<compile_context>
chip_gen: v6e
topology: v6e:2x2x1
jax: 0.10.0
libtpu: 0.0.40
codegen_flags: <defaults>
</compile_context>

<pallas_src>
import functools

import jax
import jax.numpy as jnp
import numpy as np
from jax import lax
from jax.experimental import pallas as pl
from jax.experimental.pallas import tpu as pltpu


def _round_up(x, m):
    return (x + m - 1) // m * m


def _basic_block_kernel(x_ref, w1_ref, b1_ref, w2_ref, b2_ref, out_ref,
                        xpad_s, mid_s, acc_s, *, H, W):
    """Fused conv1+bn1+relu -> conv2+bn2+residual+relu for one image.

    x_ref  : (1, H, W, Cp)   bf16   channel-padded NHWC input (residual src)
    w1_ref : (9, Cp, Cp)     bf16   conv1 weights (BN1 folded), tap-major
    b1_ref : (1, Cp)         f32    folded BN1 bias
    w2_ref : (9, Cp, Cp)     bf16   conv2 weights (BN2 folded), tap-major
    b2_ref : (1, Cp)         f32    folded BN2 bias
    out_ref: (1, H, W, Cp)   f32
    xpad_s : (H+2, Wp, Cp)   f32    spatially padded input scratch
    mid_s  : (H+2, Wp, Cp)   f32    spatially padded intermediate scratch
    acc_s  : (H*W, Cp)       f32    matmul accumulator scratch
    """
    Cp = x_ref.shape[-1]
    Wp = xpad_s.shape[1]
    f32 = jnp.float32

    # --- zero ONLY the 1-pixel halo strips (every step: megacore-safe). ----
    zrow = jnp.zeros((1, Wp, Cp), f32)
    zcol = jnp.zeros((H + 2, 1, Cp), f32)
    for s in (xpad_s, mid_s):
        s[0:1, :, :] = zrow                 # top halo row
        s[H + 1:H + 2, :, :] = zrow         # bottom halo row
        s[:, 0:1, :] = zcol                 # left halo column
        s[:, W + 1:W + 2, :] = zcol         # right halo column
    # Columns >= W+2 (alignment padding) are never read by the taps.

    # --- place input into the spatially padded scratch (interior only). ----
    xpad_s[1:H + 1, 1:W + 1, :] = x_ref[0].astype(f32)

    def conv3x3(src_s, w_ref):
        # 3x3 conv as 9 accumulating (H*W, Cp) @ (Cp, Cp) MXU matmuls with
        # bf16 operands and f32 accumulation (no im2col patch buffer).
        for k in range(9):
            kh, kw = divmod(k, 3)
            tap = src_s[kh:kh + H, kw:kw + W, :].reshape(H * W, Cp)
            part = jnp.dot(tap.astype(jnp.bfloat16), w_ref[k],
                           preferred_element_type=f32)
            if k == 0:
                acc_s[...] = part
            else:
                acc_s[...] += part

    # --- stage 1: conv1 + folded-bn1 + relu, kept only in VMEM. ------------
    conv3x3(xpad_s, w1_ref)
    y1 = jnp.maximum(acc_s[...] + b1_ref[0], 0.0)          # (H*W, Cp) f32
    mid_s[1:H + 1, 1:W + 1, :] = y1.reshape(H, W, Cp)

    # --- stage 2: conv2 + folded-bn2 + residual + relu. ---------------------
    conv3x3(mid_s, w2_ref)
    y2 = (acc_s[...] + b2_ref[0]).reshape(H, W, Cp)
    y2 = y2 + x_ref[0].astype(f32)          # residual re-read (short live range)
    out_ref[0] = jnp.maximum(y2, 0.0).astype(out_ref.dtype)


def _fold_bn_into_conv(w_oihw, gamma, beta, mean, var, eps):
    """Fold inference BatchNorm into the preceding conv: returns (w', bias)."""
    s = gamma / jnp.sqrt(var + eps)                    # (Cout,)
    bias = beta - mean * s                             # (Cout,)
    w_folded = w_oihw * s[:, None, None, None]         # scale per out-channel
    return w_folded, bias


def _pack_conv_weight(w_oihw, cin_p, cout_p):
    """torch (Cout, Cin, 3, 3) -> (9, cin_p, cout_p), tap-major (kh*3+kw),
    channel dims zero-padded to lane-dense sizes."""
    w = jnp.transpose(w_oihw, (2, 3, 1, 0))            # (kh, kw, Cin, Cout)
    kh, kw, cin, cout = w.shape
    w = jnp.pad(w, ((0, 0), (0, 0), (0, cin_p - cin), (0, cout_p - cout)))
    return w.reshape(kh * kw, cin_p, cout_p)


def basic_block_forward(x_nchw, params, eps=1e-5):
    """Pallas implementation of BasicBlock.forward (stride=1, downsample=None)."""
    N, C, H, W = x_nchw.shape
    Cp = _round_up(C, 128)          # lane-dense channels (MXU N-fill note:
    Wp = _round_up(W + 2, 8)        # accepted FLOP padding for small C layers)

    # NCHW -> NHWC, pad channels, bf16 operands (halved HBM bytes, bf16 MXU).
    x = jnp.transpose(x_nchw, (0, 2, 3, 1))
    x = jnp.pad(x, ((0, 0), (0, 0), (0, 0), (0, Cp - C))).astype(jnp.bfloat16)

    w1f, b1 = _fold_bn_into_conv(params["w1"], params["bn1_gamma"],
                                 params["bn1_beta"], params["bn1_mean"],
                                 params["bn1_var"], eps)
    w2f, b2 = _fold_bn_into_conv(params["w2"], params["bn2_gamma"],
                                 params["bn2_beta"], params["bn2_mean"],
                                 params["bn2_var"], eps)
    w1p = _pack_conv_weight(w1f, Cp, Cp).astype(jnp.bfloat16)   # (9, Cp, Cp)
    w2p = _pack_conv_weight(w2f, Cp, Cp).astype(jnp.bfloat16)
    b1p = jnp.pad(b1, (0, Cp - C)).reshape(1, Cp).astype(jnp.float32)
    b2p = jnp.pad(b2, (0, Cp - C)).reshape(1, Cp).astype(jnp.float32)

    kernel = functools.partial(_basic_block_kernel, H=H, W=W)

    # Weight/bias blocks never change across the grid -> single-buffer them.
    def _const_spec(shape):
        idx = lambda n, _nd=len(shape): (0,) * _nd
        try:
            return pl.BlockSpec(shape, idx, pipeline_mode=pl.Buffered(1))
        except Exception:                      # older jax: no pipeline_mode
            return pl.BlockSpec(shape, idx)

    # VMEM budget: double-buffered x/out blocks, single-buffered weights,
    # plus scratches; 2x headroom, clamped below v7x's 64 MiB physical VMEM.
    need = (2 * H * W * Cp * 2            # x block (bf16), 2 buffers
            + 2 * H * W * Cp * 4          # out block (f32), 2 buffers
            + 2 * 9 * Cp * Cp * 2         # w1p + w2p (bf16), single-buffered
            + 2 * 2 * Cp * 4              # biases
            + 2 * (H + 2) * Wp * Cp * 4   # xpad + mid scratch (f32)
            + H * W * Cp * 4)             # accumulator scratch (f32)
    vmem_limit = int(min(max(2 * need, 16 * 2**20), 48 * 2**20))

    out = pl.pallas_call(
        kernel,
        out_shape=jax.ShapeDtypeStruct((N, H, W, Cp), jnp.float32),
        grid_spec=pltpu.PrefetchScalarGridSpec(
            num_scalar_prefetch=0,
            grid=(N,),
            in_specs=[
                pl.BlockSpec((1, H, W, Cp), lambda n: (n, 0, 0, 0)),
                _const_spec((9, Cp, Cp)),
                _const_spec((1, Cp)),
                _const_spec((9, Cp, Cp)),
                _const_spec((1, Cp)),
            ],
            out_specs=pl.BlockSpec((1, H, W, Cp), lambda n: (n, 0, 0, 0)),
            scratch_shapes=[
                pltpu.VMEM((H + 2, Wp, Cp), jnp.float32),   # xpad
                pltpu.VMEM((H + 2, Wp, Cp), jnp.float32),   # mid
                pltpu.VMEM((H * W, Cp), jnp.float32),       # accumulator
            ],
        ),
        compiler_params=pltpu.CompilerParams(
            dimension_semantics=("parallel",),
            vmem_limit_bytes=vmem_limit),
    )(x, w1p, b1p, w2p, b2p)

    out = out[..., :C]                                   # drop channel padding
    return jnp.transpose(out, (0, 3, 1, 2))              # NHWC -> NCHW


# ----------------------------- references ----------------------------------

def _conv_nchw(x, w, precision=lax.Precision.HIGHEST):
    return lax.conv_general_dilated(
        x, w, window_strides=(1, 1), padding=((1, 1), (1, 1)),
        dimension_numbers=("NCHW", "OIHW", "NCHW"), precision=precision)


def basic_block_reference(x_nchw, params, eps=1e-5):
    """Pure-JAX f32 reference with the exact module semantics."""
    def bn(x, g, b, m, v):
        return (x - m[None, :, None, None]) / jnp.sqrt(v[None, :, None, None] + eps) \
            * g[None, :, None, None] + b[None, :, None, None]

    out = _conv_nchw(x_nchw, params["w1"])
    out = jnp.maximum(bn(out, params["bn1_gamma"], params["bn1_beta"],
                         params["bn1_mean"], params["bn1_var"]), 0.0)
    out = _conv_nchw(out, params["w2"])
    out = bn(out, params["bn2_gamma"], params["bn2_beta"],
             params["bn2_mean"], params["bn2_var"])
    return jnp.maximum(out + x_nchw, 0.0)


def basic_block_reference_bf16ops(x_nchw, params, eps=1e-5):
    """Reference that mimics the kernel's numerics: BN folded into the conv,
    conv *operands* rounded to bf16 (f32 accumulation), epilogue in f32."""
    r = lambda a: a.astype(jnp.bfloat16).astype(jnp.float32)
    w1f, b1 = _fold_bn_into_conv(params["w1"], params["bn1_gamma"],
                                 params["bn1_beta"], params["bn1_mean"],
                                 params["bn1_var"], eps)
    w2f, b2 = _fold_bn_into_conv(params["w2"], params["bn2_gamma"],
                                 params["bn2_beta"], params["bn2_mean"],
                                 params["bn2_var"], eps)
    out = jnp.maximum(_conv_nchw(r(x_nchw), r(w1f)) + b1[None, :, None, None], 0.0)
    out = _conv_nchw(r(out), r(w2f)) + b2[None, :, None, None] + r(x_nchw)
    return jnp.maximum(out, 0.0)


def make_params(key, inplanes, planes):
    ks = jax.random.split(key, 8)
    fan_in = inplanes * 9
    return {
        "w1": jax.random.normal(ks[0], (planes, inplanes, 3, 3), jnp.float32)
              / np.sqrt(fan_in),
        "w2": jax.random.normal(ks[1], (planes, planes, 3, 3), jnp.float32)
              / np.sqrt(planes * 9),
        "bn1_gamma": 1.0 + 0.1 * jax.random.normal(ks[2], (planes,), jnp.float32),
        "bn1_beta": 0.1 * jax.random.normal(ks[3], (planes,), jnp.float32),
        "bn1_mean": 0.1 * jax.random.normal(ks[4], (planes,), jnp.float32),
        "bn1_var": jnp.abs(jax.random.normal(ks[5], (planes,), jnp.float32)) + 0.5,
        "bn2_gamma": 1.0 + 0.1 * jax.random.normal(ks[6], (planes,), jnp.float32),
        "bn2_beta": 0.1 * jax.random.normal(ks[7], (planes,), jnp.float32),
        "bn2_mean": jnp.zeros((planes,), jnp.float32),
        "bn2_var": jnp.ones((planes,), jnp.float32),
    }


if __name__ == "__main__":
    key = jax.random.PRNGKey(0)
    kx, kp = jax.random.split(key)

    N, C, H, W = 2, 4, 16, 16           # inplanes = planes = 4
    x = jax.random.normal(kx, (N, C, H, W), jnp.float32)
    params = make_params(kp, C, C)

    out = jax.jit(basic_block_forward)(x, params)
    out = jax.block_until_ready(out)

    # Strict structural check against a reference that uses the same bf16
    # operand rounding as the kernel (BN folded, bf16 conv operands, f32 acc).
    ref_strict = basic_block_reference_bf16ops(x, params)
    np.testing.assert_allclose(np.asarray(out), np.asarray(ref_strict),
                               rtol=1e-4, atol=1e-4)

    # Loose check against the exact f32 module semantics (documents the bf16
    # quantization error introduced by feeding the MXU bf16 operands).
    ref_f32 = basic_block_reference(x, params)
    np.testing.assert_allclose(np.asarray(out), np.asarray(ref_f32),
                               rtol=1e-1, atol=1e-1)

    print("KERNEL_OK")
</pallas_src>

<mosaic_0001>
module attributes {stable_mosaic.version = 11 : i64} {
  func.func @_basic_block_kernel(%arg0: i32, %arg1: memref<1x16x16x128xbf16, #tpu.memory_space<vmem>>, %arg2: memref<9x128x128xbf16, #tpu.memory_space<vmem>>, %arg3: memref<1x128xf32, #tpu.memory_space<vmem>>, %arg4: memref<9x128x128xbf16, #tpu.memory_space<vmem>>, %arg5: memref<1x128xf32, #tpu.memory_space<vmem>>, %arg6: memref<1x16x16x128xf32, #tpu.memory_space<vmem>>, %arg7: memref<18x24x128xf32, #tpu.memory_space<vmem>>, %arg8: memref<18x24x128xf32, #tpu.memory_space<vmem>>, %arg9: memref<256x128xf32, #tpu.memory_space<vmem>>) attributes {dimension_semantics = [#tpu.dimension_semantics<parallel>], iteration_bounds = array<i64: 2>, scalar_prefetch = 0 : i64, scratch_operands = 3 : i64, tpu.core_type = #tpu.core_type<tc>, window_params = [{transform_indices = @transform_0, window_bounds = array<i64: 1, 16, 16, 128>}, {pipeline_mode = #tpu.pipeline_mode<synchronous>, transform_indices = @transform_1, window_bounds = array<i64: 9, 128, 128>}, {pipeline_mode = #tpu.pipeline_mode<synchronous>, transform_indices = @transform_2, window_bounds = array<i64: 1, 128>}, {pipeline_mode = #tpu.pipeline_mode<synchronous>, transform_indices = @transform_3, window_bounds = array<i64: 9, 128, 128>}, {pipeline_mode = #tpu.pipeline_mode<synchronous>, transform_indices = @transform_4, window_bounds = array<i64: 1, 128>}, {transform_indices = @transform_5, window_bounds = array<i64: 1, 16, 16, 128>}]} {
    %cst = arith.constant 0.000000e+00 : f32
    %0 = vector.broadcast %cst : f32 to vector<1x24x128xf32>
    %cst_0 = arith.constant 0.000000e+00 : f32
    %1 = vector.broadcast %cst_0 : f32 to vector<18x1x128xf32>
    %c0 = arith.constant 0 : index
    %c0_1 = arith.constant 0 : index
    %c0_2 = arith.constant 0 : index
    %2 = vector.load %arg7[%c0, %c0_1, %c0_2] : memref<18x24x128xf32, #tpu.memory_space<vmem>>, vector<1x24x128xf32>
    tpu.vector_store %arg7[%c0, %c0_1, %c0_2], %0 {strides = array<i32>} : memref<18x24x128xf32, #tpu.memory_space<vmem>>, vector<1x24x128xf32>,
    %c17 = arith.constant 17 : index
    %c0_3 = arith.constant 0 : index
    %c0_4 = arith.constant 0 : index
    %3 = vector.load %arg7[%c17, %c0_3, %c0_4] : memref<18x24x128xf32, #tpu.memory_space<vmem>>, vector<1x24x128xf32>
    tpu.vector_store %arg7[%c17, %c0_3, %c0_4], %0 {strides = array<i32>} : memref<18x24x128xf32, #tpu.memory_space<vmem>>, vector<1x24x128xf32>,
    %c0_5 = arith.constant 0 : index
    %c0_6 = arith.constant 0 : index
    %c0_7 = arith.constant 0 : index
    %4 = vector.load %arg7[%c0_5, %c0_6, %c0_7] : memref<18x24x128xf32, #tpu.memory_space<vmem>>, vector<18x1x128xf32>
    tpu.vector_store %arg7[%c0_5, %c0_6, %c0_7], %1 {strides = array<i32>} : memref<18x24x128xf32, #tpu.memory_space<vmem>>, vector<18x1x128xf32>,
    %c0_8 = arith.constant 0 : index
    %c17_9 = arith.constant 17 : index
    %c0_10 = arith.constant 0 : index
    %5 = vector.load %arg7[%c0_8, %c17_9, %c0_10] : memref<18x24x128xf32, #tpu.memory_space<vmem>>, vector<18x1x128xf32>
    tpu.vector_store %arg7[%c0_8, %c17_9, %c0_10], %1 {strides = array<i32>} : memref<18x24x128xf32, #tpu.memory_space<vmem>>, vector<18x1x128xf32>,
    %c0_11 = arith.constant 0 : index
    %c0_12 = arith.constant 0 : index
    %c0_13 = arith.constant 0 : index
    %6 = vector.load %arg8[%c0_11, %c0_12, %c0_13] : memref<18x24x128xf32, #tpu.memory_space<vmem>>, vector<1x24x128xf32>
    tpu.vector_store %arg8[%c0_11, %c0_12, %c0_13], %0 {strides = array<i32>} : memref<18x24x128xf32, #tpu.memory_space<vmem>>, vector<1x24x128xf32>,
    %c17_14 = arith.constant 17 : index
    %c0_15 = arith.constant 0 : index
    %c0_16 = arith.constant 0 : index
    %7 = vector.load %arg8[%c17_14, %c0_15, %c0_16] : memref<18x24x128xf32, #tpu.memory_space<vmem>>, vector<1x24x128xf32>
    tpu.vector_store %arg8[%c17_14, %c0_15, %c0_16], %0 {strides = array<i32>} : memref<18x24x128xf32, #tpu.memory_space<vmem>>, vector<1x24x128xf32>,
    %c0_17 = arith.constant 0 : index
    %c0_18 = arith.constant 0 : index
    %c0_19 = arith.constant 0 : index
    %8 = vector.load %arg8[%c0_17, %c0_18, %c0_19] : memref<18x24x128xf32, #tpu.memory_space<vmem>>, vector<18x1x128xf32>
    tpu.vector_store %arg8[%c0_17, %c0_18, %c0_19], %1 {strides = array<i32>} : memref<18x24x128xf32, #tpu.memory_space<vmem>>, vector<18x1x128xf32>,
    %c0_20 = arith.constant 0 : index
    %c17_21 = arith.constant 17 : index
    %c0_22 = arith.constant 0 : index
    %9 = vector.load %arg8[%c0_20, %c17_21, %c0_22] : memref<18x24x128xf32, #tpu.memory_space<vmem>>, vector<18x1x128xf32>
    tpu.vector_store %arg8[%c0_20, %c17_21, %c0_22], %1 {strides = array<i32>} : memref<18x24x128xf32, #tpu.memory_space<vmem>>, vector<18x1x128xf32>,
    %c0_23 = arith.constant 0 : index
    %c0_24 = arith.constant 0 : index
    %c0_25 = arith.constant 0 : index
    %c0_26 = arith.constant 0 : index
    %10 = vector.load %arg1[%c0_23, %c0_24, %c0_25, %c0_26] : memref<1x16x16x128xbf16, #tpu.memory_space<vmem>>, vector<1x16x16x128xbf16>
    %11 = vector.shape_cast %10 : vector<1x16x16x128xbf16> to vector<16x16x128xbf16>
    %12 = arith.extf %11 : vector<16x16x128xbf16> to vector<16x16x128xf32>
    %c1 = arith.constant 1 : index
    %c1_27 = arith.constant 1 : index
    %c0_28 = arith.constant 0 : index
    %13 = vector.load %arg7[%c1, %c1_27, %c0_28] : memref<18x24x128xf32, #tpu.memory_space<vmem>>, vector<16x16x128xf32>
    tpu.vector_store %arg7[%c1, %c1_27, %c0_28], %12 {strides = array<i32>} : memref<18x24x128xf32, #tpu.memory_space<vmem>>, vector<16x16x128xf32>,
    %c0_29 = arith.constant 0 : index
    %c0_30 = arith.constant 0 : index
    %c0_31 = arith.constant 0 : index
    %14 = vector.load %arg7[%c0_29, %c0_30, %c0_31] : memref<18x24x128xf32, #tpu.memory_space<vmem>>, vector<16x16x128xf32>
    %15 = vector.shape_cast %14 : vector<16x16x128xf32> to vector<256x128xf32>
    %16 = arith.truncf %15 : vector<256x128xf32> to vector<256x128xbf16>
    %c0_32 = arith.constant 0 : index
    %c0_33 = arith.constant 0 : index
    %c0_34 = arith.constant 0 : index
    %17 = vector.load %arg2[%c0_32, %c0_33, %c0_34] : memref<9x128x128xbf16, #tpu.memory_space<vmem>>, vector<1x128x128xbf16>
    %18 = vector.shape_cast %17 : vector<1x128x128xbf16> to vector<128x128xbf16>
    %cst_35 = arith.constant dense<0.000000e+00> : vector<256x128xf32>
    %19 = tpu.matmul %16, %18, %cst_35 {dimension_numbers = #tpu.dot_dimension_numbers<[1], [0], [0], [1], [0, 0, 1, 1], [], []>} : vector<256x128xbf16>, vector<128x128xbf16>, vector<256x128xf32> -> vector<256x128xf32>
    %c0_36 = arith.constant 0 : index
    %c0_37 = arith.constant 0 : index
    %20 = vector.load %arg9[%c0_36, %c0_37] : memref<256x128xf32, #tpu.memory_space<vmem>>, vector<256x128xf32>
    tpu.vector_store %arg9[%c0_36, %c0_37], %19 {strides = array<i32>} : memref<256x128xf32, #tpu.memory_space<vmem>>, vector<256x128xf32>,
    %c0_38 = arith.constant 0 : index
    %c1_39 = arith.constant 1 : index
    %c0_40 = arith.constant 0 : index
    %21 = vector.load %arg7[%c0_38, %c1_39, %c0_40] : memref<18x24x128xf32, #tpu.memory_space<vmem>>, vector<16x16x128xf32>
    %22 = vector.shape_cast %21 : vector<16x16x128xf32> to vector<256x128xf32>
    %23 = arith.truncf %22 : vector<256x128xf32> to vector<256x128xbf16>
    %c1_41 = arith.constant 1 : index
    %c0_42 = arith.constant 0 : index
    %c0_43 = arith.constant 0 : index
    %24 = vector.load %arg2[%c1_41, %c0_42, %c0_43] : memref<9x128x128xbf16, #tpu.memory_space<vmem>>, vector<1x128x128xbf16>
    %25 = vector.shape_cast %24 : vector<1x128x128xbf16> to vector<128x128xbf16>
    %cst_44 = arith.constant dense<0.000000e+00> : vector<256x128xf32>
    %26 = tpu.matmul %23, %25, %cst_44 {dimension_numbers = #tpu.dot_dimension_numbers<[1], [0], [0], [1], [0, 0, 1, 1], [], []>} : vector<256x128xbf16>, vector<128x128xbf16>, vector<256x128xf32> -> vector<256x128xf32>
    %c0_45 = arith.constant 0 : index
    %c0_46 = arith.constant 0 : index
    %27 = vector.load %arg9[%c0_45, %c0_46] : memref<256x128xf32, #tpu.memory_space<vmem>>, vector<256x128xf32>
    %28 = arith.addf %27, %26 : vector<256x128xf32>
    %c0_47 = arith.constant 0 : index
    %c0_48 = arith.constant 0 : index
    %29 = vector.load %arg9[%c0_47, %c0_48] : memref<256x128xf32, #tpu.memory_space<vmem>>, vector<256x128xf32>
    tpu.vector_store %arg9[%c0_47, %c0_48], %28 {strides = array<i32>} : memref<256x128xf32, #tpu.memory_space<vmem>>, vector<256x128xf32>,
    %c0_49 = arith.constant 0 : index
    %c2 = arith.constant 2 : index
    %c0_50 = arith.constant 0 : index
    %30 = vector.load %arg7[%c0_49, %c2, %c0_50] : memref<18x24x128xf32, #tpu.memory_space<vmem>>, vector<16x16x128xf32>
    %31 = vector.shape_cast %30 : vector<16x16x128xf32> to vector<256x128xf32>
    %32 = arith.truncf %31 : vector<256x128xf32> to vector<256x128xbf16>
    %c2_51 = arith.constant 2 : index
    %c0_52 = arith.constant 0 : index
    %c0_53 = arith.constant 0 : index
    %33 = vector.load %arg2[%c2_51, %c0_52, %c0_53] : memref<9x128x128xbf16, #tpu.memory_space<vmem>>, vector<1x128x128xbf16>
    %34 = vector.shape_cast %33 : vector<1x128x128xbf16> to vector<128x128xbf16>
    %cst_54 = arith.constant dense<0.000000e+00> : vector<256x128xf32>
    %35 = tpu.matmul %32, %34, %cst_54 {dimension_numbers = #tpu.dot_dimension_numbers<[1], [0], [0], [1], [0, 0, 1, 1], [], []>} : vector<256x128xbf16>, vector<128x128xbf16>, vector<256x128xf32> -> vector<256x128xf32>
    %c0_55 = arith.constant 0 : index
    %c0_56 = arith.constant 0 : index
    %36 = vector.load %arg9[%c0_55, %c0_56] : memref<256x128xf32, #tpu.memory_space<vmem>>, vector<256x128xf32>
    %37 = arith.addf %36, %35 : vector<256x128xf32>
    %c0_57 = arith.constant 0 : index
    %c0_58 = arith.constant 0 : index
    %38 = vector.load %arg9[%c0_57, %c0_58] : memref<256x128xf32, #tpu.memory_space<vmem>>, vector<256x128xf32>
    tpu.vector_store %arg9[%c0_57, %c0_58], %37 {strides = array<i32>} : memref<256x128xf32, #tpu.memory_space<vmem>>, vector<256x128xf32>,
    %c1_59 = arith.constant 1 : index
    %c0_60 = arith.constant 0 : index
    %c0_61 = arith.constant 0 : index
    %39 = vector.load %arg7[%c1_59, %c0_60, %c0_61] : memref<18x24x128xf32, #tpu.memory_space<vmem>>, vector<16x16x128xf32>
    %40 = vector.shape_cast %39 : vector<16x16x128xf32> to vector<256x128xf32>
    %41 = arith.truncf %40 : vector<256x128xf32> to vector<256x128xbf16>
    %c3 = arith.constant 3 : index
    %c0_62 = arith.constant 0 : index
    %c0_63 = arith.constant 0 : index
    %42 = vector.load %arg2[%c3, %c0_62, %c0_63] : memref<9x128x128xbf16, #tpu.memory_space<vmem>>, vector<1x128x128xbf16>
    %43 = vector.shape_cast %42 : vector<1x128x128xbf16> to vector<128x128xbf16>
    %cst_64 = arith.constant dense<0.000000e+00> : vector<256x128xf32>
    %44 = tpu.matmul %41, %43, %cst_64 {dimension_numbers = #tpu.dot_dimension_numbers<[1], [0], [0], [1], [0, 0, 1, 1], [], []>} : vector<256x128xbf16>, vector<128x128xbf16>, vector<256x128xf32> -> vector<256x128xf32>
    %c0_65 = arith.constant 0 : index
    %c0_66 = arith.constant 0 : index
    %45 = vector.load %arg9[%c0_65, %c0_66] : memref<256x128xf32, #tpu.memory_space<vmem>>, vector<256x128xf32>
    %46 = arith.addf %45, %44 : vector<256x128xf32>
    %c0_67 = arith.constant 0 : index
    %c0_68 = arith.constant 0 : index
    %47 = vector.load %arg9[%c0_67, %c0_68] : memref<256x128xf32, #tpu.memory_space<vmem>>, vector<256x128xf32>
    tpu.vector_store %arg9[%c0_67, %c0_68], %46 {strides = array<i32>} : memref<256x128xf32, #tpu.memory_space<vmem>>, vector<256x128xf32>,
    %c1_69 = arith.constant 1 : index
    %c1_70 = arith.constant 1 : index
    %c0_71 = arith.constant 0 : index
    %48 = vector.load %arg7[%c1_69, %c1_70, %c0_71] : memref<18x24x128xf32, #tpu.memory_space<vmem>>, vector<16x16x128xf32>
    %49 = vector.shape_cast %48 : vector<16x16x128xf32> to vector<256x128xf32>
    %50 = arith.truncf %49 : vector<256x128xf32> to vector<256x128xbf16>
    %c4 = arith.constant 4 : index
    %c0_72 = arith.constant 0 : index
    %c0_73 = arith.constant 0 : index
    %51 = vector.load %arg2[%c4, %c0_72, %c0_73] : memref<9x128x128xbf16, #tpu.memory_space<vmem>>, vector<1x128x128xbf16>
    %52 = vector.shape_cast %51 : vector<1x128x128xbf16> to vector<128x128xbf16>
    %cst_74 = arith.constant dense<0.000000e+00> : vector<256x128xf32>
    %53 = tpu.matmul %50, %52, %cst_74 {dimension_numbers = #tpu.dot_dimension_numbers<[1], [0], [0], [1], [0, 0, 1, 1], [], []>} : vector<256x128xbf16>, vector<128x128xbf16>, vector<256x128xf32> -> vector<256x128xf32>
    %c0_75 = arith.constant 0 : index
    %c0_76 = arith.constant 0 : index
    %54 = vector.load %arg9[%c0_75, %c0_76] : memref<256x128xf32, #tpu.memory_space<vmem>>, vector<256x128xf32>
    %55 = arith.addf %54, %53 : vector<256x128xf32>
    %c0_77 = arith.constant 0 : index
    %c0_78 = arith.constant 0 : index
    %56 = vector.load %arg9[%c0_77, %c0_78] : memref<256x128xf32, #tpu.memory_space<vmem>>, vector<256x128xf32>
    tpu.vector_store %arg9[%c0_77, %c0_78], %55 {strides = array<i32>} : memref<256x128xf32, #tpu.memory_space<vmem>>, vector<256x128xf32>,
    %c1_79 = arith.constant 1 : index
    %c2_80 = arith.constant 2 : index
    %c0_81 = arith.constant 0 : index
    %57 = vector.load %arg7[%c1_79, %c2_80, %c0_81] : memref<18x24x128xf32, #tpu.memory_space<vmem>>, vector<16x16x128xf32>
    %58 = vector.shape_cast %57 : vector<16x16x128xf32> to vector<256x128xf32>
    %59 = arith.truncf %58 : vector<256x128xf32> to vector<256x128xbf16>
    %c5 = arith.constant 5 : index
    %c0_82 = arith.constant 0 : index
    %c0_83 = arith.constant 0 : index
    %60 = vector.load %arg2[%c5, %c0_82, %c0_83] : memref<9x128x128xbf16, #tpu.memory_space<vmem>>, vector<1x128x128xbf16>
    %61 = vector.shape_cast %60 : vector<1x128x128xbf16> to vector<128x128xbf16>
    %cst_84 = arith.constant dense<0.000000e+00> : vector<256x128xf32>
    %62 = tpu.matmul %59, %61, %cst_84 {dimension_numbers = #tpu.dot_dimension_numbers<[1], [0], [0], [1], [0, 0, 1, 1], [], []>} : vector<256x128xbf16>, vector<128x128xbf16>, vector<256x128xf32> -> vector<256x128xf32>
    %c0_85 = arith.constant 0 : index
    %c0_86 = arith.constant 0 : index
    %63 = vector.load %arg9[%c0_85, %c0_86] : memref<256x128xf32, #tpu.memory_space<vmem>>, vector<256x128xf32>
    %64 = arith.addf %63, %62 : vector<256x128xf32>
    %c0_87 = arith.constant 0 : index
    %c0_88 = arith.constant 0 : index
    %65 = vector.load %arg9[%c0_87, %c0_88] : memref<256x128xf32, #tpu.memory_space<vmem>>, vector<256x128xf32>
    tpu.vector_store %arg9[%c0_87, %c0_88], %64 {strides = array<i32>} : memref<256x128xf32, #tpu.memory_space<vmem>>, vector<256x128xf32>,
    %c2_89 = arith.constant 2 : index
    %c0_90 = arith.constant 0 : index
    %c0_91 = arith.constant 0 : index
    %66 = vector.load %arg7[%c2_89, %c0_90, %c0_91] : memref<18x24x128xf32, #tpu.memory_space<vmem>>, vector<16x16x128xf32>
    %67 = vector.shape_cast %66 : vector<16x16x128xf32> to vector<256x128xf32>
    %68 = arith.truncf %67 : vector<256x128xf32> to vector<256x128xbf16>
    %c6 = arith.constant 6 : index
    %c0_92 = arith.constant 0 : index
    %c0_93 = arith.constant 0 : index
    %69 = vector.load %arg2[%c6, %c0_92, %c0_93] : memref<9x128x128xbf16, #tpu.memory_space<vmem>>, vector<1x128x128xbf16>
    %70 = vector.shape_cast %69 : vector<1x128x128xbf16> to vector<128x128xbf16>
    %cst_94 = arith.constant dense<0.000000e+00> : vector<256x128xf32>
    %71 = tpu.matmul %68, %70, %cst_94 {dimension_numbers = #tpu.dot_dimension_numbers<[1], [0], [0], [1], [0, 0, 1, 1], [], []>} : vector<256x128xbf16>, vector<128x128xbf16>, vector<256x128xf32> -> vector<256x128xf32>
    %c0_95 = arith.constant 0 : index
    %c0_96 = arith.constant 0 : index
    %72 = vector.load %arg9[%c0_95, %c0_96] : memref<256x128xf32, #tpu.memory_space<vmem>>, vector<256x128xf32>
    %73 = arith.addf %72, %71 : vector<256x128xf32>
    %c0_97 = arith.constant 0 : index
    %c0_98 = arith.constant 0 : index
    %74 = vector.load %arg9[%c0_97, %c0_98] : memref<256x128xf32, #tpu.memory_space<vmem>>, vector<256x128xf32>
    tpu.vector_store %arg9[%c0_97, %c0_98], %73 {strides = array<i32>} : memref<256x128xf32, #tpu.memory_space<vmem>>, vector<256x128xf32>,
    %c2_99 = arith.constant 2 : index
    %c1_100 = arith.constant 1 : index
    %c0_101 = arith.constant 0 : index
    %75 = vector.load %arg7[%c2_99, %c1_100, %c0_101] : memref<18x24x128xf32, #tpu.memory_space<vmem>>, vector<16x16x128xf32>
    %76 = vector.shape_cast %75 : vector<16x16x128xf32> to vector<256x128xf32>
    %77 = arith.truncf %76 : vector<256x128xf32> to vector<256x128xbf16>
    %c7 = arith.constant 7 : index
    %c0_102 = arith.constant 0 : index
    %c0_103 = arith.constant 0 : index
    %78 = vector.load %arg2[%c7, %c0_102, %c0_103] : memref<9x128x128xbf16, #tpu.memory_space<vmem>>, vector<1x128x128xbf16>
    %79 = vector.shape_cast %78 : vector<1x128x128xbf16> to vector<128x128xbf16>
    %cst_104 = arith.constant dense<0.000000e+00> : vector<256x128xf32>
    %80 = tpu.matmul %77, %79, %cst_104 {dimension_numbers = #tpu.dot_dimension_numbers<[1], [0], [0], [1], [0, 0, 1, 1], [], []>} : vector<256x128xbf16>, vector<128x128xbf16>, vector<256x128xf32> -> vector<256x128xf32>
    %c0_105 = arith.constant 0 : index
    %c0_106 = arith.constant 0 : index
    %81 = vector.load %arg9[%c0_105, %c0_106] : memref<256x128xf32, #tpu.memory_space<vmem>>, vector<256x128xf32>
    %82 = arith.addf %81, %80 : vector<256x128xf32>
    %c0_107 = arith.constant 0 : index
    %c0_108 = arith.constant 0 : index
    %83 = vector.load %arg9[%c0_107, %c0_108] : memref<256x128xf32, #tpu.memory_space<vmem>>, vector<256x128xf32>
    tpu.vector_store %arg9[%c0_107, %c0_108], %82 {strides = array<i32>} : memref<256x128xf32, #tpu.memory_space<vmem>>, vector<256x128xf32>,
    %c2_109 = arith.constant 2 : index
    %c2_110 = arith.constant 2 : index
    %c0_111 = arith.constant 0 : index
    %84 = vector.load %arg7[%c2_109, %c2_110, %c0_111] : memref<18x24x128xf32, #tpu.memory_space<vmem>>, vector<16x16x128xf32>
    %85 = vector.shape_cast %84 : vector<16x16x128xf32> to vector<256x128xf32>
    %86 = arith.truncf %85 : vector<256x128xf32> to vector<256x128xbf16>
    %c8 = arith.constant 8 : index
    %c0_112 = arith.constant 0 : index
    %c0_113 = arith.constant 0 : index
    %87 = vector.load %arg2[%c8, %c0_112, %c0_113] : memref<9x128x128xbf16, #tpu.memory_space<vmem>>, vector<1x128x128xbf16>
    %88 = vector.shape_cast %87 : vector<1x128x128xbf16> to vector<128x128xbf16>
    %cst_114 = arith.constant dense<0.000000e+00> : vector<256x128xf32>
    %89 = tpu.matmul %86, %88, %cst_114 {dimension_numbers = #tpu.dot_dimension_numbers<[1], [0], [0], [1], [0, 0, 1, 1], [], []>} : vector<256x128xbf16>, vector<128x128xbf16>, vector<256x128xf32> -> vector<256x128xf32>
    %c0_115 = arith.constant 0 : index
    %c0_116 = arith.constant 0 : index
    %90 = vector.load %arg9[%c0_115, %c0_116] : memref<256x128xf32, #tpu.memory_space<vmem>>, vector<256x128xf32>
    %91 = arith.addf %90, %89 : vector<256x128xf32>
    %c0_117 = arith.constant 0 : index
    %c0_118 = arith.constant 0 : index
    %92 = vector.load %arg9[%c0_117, %c0_118] : memref<256x128xf32, #tpu.memory_space<vmem>>, vector<256x128xf32>
    tpu.vector_store %arg9[%c0_117, %c0_118], %91 {strides = array<i32>} : memref<256x128xf32, #tpu.memory_space<vmem>>, vector<256x128xf32>,
    %c0_119 = arith.constant 0 : index
    %c0_120 = arith.constant 0 : index
    %93 = vector.load %arg9[%c0_119, %c0_120] : memref<256x128xf32, #tpu.memory_space<vmem>>, vector<256x128xf32>
    %c0_121 = arith.constant 0 : index
    %c0_122 = arith.constant 0 : index
    %94 = vector.load %arg3[%c0_121, %c0_122] : memref<1x128xf32, #tpu.memory_space<vmem>>, vector<1x128xf32>
    %95 = vector.shape_cast %94 : vector<1x128xf32> to vector<128xf32>
    %96 = vector.shape_cast %95 : vector<128xf32> to vector<1x128xf32>
    %97 = vector.broadcast %96 : vector<1x128xf32> to vector<256x128xf32>
    %98 = arith.addf %93, %97 : vector<256x128xf32>
    %cst_123 = arith.constant 0.000000e+00 : f32
    %99 = vector.broadcast %cst_123 : f32 to vector<256x128xf32>
    %100 = arith.maximumf %98, %99 : vector<256x128xf32>
    %101 = vector.shape_cast %100 : vector<256x128xf32> to vector<16x16x128xf32>
    %c1_124 = arith.constant 1 : index
    %c1_125 = arith.constant 1 : index
    %c0_126 = arith.constant 0 : index
    %102 = vector.load %arg8[%c1_124, %c1_125, %c0_126] : memref<18x24x128xf32, #tpu.memory_space<vmem>>, vector<16x16x128xf32>
    tpu.vector_store %arg8[%c1_124, %c1_125, %c0_126], %101 {strides = array<i32>} : memref<18x24x128xf32, #tpu.memory_space<vmem>>, vector<16x16x128xf32>,
    %c0_127 = arith.constant 0 : index
    %c0_128 = arith.constant 0 : index
    %c0_129 = arith.constant 0 : index
    %103 = vector.load %arg8[%c0_127, %c0_128, %c0_129] : memref<18x24x128xf32, #tpu.memory_space<vmem>>, vector<16x16x128xf32>
    %104 = vector.shape_cast %103 : vector<16x16x128xf32> to vector<256x128xf32>
    %105 = arith.truncf %104 : vector<256x128xf32> to vector<256x128xbf16>
    %c0_130 = arith.constant 0 : index
    %c0_131 = arith.constant 0 : index
    %c0_132 = arith.constant 0 : index
    %106 = vector.load %arg4[%c0_130, %c0_131, %c0_132] : memref<9x128x128xbf16, #tpu.memory_space<vmem>>, vector<1x128x128xbf16>
    %107 = vector.shape_cast %106 : vector<1x128x128xbf16> to vector<128x128xbf16>
    %cst_133 = arith.constant dense<0.000000e+00> : vector<256x128xf32>
    %108 = tpu.matmul %105, %107, %cst_133 {dimension_numbers = #tpu.dot_dimension_numbers<[1], [0], [0], [1], [0, 0, 1, 1], [], []>} : vector<256x128xbf16>, vector<128x128xbf16>, vector<256x128xf32> -> vector<256x128xf32>
    %c0_134 = arith.constant 0 : index
    %c0_135 = arith.constant 0 : index
    %109 = vector.load %arg9[%c0_134, %c0_135] : memref<256x128xf32, #tpu.memory_space<vmem>>, vector<256x128xf32>
    tpu.vector_store %arg9[%c0_134, %c0_135], %108 {strides = array<i32>} : memref<256x128xf32, #tpu.memory_space<vmem>>, vector<256x128xf32>,
    %c0_136 = arith.constant 0 : index
    %c1_137 = arith.constant 1 : index
    %c0_138 = arith.constant 0 : index
    %110 = vector.load %arg8[%c0_136, %c1_137, %c0_138] : memref<18x24x128xf32, #tpu.memory_space<vmem>>, vector<16x16x128xf32>
    %111 = vector.shape_cast %110 : vector<16x16x128xf32> to vector<256x128xf32>
    %112 = arith.truncf %111 : vector<256x128xf32> to vector<256x128xbf16>
    %c1_139 = arith.constant 1 : index
    %c0_140 = arith.constant 0 : index
    %c0_141 = arith.constant 0 : index
    %113 = vector.load %arg4[%c1_139, %c0_140, %c0_141] : memref<9x128x128xbf16, #tpu.memory_space<vmem>>, vector<1x128x128xbf16>
    %114 = vector.shape_cast %113 : vector<1x128x128xbf16> to vector<128x128xbf16>
    %cst_142 = arith.constant dense<0.000000e+00> : vector<256x128xf32>
    %115 = tpu.matmul %112, %114, %cst_142 {dimension_numbers = #tpu.dot_dimension_numbers<[1], [0], [0], [1], [0, 0, 1, 1], [], []>} : vector<256x128xbf16>, vector<128x128xbf16>, vector<256x128xf32> -> vector<256x128xf32>
    %c0_143 = arith.constant 0 : index
    %c0_144 = arith.constant 0 : index
    %116 = vector.load %arg9[%c0_143, %c0_144] : memref<256x128xf32, #tpu.memory_space<vmem>>, vector<256x128xf32>
    %117 = arith.addf %116, %115 : vector<256x128xf32>
    %c0_145 = arith.constant 0 : index
    %c0_146 = arith.constant 0 : index
    %118 = vector.load %arg9[%c0_145, %c0_146] : memref<256x128xf32, #tpu.memory_space<vmem>>, vector<256x128xf32>
    tpu.vector_store %arg9[%c0_145, %c0_146], %117 {strides = array<i32>} : memref<256x128xf32, #tpu.memory_space<vmem>>, vector<256x128xf32>,
    %c0_147 = arith.constant 0 : index
    %c2_148 = arith.constant 2 : index
    %c0_149 = arith.constant 0 : index
    %119 = vector.load %arg8[%c0_147, %c2_148, %c0_149] : memref<18x24x128xf32, #tpu.memory_space<vmem>>, vector<16x16x128xf32>
    %120 = vector.shape_cast %119 : vector<16x16x128xf32> to vector<256x128xf32>
    %121 = arith.truncf %120 : vector<256x128xf32> to vector<256x128xbf16>
    %c2_150 = arith.constant 2 : index
    %c0_151 = arith.constant 0 : index
    %c0_152 = arith.constant 0 : index
    %122 = vector.load %arg4[%c2_150, %c0_151, %c0_152] : memref<9x128x128xbf16, #tpu.memory_space<vmem>>, vector<1x128x128xbf16>
    %123 = vector.shape_cast %122 : vector<1x128x128xbf16> to vector<128x128xbf16>
    %cst_153 = arith.constant dense<0.000000e+00> : vector<256x128xf32>
    %124 = tpu.matmul %121, %123, %cst_153 {dimension_numbers = #tpu.dot_dimension_numbers<[1], [0], [0], [1], [0, 0, 1, 1], [], []>} : vector<256x128xbf16>, vector<128x128xbf16>, vector<256x128xf32> -> vector<256x128xf32>
    %c0_154 = arith.constant 0 : index
    %c0_155 = arith.constant 0 : index
    %125 = vector.load %arg9[%c0_154, %c0_155] : memref<256x128xf32, #tpu.memory_space<vmem>>, vector<256x128xf32>
    %126 = arith.addf %125, %124 : vector<256x128xf32>
    %c0_156 = arith.constant 0 : index
    %c0_157 = arith.constant 0 : index
    %127 = vector.load %arg9[%c0_156, %c0_157] : memref<256x128xf32, #tpu.memory_space<vmem>>, vector<256x128xf32>
    tpu.vector_store %arg9[%c0_156, %c0_157], %126 {strides = array<i32>} : memref<256x128xf32, #tpu.memory_space<vmem>>, vector<256x128xf32>,
    %c1_158 = arith.constant 1 : index
    %c0_159 = arith.constant 0 : index
    %c0_160 = arith.constant 0 : index
    %128 = vector.load %arg8[%c1_158, %c0_159, %c0_160] : memref<18x24x128xf32, #tpu.memory_space<vmem>>, vector<16x16x128xf32>
    %129 = vector.shape_cast %128 : vector<16x16x128xf32> to vector<256x128xf32>
    %130 = arith.truncf %129 : vector<256x128xf32> to vector<256x128xbf16>
    %c3_161 = arith.constant 3 : index
    %c0_162 = arith.constant 0 : index
    %c0_163 = arith.constant 0 : index
    %131 = vector.load %arg4[%c3_161, %c0_162, %c0_163] : memref<9x128x128xbf16, #tpu.memory_space<vmem>>, vector<1x128x128xbf16>
    %132 = vector.shape_cast %131 : vector<1x128x128xbf16> to vector<128x128xbf16>
    %cst_164 = arith.constant dense<0.000000e+00> : vector<256x128xf32>
    %133 = tpu.matmul %130, %132, %cst_164 {dimension_numbers = #tpu.dot_dimension_numbers<[1], [0], [0], [1], [0, 0, 1, 1], [], []>} : vector<256x128xbf16>, vector<128x128xbf16>, vector<256x128xf32> -> vector<256x128xf32>
    %c0_165 = arith.constant 0 : index
    %c0_166 = arith.constant 0 : index
    %134 = vector.load %arg9[%c0_165, %c0_166] : memref<256x128xf32, #tpu.memory_space<vmem>>, vector<256x128xf32>
    %135 = arith.addf %134, %133 : vector<256x128xf32>
    %c0_167 = arith.constant 0 : index
    %c0_168 = arith.constant 0 : index
    %136 = vector.load %arg9[%c0_167, %c0_168] : memref<256x128xf32, #tpu.memory_space<vmem>>, vector<256x128xf32>
    tpu.vector_store %arg9[%c0_167, %c0_168], %135 {strides = array<i32>} : memref<256x128xf32, #tpu.memory_space<vmem>>, vector<256x128xf32>,
    %c1_169 = arith.constant 1 : index
    %c1_170 = arith.constant 1 : index
    %c0_171 = arith.constant 0 : index
    %137 = vector.load %arg8[%c1_169, %c1_170, %c0_171] : memref<18x24x128xf32, #tpu.memory_space<vmem>>, vector<16x16x128xf32>
    %138 = vector.shape_cast %137 : vector<16x16x128xf32> to vector<256x128xf32>
    %139 = arith.truncf %138 : vector<256x128xf32> to vector<256x128xbf16>
    %c4_172 = arith.constant 4 : index
    %c0_173 = arith.constant 0 : index
    %c0_174 = arith.constant 0 : index
    %140 = vector.load %arg4[%c4_172, %c0_173, %c0_174] : memref<9x128x128xbf16, #tpu.memory_space<vmem>>, vector<1x128x128xbf16>
    %141 = vector.shape_cast %140 : vector<1x128x128xbf16> to vector<128x128xbf16>
    %cst_175 = arith.constant dense<0.000000e+00> : vector<256x128xf32>
    %142 = tpu.matmul %139, %141, %cst_175 {dimension_numbers = #tpu.dot_dimension_numbers<[1], [0], [0], [1], [0, 0, 1, 1], [], []>} : vector<256x128xbf16>, vector<128x128xbf16>, vector<256x128xf32> -> vector<256x128xf32>
    %c0_176 = arith.constant 0 : index
    %c0_177 = arith.constant 0 : index
    %143 = vector.load %arg9[%c0_176, %c0_177] : memref<256x128xf32, #tpu.memory_space<vmem>>, vector<256x128xf32>
    %144 = arith.addf %143, %142 : vector<256x128xf32>
    %c0_178 = arith.constant 0 : index
    %c0_179 = arith.constant 0 : index
    %145 = vector.load %arg9[%c0_178, %c0_179] : memref<256x128xf32, #tpu.memory_space<vmem>>, vector<256x128xf32>
    tpu.vector_store %arg9[%c0_178, %c0_179], %144 {strides = array<i32>} : memref<256x128xf32, #tpu.memory_space<vmem>>, vector<256x128xf32>,
    %c1_180 = arith.constant 1 : index
    %c2_181 = arith.constant 2 : index
    %c0_182 = arith.constant 0 : index
    %146 = vector.load %arg8[%c1_180, %c2_181, %c0_182] : memref<18x24x128xf32, #tpu.memory_space<vmem>>, vector<16x16x128xf32>
    %147 = vector.shape_cast %146 : vector<16x16x128xf32> to vector<256x128xf32>
    %148 = arith.truncf %147 : vector<256x128xf32> to vector<256x128xbf16>
    %c5_183 = arith.constant 5 : index
    %c0_184 = arith.constant 0 : index
    %c0_185 = arith.constant 0 : index
    %149 = vector.load %arg4[%c5_183, %c0_184, %c0_185] : memref<9x128x128xbf16, #tpu.memory_space<vmem>>, vector<1x128x128xbf16>
    %150 = vector.shape_cast %149 : vector<1x128x128xbf16> to vector<128x128xbf16>
    %cst_186 = arith.constant dense<0.000000e+00> : vector<256x128xf32>
    %151 = tpu.matmul %148, %150, %cst_186 {dimension_numbers = #tpu.dot_dimension_numbers<[1], [0], [0], [1], [0, 0, 1, 1], [], []>} : vector<256x128xbf16>, vector<128x128xbf16>, vector<256x128xf32> -> vector<256x128xf32>
    %c0_187 = arith.constant 0 : index
    %c0_188 = arith.constant 0 : index
    %152 = vector.load %arg9[%c0_187, %c0_188] : memref<256x128xf32, #tpu.memory_space<vmem>>, vector<256x128xf32>
    %153 = arith.addf %152, %151 : vector<256x128xf32>
    %c0_189 = arith.constant 0 : index
    %c0_190 = arith.constant 0 : index
    %154 = vector.load %arg9[%c0_189, %c0_190] : memref<256x128xf32, #tpu.memory_space<vmem>>, vector<256x128xf32>
    tpu.vector_store %arg9[%c0_189, %c0_190], %153 {strides = array<i32>} : memref<256x128xf32, #tpu.memory_space<vmem>>, vector<256x128xf32>,
    %c2_191 = arith.constant 2 : index
    %c0_192 = arith.constant 0 : index
    %c0_193 = arith.constant 0 : index
    %155 = vector.load %arg8[%c2_191, %c0_192, %c0_193] : memref<18x24x128xf32, #tpu.memory_space<vmem>>, vector<16x16x128xf32>
    %156 = vector.shape_cast %155 : vector<16x16x128xf32> to vector<256x128xf32>
    %157 = arith.truncf %156 : vector<256x128xf32> to vector<256x128xbf16>
    %c6_194 = arith.constant 6 : index
    %c0_195 = arith.constant 0 : index
    %c0_196 = arith.constant 0 : index
    %158 = vector.load %arg4[%c6_194, %c0_195, %c0_196] : memref<9x128x128xbf16, #tpu.memory_space<vmem>>, vector<1x128x128xbf16>
    %159 = vector.shape_cast %158 : vector<1x128x128xbf16> to vector<128x128xbf16>
    %cst_197 = arith.constant dense<0.000000e+00> : vector<256x128xf32>
    %160 = tpu.matmul %157, %159, %cst_197 {dimension_numbers = #tpu.dot_dimension_numbers<[1], [0], [0], [1], [0, 0, 1, 1], [], []>} : vector<256x128xbf16>, vector<128x128xbf16>, vector<256x128xf32> -> vector<256x128xf32>
    %c0_198 = arith.constant 0 : index
    %c0_199 = arith.constant 0 : index
    %161 = vector.load %arg9[%c0_198, %c0_199] : memref<256x128xf32, #tpu.memory_space<vmem>>, vector<256x128xf32>
    %162 = arith.addf %161, %160 : vector<256x128xf32>
    %c0_200 = arith.constant 0 : index
    %c0_201 = arith.constant 0 : index
    %163 = vector.load %arg9[%c0_200, %c0_201] : memref<256x128xf32, #tpu.memory_space<vmem>>, vector<256x128xf32>
    tpu.vector_store %arg9[%c0_200, %c0_201], %162 {strides = array<i32>} : memref<256x128xf32, #tpu.memory_space<vmem>>, vector<256x128xf32>,
    %c2_202 = arith.constant 2 : index
    %c1_203 = arith.constant 1 : index
    %c0_204 = arith.constant 0 : index
    %164 = vector.load %arg8[%c2_202, %c1_203, %c0_204] : memref<18x24x128xf32, #tpu.memory_space<vmem>>, vector<16x16x128xf32>
    %165 = vector.shape_cast %164 : vector<16x16x128xf32> to vector<256x128xf32>
    %166 = arith.truncf %165 : vector<256x128xf32> to vector<256x128xbf16>
    %c7_205 = arith.constant 7 : index
    %c0_206 = arith.constant 0 : index
    %c0_207 = arith.constant 0 : index
    %167 = vector.load %arg4[%c7_205, %c0_206, %c0_207] : memref<9x128x128xbf16, #tpu.memory_space<vmem>>, vector<1x128x128xbf16>
    %168 = vector.shape_cast %167 : vector<1x128x128xbf16> to vector<128x128xbf16>
    %cst_208 = arith.constant dense<0.000000e+00> : vector<256x128xf32>
    %169 = tpu.matmul %166, %168, %cst_208 {dimension_numbers = #tpu.dot_dimension_numbers<[1], [0], [0], [1], [0, 0, 1, 1], [], []>} : vector<256x128xbf16>, vector<128x128xbf16>, vector<256x128xf32> -> vector<256x128xf32>
    %c0_209 = arith.constant 0 : index
    %c0_210 = arith.constant 0 : index
    %170 = vector.load %arg9[%c0_209, %c0_210] : memref<256x128xf32, #tpu.memory_space<vmem>>, vector<256x128xf32>
    %171 = arith.addf %170, %169 : vector<256x128xf32>
    %c0_211 = arith.constant 0 : index
    %c0_212 = arith.constant 0 : index
    %172 = vector.load %arg9[%c0_211, %c0_212] : memref<256x128xf32, #tpu.memory_space<vmem>>, vector<256x128xf32>
    tpu.vector_store %arg9[%c0_211, %c0_212], %171 {strides = array<i32>} : memref<256x128xf32, #tpu.memory_space<vmem>>, vector<256x128xf32>,
    %c2_213 = arith.constant 2 : index
    %c2_214 = arith.constant 2 : index
    %c0_215 = arith.constant 0 : index
    %173 = vector.load %arg8[%c2_213, %c2_214, %c0_215] : memref<18x24x128xf32, #tpu.memory_space<vmem>>, vector<16x16x128xf32>
    %174 = vector.shape_cast %173 : vector<16x16x128xf32> to vector<256x128xf32>
    %175 = arith.truncf %174 : vector<256x128xf32> to vector<256x128xbf16>
    %c8_216 = arith.constant 8 : index
    %c0_217 = arith.constant 0 : index
    %c0_218 = arith.constant 0 : index
    %176 = vector.load %arg4[%c8_216, %c0_217, %c0_218] : memref<9x128x128xbf16, #tpu.memory_space<vmem>>, vector<1x128x128xbf16>
    %177 = vector.shape_cast %176 : vector<1x128x128xbf16> to vector<128x128xbf16>
    %cst_219 = arith.constant dense<0.000000e+00> : vector<256x128xf32>
    %178 = tpu.matmul %175, %177, %cst_219 {dimension_numbers = #tpu.dot_dimension_numbers<[1], [0], [0], [1], [0, 0, 1, 1], [], []>} : vector<256x128xbf16>, vector<128x128xbf16>, vector<256x128xf32> -> vector<256x128xf32>
    %c0_220 = arith.constant 0 : index
    %c0_221 = arith.constant 0 : index
    %179 = vector.load %arg9[%c0_220, %c0_221] : memref<256x128xf32, #tpu.memory_space<vmem>>, vector<256x128xf32>
    %180 = arith.addf %179, %178 : vector<256x128xf32>
    %c0_222 = arith.constant 0 : index
    %c0_223 = arith.constant 0 : index
    %181 = vector.load %arg9[%c0_222, %c0_223] : memref<256x128xf32, #tpu.memory_space<vmem>>, vector<256x128xf32>
    tpu.vector_store %arg9[%c0_222, %c0_223], %180 {strides = array<i32>} : memref<256x128xf32, #tpu.memory_space<vmem>>, vector<256x128xf32>,
    %c0_224 = arith.constant 0 : index
    %c0_225 = arith.constant 0 : index
    %182 = vector.load %arg9[%c0_224, %c0_225] : memref<256x128xf32, #tpu.memory_space<vmem>>, vector<256x128xf32>
    %c0_226 = arith.constant 0 : index
    %c0_227 = arith.constant 0 : index
    %183 = vector.load %arg5[%c0_226, %c0_227] : memref<1x128xf32, #tpu.memory_space<vmem>>, vector<1x128xf32>
    %184 = vector.shape_cast %183 : vector<1x128xf32> to vector<128xf32>
    %185 = vector.shape_cast %184 : vector<128xf32> to vector<1x128xf32>
    %186 = vector.broadcast %185 : vector<1x128xf32> to vector<256x128xf32>
    %187 = arith.addf %182, %186 : vector<256x128xf32>
    %188 = vector.shape_cast %187 : vector<256x128xf32> to vector<16x16x128xf32>
    %c0_228 = arith.constant 0 : index
    %c0_229 = arith.constant 0 : index
    %c0_230 = arith.constant 0 : index
    %c0_231 = arith.constant 0 : index
    %189 = vector.load %arg1[%c0_228, %c0_229, %c0_230, %c0_231] : memref<1x16x16x128xbf16, #tpu.memory_space<vmem>>, vector<1x16x16x128xbf16>
    %190 = vector.shape_cast %189 : vector<1x16x16x128xbf16> to vector<16x16x128xbf16>
    %191 = arith.extf %190 : vector<16x16x128xbf16> to vector<16x16x128xf32>
    %192 = arith.addf %188, %191 : vector<16x16x128xf32>
    %cst_232 = arith.constant 0.000000e+00 : f32
    %193 = vector.broadcast %cst_232 : f32 to vector<16x16x128xf32>
    %194 = arith.maximumf %192, %193 : vector<16x16x128xf32>
    %c0_233 = arith.constant 0 : index
    %c0_234 = arith.constant 0 : index
    %c0_235 = arith.constant 0 : index
    %c0_236 = arith.constant 0 : index
    %195 = vector.load %arg6[%c0_233, %c0_234, %c0_235, %c0_236] : memref<1x16x16x128xf32, #tpu.memory_space<vmem>>, vector<1x16x16x128xf32>
    %196 = vector.shape_cast %195 : vector<1x16x16x128xf32> to vector<16x16x128xf32>
    %197 = vector.shape_cast %194 : vector<16x16x128xf32> to vector<1x16x16x128xf32>
    tpu.vector_store %arg6[%c0_233, %c0_234, %c0_235, %c0_236], %197 {strides = array<i32>} : memref<1x16x16x128xf32, #tpu.memory_space<vmem>>, vector<1x16x16x128xf32>,
    return
  }
  func.func @transform_0(%arg0: i32) -> (i32, i32, i32, i32) {
    %c0_i32 = arith.constant 0 : i32
    %c0_i32_0 = arith.constant 0 : i32
    %c0_i32_1 = arith.constant 0 : i32
    %c0_i32_2 = arith.constant 0 : i32
    return %arg0, %c0_i32, %c0_i32_0, %c0_i32_1 : i32, i32, i32, i32
  }
  func.func @transform_1(%arg0: i32) -> (i32, i32, i32) {
    %c0_i32 = arith.constant 0 : i32
    %c0_i32_0 = arith.constant 0 : i32
    %c0_i32_1 = arith.constant 0 : i32
    %c0_i32_2 = arith.constant 0 : i32
    return %c0_i32, %c0_i32_0, %c0_i32_1 : i32, i32, i32
  }
  func.func @transform_2(%arg0: i32) -> (i32, i32) {
    %c0_i32 = arith.constant 0 : i32
    %c0_i32_0 = arith.constant 0 : i32
    %c0_i32_1 = arith.constant 0 : i32
    return %c0_i32, %c0_i32_0 : i32, i32
  }
  func.func @transform_3(%arg0: i32) -> (i32, i32, i32) {
    %c0_i32 = arith.constant 0 : i32
    %c0_i32_0 = arith.constant 0 : i32
    %c0_i32_1 = arith.constant 0 : i32
    %c0_i32_2 = arith.constant 0 : i32
    return %c0_i32, %c0_i32_0, %c0_i32_1 : i32, i32, i32
  }
  func.func @transform_4(%arg0: i32) -> (i32, i32) {
    %c0_i32 = arith.constant 0 : i32
    %c0_i32_0 = arith.constant 0 : i32
    %c0_i32_1 = arith.constant 0 : i32
    return %c0_i32, %c0_i32_0 : i32, i32
  }
  func.func @transform_5(%arg0: i32) -> (i32, i32, i32, i32) {
    %c0_i32 = arith.constant 0 : i32
    %c0_i32_0 = arith.constant 0 : i32
    %c0_i32_1 = arith.constant 0 : i32
    %c0_i32_2 = arith.constant 0 : i32
    return %arg0, %c0_i32, %c0_i32_0, %c0_i32_1 : i32, i32, i32, i32
  }
}

</mosaic_0001>

<llo_original>
// kernel: basic_block_forward.1
$region0: #{basic_block_forward.1}
  #allocation0 [shape = 'u32[]', space=smem, size = 0x4, offset = 0x4, fixed_abs, tag = 'smem constant byte address 0x4 - core index']
  #allocation1 [shape = 'u32[144,128]{1,0:T(1,128)}', space=vmem, size = 0x12000, scoped, tag = 'internal scratch']
  #allocation2 [shape = 'f32[18,24,128]{2,1,0:T(8,128)}', space=vmem, size = 0x36000, scoped, tag = 'scratch operand']
  #allocation3 [shape = 'f32[18,24,128]{2,1,0:T(8,128)}', space=vmem, size = 0x36000, scoped, tag = 'scratch operand']
  #allocation4 [shape = 'f32[256,128]{1,0:T(8,128)}', space=vmem, size = 0x20000, scoped, tag = 'scratch operand']
  %s0 = inlined_call_operand.vmem [shape: bf16[2,16,16,128], index: 0, kind: input, shape index: {}]
  %s1 = inlined_call_operand.vmem [shape: bf16[9,128,128], index: 1, kind: input, shape index: {}]
  %s2 = inlined_call_operand.vmem [shape: f32[1,128], index: 2, kind: input, shape index: {}]
  %s3 = inlined_call_operand.vmem [shape: bf16[9,128,128], index: 3, kind: input, shape index: {}]
  %s4 = inlined_call_operand.vmem [shape: f32[1,128], index: 4, kind: input, shape index: {}]
  %s5 = inlined_call_operand.vmem [shape: f32[2,16,16,128], index: 5, kind: output, shape index: {}]
  %s6 = sld [smem:[#allocation0]]
  $region53: #{basic_block_forward.1} parent=0
    _
  %s8 = ssub.s32 1, %s6
  %s9 = scalar_select 0, %s8, %s6
  loop: start=0, step=1, limit=4
  $region2: #{basic_block_forward.1} parent=0 // loop_pre_header
    _
  $region3: #{basic_block_forward.1} parent=0 // loop_header
    %s11 = sphi 0, %s15
    %p12 = scmp.ge.s32.totalorder %s11, 4
    %s21 = sphi 0, %s23
    %s24 = sphi 0, %s21
    %s25 = sphi 0, %s24
    %s41 = sphi 0, %s25
    %s45 = sphi 0, %s45
    %s47 = sphi 0, %s45
    %s48 = sphi 0, %s47
    %s62 = sphi 0, %s48
    %s66 = sphi 0, %s66
    %s68 = sphi 0, %s66
    %s69 = sphi 0, %s68
    %s83 = sphi 0, %s69
    %s87 = sphi 0, %s87
    %s89 = sphi 0, %s87
    %s90 = sphi 0, %s89
    %s104 = sphi 0, %s90
    %s108 = sphi 0, %s108
    %s110 = sphi 0, %s108
    %s111 = sphi 0, %s110
    %s125 = sphi 0, %s111
    %s131 = sphi 0, %s133
    %s134 = sphi 0, %s131
    %s135 = sphi 0, %s134
    %s151 = sphi 0, %s135
  $region4: #{basic_block_forward.1} parent=0 // loop_header_branch
    %14 = sbr.rel (%p12) target = $region8
  $region5: #{basic_block_forward.1} parent=0 // loop_body
    %s16 = ssub.s32 %s11, 1
    %s17 = ssub.s32 %s11, 2
    %s18 = sadd.s32 %s11, 1
    %s19 = ssub.s32 %s11, %s18
    %p20 = scmp.eq.s32.totalorder %s19, 0
    %s22 = sadd.s32 %s21, 1
    %s23 = scalar_select %p20, %s21, %s22
    %p26 = pneg %p20
    %p27 = scmp.eq.s32.totalorder %s11, 1
    %p28 = por %p26, %p27
    %p29 = scmp.ne.s32.totalorder %s21, %s24
    %p30 = scmp.eq.s32.totalorder %s11, 0
    %p31 = por %p29, %p30
    %p32 = scmp.ne.s32.totalorder %s21, %s24
    %p33 = scmp.eq.s32.totalorder %s16, 1
    %p34 = por %p32, %p33
    %p35 = scmp.ne.s32.totalorder %s24, %s25
    %p36 = scmp.eq.s32.totalorder %s16, 0
    %p37 = por %p35, %p36
    %p38 = scmp.ne.s32.totalorder %s24, %s25
    %p39 = scmp.eq.s32.totalorder %s17, 1
    %p40 = por %p38, %p39
    %p42 = scmp.ne.s32.totalorder %s25, %s41
    %p43 = scmp.eq.s32.totalorder %s17, 0
    %p44 = por %p42, %p43
    %s46 = sadd.s32 %s45, 1
    %p49 = scmp.eq.s32.totalorder %s11, 1
    %p50 = scmp.ne.s32.totalorder %s45, %s47
    %p51 = scmp.eq.s32.totalorder %s11, 0
    %p52 = por %p50, %p51
    %p53 = scmp.ne.s32.totalorder %s45, %s47
    %p54 = scmp.eq.s32.totalorder %s16, 1
    %p55 = por %p53, %p54
    %p56 = scmp.ne.s32.totalorder %s47, %s48
    %p57 = scmp.eq.s32.totalorder %s16, 0
    %p58 = por %p56, %p57
    %p59 = scmp.ne.s32.totalorder %s47, %s48
    %p60 = scmp.eq.s32.totalorder %s17, 1
    %p61 = por %p59, %p60
    %p63 = scmp.ne.s32.totalorder %s48, %s62
    %p64 = scmp.eq.s32.totalorder %s17, 0
    %p65 = por %p63, %p64
    %s67 = sadd.s32 %s66, 1
    %p70 = scmp.eq.s32.totalorder %s11, 1
    %p71 = scmp.ne.s32.totalorder %s66, %s68
    %p72 = scmp.eq.s32.totalorder %s11, 0
    %p73 = por %p71, %p72
    %p74 = scmp.ne.s32.totalorder %s66, %s68
    %p75 = scmp.eq.s32.totalorder %s16, 1
    %p76 = por %p74, %p75
    %p77 = scmp.ne.s32.totalorder %s68, %s69
    %p78 = scmp.eq.s32.totalorder %s16, 0
    %p79 = por %p77, %p78
    %p80 = scmp.ne.s32.totalorder %s68, %s69
    %p81 = scmp.eq.s32.totalorder %s17, 1
    %p82 = por %p80, %p81
    %p84 = scmp.ne.s32.totalorder %s69, %s83
    %p85 = scmp.eq.s32.totalorder %s17, 0
    %p86 = por %p84, %p85
    %s88 = sadd.s32 %s87, 1
    %p91 = scmp.eq.s32.totalorder %s11, 1
    %p92 = scmp.ne.s32.totalorder %s87, %s89
    %p93 = scmp.eq.s32.totalorder %s11, 0
    %p94 = por %p92, %p93
    %p95 = scmp.ne.s32.totalorder %s87, %s89
    %p96 = scmp.eq.s32.totalorder %s16, 1
    %p97 = por %p95, %p96
    %p98 = scmp.ne.s32.totalorder %s89, %s90
    %p99 = scmp.eq.s32.totalorder %s16, 0
    %p100 = por %p98, %p99
    %p101 = scmp.ne.s32.totalorder %s89, %s90
    %p102 = scmp.eq.s32.totalorder %s17, 1
    %p103 = por %p101, %p102
    %p105 = scmp.ne.s32.totalorder %s90, %s104
    %p106 = scmp.eq.s32.totalorder %s17, 0
    %p107 = por %p105, %p106
    %s109 = sadd.s32 %s108, 1
    %p112 = scmp.eq.s32.totalorder %s11, 1
    %p113 = scmp.ne.s32.totalorder %s108, %s110
    %p114 = scmp.eq.s32.totalorder %s11, 0
    %p115 = por %p113, %p114
    %p116 = scmp.ne.s32.totalorder %s108, %s110
    %p117 = scmp.eq.s32.totalorder %s16, 1
    %p118 = por %p116, %p117
    %p119 = scmp.ne.s32.totalorder %s110, %s111
    %p120 = scmp.eq.s32.totalorder %s16, 0
    %p121 = por %p119, %p120
    %p122 = scmp.ne.s32.totalorder %s110, %s111
    %p123 = scmp.eq.s32.totalorder %s17, 1
    %p124 = por %p122, %p123
    %p126 = scmp.ne.s32.totalorder %s111, %s125
    %p127 = scmp.eq.s32.totalorder %s17, 0
    %p128 = por %p126, %p127
    %s129 = ssub.s32 %s11, %s18
    %p130 = scmp.eq.s32.totalorder %s129, 0
    %s132 = sadd.s32 %s131, 1
    %s133 = scalar_select %p130, %s131, %s132
    %p136 = pneg %p130
    %p137 = scmp.eq.s32.totalorder %s11, 1
    %p138 = por %p136, %p137
    %p139 = scmp.ne.s32.totalorder %s131, %s134
    %p140 = scmp.eq.s32.totalorder %s11, 0
    %p141 = por %p139, %p140
    %p142 = scmp.ne.s32.totalorder %s131, %s134
    %p143 = scmp.eq.s32.totalorder %s16, 1
    %p144 = por %p142, %p143
    %p145 = scmp.ne.s32.totalorder %s134, %s135
    %p146 = scmp.eq.s32.totalorder %s16, 0
    %p147 = por %p145, %p146
    %p148 = scmp.ne.s32.totalorder %s134, %s135
    %p149 = scmp.eq.s32.totalorder %s17, 1
    %p150 = por %p148, %p149
    %p152 = scmp.ne.s32.totalorder %s135, %s151
    %p153 = scmp.eq.s32.totalorder %s17, 0
    %p154 = por %p152, %p153
    %p155 = scmp.le.s32.totalorder 1, %s11
    %p156 = scmp.lt.s32.totalorder %s11, 3
    %p157 = pnand %p155, %p156
    %p158 = pneg %p157
    // Predicated region
    $region9: #{basic_block_forward.1} parent=5 // pred_check
      _
    $region10: #{basic_block_forward.1} parent=5 // pred_check_branch
      %160 = sbr.rel (%p157) target = $region12
    $region11: #{basic_block_forward.1} parent=5 // pred_region
      %s161 = ssub.s32 %s11, 1
      // Predicated region
      $region13: #{basic_block_forward.1} parent=11 // pred_check
        %p162 = pneg %p58
      $region14: #{basic_block_forward.1} parent=11 // pred_check_branch
        %164 = sbr.rel (%p162) target = $region16
      $region15: #{basic_block_forward.1} parent=11 // pred_region
        _
      $region16: #{basic_block_forward.1} parent=11 // pred_fallthru
        _
      // Predicated region
      $region17: #{basic_block_forward.1} parent=11 // pred_check
        %p165 = pneg %p79
      $region18: #{basic_block_forward.1} parent=11 // pred_check_branch
        %167 = sbr.rel (%p165) target = $region20
      $region19: #{basic_block_forward.1} parent=11 // pred_region
        _
      $region20: #{basic_block_forward.1} parent=11 // pred_fallthru
        _
      // Predicated region
      $region21: #{basic_block_forward.1} parent=11 // pred_check
        %p168 = pneg %p100
      $region22: #{basic_block_forward.1} parent=11 // pred_check_branch
        %170 = sbr.rel (%p168) target = $region24
      $region23: #{basic_block_forward.1} parent=11 // pred_region
        _
      $region24: #{basic_block_forward.1} parent=11 // pred_fallthru
        _
      // Predicated region
      $region25: #{basic_block_forward.1} parent=11 // pred_check
        %p171 = pneg %p121
      $region26: #{basic_block_forward.1} parent=11 // pred_check_branch
        %173 = sbr.rel (%p171) target = $region28
      $region27: #{basic_block_forward.1} parent=11 // pred_region
        _
      $region28: #{basic_block_forward.1} parent=11 // pred_fallthru
        _
    $region12: #{basic_block_forward.1} parent=5 // pred_fallthru
      _
    %p174 = scmp.lt.s32.totalorder %s11, 2
    // Predicated region
    $region29: #{basic_block_forward.1} parent=5 // pred_check
      %p175 = pneg %p174
    $region30: #{basic_block_forward.1} parent=5 // pred_check_branch
      %177 = sbr.rel (%p175) target = $region32
    $region31: #{basic_block_forward.1} parent=5 // pred_region
      // Predicated region
      $region33: #{basic_block_forward.1} parent=31 // pred_check
        %p178 = pneg %p31
      $region34: #{basic_block_forward.1} parent=31 // pred_check_branch
        %180 = sbr.rel (%p178) target = $region36
      $region35: #{basic_block_forward.1} parent=31 // pred_region
        %p181 = scmp.lt.s32.totalorder %s11, 1
        %s182 = scalar_select %p181, %s11, 1
        %s183 = smul.addr %s182, 32
        %s184 = smul.addr %s183, 4
        %s185 = scalar_lea.vmem %s0, %s184
      $region36: #{basic_block_forward.1} parent=31 // pred_fallthru
        _
    $region32: #{basic_block_forward.1} parent=5 // pred_fallthru
      _
    %p186 = scmp.le.s32.totalorder 1, %s11
    %p187 = scmp.lt.s32.totalorder %s11, 3
    %p188 = pnand %p186, %p187
    %p189 = pneg %p188
    // Predicated region
    $region37: #{basic_block_forward.1} parent=5 // pred_check
      _
    $region38: #{basic_block_forward.1} parent=5 // pred_check_branch
      %191 = sbr.rel (%p188) target = $region40
    $region39: #{basic_block_forward.1} parent=5 // pred_region
      %s192 = ssub.s32 %s11, 1
      %p193 = scmp.lt.s32.totalorder %s16, 1
      %s194 = scalar_select %p193, %s16, 1
      %s195 = smul.addr %s194, 32
      %s196 = smul.addr %s195, 4
      %s197 = scalar_lea.vmem %s0, %s196
      %p198 = pneg %p37
      %p199 = pneg %p34
      %p200 = pneg %p58
      %p201 = pneg %p55
      %p202 = pneg %p79
      %p203 = pneg %p76
      %p204 = pneg %p100
      %p205 = pneg %p97
      %p206 = pneg %p121
      %p207 = pneg %p118
      %p208 = pneg %p147
      %p209 = pneg %p144
      %p210 = scmp.lt.s32.totalorder %s16, 1
      %s211 = scalar_select %p210, %s16, 1
      %s212 = smul.addr %s211, 32
      %s213 = smul.addr %s212, 8
      %s214 = scalar_lea.vmem %s5, %s213
      %p215 = scmp.lt.s32.totalorder %s16, 1
      %s216 = scalar_select %p215, %s16, 1
      %s217 = smul.addr %s216, 32
      %s218 = smul.addr %s217, 4
      %s219 = scalar_lea.vmem %s0, %s218
      %p220 = scmp.lt.s32.totalorder %s16, 1
      %s221 = scalar_select %p220, %s16, 1
      %s222 = smul.addr %s221, 32
      %s223 = smul.addr %s222, 8
      %s224 = scalar_lea.vmem %s5, %s223
      %226 = vst [vmem:[#allocation2] sm:$0xff] 0.0
      %227 = vst [vmem:[#allocation2 + $0x8] sm:$0xff] 0.0
      %228 = vst [vmem:[#allocation2 + $0x10] sm:$0xff] 0.0
      %s229 = scalar_lea.vmem [#allocation2], 408
      %230 = vst [vmem:[%s229] sm:$0xff] 0.0
      %231 = vst [vmem:[%s229 + $0x8] sm:$0xff] 0.0
      %232 = vst [vmem:[%s229 + $0x10] sm:$0xff] 0.0
      %233 = vst [vmem:[#allocation2] sm:$0x1] 0.0
      %234 = vst [vmem:[#allocation2 + $0x18] sm:$0x1] 0.0
      %235 = vst [vmem:[#allocation2 + $0x30] sm:$0x1] 0.0
      %236 = vst [vmem:[#allocation2 + $0x48] sm:$0x1] 0.0
      %237 = vst [vmem:[#allocation2 + $0x60] sm:$0x1] 0.0
      %238 = vst [vmem:[#allocation2 + $0x78] sm:$0x1] 0.0
      %239 = vst [vmem:[#allocation2 + $0x90] sm:$0x1] 0.0
      %240 = vst [vmem:[#allocation2 + $0xa8] sm:$0x1] 0.0
      %241 = vst [vmem:[#allocation2 + $0xc0] sm:$0x1] 0.0
      %242 = vst [vmem:[#allocation2 + $0xd8] sm:$0x1] 0.0
      %243 = vst [vmem:[#allocation2 + $0xf0] sm:$0x1] 0.0
      %244 = vst [vmem:[#allocation2 + $0x108] sm:$0x1] 0.0
      %245 = vst [vmem:[#allocation2 + $0x120] sm:$0x1] 0.0
      %246 = vst [vmem:[#allocation2 + $0x138] sm:$0x1] 0.0
      %247 = vst [vmem:[#allocation2 + $0x150] sm:$0x1] 0.0
      %248 = vst [vmem:[#allocation2 + $0x168] sm:$0x1] 0.0
      %249 = vst [vmem:[#allocation2 + $0x180] sm:$0x1] 0.0
      %250 = vst [vmem:[#allocation2 + $0x198] sm:$0x1] 0.0
      %251 = vst [vmem:[#allocation2 + $0x11] sm:$0x1] 0.0
      %252 = vst [vmem:[#allocation2 + $0x29] sm:$0x1] 0.0
      %253 = vst [vmem:[#allocation2 + $0x41] sm:$0x1] 0.0
      %254 = vst [vmem:[#allocation2 + $0x59] sm:$0x1] 0.0
      %255 = vst [vmem:[#allocation2 + $0x71] sm:$0x1] 0.0
      %256 = vst [vmem:[#allocation2 + $0x89] sm:$0x1] 0.0
      %257 = vst [vmem:[#allocation2 + $0xa1] sm:$0x1] 0.0
      %258 = vst [vmem:[#allocation2 + $0xb9] sm:$0x1] 0.0
      %259 = vst [vmem:[#allocation2 + $0xd1] sm:$0x1] 0.0
      %260 = vst [vmem:[#allocation2 + $0xe9] sm:$0x1] 0.0
      %261 = vst [vmem:[#allocation2 + $0x101] sm:$0x1] 0.0
      %262 = vst [vmem:[#allocation2 + $0x119] sm:$0x1] 0.0
      %263 = vst [vmem:[#allocation2 + $0x131] sm:$0x1] 0.0
      %264 = vst [vmem:[#allocation2 + $0x149] sm:$0x1] 0.0
      %265 = vst [vmem:[#allocation2 + $0x161] sm:$0x1] 0.0
      %266 = vst [vmem:[#allocation2 + $0x179] sm:$0x1] 0.0
      %267 = vst [vmem:[#allocation2 + $0x191] sm:$0x1] 0.0
      %268 = vst [vmem:[#allocation2 + $0x1a9] sm:$0x1] 0.0
      %269 = vst [vmem:[#allocation3] sm:$0xff] 0.0
      %270 = vst [vmem:[#allocation3 + $0x8] sm:$0xff] 0.0
      %271 = vst [vmem:[#allocation3 + $0x10] sm:$0xff] 0.0
      %s272 = scalar_lea.vmem [#allocation3], 408
      %273 = vst [vmem:[%s272] sm:$0xff] 0.0
      %274 = vst [vmem:[%s272 + $0x8] sm:$0xff] 0.0
      %275 = vst [vmem:[%s272 + $0x10] sm:$0xff] 0.0
      %276 = vst [vmem:[#allocation3] sm:$0x1] 0.0
      %277 = vst [vmem:[#allocation3 + $0x18] sm:$0x1] 0.0
      %278 = vst [vmem:[#allocation3 + $0x30] sm:$0x1] 0.0
      %279 = vst [vmem:[#allocation3 + $0x48] sm:$0x1] 0.0
      %280 = vst [vmem:[#allocation3 + $0x60] sm:$0x1] 0.0
      %281 = vst [vmem:[#allocation3 + $0x78] sm:$0x1] 0.0
      %282 = vst [vmem:[#allocation3 + $0x90] sm:$0x1] 0.0
      %283 = vst [vmem:[#allocation3 + $0xa8] sm:$0x1] 0.0
      %284 = vst [vmem:[#allocation3 + $0xc0] sm:$0x1] 0.0
      %285 = vst [vmem:[#allocation3 + $0xd8] sm:$0x1] 0.0
      %286 = vst [vmem:[#allocation3 + $0xf0] sm:$0x1] 0.0
      %287 = vst [vmem:[#allocation3 + $0x108] sm:$0x1] 0.0
      %288 = vst [vmem:[#allocation3 + $0x120] sm:$0x1] 0.0
      %289 = vst [vmem:[#allocation3 + $0x138] sm:$0x1] 0.0
      %290 = vst [vmem:[#allocation3 + $0x150] sm:$0x1] 0.0
      %291 = vst [vmem:[#allocation3 + $0x168] sm:$0x1] 0.0
      %292 = vst [vmem:[#allocation3 + $0x180] sm:$0x1] 0.0
      %293 = vst [vmem:[#allocation3 + $0x198] sm:$0x1] 0.0
      %294 = vst [vmem:[#allocation3 + $0x11] sm:$0x1] 0.0
      %295 = vst [vmem:[#allocation3 + $0x29] sm:$0x1] 0.0
      %296 = vst [vmem:[#allocation3 + $0x41] sm:$0x1] 0.0
      %297 = vst [vmem:[#allocation3 + $0x59] sm:$0x1] 0.0
      %298 = vst [vmem:[#allocation3 + $0x71] sm:$0x1] 0.0
      %299 = vst [vmem:[#allocation3 + $0x89] sm:$0x1] 0.0
      %300 = vst [vmem:[#allocation3 + $0xa1] sm:$0x1] 0.0
      %301 = vst [vmem:[#allocation3 + $0xb9] sm:$0x1] 0.0
      %302 = vst [vmem:[#allocation3 + $0xd1] sm:$0x1] 0.0
      %303 = vst [vmem:[#allocation3 + $0xe9] sm:$0x1] 0.0
      %304 = vst [vmem:[#allocation3 + $0x101] sm:$0x1] 0.0
      %305 = vst [vmem:[#allocation3 + $0x119] sm:$0x1] 0.0
      %306 = vst [vmem:[#allocation3 + $0x131] sm:$0x1] 0.0
      %307 = vst [vmem:[#allocation3 + $0x149] sm:$0x1] 0.0
      %308 = vst [vmem:[#allocation3 + $0x161] sm:$0x1] 0.0
      %309 = vst [vmem:[#allocation3 + $0x179] sm:$0x1] 0.0
      %310 = vst [vmem:[#allocation3 + $0x191] sm:$0x1] 0.0
      %311 = vst [vmem:[#allocation3 + $0x1a9] sm:$0x1] 0.0
      %v312 = vld [vmem:[%s219] sm:$0xf]
      %v313 = vld [vmem:[%s219 + $0x4] sm:$0xf]
      %v314 = vld [vmem:[%s219 + $0x8] sm:$0xf]
      %v315 = vld [vmem:[%s219 + $0xc] sm:$0xf]
      %v316 = vld [vmem:[%s219 + $0x10] sm:$0xf]
      %v317 = vld [vmem:[%s219 + $0x14] sm:$0xf]
      %v318 = vld [vmem:[%s219 + $0x18] sm:$0xf]
      %v319 = vld [vmem:[%s219 + $0x1c] sm:$0xf]
      %v320 = vld [vmem:[%s219 + $0x20] sm:$0xf]
      %v321 = vld [vmem:[%s219 + $0x24] sm:$0xf]
      %v322 = vld [vmem:[%s219 + $0x28] sm:$0xf]
      %v323 = vld [vmem:[%s219 + $0x2c] sm:$0xf]
      %v324 = vld [vmem:[%s219 + $0x30] sm:$0xf]
      %v325 = vld [vmem:[%s219 + $0x34] sm:$0xf]
      %v326 = vld [vmem:[%s219 + $0x38] sm:$0xf]
      %v327 = vld [vmem:[%s219 + $0x3c] sm:$0xf]
      %v328 = vld [vmem:[%s219 + $0x40] sm:$0xf]
      %v329 = vld [vmem:[%s219 + $0x44] sm:$0xf]
      %v330 = vld [vmem:[%s219 + $0x48] sm:$0xf]
      %v331 = vld [vmem:[%s219 + $0x4c] sm:$0xf]
      %v332 = vld [vmem:[%s219 + $0x50] sm:$0xf]
      %v333 = vld [vmem:[%s219 + $0x54] sm:$0xf]
      %v334 = vld [vmem:[%s219 + $0x58] sm:$0xf]
      %v335 = vld [vmem:[%s219 + $0x5c] sm:$0xf]
      %v336 = vld [vmem:[%s219 + $0x60] sm:$0xf]
      %v337 = vld [vmem:[%s219 + $0x64] sm:$0xf]
      %v338 = vld [vmem:[%s219 + $0x68] sm:$0xf]
      %v339 = vld [vmem:[%s219 + $0x6c] sm:$0xf]
      %v340 = vld [vmem:[%s219 + $0x70] sm:$0xf]
      %v341 = vld [vmem:[%s219 + $0x74] sm:$0xf]
      %v342 = vld [vmem:[%s219 + $0x78] sm:$0xf]
      %v343 = vld [vmem:[%s219 + $0x7c] sm:$0xf]
      %v344 = vunpack.c.l.bf16 %v312
      %v345 = vunpack.c.l.bf16 %v313
      %v346 = vunpack.c.l.bf16 %v314
      %v347 = vunpack.c.l.bf16 %v315
      %v348 = vunpack.c.l.bf16 %v316
      %v349 = vunpack.c.l.bf16 %v317
      %v350 = vunpack.c.l.bf16 %v318
      %v351 = vunpack.c.l.bf16 %v319
      %v352 = vunpack.c.l.bf16 %v320
      %v353 = vunpack.c.l.bf16 %v321
      %v354 = vunpack.c.l.bf16 %v322
      %v355 = vunpack.c.l.bf16 %v323
      %v356 = vunpack.c.l.bf16 %v324
      %v357 = vunpack.c.l.bf16 %v325
      %v358 = vunpack.c.l.bf16 %v326
      %v359 = vunpack.c.l.bf16 %v327
      %v360 = vunpack.c.l.bf16 %v328
      %v361 = vunpack.c.l.bf16 %v329
      %v362 = vunpack.c.l.bf16 %v330
      %v363 = vunpack.c.l.bf16 %v331
      %v364 = vunpack.c.l.bf16 %v332
      %v365 = vunpack.c.l.bf16 %v333
      %v366 = vunpack.c.l.bf16 %v334
      %v367 = vunpack.c.l.bf16 %v335
      %v368 = vunpack.c.l.bf16 %v336
      %v369 = vunpack.c.l.bf16 %v337
      %v370 = vunpack.c.l.bf16 %v338
      %v371 = vunpack.c.l.bf16 %v339
      %v372 = vunpack.c.l.bf16 %v340
      %v373 = vunpack.c.l.bf16 %v341
      %v374 = vunpack.c.l.bf16 %v342
      %v375 = vunpack.c.l.bf16 %v343
      %s376 = scalar_lea.vmem [#allocation2], 24
      %377 = vst [vmem:[%s376 + $0x1] sm:$0xff] %v344
      %378 = vst [vmem:[%s376 + $0x9] sm:$0xff] %v345
      %379 = vst [vmem:[%s376 + $0x19] sm:$0xff] %v346
      %380 = vst [vmem:[%s376 + $0x21] sm:$0xff] %v347
      %381 = vst [vmem:[%s376 + $0x31] sm:$0xff] %v348
      %382 = vst [vmem:[%s376 + $0x39] sm:$0xff] %v349
      %383 = vst [vmem:[%s376 + $0x49] sm:$0xff] %v350
      %384 = vst [vmem:[%s376 + $0x51] sm:$0xff] %v351
      %385 = vst [vmem:[%s376 + $0x61] sm:$0xff] %v352
      %386 = vst [vmem:[%s376 + $0x69] sm:$0xff] %v353
      %387 = vst [vmem:[%s376 + $0x79] sm:$0xff] %v354
      %388 = vst [vmem:[%s376 + $0x81] sm:$0xff] %v355
      %389 = vst [vmem:[%s376 + $0x91] sm:$0xff] %v356
      %390 = vst [vmem:[%s376 + $0x99] sm:$0xff] %v357
      %391 = vst [vmem:[%s376 + $0xa9] sm:$0xff] %v358
      %392 = vst [vmem:[%s376 + $0xb1] sm:$0xff] %v359
      %393 = vst [vmem:[%s376 + $0xc1] sm:$0xff] %v360
      %394 = vst [vmem:[%s376 + $0xc9] sm:$0xff] %v361
      %395 = vst [vmem:[%s376 + $0xd9] sm:$0xff] %v362
      %396 = vst [vmem:[%s376 + $0xe1] sm:$0xff] %v363
      %397 = vst [vmem:[%s376 + $0xf1] sm:$0xff] %v364
      %398 = vst [vmem:[%s376 + $0xf9] sm:$0xff] %v365
      %399 = vst [vmem:[%s376 + $0x109] sm:$0xff] %v366
      %400 = vst [vmem:[%s376 + $0x111] sm:$0xff] %v367
      %401 = vst [vmem:[%s376 + $0x121] sm:$0xff] %v368
      %402 = vst [vmem:[%s376 + $0x129] sm:$0xff] %v369
      %403 = vst [vmem:[%s376 + $0x139] sm:$0xff] %v370
      %404 = vst [vmem:[%s376 + $0x141] sm:$0xff] %v371
      %405 = vst [vmem:[%s376 + $0x151] sm:$0xff] %v372
      %406 = vst [vmem:[%s376 + $0x159] sm:$0xff] %v373
      %407 = vst [vmem:[%s376 + $0x169] sm:$0xff] %v374
      %408 = vst [vmem:[%s376 + $0x171] sm:$0xff] %v375
      %v409 = vld [vmem:[#allocation2] sm:$0xff]
      %v410 = vld [vmem:[#allocation2 + $0x8] sm:$0xff]
      %v411 = vld [vmem:[#allocation2 + $0x18] sm:$0xff]
      %v412 = vld [vmem:[#allocation2 + $0x20] sm:$0xff]
      %v413 = vld [vmem:[#allocation2 + $0x30] sm:$0xff]
      %v414 = vld [vmem:[#allocation2 + $0x38] sm:$0xff]
      %v415 = vld [vmem:[#allocation2 + $0x48] sm:$0xff]
      %v416 = vld [vmem:[#allocation2 + $0x50] sm:$0xff]
      %v417 = vld [vmem:[#allocation2 + $0x60] sm:$0xff]
      %v418 = vld [vmem:[#allocation2 + $0x68] sm:$0xff]
      %v419 = vld [vmem:[#allocation2 + $0x78] sm:$0xff]
      %v420 = vld [vmem:[#allocation2 + $0x80] sm:$0xff]
      %v421 = vld [vmem:[#allocation2 + $0x90] sm:$0xff]
      %v422 = vld [vmem:[#allocation2 + $0x98] sm:$0xff]
      %v423 = vld [vmem:[#allocation2 + $0xa8] sm:$0xff]
      %v424 = vld [vmem:[#allocation2 + $0xb0] sm:$0xff]
      %v425 = vld [vmem:[#allocation2 + $0xc0] sm:$0xff]
      %v426 = vld [vmem:[#allocation2 + $0xc8] sm:$0xff]
      %v427 = vld [vmem:[#allocation2 + $0xd8] sm:$0xff]
      %v428 = vld [vmem:[#allocation2 + $0xe0] sm:$0xff]
      %v429 = vld [vmem:[#allocation2 + $0xf0] sm:$0xff]
      %v430 = vld [vmem:[#allocation2 + $0xf8] sm:$0xff]
      %v431 = vld [vmem:[#allocation2 + $0x108] sm:$0xff]
      %v432 = vld [vmem:[#allocation2 + $0x110] sm:$0xff]
      %v433 = vld [vmem:[#allocation2 + $0x120] sm:$0xff]
      %v434 = vld [vmem:[#allocation2 + $0x128] sm:$0xff]
      %v435 = vld [vmem:[#allocation2 + $0x138] sm:$0xff]
      %v436 = vld [vmem:[#allocation2 + $0x140] sm:$0xff]
      %v437 = vld [vmem:[#allocation2 + $0x150] sm:$0xff]
      %v438 = vld [vmem:[#allocation2 + $0x158] sm:$0xff]
      %v439 = vld [vmem:[#allocation2 + $0x168] sm:$0xff]
      %v440 = vld [vmem:[#allocation2 + $0x170] sm:$0xff]
      %v441 = vpack.c.bf16 %v410, %v409
      %v442 = vpack.c.bf16 %v412, %v411
      %v443 = vpack.c.bf16 %v414, %v413
      %v444 = vpack.c.bf16 %v416, %v415
      %v445 = vpack.c.bf16 %v418, %v417
      %v446 = vpack.c.bf16 %v420, %v419
      %v447 = vpack.c.bf16 %v422, %v421
      %v448 = vpack.c.bf16 %v424, %v423
      %v449 = vpack.c.bf16 %v426, %v425
      %v450 = vpack.c.bf16 %v428, %v427
      %v451 = vpack.c.bf16 %v430, %v429
      %v452 = vpack.c.bf16 %v432, %v431
      %v453 = vpack.c.bf16 %v434, %v433
      %v454 = vpack.c.bf16 %v436, %v435
      %v455 = vpack.c.bf16 %v438, %v437
      %v456 = vpack.c.bf16 %v440, %v439
      %v457 = vld [vmem:[%s1] sm:$0xf]
      %v458 = vld [vmem:[%s1 + $0x4] sm:$0xf]
      %v459 = vld [vmem:[%s1 + $0x8] sm:$0xf]
      %v460 = vld [vmem:[%s1 + $0xc] sm:$0xf]
      %v461 = vld [vmem:[%s1 + $0x10] sm:$0xf]
      %v462 = vld [vmem:[%s1 + $0x14] sm:$0xf]
      %v463 = vld [vmem:[%s1 + $0x18] sm:$0xf]
      %v464 = vld [vmem:[%s1 + $0x1c] sm:$0xf]
      %v465 = vld [vmem:[%s1 + $0x20] sm:$0xf]
      %v466 = vld [vmem:[%s1 + $0x24] sm:$0xf]
      %v467 = vld [vmem:[%s1 + $0x28] sm:$0xf]
      %v468 = vld [vmem:[%s1 + $0x2c] sm:$0xf]
      %v469 = vld [vmem:[%s1 + $0x30] sm:$0xf]
      %v470 = vld [vmem:[%s1 + $0x34] sm:$0xf]
      %v471 = vld [vmem:[%s1 + $0x38] sm:$0xf]
      %v472 = vld [vmem:[%s1 + $0x3c] sm:$0xf]
      %v489 = vunpack.c.l.b16 %v457
      %v490 = vunpack.c.l.b16 %v458
      %v491 = vunpack.c.l.b16 %v459
      %v492 = vunpack.c.l.b16 %v460
      %v493 = vunpack.c.l.b16 %v461
      %v494 = vunpack.c.l.b16 %v462
      %v495 = vunpack.c.l.b16 %v463
      %v496 = vunpack.c.l.b16 %v464
      %v497 = vunpack.c.l.b16 %v465
      %v498 = vunpack.c.l.b16 %v466
      %v499 = vunpack.c.l.b16 %v467
      %v500 = vunpack.c.l.b16 %v468
      %v501 = vunpack.c.l.b16 %v469
      %v502 = vunpack.c.l.b16 %v470
      %v503 = vunpack.c.l.b16 %v471
      %v504 = vunpack.c.l.b16 %v472
      %v505 = vpack.c.b16 %v490, %v489
      %v506 = vpack.c.b16 %v492, %v491
      %v507 = vpack.c.b16 %v494, %v493
      %v508 = vpack.c.b16 %v496, %v495
      %v509 = vpack.c.b16 %v498, %v497
      %v510 = vpack.c.b16 %v500, %v499
      %v511 = vpack.c.b16 %v502, %v501
      %v512 = vpack.c.b16 %v504, %v503
      %521 = vmatprep.subr.bf16.mxu0 0
      %522 = vmatpush1.bf16.msra.mxu0 %v512
      %523 = vmatprep.subr.bf16.mxu0 0
      %524 = vmatpush1.bf16.msra.mxu0 %v511
      %525 = vmatprep.subr.bf16.mxu0 0
      %526 = vmatpush1.bf16.msra.mxu0 %v510
      %527 = vmatprep.subr.bf16.mxu0 0
      %528 = vmatpush1.bf16.msra.mxu0 %v509
      %529 = vmatprep.subr.bf16.mxu0 0
      %530 = vmatpush1.bf16.msra.mxu0 %v508
      %531 = vmatprep.subr.bf16.mxu0 0
      %532 = vmatpush1.bf16.msra.mxu0 %v507
      %533 = vmatprep.subr.bf16.mxu0 0
      %534 = vmatpush1.bf16.msra.mxu0 %v506
      %535 = vmatprep.subr.bf16.mxu0 0
      %536 = vmatpush1.bf16.msra.mxu0 %v505
      %537 = vmatprep.subr.bf16.mxu0 0
      %538 = vmatpush2.bf16.msra.mxu0 0
      %539 = vmatprep.subr.bf16.mxu0 0
      %540 = vmatpush2.bf16.msra.mxu0 0
      %541 = vmatprep.subr.bf16.mxu0 0
      %542 = vmatpush2.bf16.msra.mxu0 0
      %543 = vmatprep.subr.bf16.mxu0 0
      %544 = vmatpush2.bf16.msra.mxu0 0
      %545 = vmatprep.subr.bf16.mxu0 0
      %546 = vmatpush2.bf16.msra.mxu0 0
      %547 = vmatprep.subr.bf16.mxu0 0
      %548 = vmatpush2.bf16.msra.mxu0 0
      %549 = vmatprep.subr.bf16.mxu0 0
      %550 = vmatpush2.bf16.msra.mxu0 0
      %551 = vmatprep.subr.bf16.mxu0 0
      %552 = vmatpush2.bf16.msra.mxu0 0
      %553 = vmatprep.mubr.bf16.mxu0 0
      %554 = vmatmul.mubr.bf16.gmra.mxu0 %v441
      %v555 = vpop.f32.mrf.mxu0
      %v556 = vadd.f32 0.0, %v555
      %v557 = vpop.f32.mrf.mxu0
      %v558 = vpop.f32.mrf.mxu0
      %v559 = vadd.f32 0.0, %v558
      %v560 = vpop.f32.mrf.mxu0
      %561 = vmatprep.mubr.bf16.mxu0 0
      %562 = vmatmul.mubr.bf16.gmra.mxu0 %v442
      %v563 = vpop.f32.mrf.mxu0
      %v564 = vadd.f32 0.0, %v563
      %v565 = vpop.f32.mrf.mxu0
      %v566 = vpop.f32.mrf.mxu0
      %v567 = vadd.f32 0.0, %v566
      %v568 = vpop.f32.mrf.mxu0
      %569 = vmatprep.mubr.bf16.mxu0 0
      %570 = vmatmul.mubr.bf16.gmra.mxu0 %v443
      %v571 = vpop.f32.mrf.mxu0
      %v572 = vadd.f32 0.0, %v571
      %v573 = vpop.f32.mrf.mxu0
      %v574 = vpop.f32.mrf.mxu0
      %v575 = vadd.f32 0.0, %v574
      %v576 = vpop.f32.mrf.mxu0
      %577 = vmatprep.mubr.bf16.mxu0 0
      %578 = vmatmul.mubr.bf16.gmra.mxu0 %v444
      %v579 = vpop.f32.mrf.mxu0
      %v580 = vadd.f32 0.0, %v579
      %v581 = vpop.f32.mrf.mxu0
      %v582 = vpop.f32.mrf.mxu0
      %v583 = vadd.f32 0.0, %v582
      %v584 = vpop.f32.mrf.mxu0
      %585 = vmatprep.mubr.bf16.mxu0 0
      %586 = vmatmul.mubr.bf16.gmra.mxu0 %v445
      %v587 = vpop.f32.mrf.mxu0
      %v588 = vadd.f32 0.0, %v587
      %v589 = vpop.f32.mrf.mxu0
      %v590 = vpop.f32.mrf.mxu0
      %v591 = vadd.f32 0.0, %v590
      %v592 = vpop.f32.mrf.mxu0
      %593 = vmatprep.mubr.bf16.mxu0 0
      %594 = vmatmul.mubr.bf16.gmra.mxu0 %v446
      %v595 = vpop.f32.mrf.mxu0
      %v596 = vadd.f32 0.0, %v595
      %v597 = vpop.f32.mrf.mxu0
      %v598 = vpop.f32.mrf.mxu0
      %v599 = vadd.f32 0.0, %v598
      %v600 = vpop.f32.mrf.mxu0
      %601 = vmatprep.mubr.bf16.mxu0 0
      %602 = vmatmul.mubr.bf16.gmra.mxu0 %v447
      %v603 = vpop.f32.mrf.mxu0
      %v604 = vadd.f32 0.0, %v603
      %v605 = vpop.f32.mrf.mxu0
      %v606 = vpop.f32.mrf.mxu0
      %v607 = vadd.f32 0.0, %v606
      %v608 = vpop.f32.mrf.mxu0
      %609 = vmatprep.mubr.bf16.mxu0 0
      %610 = vmatmul.mubr.bf16.gmra.mxu0 %v448
      %v611 = vpop.f32.mrf.mxu0
      %v612 = vadd.f32 0.0, %v611
      %v613 = vpop.f32.mrf.mxu0
      %v614 = vpop.f32.mrf.mxu0
      %v615 = vadd.f32 0.0, %v614
      %v616 = vpop.f32.mrf.mxu0
      %617 = vmatprep.mubr.bf16.mxu0 0
      %618 = vmatmul.mubr.bf16.gmra.mxu0 %v449
      %v619 = vpop.f32.mrf.mxu0
      %v620 = vadd.f32 0.0, %v619
      %v621 = vpop.f32.mrf.mxu0
      %v622 = vpop.f32.mrf.mxu0
      %v623 = vadd.f32 0.0, %v622
      %v624 = vpop.f32.mrf.mxu0
      %625 = vmatprep.mubr.bf16.mxu0 0
      %626 = vmatmul.mubr.bf16.gmra.mxu0 %v450
      %v627 = vpop.f32.mrf.mxu0
      %v628 = vadd.f32 0.0, %v627
      %v629 = vpop.f32.mrf.mxu0
      %v630 = vpop.f32.mrf.mxu0
      %v631 = vadd.f32 0.0, %v630
      %v632 = vpop.f32.mrf.mxu0
      %633 = vmatprep.mubr.bf16.mxu0 0
      %634 = vmatmul.mubr.bf16.gmra.mxu0 %v451
      %v635 = vpop.f32.mrf.mxu0
      %v636 = vadd.f32 0.0, %v635
      %v637 = vpop.f32.mrf.mxu0
      %v638 = vpop.f32.mrf.mxu0
      %v639 = vadd.f32 0.0, %v638
      %v640 = vpop.f32.mrf.mxu0
      %641 = vmatprep.mubr.bf16.mxu0 0
      %642 = vmatmul.mubr.bf16.gmra.mxu0 %v452
      %v643 = vpop.f32.mrf.mxu0
      %v644 = vadd.f32 0.0, %v643
      %v645 = vpop.f32.mrf.mxu0
      %v646 = vpop.f32.mrf.mxu0
      %v647 = vadd.f32 0.0, %v646
      %v648 = vpop.f32.mrf.mxu0
      %649 = vmatprep.mubr.bf16.mxu0 0
      %650 = vmatmul.mubr.bf16.gmra.mxu0 %v453
      %v651 = vpop.f32.mrf.mxu0
      %v652 = vadd.f32 0.0, %v651
      %v653 = vpop.f32.mrf.mxu0
      %v654 = vpop.f32.mrf.mxu0
      %v655 = vadd.f32 0.0, %v654
      %v656 = vpop.f32.mrf.mxu0
      %657 = vmatprep.mubr.bf16.mxu0 0
      %658 = vmatmul.mubr.bf16.gmra.mxu0 %v454
      %v659 = vpop.f32.mrf.mxu0
      %v660 = vadd.f32 0.0, %v659
      %v661 = vpop.f32.mrf.mxu0
      %v662 = vpop.f32.mrf.mxu0
      %v663 = vadd.f32 0.0, %v662
      %v664 = vpop.f32.mrf.mxu0
      %665 = vmatprep.mubr.bf16.mxu0 0
      %666 = vmatmul.mubr.bf16.gmra.mxu0 %v455
      %v667 = vpop.f32.mrf.mxu0
      %v668 = vadd.f32 0.0, %v667
      %v669 = vpop.f32.mrf.mxu0
      %v670 = vpop.f32.mrf.mxu0
      %v671 = vadd.f32 0.0, %v670
      %v672 = vpop.f32.mrf.mxu0
      %673 = vmatprep.mubr.bf16.mxu0 0
      %674 = vmatmul.mubr.bf16.gmra.mxu0 %v456
      %v675 = vpop.f32.mrf.mxu0
      %v676 = vadd.f32 0.0, %v675
      %v677 = vpop.f32.mrf.mxu0
      %v678 = vpop.f32.mrf.mxu0
      %v679 = vadd.f32 0.0, %v678
      %v680 = vpop.f32.mrf.mxu0
      %681 = vdwg.mxu0
      %682 = vst [vmem:[#allocation4] sm:$0xff] %v556
      %683 = vst [vmem:[#allocation4 + $0x8] sm:$0xff] %v559
      %684 = vst [vmem:[#allocation4 + $0x10] sm:$0xff] %v564
      %685 = vst [vmem:[#allocation4 + $0x18] sm:$0xff] %v567
      %686 = vst [vmem:[#allocation4 + $0x20] sm:$0xff] %v572
      %687 = vst [vmem:[#allocation4 + $0x28] sm:$0xff] %v575
      %688 = vst [vmem:[#allocation4 + $0x30] sm:$0xff] %v580
      %689 = vst [vmem:[#allocation4 + $0x38] sm:$0xff] %v583
      %690 = vst [vmem:[#allocation4 + $0x40] sm:$0xff] %v588
      %691 = vst [vmem:[#allocation4 + $0x48] sm:$0xff] %v591
      %692 = vst [vmem:[#allocation4 + $0x50] sm:$0xff] %v596
      %693 = vst [vmem:[#allocation4 + $0x58] sm:$0xff] %v599
      %694 = vst [vmem:[#allocation4 + $0x60] sm:$0xff] %v604
      %695 = vst [vmem:[#allocation4 + $0x68] sm:$0xff] %v607
      %696 = vst [vmem:[#allocation4 + $0x70] sm:$0xff] %v612
      %697 = vst [vmem:[#allocation4 + $0x78] sm:$0xff] %v615
      %698 = vst [vmem:[#allocation4 + $0x80] sm:$0xff] %v620
      %699 = vst [vmem:[#allocation4 + $0x88] sm:$0xff] %v623
      %700 = vst [vmem:[#allocation4 + $0x90] sm:$0xff] %v628
      %701 = vst [vmem:[#allocation4 + $0x98] sm:$0xff] %v631
      %702 = vst [vmem:[#allocation4 + $0xa0] sm:$0xff] %v636
      %703 = vst [vmem:[#allocation4 + $0xa8] sm:$0xff] %v639
      %704 = vst [vmem:[#allocation4 + $0xb0] sm:$0xff] %v644
      %705 = vst [vmem:[#allocation4 + $0xb8] sm:$0xff] %v647
      %706 = vst [vmem:[#allocation4 + $0xc0] sm:$0xff] %v652
      %707 = vst [vmem:[#allocation4 + $0xc8] sm:$0xff] %v655
      %708 = vst [vmem:[#allocation4 + $0xd0] sm:$0xff] %v660
      %709 = vst [vmem:[#allocation4 + $0xd8] sm:$0xff] %v663
      %710 = vst [vmem:[#allocation4 + $0xe0] sm:$0xff] %v668
      %711 = vst [vmem:[#allocation4 + $0xe8] sm:$0xff] %v671
      %712 = vst [vmem:[#allocation4 + $0xf0] sm:$0xff] %v676
      %713 = vst [vmem:[#allocation4 + $0xf8] sm:$0xff] %v679
      %v714 = vld [vmem:[#allocation2 + $0x1] sm:$0xff]
      %v715 = vld [vmem:[#allocation2 + $0x9] sm:$0xff]
      %v716 = vld [vmem:[#allocation2 + $0x19] sm:$0xff]
      %v717 = vld [vmem:[#allocation2 + $0x21] sm:$0xff]
      %v718 = vld [vmem:[#allocation2 + $0x31] sm:$0xff]
      %v719 = vld [vmem:[#allocation2 + $0x39] sm:$0xff]
      %v720 = vld [vmem:[#allocation2 + $0x49] sm:$0xff]
      %v721 = vld [vmem:[#allocation2 + $0x51] sm:$0xff]
      %v722 = vld [vmem:[#allocation2 + $0x61] sm:$0xff]
      %v723 = vld [vmem:[#allocation2 + $0x69] sm:$0xff]
      %v724 = vld [vmem:[#allocation2 + $0x79] sm:$0xff]
      %v725 = vld [vmem:[#allocation2 + $0x81] sm:$0xff]
      %v726 = vld [vmem:[#allocation2 + $0x91] sm:$0xff]
      %v727 = vld [vmem:[#allocation2 + $0x99] sm:$0xff]
      %v728 = vld [vmem:[#allocation2 + $0xa9] sm:$0xff]
      %v729 = vld [vmem:[#allocation2 + $0xb1] sm:$0xff]
      %v730 = vld [vmem:[#allocation2 + $0xc1] sm:$0xff]
      %v731 = vld [vmem:[#allocation2 + $0xc9] sm:$0xff]
      %v732 = vld [vmem:[#allocation2 + $0xd9] sm:$0xff]
      %v733 = vld [vmem:[#allocation2 + $0xe1] sm:$0xff]
      %v734 = vld [vmem:[#allocation2 + $0xf1] sm:$0xff]
      %v735 = vld [vmem:[#allocation2 + $0xf9] sm:$0xff]
      %v736 = vld [vmem:[#allocation2 + $0x109] sm:$0xff]
      %v737 = vld [vmem:[#allocation2 + $0x111] sm:$0xff]
      %v738 = vld [vmem:[#allocation2 + $0x121] sm:$0xff]
      %v739 = vld [vmem:[#allocation2 + $0x129] sm:$0xff]
      %v740 = vld [vmem:[#allocation2 + $0x139] sm:$0xff]
      %v741 = vld [vmem:[#allocation2 + $0x141] sm:$0xff]
      %v742 = vld [vmem:[#allocation2 + $0x151] sm:$0xff]
      %v743 = vld [vmem:[#allocation2 + $0x159] sm:$0xff]
      %v744 = vld [vmem:[#allocation2 + $0x169] sm:$0xff]
      %v745 = vld [vmem:[#allocation2 + $0x171] sm:$0xff]
      %v746 = vpack.c.bf16 %v715, %v714
      %v747 = vpack.c.bf16 %v717, %v716
      %v748 = vpack.c.bf16 %v719, %v718
      %v749 = vpack.c.bf16 %v721, %v720
      %v750 = vpack.c.bf16 %v723, %v722
      %v751 = vpack.c.bf16 %v725, %v724
      %v752 = vpack.c.bf16 %v727, %v726
      %v753 = vpack.c.bf16 %v729, %v728
      %v754 = vpack.c.bf16 %v731, %v730
      %v755 = vpack.c.bf16 %v733, %v732
      %v756 = vpack.c.bf16 %v735, %v734
      %v757 = vpack.c.bf16 %v737, %v736
      %v758 = vpack.c.bf16 %v739, %v738
      %v759 = vpack.c.bf16 %v741, %v740
      %v760 = vpack.c.bf16 %v743, %v742
      %v761 = vpack.c.bf16 %v745, %v744
      %s762 = scalar_lea.vmem %s1, 64
      %v763 = vld [vmem:[%s762] sm:$0xf]
      %v764 = vld [vmem:[%s762 + $0x4] sm:$0xf]
      %v765 = vld [vmem:[%s762 + $0x8] sm:$0xf]
      %v766 = vld [vmem:[%s762 + $0xc] sm:$0xf]
      %v767 = vld [vmem:[%s762 + $0x10] sm:$0xf]
      %v768 = vld [vmem:[%s762 + $0x14] sm:$0xf]
      %v769 = vld [vmem:[%s762 + $0x18] sm:$0xf]
      %v770 = vld [vmem:[%s762 + $0x1c] sm:$0xf]
      %v771 = vld [vmem:[%s762 + $0x20] sm:$0xf]
      %v772 = vld [vmem:[%s762 + $0x24] sm:$0xf]
      %v773 = vld [vmem:[%s762 + $0x28] sm:$0xf]
      %v774 = vld [vmem:[%s762 + $0x2c] sm:$0xf]
      %v775 = vld [vmem:[%s762 + $0x30] sm:$0xf]
      %v776 = vld [vmem:[%s762 + $0x34] sm:$0xf]
      %v777 = vld [vmem:[%s762 + $0x38] sm:$0xf]
      %v778 = vld [vmem:[%s762 + $0x3c] sm:$0xf]
      %v795 = vunpack.c.l.b16 %v763
      %v796 = vunpack.c.l.b16 %v764
      %v797 = vunpack.c.l.b16 %v765
      %v798 = vunpack.c.l.b16 %v766
      %v799 = vunpack.c.l.b16 %v767
      %v800 = vunpack.c.l.b16 %v768
      %v801 = vunpack.c.l.b16 %v769
      %v802 = vunpack.c.l.b16 %v770
      %v803 = vunpack.c.l.b16 %v771
      %v804 = vunpack.c.l.b16 %v772
      %v805 = vunpack.c.l.b16 %v773
      %v806 = vunpack.c.l.b16 %v774
      %v807 = vunpack.c.l.b16 %v775
      %v808 = vunpack.c.l.b16 %v776
      %v809 = vunpack.c.l.b16 %v777
      %v810 = vunpack.c.l.b16 %v778
      %v811 = vpack.c.b16 %v796, %v795
      %v812 = vpack.c.b16 %v798, %v797
      %v813 = vpack.c.b16 %v800, %v799
      %v814 = vpack.c.b16 %v802, %v801
      %v815 = vpack.c.b16 %v804, %v803
      %v816 = vpack.c.b16 %v806, %v805
      %v817 = vpack.c.b16 %v808, %v807
      %v818 = vpack.c.b16 %v810, %v809
      %827 = vmatprep.subr.bf16.mxu0 0
      %828 = vmatpush1.bf16.msra.mxu0 %v818
      %829 = vmatprep.subr.bf16.mxu0 0
      %830 = vmatpush1.bf16.msra.mxu0 %v817
      %831 = vmatprep.subr.bf16.mxu0 0
      %832 = vmatpush1.bf16.msra.mxu0 %v816
      %833 = vmatprep.subr.bf16.mxu0 0
      %834 = vmatpush1.bf16.msra.mxu0 %v815
      %835 = vmatprep.subr.bf16.mxu0 0
      %836 = vmatpush1.bf16.msra.mxu0 %v814
      %837 = vmatprep.subr.bf16.mxu0 0
      %838 = vmatpush1.bf16.msra.mxu0 %v813
      %839 = vmatprep.subr.bf16.mxu0 0
      %840 = vmatpush1.bf16.msra.mxu0 %v812
      %841 = vmatprep.subr.bf16.mxu0 0
      %842 = vmatpush1.bf16.msra.mxu0 %v811
      %843 = vmatprep.subr.bf16.mxu0 0
      %844 = vmatpush2.bf16.msra.mxu0 0
      %845 = vmatprep.subr.bf16.mxu0 0
      %846 = vmatpush2.bf16.msra.mxu0 0
      %847 = vmatprep.subr.bf16.mxu0 0
      %848 = vmatpush2.bf16.msra.mxu0 0
      %849 = vmatprep.subr.bf16.mxu0 0
      %850 = vmatpush2.bf16.msra.mxu0 0
      %851 = vmatprep.subr.bf16.mxu0 0
      %852 = vmatpush2.bf16.msra.mxu0 0
      %853 = vmatprep.subr.bf16.mxu0 0
      %854 = vmatpush2.bf16.msra.mxu0 0
      %855 = vmatprep.subr.bf16.mxu0 0
      %856 = vmatpush2.bf16.msra.mxu0 0
      %857 = vmatprep.subr.bf16.mxu0 0
      %858 = vmatpush2.bf16.msra.mxu0 0
      %859 = vmatprep.mubr.bf16.mxu0 0
      %860 = vmatmul.mubr.bf16.gmra.mxu0 %v746
      %v861 = vpop.f32.mrf.mxu0
      %v862 = vadd.f32 0.0, %v861
      %v863 = vpop.f32.mrf.mxu0
      %v864 = vpop.f32.mrf.mxu0
      %v865 = vadd.f32 0.0, %v864
      %v866 = vpop.f32.mrf.mxu0
      %867 = vmatprep.mubr.bf16.mxu0 0
      %868 = vmatmul.mubr.bf16.gmra.mxu0 %v747
      %v869 = vpop.f32.mrf.mxu0
      %v870 = vadd.f32 0.0, %v869
      %v871 = vpop.f32.mrf.mxu0
      %v872 = vpop.f32.mrf.mxu0
      %v873 = vadd.f32 0.0, %v872
      %v874 = vpop.f32.mrf.mxu0
      %875 = vmatprep.mubr.bf16.mxu0 0
      %876 = vmatmul.mubr.bf16.gmra.mxu0 %v748
      %v877 = vpop.f32.mrf.mxu0
      %v878 = vadd.f32 0.0, %v877
      %v879 = vpop.f32.mrf.mxu0
      %v880 = vpop.f32.mrf.mxu0
      %v881 = vadd.f32 0.0, %v880
      %v882 = vpop.f32.mrf.mxu0
      %883 = vmatprep.mubr.bf16.mxu0 0
      %884 = vmatmul.mubr.bf16.gmra.mxu0 %v749
      %v885 = vpop.f32.mrf.mxu0
      %v886 = vadd.f32 0.0, %v885
      %v887 = vpop.f32.mrf.mxu0
      %v888 = vpop.f32.mrf.mxu0
      %v889 = vadd.f32 0.0, %v888
      %v890 = vpop.f32.mrf.mxu0
      %891 = vmatprep.mubr.bf16.mxu0 0
      %892 = vmatmul.mubr.bf16.gmra.mxu0 %v750
      %v893 = vpop.f32.mrf.mxu0
      %v894 = vadd.f32 0.0, %v893
      %v895 = vpop.f32.mrf.mxu0
      %v896 = vpop.f32.mrf.mxu0
      %v897 = vadd.f32 0.0, %v896
      %v898 = vpop.f32.mrf.mxu0
      %899 = vmatprep.mubr.bf16.mxu0 0
      %900 = vmatmul.mubr.bf16.gmra.mxu0 %v751
      %v901 = vpop.f32.mrf.mxu0
      %v902 = vadd.f32 0.0, %v901
      %v903 = vpop.f32.mrf.mxu0
      %v904 = vpop.f32.mrf.mxu0
      %v905 = vadd.f32 0.0, %v904
      %v906 = vpop.f32.mrf.mxu0
      %907 = vmatprep.mubr.bf16.mxu0 0
      %908 = vmatmul.mubr.bf16.gmra.mxu0 %v752
      %v909 = vpop.f32.mrf.mxu0
      %v910 = vadd.f32 0.0, %v909
      %v911 = vpop.f32.mrf.mxu0
      %v912 = vpop.f32.mrf.mxu0
      %v913 = vadd.f32 0.0, %v912
      %v914 = vpop.f32.mrf.mxu0
      %915 = vmatprep.mubr.bf16.mxu0 0
      %916 = vmatmul.mubr.bf16.gmra.mxu0 %v753
      %v917 = vpop.f32.mrf.mxu0
      %v918 = vadd.f32 0.0, %v917
      %v919 = vpop.f32.mrf.mxu0
      %v920 = vpop.f32.mrf.mxu0
      %v921 = vadd.f32 0.0, %v920
      %v922 = vpop.f32.mrf.mxu0
      %923 = vmatprep.mubr.bf16.mxu0 0
      %924 = vmatmul.mubr.bf16.gmra.mxu0 %v754
      %v925 = vpop.f32.mrf.mxu0
      %v926 = vadd.f32 0.0, %v925
      %v927 = vpop.f32.mrf.mxu0
      %v928 = vpop.f32.mrf.mxu0
      %v929 = vadd.f32 0.0, %v928
      %v930 = vpop.f32.mrf.mxu0
      %931 = vmatprep.mubr.bf16.mxu0 0
      %932 = vmatmul.mubr.bf16.gmra.mxu0 %v755
      %v933 = vpop.f32.mrf.mxu0
      %v934 = vadd.f32 0.0, %v933
      %v935 = vpop.f32.mrf.mxu0
      %v936 = vpop.f32.mrf.mxu0
      %v937 = vadd.f32 0.0, %v936
      %v938 = vpop.f32.mrf.mxu0
      %939 = vmatprep.mubr.bf16.mxu0 0
      %940 = vmatmul.mubr.bf16.gmra.mxu0 %v756
      %v941 = vpop.f32.mrf.mxu0
      %v942 = vadd.f32 0.0, %v941
      %v943 = vpop.f32.mrf.mxu0
      %v944 = vpop.f32.mrf.mxu0
      %v945 = vadd.f32 0.0, %v944
      %v946 = vpop.f32.mrf.mxu0
      %947 = vmatprep.mubr.bf16.mxu0 0
      %948 = vmatmul.mubr.bf16.gmra.mxu0 %v757
      %v949 = vpop.f32.mrf.mxu0
      %v950 = vadd.f32 0.0, %v949
      %v951 = vpop.f32.mrf.mxu0
      %v952 = vpop.f32.mrf.mxu0
      %v953 = vadd.f32 0.0, %v952
      %v954 = vpop.f32.mrf.mxu0
      %955 = vmatprep.mubr.bf16.mxu0 0
      %956 = vmatmul.mubr.bf16.gmra.mxu0 %v758
      %v957 = vpop.f32.mrf.mxu0
      %v958 = vadd.f32 0.0, %v957
      %v959 = vpop.f32.mrf.mxu0
      %v960 = vpop.f32.mrf.mxu0
      %v961 = vadd.f32 0.0, %v960
      %v962 = vpop.f32.mrf.mxu0
      %963 = vmatprep.mubr.bf16.mxu0 0
      %964 = vmatmul.mubr.bf16.gmra.mxu0 %v759
      %v965 = vpop.f32.mrf.mxu0
      %v966 = vadd.f32 0.0, %v965
      %v967 = vpop.f32.mrf.mxu0
      %v968 = vpop.f32.mrf.mxu0
      %v969 = vadd.f32 0.0, %v968
      %v970 = vpop.f32.mrf.mxu0
      %971 = vmatprep.mubr.bf16.mxu0 0
      %972 = vmatmul.mubr.bf16.gmra.mxu0 %v760
      %v973 = vpop.f32.mrf.mxu0
      %v974 = vadd.f32 0.0, %v973
      %v975 = vpop.f32.mrf.mxu0
      %v976 = vpop.f32.mrf.mxu0
      %v977 = vadd.f32 0.0, %v976
      %v978 = vpop.f32.mrf.mxu0
      %979 = vmatprep.mubr.bf16.mxu0 0
      %980 = vmatmul.mubr.bf16.gmra.mxu0 %v761
      %v981 = vpop.f32.mrf.mxu0
      %v982 = vadd.f32 0.0, %v981
      %v983 = vpop.f32.mrf.mxu0
      %v984 = vpop.f32.mrf.mxu0
      %v985 = vadd.f32 0.0, %v984
      %v986 = vpop.f32.mrf.mxu0
      %987 = vdwg.mxu0
      %v988 = vld [vmem:[#allocation4] sm:$0xff]
      %v989 = vld [vmem:[#allocation4 + $0x8] sm:$0xff]
      %v990 = vld [vmem:[#allocation4 + $0x10] sm:$0xff]
      %v991 = vld [vmem:[#allocation4 + $0x18] sm:$0xff]
      %v992 = vld [vmem:[#allocation4 + $0x20] sm:$0xff]
      %v993 = vld [vmem:[#allocation4 + $0x28] sm:$0xff]
      %v994 = vld [vmem:[#allocation4 + $0x30] sm:$0xff]
      %v995 = vld [vmem:[#allocation4 + $0x38] sm:$0xff]
      %v996 = vld [vmem:[#allocation4 + $0x40] sm:$0xff]
      %v997 = vld [vmem:[#allocation4 + $0x48] sm:$0xff]
      %v998 = vld [vmem:[#allocation4 + $0x50] sm:$0xff]
      %v999 = vld [vmem:[#allocation4 + $0x58] sm:$0xff]
      %v1000 = vld [vmem:[#allocation4 + $0x60] sm:$0xff]
      %v1001 = vld [vmem:[#allocation4 + $0x68] sm:$0xff]
      %v1002 = vld [vmem:[#allocation4 + $0x70] sm:$0xff]
      %v1003 = vld [vmem:[#allocation4 + $0x78] sm:$0xff]
      %v1004 = vld [vmem:[#allocation4 + $0x80] sm:$0xff]
      %v1005 = vld [vmem:[#allocation4 + $0x88] sm:$0xff]
      %v1006 = vld [vmem:[#allocation4 + $0x90] sm:$0xff]
      %v1007 = vld [vmem:[#allocation4 + $0x98] sm:$0xff]
      %v1008 = vld [vmem:[#allocation4 + $0xa0] sm:$0xff]
      %v1009 = vld [vmem:[#allocation4 + $0xa8] sm:$0xff]
      %v1010 = vld [vmem:[#allocation4 + $0xb0] sm:$0xff]
      %v1011 = vld [vmem:[#allocation4 + $0xb8] sm:$0xff]
      %v1012 = vld [vmem:[#allocation4 + $0xc0] sm:$0xff]
      %v1013 = vld [vmem:[#allocation4 + $0xc8] sm:$0xff]
      %v1014 = vld [vmem:[#allocation4 + $0xd0] sm:$0xff]
      %v1015 = vld [vmem:[#allocation4 + $0xd8] sm:$0xff]
      %v1016 = vld [vmem:[#allocation4 + $0xe0] sm:$0xff]
      %v1017 = vld [vmem:[#allocation4 + $0xe8] sm:$0xff]
      %v1018 = vld [vmem:[#allocation4 + $0xf0] sm:$0xff]
      %v1019 = vld [vmem:[#allocation4 + $0xf8] sm:$0xff]
      %v1020 = vadd.f32 %v988, %v862
      %v1021 = vadd.f32 %v989, %v865
      %v1022 = vadd.f32 %v990, %v870
      %v1023 = vadd.f32 %v991, %v873
      %v1024 = vadd.f32 %v992, %v878
      %v1025 = vadd.f32 %v993, %v881
      %v1026 = vadd.f32 %v994, %v886
      %v1027 = vadd.f32 %v995, %v889
      %v1028 = vadd.f32 %v996, %v894
      %v1029 = vadd.f32 %v997, %v897
      %v1030 = vadd.f32 %v998, %v902
      %v1031 = vadd.f32 %v999, %v905
      %v1032 = vadd.f32 %v1000, %v910
      %v1033 = vadd.f32 %v1001, %v913
      %v1034 = vadd.f32 %v1002, %v918
      %v1035 = vadd.f32 %v1003, %v921
      %v1036 = vadd.f32 %v1004, %v926
      %v1037 = vadd.f32 %v1005, %v929
      %v1038 = vadd.f32 %v1006, %v934
      %v1039 = vadd.f32 %v1007, %v937
      %v1040 = vadd.f32 %v1008, %v942
      %v1041 = vadd.f32 %v1009, %v945
      %v1042 = vadd.f32 %v1010, %v950
      %v1043 = vadd.f32 %v1011, %v953
      %v1044 = vadd.f32 %v1012, %v958
      %v1045 = vadd.f32 %v1013, %v961
      %v1046 = vadd.f32 %v1014, %v966
      %v1047 = vadd.f32 %v1015, %v969
      %v1048 = vadd.f32 %v1016, %v974
      %v1049 = vadd.f32 %v1017, %v977
      %v1050 = vadd.f32 %v1018, %v982
      %v1051 = vadd.f32 %v1019, %v985
      %1052 = vst [vmem:[#allocation4] sm:$0xff] %v1020
      %1053 = vst [vmem:[#allocation4 + $0x8] sm:$0xff] %v1021
      %1054 = vst [vmem:[#allocation4 + $0x10] sm:$0xff] %v1022
      %1055 = vst [vmem:[#allocation4 + $0x18] sm:$0xff] %v1023
      %1056 = vst [vmem:[#allocation4 + $0x20] sm:$0xff] %v1024
      %1057 = vst [vmem:[#allocation4 + $0x28] sm:$0xff] %v1025
      %1058 = vst [vmem:[#allocation4 + $0x30] sm:$0xff] %v1026
      %1059 = vst [vmem:[#allocation4 + $0x38] sm:$0xff] %v1027
      %1060 = vst [vmem:[#allocation4 + $0x40] sm:$0xff] %v1028
      %1061 = vst [vmem:[#allocation4 + $0x48] sm:$0xff] %v1029
      %1062 = vst [vmem:[#allocation4 + $0x50] sm:$0xff] %v1030
      %1063 = vst [vmem:[#allocation4 + $0x58] sm:$0xff] %v1031
      %1064 = vst [vmem:[#allocation4 + $0x60] sm:$0xff] %v1032
      %1065 = vst [vmem:[#allocation4 + $0x68] sm:$0xff] %v1033
      %1066 = vst [vmem:[#allocation4 + $0x70] sm:$0xff] %v1034
      %1067 = vst [vmem:[#allocation4 + $0x78] sm:$0xff] %v1035
      %1068 = vst [vmem:[#allocation4 + $0x80] sm:$0xff] %v1036
      %1069 = vst [vmem:[#allocation4 + $0x88] sm:$0xff] %v1037
      %1070 = vst [vmem:[#allocation4 + $0x90] sm:$0xff] %v1038
      %1071 = vst [vmem:[#allocation4 + $0x98] sm:$0xff] %v1039
      %1072 = vst [vmem:[#allocation4 + $0xa0] sm:$0xff] %v1040
      %1073 = vst [vmem:[#allocation4 + $0xa8] sm:$0xff] %v1041
      %1074 = vst [vmem:[#allocation4 + $0xb0] sm:$0xff] %v1042
      %1075 = vst [vmem:[#allocation4 + $0xb8] sm:$0xff] %v1043
      %1076 = vst [vmem:[#allocation4 + $0xc0] sm:$0xff] %v1044
      %1077 = vst [vmem:[#allocation4 + $0xc8] sm:$0xff] %v1045
      %1078 = vst [vmem:[#allocation4 + $0xd0] sm:$0xff] %v1046
      %1079 = vst [vmem:[#allocation4 + $0xd8] sm:$0xff] %v1047
      %1080 = vst [vmem:[#allocation4 + $0xe0] sm:$0xff] %v1048
      %1081 = vst [vmem:[#allocation4 + $0xe8] sm:$0xff] %v1049
      %1082 = vst [vmem:[#allocation4 + $0xf0] sm:$0xff] %v1050
      %1083 = vst [vmem:[#allocation4 + $0xf8] sm:$0xff] %v1051
      %v1084 = vld [vmem:[#allocation2 + $0x2] sm:$0xff]
      %v1085 = vld [vmem:[#allocation2 + $0xa] sm:$0xff]
      %v1086 = vld [vmem:[#allocation2 + $0x1a] sm:$0xff]
      %v1087 = vld [vmem:[#allocation2 + $0x22] sm:$0xff]
      %v1088 = vld [vmem:[#allocation2 + $0x32] sm:$0xff]
      %v1089 = vld [vmem:[#allocation2 + $0x3a] sm:$0xff]
      %v1090 = vld [vmem:[#allocation2 + $0x4a] sm:$0xff]
      %v1091 = vld [vmem:[#allocation2 + $0x52] sm:$0xff]
      %v1092 = vld [vmem:[#allocation2 + $0x62] sm:$0xff]
      %v1093 = vld [vmem:[#allocation2 + $0x6a] sm:$0xff]
      %v1094 = vld [vmem:[#allocation2 + $0x7a] sm:$0xff]
      %v1095 = vld [vmem:[#allocation2 + $0x82] sm:$0xff]
      %v1096 = vld [vmem:[#allocation2 + $0x92] sm:$0xff]
      %v1097 = vld [vmem:[#allocation2 + $0x9a] sm:$0xff]
      %v1098 = vld [vmem:[#allocation2 + $0xaa] sm:$0xff]
      %v1099 = vld [vmem:[#allocation2 + $0xb2] sm:$0xff]
      %v1100 = vld [vmem:[#allocation2 + $0xc2] sm:$0xff]
      %v1101 = vld [vmem:[#allocation2 + $0xca] sm:$0xff]
      %v1102 = vld [vmem:[#allocation2 + $0xda] sm:$0xff]
      %v1103 = vld [vmem:[#allocation2 + $0xe2] sm:$0xff]
      %v1104 = vld [vmem:[#allocation2 + $0xf2] sm:$0xff]
      %v1105 = vld [vmem:[#allocation2 + $0xfa] sm:$0xff]
      %v1106 = vld [vmem:[#allocation2 + $0x10a] sm:$0xff]
      %v1107 = vld [vmem:[#allocation2 + $0x112] sm:$0xff]
      %v1108 = vld [vmem:[#allocation2 + $0x122] sm:$0xff]
      %v1109 = vld [vmem:[#allocation2 + $0x12a] sm:$0xff]
      %v1110 = vld [vmem:[#allocation2 + $0x13a] sm:$0xff]
      %v1111 = vld [vmem:[#allocation2 + $0x142] sm:$0xff]
      %v1112 = vld [vmem:[#allocation2 + $0x152] sm:$0xff]
      %v1113 = vld [vmem:[#allocation2 + $0x15a] sm:$0xff]
      %v1114 = vld [vmem:[#allocation2 + $0x16a] sm:$0xff]
      %v1115 = vld [vmem:[#allocation2 + $0x172] sm:$0xff]
      %v1116 = vpack.c.bf16 %v1085, %v1084
      %v1117 = vpack.c.bf16 %v1087, %v1086
      %v1118 = vpack.c.bf16 %v1089, %v1088
      %v1119 = vpack.c.bf16 %v1091, %v1090
      %v1120 = vpack.c.bf16 %v1093, %v1092
      %v1121 = vpack.c.bf16 %v1095, %v1094
      %v1122 = vpack.c.bf16 %v1097, %v1096
      %v1123 = vpack.c.bf16 %v1099, %v1098
      %v1124 = vpack.c.bf16 %v1101, %v1100
      %v1125 = vpack.c.bf16 %v1103, %v1102
      %v1126 = vpack.c.bf16 %v1105, %v1104
      %v1127 = vpack.c.bf16 %v1107, %v1106
      %v1128 = vpack.c.bf16 %v1109, %v1108
      %v1129 = vpack.c.bf16 %v1111, %v1110
      %v1130 = vpack.c.bf16 %v1113, %v1112
      %v1131 = vpack.c.bf16 %v1115, %v1114
      %s1132 = scalar_lea.vmem %s1, 128
      %v1133 = vld [vmem:[%s1132] sm:$0xf]
      %v1134 = vld [vmem:[%s1132 + $0x4] sm:$0xf]
      %v1135 = vld [vmem:[%s1132 + $0x8] sm:$0xf]
      %v1136 = vld [vmem:[%s1132 + $0xc] sm:$0xf]
      %v1137 = vld [vmem:[%s1132 + $0x10] sm:$0xf]
      %v1138 = vld [vmem:[%s1132 + $0x14] sm:$0xf]
      %v1139 = vld [vmem:[%s1132 + $0x18] sm:$0xf]
      %v1140 = vld [vmem:[%s1132 + $0x1c] sm:$0xf]
      %v1141 = vld [vmem:[%s1132 + $0x20] sm:$0xf]
      %v1142 = vld [vmem:[%s1132 + $0x24] sm:$0xf]
      %v1143 = vld [vmem:[%s1132 + $0x28] sm:$0xf]
      %v1144 = vld [vmem:[%s1132 + $0x2c] sm:$0xf]
      %v1145 = vld [vmem:[%s1132 + $0x30] sm:$0xf]
      %v1146 = vld [vmem:[%s1132 + $0x34] sm:$0xf]
      %v1147 = vld [vmem:[%s1132 + $0x38] sm:$0xf]
      %v1148 = vld [vmem:[%s1132 + $0x3c] sm:$0xf]
      %v1165 = vunpack.c.l.b16 %v1133
      %v1166 = vunpack.c.l.b16 %v1134
      %v1167 = vunpack.c.l.b16 %v1135
      %v1168 = vunpack.c.l.b16 %v1136
      %v1169 = vunpack.c.l.b16 %v1137
      %v1170 = vunpack.c.l.b16 %v1138
      %v1171 = vunpack.c.l.b16 %v1139
      %v1172 = vunpack.c.l.b16 %v1140
      %v1173 = vunpack.c.l.b16 %v1141
      %v1174 = vunpack.c.l.b16 %v1142
      %v1175 = vunpack.c.l.b16 %v1143
      %v1176 = vunpack.c.l.b16 %v1144
      %v1177 = vunpack.c.l.b16 %v1145
      %v1178 = vunpack.c.l.b16 %v1146
      %v1179 = vunpack.c.l.b16 %v1147
      %v1180 = vunpack.c.l.b16 %v1148
      %v1181 = vpack.c.b16 %v1166, %v1165
      %v1182 = vpack.c.b16 %v1168, %v1167
      %v1183 = vpack.c.b16 %v1170, %v1169
      %v1184 = vpack.c.b16 %v1172, %v1171
      %v1185 = vpack.c.b16 %v1174, %v1173
      %v1186 = vpack.c.b16 %v1176, %v1175
      %v1187 = vpack.c.b16 %v1178, %v1177
      %v1188 = vpack.c.b16 %v1180, %v1179
      %1197 = vmatprep.subr.bf16.mxu0 0
      %1198 = vmatpush1.bf16.msra.mxu0 %v1188
      %1199 = vmatprep.subr.bf16.mxu0 0
      %1200 = vmatpush1.bf16.msra.mxu0 %v1187
      %1201 = vmatprep.subr.bf16.mxu0 0
      %1202 = vmatpush1.bf16.msra.mxu0 %v1186
      %1203 = vmatprep.subr.bf16.mxu0 0
      %1204 = vmatpush1.bf16.msra.mxu0 %v1185
      %1205 = vmatprep.subr.bf16.mxu0 0
      %1206 = vmatpush1.bf16.msra.mxu0 %v1184
      %1207 = vmatprep.subr.bf16.mxu0 0
      %1208 = vmatpush1.bf16.msra.mxu0 %v1183
      %1209 = vmatprep.subr.bf16.mxu0 0
      %1210 = vmatpush1.bf16.msra.mxu0 %v1182
      %1211 = vmatprep.subr.bf16.mxu0 0
      %1212 = vmatpush1.bf16.msra.mxu0 %v1181
      %1213 = vmatprep.subr.bf16.mxu0 0
      %1214 = vmatpush2.bf16.msra.mxu0 0
      %1215 = vmatprep.subr.bf16.mxu0 0
      %1216 = vmatpush2.bf16.msra.mxu0 0
      %1217 = vmatprep.subr.bf16.mxu0 0
      %1218 = vmatpush2.bf16.msra.mxu0 0
      %1219 = vmatprep.subr.bf16.mxu0 0
      %1220 = vmatpush2.bf16.msra.mxu0 0
      %1221 = vmatprep.subr.bf16.mxu0 0
      %1222 = vmatpush2.bf16.msra.mxu0 0
      %1223 = vmatprep.subr.bf16.mxu0 0
      %1224 = vmatpush2.bf16.msra.mxu0 0
      %1225 = vmatprep.subr.bf16.mxu0 0
      %1226 = vmatpush2.bf16.msra.mxu0 0
      %1227 = vmatprep.subr.bf16.mxu0 0
      %1228 = vmatpush2.bf16.msra.mxu0 0
      %1229 = vmatprep.mubr.bf16.mxu0 0
      %1230 = vmatmul.mubr.bf16.gmra.mxu0 %v1116
      %v1231 = vpop.f32.mrf.mxu0
      %v1232 = vadd.f32 0.0, %v1231
      %v1233 = vpop.f32.mrf.mxu0
      %v1234 = vpop.f32.mrf.mxu0
      %v1235 = vadd.f32 0.0, %v1234
      %v1236 = vpop.f32.mrf.mxu0
      %1237 = vmatprep.mubr.bf16.mxu0 0
      %1238 = vmatmul.mubr.bf16.gmra.mxu0 %v1117
      %v1239 = vpop.f32.mrf.mxu0
      %v1240 = vadd.f32 0.0, %v1239
      %v1241 = vpop.f32.mrf.mxu0
      %v1242 = vpop.f32.mrf.mxu0
      %v1243 = vadd.f32 0.0, %v1242
      %v1244 = vpop.f32.mrf.mxu0
      %1245 = vmatprep.mubr.bf16.mxu0 0
      %1246 = vmatmul.mubr.bf16.gmra.mxu0 %v1118
      %v1247 = vpop.f32.mrf.mxu0
      %v1248 = vadd.f32 0.0, %v1247
      %v1249 = vpop.f32.mrf.mxu0
      %v1250 = vpop.f32.mrf.mxu0
      %v1251 = vadd.f32 0.0, %v1250
      %v1252 = vpop.f32.mrf.mxu0
      %1253 = vmatprep.mubr.bf16.mxu0 0
      %1254 = vmatmul.mubr.bf16.gmra.mxu0 %v1119
      %v1255 = vpop.f32.mrf.mxu0
      %v1256 = vadd.f32 0.0, %v1255
      %v1257 = vpop.f32.mrf.mxu0
      %v1258 = vpop.f32.mrf.mxu0
      %v1259 = vadd.f32 0.0, %v1258
      %v1260 = vpop.f32.mrf.mxu0
      %1261 = vmatprep.mubr.bf16.mxu0 0
      %1262 = vmatmul.mubr.bf16.gmra.mxu0 %v1120
      %v1263 = vpop.f32.mrf.mxu0
      %v1264 = vadd.f32 0.0, %v1263
      %v1265 = vpop.f32.mrf.mxu0
      %v1266 = vpop.f32.mrf.mxu0
      %v1267 = vadd.f32 0.0, %v1266
      %v1268 = vpop.f32.mrf.mxu0
      %1269 = vmatprep.mubr.bf16.mxu0 0
      %1270 = vmatmul.mubr.bf16.gmra.mxu0 %v1121
      %v1271 = vpop.f32.mrf.mxu0
      %v1272 = vadd.f32 0.0, %v1271
      %v1273 = vpop.f32.mrf.mxu0
      %v1274 = vpop.f32.mrf.mxu0
      %v1275 = vadd.f32 0.0, %v1274
      %v1276 = vpop.f32.mrf.mxu0
      %1277 = vmatprep.mubr.bf16.mxu0 0
      %1278 = vmatmul.mubr.bf16.gmra.mxu0 %v1122
      %v1279 = vpop.f32.mrf.mxu0
      %v1280 = vadd.f32 0.0, %v1279
      %v1281 = vpop.f32.mrf.mxu0
      %v1282 = vpop.f32.mrf.mxu0
      %v1283 = vadd.f32 0.0, %v1282
      %v1284 = vpop.f32.mrf.mxu0
      %1285 = vmatprep.mubr.bf16.mxu0 0
      %1286 = vmatmul.mubr.bf16.gmra.mxu0 %v1123
      %v1287 = vpop.f32.mrf.mxu0
      %v1288 = vadd.f32 0.0, %v1287
      %v1289 = vpop.f32.mrf.mxu0
      %v1290 = vpop.f32.mrf.mxu0
      %v1291 = vadd.f32 0.0, %v1290
      %v1292 = vpop.f32.mrf.mxu0
      %1293 = vmatprep.mubr.bf16.mxu0 0
      %1294 = vmatmul.mubr.bf16.gmra.mxu0 %v1124
      %v1295 = vpop.f32.mrf.mxu0
      %v1296 = vadd.f32 0.0, %v1295
      %v1297 = vpop.f32.mrf.mxu0
      %v1298 = vpop.f32.mrf.mxu0
      %v1299 = vadd.f32 0.0, %v1298
      %v1300 = vpop.f32.mrf.mxu0
      %1301 = vmatprep.mubr.bf16.mxu0 0
      %1302 = vmatmul.mubr.bf16.gmra.mxu0 %v1125
      %v1303 = vpop.f32.mrf.mxu0
      %v1304 = vadd.f32 0.0, %v1303
      %v1305 = vpop.f32.mrf.mxu0
      %v1306 = vpop.f32.mrf.mxu0
      %v1307 = vadd.f32 0.0, %v1306
      %v1308 = vpop.f32.mrf.mxu0
      %1309 = vmatprep.mubr.bf16.mxu0 0
      %1310 = vmatmul.mubr.bf16.gmra.mxu0 %v1126
      %v1311 = vpop.f32.mrf.mxu0
      %v1312 = vadd.f32 0.0, %v1311
      %v1313 = vpop.f32.mrf.mxu0
      %v1314 = vpop.f32.mrf.mxu0
      %v1315 = vadd.f32 0.0, %v1314
      %v1316 = vpop.f32.mrf.mxu0
      %1317 = vmatprep.mubr.bf16.mxu0 0
      %1318 = vmatmul.mubr.bf16.gmra.mxu0 %v1127
      %v1319 = vpop.f32.mrf.mxu0
      %v1320 = vadd.f32 0.0, %v1319
      %v1321 = vpop.f32.mrf.mxu0
      %v1322 = vpop.f32.mrf.mxu0
      %v1323 = vadd.f32 0.0, %v1322
      %v1324 = vpop.f32.mrf.mxu0
      %1325 = vmatprep.mubr.bf16.mxu0 0
      %1326 = vmatmul.mubr.bf16.gmra.mxu0 %v1128
      %v1327 = vpop.f32.mrf.mxu0
      %v1328 = vadd.f32 0.0, %v1327
      %v1329 = vpop.f32.mrf.mxu0
      %v1330 = vpop.f32.mrf.mxu0
      %v1331 = vadd.f32 0.0, %v1330
      %v1332 = vpop.f32.mrf.mxu0
      %1333 = vmatprep.mubr.bf16.mxu0 0
      %1334 = vmatmul.mubr.bf16.gmra.mxu0 %v1129
      %v1335 = vpop.f32.mrf.mxu0
      %v1336 = vadd.f32 0.0, %v1335
      %v1337 = vpop.f32.mrf.mxu0
      %v1338 = vpop.f32.mrf.mxu0
      %v1339 = vadd.f32 0.0, %v1338
      %v1340 = vpop.f32.mrf.mxu0
      %1341 = vmatprep.mubr.bf16.mxu0 0
      %1342 = vmatmul.mubr.bf16.gmra.mxu0 %v1130
      %v1343 = vpop.f32.mrf.mxu0
      %v1344 = vadd.f32 0.0, %v1343
      %v1345 = vpop.f32.mrf.mxu0
      %v1346 = vpop.f32.mrf.mxu0
      %v1347 = vadd.f32 0.0, %v1346
      %v1348 = vpop.f32.mrf.mxu0
      %1349 = vmatprep.mubr.bf16.mxu0 0
      %1350 = vmatmul.mubr.bf16.gmra.mxu0 %v1131
      %v1351 = vpop.f32.mrf.mxu0
      %v1352 = vadd.f32 0.0, %v1351
      %v1353 = vpop.f32.mrf.mxu0
      %v1354 = vpop.f32.mrf.mxu0
      %v1355 = vadd.f32 0.0, %v1354
      %v1356 = vpop.f32.mrf.mxu0
      %1357 = vdwg.mxu0
      %v1358 = vld [vmem:[#allocation4] sm:$0xff]
      %v1359 = vld [vmem:[#allocation4 + $0x8] sm:$0xff]
      %v1360 = vld [vmem:[#allocation4 + $0x10] sm:$0xff]
      %v1361 = vld [vmem:[#allocation4 + $0x18] sm:$0xff]
      %v1362 = vld [vmem:[#allocation4 + $0x20] sm:$0xff]
      %v1363 = vld [vmem:[#allocation4 + $0x28] sm:$0xff]
      %v1364 = vld [vmem:[#allocation4 + $0x30] sm:$0xff]
      %v1365 = vld [vmem:[#allocation4 + $0x38] sm:$0xff]
      %v1366 = vld [vmem:[#allocation4 + $0x40] sm:$0xff]
      %v1367 = vld [vmem:[#allocation4 + $0x48] sm:$0xff]
      %v1368 = vld [vmem:[#allocation4 + $0x50] sm:$0xff]
      %v1369 = vld [vmem:[#allocation4 + $0x58] sm:$0xff]
      %v1370 = vld [vmem:[#allocation4 + $0x60] sm:$0xff]
      %v1371 = vld [vmem:[#allocation4 + $0x68] sm:$0xff]
      %v1372 = vld [vmem:[#allocation4 + $0x70] sm:$0xff]
      %v1373 = vld [vmem:[#allocation4 + $0x78] sm:$0xff]
      %v1374 = vld [vmem:[#allocation4 + $0x80] sm:$0xff]
      %v1375 = vld [vmem:[#allocation4 + $0x88] sm:$0xff]
      %v1376 = vld [vmem:[#allocation4 + $0x90] sm:$0xff]
      %v1377 = vld [vmem:[#allocation4 + $0x98] sm:$0xff]
      %v1378 = vld [vmem:[#allocation4 + $0xa0] sm:$0xff]
      %v1379 = vld [vmem:[#allocation4 + $0xa8] sm:$0xff]
      %v1380 = vld [vmem:[#allocation4 + $0xb0] sm:$0xff]
      %v1381 = vld [vmem:[#allocation4 + $0xb8] sm:$0xff]
      %v1382 = vld [vmem:[#allocation4 + $0xc0] sm:$0xff]
      %v1383 = vld [vmem:[#allocation4 + $0xc8] sm:$0xff]
      %v1384 = vld [vmem:[#allocation4 + $0xd0] sm:$0xff]
      %v1385 = vld [vmem:[#allocation4 + $0xd8] sm:$0xff]
      %v1386 = vld [vmem:[#allocation4 + $0xe0] sm:$0xff]
      %v1387 = vld [vmem:[#allocation4 + $0xe8] sm:$0xff]
      %v1388 = vld [vmem:[#allocation4 + $0xf0] sm:$0xff]
      %v1389 = vld [vmem:[#allocation4 + $0xf8] sm:$0xff]
      %v1390 = vadd.f32 %v1358, %v1232
      %v1391 = vadd.f32 %v1359, %v1235
      %v1392 = vadd.f32 %v1360, %v1240
      %v1393 = vadd.f32 %v1361, %v1243
      %v1394 = vadd.f32 %v1362, %v1248
      %v1395 = vadd.f32 %v1363, %v1251
      %v1396 = vadd.f32 %v1364, %v1256
      %v1397 = vadd.f32 %v1365, %v1259
      %v1398 = vadd.f32 %v1366, %v1264
      %v1399 = vadd.f32 %v1367, %v1267
      %v1400 = vadd.f32 %v1368, %v1272
      %v1401 = vadd.f32 %v1369, %v1275
      %v1402 = vadd.f32 %v1370, %v1280
      %v1403 = vadd.f32 %v1371, %v1283
      %v1404 = vadd.f32 %v1372, %v1288
      %v1405 = vadd.f32 %v1373, %v1291
      %v1406 = vadd.f32 %v1374, %v1296
      %v1407 = vadd.f32 %v1375, %v1299
      %v1408 = vadd.f32 %v1376, %v1304
      %v1409 = vadd.f32 %v1377, %v1307
      %v1410 = vadd.f32 %v1378, %v1312
      %v1411 = vadd.f32 %v1379, %v1315
      %v1412 = vadd.f32 %v1380, %v1320
      %v1413 = vadd.f32 %v1381, %v1323
      %v1414 = vadd.f32 %v1382, %v1328
      %v1415 = vadd.f32 %v1383, %v1331
      %v1416 = vadd.f32 %v1384, %v1336
      %v1417 = vadd.f32 %v1385, %v1339
      %v1418 = vadd.f32 %v1386, %v1344
      %v1419 = vadd.f32 %v1387, %v1347
      %v1420 = vadd.f32 %v1388, %v1352
      %v1421 = vadd.f32 %v1389, %v1355
      %1422 = vst [vmem:[#allocation4] sm:$0xff] %v1390
      %1423 = vst [vmem:[#allocation4 + $0x8] sm:$0xff] %v1391
      %1424 = vst [vmem:[#allocation4 + $0x10] sm:$0xff] %v1392
      %1425 = vst [vmem:[#allocation4 + $0x18] sm:$0xff] %v1393
      %1426 = vst [vmem:[#allocation4 + $0x20] sm:$0xff] %v1394
      %1427 = vst [vmem:[#allocation4 + $0x28] sm:$0xff] %v1395
      %1428 = vst [vmem:[#allocation4 + $0x30] sm:$0xff] %v1396
      %1429 = vst [vmem:[#allocation4 + $0x38] sm:$0xff] %v1397
      %1430 = vst [vmem:[#allocation4 + $0x40] sm:$0xff] %v1398
      %1431 = vst [vmem:[#allocation4 + $0x48] sm:$0xff] %v1399
      %1432 = vst [vmem:[#allocation4 + $0x50] sm:$0xff] %v1400
      %1433 = vst [vmem:[#allocation4 + $0x58] sm:$0xff] %v1401
      %1434 = vst [vmem:[#allocation4 + $0x60] sm:$0xff] %v1402
      %1435 = vst [vmem:[#allocation4 + $0x68] sm:$0xff] %v1403
      %1436 = vst [vmem:[#allocation4 + $0x70] sm:$0xff] %v1404
      %1437 = vst [vmem:[#allocation4 + $0x78] sm:$0xff] %v1405
      %1438 = vst [vmem:[#allocation4 + $0x80] sm:$0xff] %v1406
      %1439 = vst [vmem:[#allocation4 + $0x88] sm:$0xff] %v1407
      %1440 = vst [vmem:[#allocation4 + $0x90] sm:$0xff] %v1408
      %1441 = vst [vmem:[#allocation4 + $0x98] sm:$0xff] %v1409
      %1442 = vst [vmem:[#allocation4 + $0xa0] sm:$0xff] %v1410
      %1443 = vst [vmem:[#allocation4 + $0xa8] sm:$0xff] %v1411
      %1444 = vst [vmem:[#allocation4 + $0xb0] sm:$0xff] %v1412
      %1445 = vst [vmem:[#allocation4 + $0xb8] sm:$0xff] %v1413
      %1446 = vst [vmem:[#allocation4 + $0xc0] sm:$0xff] %v1414
      %1447 = vst [vmem:[#allocation4 + $0xc8] sm:$0xff] %v1415
      %1448 = vst [vmem:[#allocation4 + $0xd0] sm:$0xff] %v1416
      %1449 = vst [vmem:[#allocation4 + $0xd8] sm:$0xff] %v1417
      %1450 = vst [vmem:[#allocation4 + $0xe0] sm:$0xff] %v1418
      %1451 = vst [vmem:[#allocation4 + $0xe8] sm:$0xff] %v1419
      %1452 = vst [vmem:[#allocation4 + $0xf0] sm:$0xff] %v1420
      %1453 = vst [vmem:[#allocation4 + $0xf8] sm:$0xff] %v1421
      %v1454 = vld [vmem:[%s376] sm:$0xff]
      %v1455 = vld [vmem:[%s376 + $0x8] sm:$0xff]
      %v1456 = vld [vmem:[%s376 + $0x18] sm:$0xff]
      %v1457 = vld [vmem:[%s376 + $0x20] sm:$0xff]
      %v1458 = vld [vmem:[%s376 + $0x30] sm:$0xff]
      %v1459 = vld [vmem:[%s376 + $0x38] sm:$0xff]
      %v1460 = vld [vmem:[%s376 + $0x48] sm:$0xff]
      %v1461 = vld [vmem:[%s376 + $0x50] sm:$0xff]
      %v1462 = vld [vmem:[%s376 + $0x60] sm:$0xff]
      %v1463 = vld [vmem:[%s376 + $0x68] sm:$0xff]
      %v1464 = vld [vmem:[%s376 + $0x78] sm:$0xff]
      %v1465 = vld [vmem:[%s376 + $0x80] sm:$0xff]
      %v1466 = vld [vmem:[%s376 + $0x90] sm:$0xff]
      %v1467 = vld [vmem:[%s376 + $0x98] sm:$0xff]
      %v1468 = vld [vmem:[%s376 + $0xa8] sm:$0xff]
      %v1469 = vld [vmem:[%s376 + $0xb0] sm:$0xff]
      %v1470 = vld [vmem:[%s376 + $0xc0] sm:$0xff]
      %v1471 = vld [vmem:[%s376 + $0xc8] sm:$0xff]
      %v1472 = vld [vmem:[%s376 + $0xd8] sm:$0xff]
      %v1473 = vld [vmem:[%s376 + $0xe0] sm:$0xff]
      %v1474 = vld [vmem:[%s376 + $0xf0] sm:$0xff]
      %v1475 = vld [vmem:[%s376 + $0xf8] sm:$0xff]
      %v1476 = vld [vmem:[%s376 + $0x108] sm:$0xff]
      %v1477 = vld [vmem:[%s376 + $0x110] sm:$0xff]
      %v1478 = vld [vmem:[%s376 + $0x120] sm:$0xff]
      %v1479 = vld [vmem:[%s376 + $0x128] sm:$0xff]
      %v1480 = vld [vmem:[%s376 + $0x138] sm:$0xff]
      %v1481 = vld [vmem:[%s376 + $0x140] sm:$0xff]
      %v1482 = vld [vmem:[%s376 + $0x150] sm:$0xff]
      %v1483 = vld [vmem:[%s376 + $0x158] sm:$0xff]
      %v1484 = vld [vmem:[%s376 + $0x168] sm:$0xff]
      %v1485 = vld [vmem:[%s376 + $0x170] sm:$0xff]
      %v1486 = vpack.c.bf16 %v1455, %v1454
      %v1487 = vpack.c.bf16 %v1457, %v1456
      %v1488 = vpack.c.bf16 %v1459, %v1458
      %v1489 = vpack.c.bf16 %v1461, %v1460
      %v1490 = vpack.c.bf16 %v1463, %v1462
      %v1491 = vpack.c.bf16 %v1465, %v1464
      %v1492 = vpack.c.bf16 %v1467, %v1466
      %v1493 = vpack.c.bf16 %v1469, %v1468
      %v1494 = vpack.c.bf16 %v1471, %v1470
      %v1495 = vpack.c.bf16 %v1473, %v1472
      %v1496 = vpack.c.bf16 %v1475, %v1474
      %v1497 = vpack.c.bf16 %v1477, %v1476
      %v1498 = vpack.c.bf16 %v1479, %v1478
      %v1499 = vpack.c.bf16 %v1481, %v1480
      %v1500 = vpack.c.bf16 %v1483, %v1482
      %v1501 = vpack.c.bf16 %v1485, %v1484
      %s1502 = scalar_lea.vmem %s1, 192
      %v1503 = vld [vmem:[%s1502] sm:$0xf]
      %v1504 = vld [vmem:[%s1502 + $0x4] sm:$0xf]
      %v1505 = vld [vmem:[%s1502 + $0x8] sm:$0xf]
      %v1506 = vld [vmem:[%s1502 + $0xc] sm:$0xf]
      %v1507 = vld [vmem:[%s1502 + $0x10] sm:$0xf]
      %v1508 = vld [vmem:[%s1502 + $0x14] sm:$0xf]
      %v1509 = vld [vmem:[%s1502 + $0x18] sm:$0xf]
      %v1510 = vld [vmem:[%s1502 + $0x1c] sm:$0xf]
      %v1511 = vld [vmem:[%s1502 + $0x20] sm:$0xf]
      %v1512 = vld [vmem:[%s1502 + $0x24] sm:$0xf]
      %v1513 = vld [vmem:[%s1502 + $0x28] sm:$0xf]
      %v1514 = vld [vmem:[%s1502 + $0x2c] sm:$0xf]
      %v1515 = vld [vmem:[%s1502 + $0x30] sm:$0xf]
      %v1516 = vld [vmem:[%s1502 + $0x34] sm:$0xf]
      %v1517 = vld [vmem:[%s1502 + $0x38] sm:$0xf]
      %v1518 = vld [vmem:[%s1502 + $0x3c] sm:$0xf]
      %v1535 = vunpack.c.l.b16 %v1503
      %v1536 = vunpack.c.l.b16 %v1504
      %v1537 = vunpack.c.l.b16 %v1505
      %v1538 = vunpack.c.l.b16 %v1506
      %v1539 = vunpack.c.l.b16 %v1507
      %v1540 = vunpack.c.l.b16 %v1508
      %v1541 = vunpack.c.l.b16 %v1509
      %v1542 = vunpack.c.l.b16 %v1510
      %v1543 = vunpack.c.l.b16 %v1511
      %v1544 = vunpack.c.l.b16 %v1512
      %v1545 = vunpack.c.l.b16 %v1513
      %v1546 = vunpack.c.l.b16 %v1514
      %v1547 = vunpack.c.l.b16 %v1515
      %v1548 = vunpack.c.l.b16 %v1516
      %v1549 = vunpack.c.l.b16 %v1517
      %v1550 = vunpack.c.l.b16 %v1518
      %v1551 = vpack.c.b16 %v1536, %v1535
      %v1552 = vpack.c.b16 %v1538, %v1537
      %v1553 = vpack.c.b16 %v1540, %v1539
      %v1554 = vpack.c.b16 %v1542, %v1541
      %v1555 = vpack.c.b16 %v1544, %v1543
      %v1556 = vpack.c.b16 %v1546, %v1545
      %v1557 = vpack.c.b16 %v1548, %v1547
      %v1558 = vpack.c.b16 %v1550, %v1549
      %1567 = vmatprep.subr.bf16.mxu0 0
      %1568 = vmatpush1.bf16.msra.mxu0 %v1558
      %1569 = vmatprep.subr.bf16.mxu0 0
      %1570 = vmatpush1.bf16.msra.mxu0 %v1557
      %1571 = vmatprep.subr.bf16.mxu0 0
      %1572 = vmatpush1.bf16.msra.mxu0 %v1556
      %1573 = vmatprep.subr.bf16.mxu0 0
      %1574 = vmatpush1.bf16.msra.mxu0 %v1555
      %1575 = vmatprep.subr.bf16.mxu0 0
      %1576 = vmatpush1.bf16.msra.mxu0 %v1554
      %1577 = vmatprep.subr.bf16.mxu0 0
      %1578 = vmatpush1.bf16.msra.mxu0 %v1553
      %1579 = vmatprep.subr.bf16.mxu0 0
      %1580 = vmatpush1.bf16.msra.mxu0 %v1552
      %1581 = vmatprep.subr.bf16.mxu0 0
      %1582 = vmatpush1.bf16.msra.mxu0 %v1551
      %1583 = vmatprep.subr.bf16.mxu0 0
      %1584 = vmatpush2.bf16.msra.mxu0 0
      %1585 = vmatprep.subr.bf16.mxu0 0
      %1586 = vmatpush2.bf16.msra.mxu0 0
      %1587 = vmatprep.subr.bf16.mxu0 0
      %1588 = vmatpush2.bf16.msra.mxu0 0
      %1589 = vmatprep.subr.bf16.mxu0 0
      %1590 = vmatpush2.bf16.msra.mxu0 0
      %1591 = vmatprep.subr.bf16.mxu0 0
      %1592 = vmatpush2.bf16.msra.mxu0 0
      %1593 = vmatprep.subr.bf16.mxu0 0
      %1594 = vmatpush2.bf16.msra.mxu0 0
      %1595 = vmatprep.subr.bf16.mxu0 0
      %1596 = vmatpush2.bf16.msra.mxu0 0
      %1597 = vmatprep.subr.bf16.mxu0 0
      %1598 = vmatpush2.bf16.msra.mxu0 0
      %1599 = vmatprep.mubr.bf16.mxu0 0
      %1600 = vmatmul.mubr.bf16.gmra.mxu0 %v1486
      %v1601 = vpop.f32.mrf.mxu0
      %v1602 = vadd.f32 0.0, %v1601
      %v1603 = vpop.f32.mrf.mxu0
      %v1604 = vpop.f32.mrf.mxu0
      %v1605 = vadd.f32 0.0, %v1604
      %v1606 = vpop.f32.mrf.mxu0
      %1607 = vmatprep.mubr.bf16.mxu0 0
      %1608 = vmatmul.mubr.bf16.gmra.mxu0 %v1487
      %v1609 = vpop.f32.mrf.mxu0
      %v1610 = vadd.f32 0.0, %v1609
      %v1611 = vpop.f32.mrf.mxu0
      %v1612 = vpop.f32.mrf.mxu0
      %v1613 = vadd.f32 0.0, %v1612
      %v1614 = vpop.f32.mrf.mxu0
      %1615 = vmatprep.mubr.bf16.mxu0 0
      %1616 = vmatmul.mubr.bf16.gmra.mxu0 %v1488
      %v1617 = vpop.f32.mrf.mxu0
      %v1618 = vadd.f32 0.0, %v1617
      %v1619 = vpop.f32.mrf.mxu0
      %v1620 = vpop.f32.mrf.mxu0
      %v1621 = vadd.f32 0.0, %v1620
      %v1622 = vpop.f32.mrf.mxu0
      %1623 = vmatprep.mubr.bf16.mxu0 0
      %1624 = vmatmul.mubr.bf16.gmra.mxu0 %v1489
      %v1625 = vpop.f32.mrf.mxu0
      %v1626 = vadd.f32 0.0, %v1625
      %v1627 = vpop.f32.mrf.mxu0
      %v1628 = vpop.f32.mrf.mxu0
      %v1629 = vadd.f32 0.0, %v1628
      %v1630 = vpop.f32.mrf.mxu0
      %1631 = vmatprep.mubr.bf16.mxu0 0
      %1632 = vmatmul.mubr.bf16.gmra.mxu0 %v1490
      %v1633 = vpop.f32.mrf.mxu0
      %v1634 = vadd.f32 0.0, %v1633
      %v1635 = vpop.f32.mrf.mxu0
      %v1636 = vpop.f32.mrf.mxu0
      %v1637 = vadd.f32 0.0, %v1636
      %v1638 = vpop.f32.mrf.mxu0
      %1639 = vmatprep.mubr.bf16.mxu0 0
      %1640 = vmatmul.mubr.bf16.gmra.mxu0 %v1491
      %v1641 = vpop.f32.mrf.mxu0
      %v1642 = vadd.f32 0.0, %v1641
      %v1643 = vpop.f32.mrf.mxu0
      %v1644 = vpop.f32.mrf.mxu0
      %v1645 = vadd.f32 0.0, %v1644
      %v1646 = vpop.f32.mrf.mxu0
      %1647 = vmatprep.mubr.bf16.mxu0 0
      %1648 = vmatmul.mubr.bf16.gmra.mxu0 %v1492
      %v1649 = vpop.f32.mrf.mxu0
      %v1650 = vadd.f32 0.0, %v1649
      %v1651 = vpop.f32.mrf.mxu0
      %v1652 = vpop.f32.mrf.mxu0
      %v1653 = vadd.f32 0.0, %v1652
      %v1654 = vpop.f32.mrf.mxu0
      %1655 = vmatprep.mubr.bf16.mxu0 0
      %1656 = vmatmul.mubr.bf16.gmra.mxu0 %v1493
      %v1657 = vpop.f32.mrf.mxu0
      %v1658 = vadd.f32 0.0, %v1657
      %v1659 = vpop.f32.mrf.mxu0
      %v1660 = vpop.f32.mrf.mxu0
      %v1661 = vadd.f32 0.0, %v1660
      %v1662 = vpop.f32.mrf.mxu0
      %1663 = vmatprep.mubr.bf16.mxu0 0
      %1664 = vmatmul.mubr.bf16.gmra.mxu0 %v1494
      %v1665 = vpop.f32.mrf.mxu0
      %v1666 = vadd.f32 0.0, %v1665
      %v1667 = vpop.f32.mrf.mxu0
      %v1668 = vpop.f32.mrf.mxu0
      %v1669 = vadd.f32 0.0, %v1668
      %v1670 = vpop.f32.mrf.mxu0
      %1671 = vmatprep.mubr.bf16.mxu0 0
      %1672 = vmatmul.mubr.bf16.gmra.mxu0 %v1495
      %v1673 = vpop.f32.mrf.mxu0
      %v1674 = vadd.f32 0.0, %v1673
      %v1675 = vpop.f32.mrf.mxu0
      %v1676 = vpop.f32.mrf.mxu0
      %v1677 = vadd.f32 0.0, %v1676
      %v1678 = vpop.f32.mrf.mxu0
      %1679 = vmatprep.mubr.bf16.mxu0 0
      %1680 = vmatmul.mubr.bf16.gmra.mxu0 %v1496
      %v1681 = vpop.f32.mrf.mxu0
      %v1682 = vadd.f32 0.0, %v1681
      %v1683 = vpop.f32.mrf.mxu0
      %v1684 = vpop.f32.mrf.mxu0
      %v1685 = vadd.f32 0.0, %v1684
      %v1686 = vpop.f32.mrf.mxu0
      %1687 = vmatprep.mubr.bf16.mxu0 0
      %1688 = vmatmul.mubr.bf16.gmra.mxu0 %v1497
      %v1689 = vpop.f32.mrf.mxu0
      %v1690 = vadd.f32 0.0, %v1689
      %v1691 = vpop.f32.mrf.mxu0
      %v1692 = vpop.f32.mrf.mxu0
      %v1693 = vadd.f32 0.0, %v1692
      %v1694 = vpop.f32.mrf.mxu0
      %1695 = vmatprep.mubr.bf16.mxu0 0
      %1696 = vmatmul.mubr.bf16.gmra.mxu0 %v1498
      %v1697 = vpop.f32.mrf.mxu0
      %v1698 = vadd.f32 0.0, %v1697
      %v1699 = vpop.f32.mrf.mxu0
      %v1700 = vpop.f32.mrf.mxu0
      %v1701 = vadd.f32 0.0, %v1700
      %v1702 = vpop.f32.mrf.mxu0
      %1703 = vmatprep.mubr.bf16.mxu0 0
      %1704 = vmatmul.mubr.bf16.gmra.mxu0 %v1499
      %v1705 = vpop.f32.mrf.mxu0
      %v1706 = vadd.f32 0.0, %v1705
      %v1707 = vpop.f32.mrf.mxu0
      %v1708 = vpop.f32.mrf.mxu0
      %v1709 = vadd.f32 0.0, %v1708
      %v1710 = vpop.f32.mrf.mxu0
      %1711 = vmatprep.mubr.bf16.mxu0 0
      %1712 = vmatmul.mubr.bf16.gmra.mxu0 %v1500
      %v1713 = vpop.f32.mrf.mxu0
      %v1714 = vadd.f32 0.0, %v1713
      %v1715 = vpop.f32.mrf.mxu0
      %v1716 = vpop.f32.mrf.mxu0
      %v1717 = vadd.f32 0.0, %v1716
      %v1718 = vpop.f32.mrf.mxu0
      %1719 = vmatprep.mubr.bf16.mxu0 0
      %1720 = vmatmul.mubr.bf16.gmra.mxu0 %v1501
      %v1721 = vpop.f32.mrf.mxu0
      %v1722 = vadd.f32 0.0, %v1721
      %v1723 = vpop.f32.mrf.mxu0
      %v1724 = vpop.f32.mrf.mxu0
      %v1725 = vadd.f32 0.0, %v1724
      %v1726 = vpop.f32.mrf.mxu0
      %1727 = vdwg.mxu0
      %v1728 = vld [vmem:[#allocation4] sm:$0xff]
      %v1729 = vld [vmem:[#allocation4 + $0x8] sm:$0xff]
      %v1730 = vld [vmem:[#allocation4 + $0x10] sm:$0xff]
      %v1731 = vld [vmem:[#allocation4 + $0x18] sm:$0xff]
      %v1732 = vld [vmem:[#allocation4 + $0x20] sm:$0xff]
      %v1733 = vld [vmem:[#allocation4 + $0x28] sm:$0xff]
      %v1734 = vld [vmem:[#allocation4 + $0x30] sm:$0xff]
      %v1735 = vld [vmem:[#allocation4 + $0x38] sm:$0xff]
      %v1736 = vld [vmem:[#allocation4 + $0x40] sm:$0xff]
      %v1737 = vld [vmem:[#allocation4 + $0x48] sm:$0xff]
      %v1738 = vld [vmem:[#allocation4 + $0x50] sm:$0xff]
      %v1739 = vld [vmem:[#allocation4 + $0x58] sm:$0xff]
      %v1740 = vld [vmem:[#allocation4 + $0x60] sm:$0xff]
      %v1741 = vld [vmem:[#allocation4 + $0x68] sm:$0xff]
      %v1742 = vld [vmem:[#allocation4 + $0x70] sm:$0xff]
      %v1743 = vld [vmem:[#allocation4 + $0x78] sm:$0xff]
      %v1744 = vld [vmem:[#allocation4 + $0x80] sm:$0xff]
      %v1745 = vld [vmem:[#allocation4 + $0x88] sm:$0xff]
      %v1746 = vld [vmem:[#allocation4 + $0x90] sm:$0xff]
      %v1747 = vld [vmem:[#allocation4 + $0x98] sm:$0xff]
      %v1748 = vld [vmem:[#allocation4 + $0xa0] sm:$0xff]
      %v1749 = vld [vmem:[#allocation4 + $0xa8] sm:$0xff]
      %v1750 = vld [vmem:[#allocation4 + $0xb0] sm:$0xff]
      %v1751 = vld [vmem:[#allocation4 + $0xb8] sm:$0xff]
      %v1752 = vld [vmem:[#allocation4 + $0xc0] sm:$0xff]
      %v1753 = vld [vmem:[#allocation4 + $0xc8] sm:$0xff]
      %v1754 = vld [vmem:[#allocation4 + $0xd0] sm:$0xff]
      %v1755 = vld [vmem:[#allocation4 + $0xd8] sm:$0xff]
      %v1756 = vld [vmem:[#allocation4 + $0xe0] sm:$0xff]
      %v1757 = vld [vmem:[#allocation4 + $0xe8] sm:$0xff]
      %v1758 = vld [vmem:[#allocation4 + $0xf0] sm:$0xff]
      %v1759 = vld [vmem:[#allocation4 + $0xf8] sm:$0xff]
      %v1760 = vadd.f32 %v1728, %v1602
      %v1761 = vadd.f32 %v1729, %v1605
      %v1762 = vadd.f32 %v1730, %v1610
      %v1763 = vadd.f32 %v1731, %v1613
      %v1764 = vadd.f32 %v1732, %v1618
      %v1765 = vadd.f32 %v1733, %v1621
      %v1766 = vadd.f32 %v1734, %v1626
      %v1767 = vadd.f32 %v1735, %v1629
      %v1768 = vadd.f32 %v1736, %v1634
      %v1769 = vadd.f32 %v1737, %v1637
      %v1770 = vadd.f32 %v1738, %v1642
      %v1771 = vadd.f32 %v1739, %v1645
      %v1772 = vadd.f32 %v1740, %v1650
      %v1773 = vadd.f32 %v1741, %v1653
      %v1774 = vadd.f32 %v1742, %v1658
      %v1775 = vadd.f32 %v1743, %v1661
      %v1776 = vadd.f32 %v1744, %v1666
      %v1777 = vadd.f32 %v1745, %v1669
      %v1778 = vadd.f32 %v1746, %v1674
      %v1779 = vadd.f32 %v1747, %v1677
      %v1780 = vadd.f32 %v1748, %v1682
      %v1781 = vadd.f32 %v1749, %v1685
      %v1782 = vadd.f32 %v1750, %v1690
      %v1783 = vadd.f32 %v1751, %v1693
      %v1784 = vadd.f32 %v1752, %v1698
      %v1785 = vadd.f32 %v1753, %v1701
      %v1786 = vadd.f32 %v1754, %v1706
      %v1787 = vadd.f32 %v1755, %v1709
      %v1788 = vadd.f32 %v1756, %v1714
      %v1789 = vadd.f32 %v1757, %v1717
      %v1790 = vadd.f32 %v1758, %v1722
      %v1791 = vadd.f32 %v1759, %v1725
      %1792 = vst [vmem:[#allocation4] sm:$0xff] %v1760
      %1793 = vst [vmem:[#allocation4 + $0x8] sm:$0xff] %v1761
      %1794 = vst [vmem:[#allocation4 + $0x10] sm:$0xff] %v1762
      %1795 = vst [vmem:[#allocation4 + $0x18] sm:$0xff] %v1763
      %1796 = vst [vmem:[#allocation4 + $0x20] sm:$0xff] %v1764
      %1797 = vst [vmem:[#allocation4 + $0x28] sm:$0xff] %v1765
      %1798 = vst [vmem:[#allocation4 + $0x30] sm:$0xff] %v1766
      %1799 = vst [vmem:[#allocation4 + $0x38] sm:$0xff] %v1767
      %1800 = vst [vmem:[#allocation4 + $0x40] sm:$0xff] %v1768
      %1801 = vst [vmem:[#allocation4 + $0x48] sm:$0xff] %v1769
      %1802 = vst [vmem:[#allocation4 + $0x50] sm:$0xff] %v1770
      %1803 = vst [vmem:[#allocation4 + $0x58] sm:$0xff] %v1771
      %1804 = vst [vmem:[#allocation4 + $0x60] sm:$0xff] %v1772
      %1805 = vst [vmem:[#allocation4 + $0x68] sm:$0xff] %v1773
      %1806 = vst [vmem:[#allocation4 + $0x70] sm:$0xff] %v1774
      %1807 = vst [vmem:[#allocation4 + $0x78] sm:$0xff] %v1775
      %1808 = vst [vmem:[#allocation4 + $0x80] sm:$0xff] %v1776
      %1809 = vst [vmem:[#allocation4 + $0x88] sm:$0xff] %v1777
      %1810 = vst [vmem:[#allocation4 + $0x90] sm:$0xff] %v1778
      %1811 = vst [vmem:[#allocation4 + $0x98] sm:$0xff] %v1779
      %1812 = vst [vmem:[#allocation4 + $0xa0] sm:$0xff] %v1780
      %1813 = vst [vmem:[#allocation4 + $0xa8] sm:$0xff] %v1781
      %1814 = vst [vmem:[#allocation4 + $0xb0] sm:$0xff] %v1782
      %1815 = vst [vmem:[#allocation4 + $0xb8] sm:$0xff] %v1783
      %1816 = vst [vmem:[#allocation4 + $0xc0] sm:$0xff] %v1784
      %1817 = vst [vmem:[#allocation4 + $0xc8] sm:$0xff] %v1785
      %1818 = vst [vmem:[#allocation4 + $0xd0] sm:$0xff] %v1786
      %1819 = vst [vmem:[#allocation4 + $0xd8] sm:$0xff] %v1787
      %1820 = vst [vmem:[#allocation4 + $0xe0] sm:$0xff] %v1788
      %1821 = vst [vmem:[#allocation4 + $0xe8] sm:$0xff] %v1789
      %1822 = vst [vmem:[#allocation4 + $0xf0] sm:$0xff] %v1790
      %1823 = vst [vmem:[#allocation4 + $0xf8] sm:$0xff] %v1791
      %v1824 = vld [vmem:[%s376 + $0x1] sm:$0xff]
      %v1825 = vld [vmem:[%s376 + $0x9] sm:$0xff]
      %v1826 = vld [vmem:[%s376 + $0x19] sm:$0xff]
      %v1827 = vld [vmem:[%s376 + $0x21] sm:$0xff]
      %v1828 = vld [vmem:[%s376 + $0x31] sm:$0xff]
      %v1829 = vld [vmem:[%s376 + $0x39] sm:$0xff]
      %v1830 = vld [vmem:[%s376 + $0x49] sm:$0xff]
      %v1831 = vld [vmem:[%s376 + $0x51] sm:$0xff]
      %v1832 = vld [vmem:[%s376 + $0x61] sm:$0xff]
      %v1833 = vld [vmem:[%s376 + $0x69] sm:$0xff]
      %v1834 = vld [vmem:[%s376 + $0x79] sm:$0xff]
      %v1835 = vld [vmem:[%s376 + $0x81] sm:$0xff]
      %v1836 = vld [vmem:[%s376 + $0x91] sm:$0xff]
      %v1837 = vld [vmem:[%s376 + $0x99] sm:$0xff]
      %v1838 = vld [vmem:[%s376 + $0xa9] sm:$0xff]
      %v1839 = vld [vmem:[%s376 + $0xb1] sm:$0xff]
      %v1840 = vld [vmem:[%s376 + $0xc1] sm:$0xff]
      %v1841 = vld [vmem:[%s376 + $0xc9] sm:$0xff]
      %v1842 = vld [vmem:[%s376 + $0xd9] sm:$0xff]
      %v1843 = vld [vmem:[%s376 + $0xe1] sm:$0xff]
      %v1844 = vld [vmem:[%s376 + $0xf1] sm:$0xff]
      %v1845 = vld [vmem:[%s376 + $0xf9] sm:$0xff]
      %v1846 = vld [vmem:[%s376 + $0x109] sm:$0xff]
      %v1847 = vld [vmem:[%s376 + $0x111] sm:$0xff]
      %v1848 = vld [vmem:[%s376 + $0x121] sm:$0xff]
      %v1849 = vld [vmem:[%s376 + $0x129] sm:$0xff]
      %v1850 = vld [vmem:[%s376 + $0x139] sm:$0xff]
      %v1851 = vld [vmem:[%s376 + $0x141] sm:$0xff]
      %v1852 = vld [vmem:[%s376 + $0x151] sm:$0xff]
      %v1853 = vld [vmem:[%s376 + $0x159] sm:$0xff]
      %v1854 = vld [vmem:[%s376 + $0x169] sm:$0xff]
      %v1855 = vld [vmem:[%s376 + $0x171] sm:$0xff]
      %v1856 = vpack.c.bf16 %v1825, %v1824
      %v1857 = vpack.c.bf16 %v1827, %v1826
      %v1858 = vpack.c.bf16 %v1829, %v1828
      %v1859 = vpack.c.bf16 %v1831, %v1830
      %v1860 = vpack.c.bf16 %v1833, %v1832
      %v1861 = vpack.c.bf16 %v1835, %v1834
      %v1862 = vpack.c.bf16 %v1837, %v1836
      %v1863 = vpack.c.bf16 %v1839, %v1838
      %v1864 = vpack.c.bf16 %v1841, %v1840
      %v1865 = vpack.c.bf16 %v1843, %v1842
      %v1866 = vpack.c.bf16 %v1845, %v1844
      %v1867 = vpack.c.bf16 %v1847, %v1846
      %v1868 = vpack.c.bf16 %v1849, %v1848
      %v1869 = vpack.c.bf16 %v1851, %v1850
      %v1870 = vpack.c.bf16 %v1853, %v1852
      %v1871 = vpack.c.bf16 %v1855, %v1854
      %s1872 = scalar_lea.vmem %s1, 256
      %v1873 = vld [vmem:[%s1872] sm:$0xf]
      %v1874 = vld [vmem:[%s1872 + $0x4] sm:$0xf]
      %v1875 = vld [vmem:[%s1872 + $0x8] sm:$0xf]
      %v1876 = vld [vmem:[%s1872 + $0xc] sm:$0xf]
      %v1877 = vld [vmem:[%s1872 + $0x10] sm:$0xf]
      %v1878 = vld [vmem:[%s1872 + $0x14] sm:$0xf]
      %v1879 = vld [vmem:[%s1872 + $0x18] sm:$0xf]
      %v1880 = vld [vmem:[%s1872 + $0x1c] sm:$0xf]
      %v1881 = vld [vmem:[%s1872 + $0x20] sm:$0xf]
      %v1882 = vld [vmem:[%s1872 + $0x24] sm:$0xf]
      %v1883 = vld [vmem:[%s1872 + $0x28] sm:$0xf]
      %v1884 = vld [vmem:[%s1872 + $0x2c] sm:$0xf]
      %v1885 = vld [vmem:[%s1872 + $0x30] sm:$0xf]
      %v1886 = vld [vmem:[%s1872 + $0x34] sm:$0xf]
      %v1887 = vld [vmem:[%s1872 + $0x38] sm:$0xf]
      %v1888 = vld [vmem:[%s1872 + $0x3c] sm:$0xf]
      %v1905 = vunpack.c.l.b16 %v1873
      %v1906 = vunpack.c.l.b16 %v1874
      %v1907 = vunpack.c.l.b16 %v1875
      %v1908 = vunpack.c.l.b16 %v1876
      %v1909 = vunpack.c.l.b16 %v1877
      %v1910 = vunpack.c.l.b16 %v1878
      %v1911 = vunpack.c.l.b16 %v1879
      %v1912 = vunpack.c.l.b16 %v1880
      %v1913 = vunpack.c.l.b16 %v1881
      %v1914 = vunpack.c.l.b16 %v1882
      %v1915 = vunpack.c.l.b16 %v1883
      %v1916 = vunpack.c.l.b16 %v1884
      %v1917 = vunpack.c.l.b16 %v1885
      %v1918 = vunpack.c.l.b16 %v1886
      %v1919 = vunpack.c.l.b16 %v1887
      %v1920 = vunpack.c.l.b16 %v1888
      %v1921 = vpack.c.b16 %v1906, %v1905
      %v1922 = vpack.c.b16 %v1908, %v1907
      %v1923 = vpack.c.b16 %v1910, %v1909
      %v1924 = vpack.c.b16 %v1912, %v1911
      %v1925 = vpack.c.b16 %v1914, %v1913
      %v1926 = vpack.c.b16 %v1916, %v1915
      %v1927 = vpack.c.b16 %v1918, %v1917
      %v1928 = vpack.c.b16 %v1920, %v1919
      %1937 = vmatprep.subr.bf16.mxu0 0
      %1938 = vmatpush1.bf16.msra.mxu0 %v1928
      %1939 = vmatprep.subr.bf16.mxu0 0
      %1940 = vmatpush1.bf16.msra.mxu0 %v1927
      %1941 = vmatprep.subr.bf16.mxu0 0
      %1942 = vmatpush1.bf16.msra.mxu0 %v1926
      %1943 = vmatprep.subr.bf16.mxu0 0
      %1944 = vmatpush1.bf16.msra.mxu0 %v1925
      %1945 = vmatprep.subr.bf16.mxu0 0
      %1946 = vmatpush1.bf16.msra.mxu0 %v1924
      %1947 = vmatprep.subr.bf16.mxu0 0
      %1948 = vmatpush1.bf16.msra.mxu0 %v1923
      %1949 = vmatprep.subr.bf16.mxu0 0
      %1950 = vmatpush1.bf16.msra.mxu0 %v1922
      %1951 = vmatprep.subr.bf16.mxu0 0
      %1952 = vmatpush1.bf16.msra.mxu0 %v1921
      %1953 = vmatprep.subr.bf16.mxu0 0
      %1954 = vmatpush2.bf16.msra.mxu0 0
      %1955 = vmatprep.subr.bf16.mxu0 0
      %1956 = vmatpush2.bf16.msra.mxu0 0
      %1957 = vmatprep.subr.bf16.mxu0 0
      %1958 = vmatpush2.bf16.msra.mxu0 0
      %1959 = vmatprep.subr.bf16.mxu0 0
      %1960 = vmatpush2.bf16.msra.mxu0 0
      %1961 = vmatprep.subr.bf16.mxu0 0
      %1962 = vmatpush2.bf16.msra.mxu0 0
      %1963 = vmatprep.subr.bf16.mxu0 0
      %1964 = vmatpush2.bf16.msra.mxu0 0
      %1965 = vmatprep.subr.bf16.mxu0 0
      %1966 = vmatpush2.bf16.msra.mxu0 0
      %1967 = vmatprep.subr.bf16.mxu0 0
      %1968 = vmatpush2.bf16.msra.mxu0 0
      %1969 = vmatprep.mubr.bf16.mxu0 0
      %1970 = vmatmul.mubr.bf16.gmra.mxu0 %v1856
      %v1971 = vpop.f32.mrf.mxu0
      %v1972 = vadd.f32 0.0, %v1971
      %v1973 = vpop.f32.mrf.mxu0
      %v1974 = vpop.f32.mrf.mxu0
      %v1975 = vadd.f32 0.0, %v1974
      %v1976 = vpop.f32.mrf.mxu0
      %1977 = vmatprep.mubr.bf16.mxu0 0
      %1978 = vmatmul.mubr.bf16.gmra.mxu0 %v1857
      %v1979 = vpop.f32.mrf.mxu0
      %v1980 = vadd.f32 0.0, %v1979
      %v1981 = vpop.f32.mrf.mxu0
      %v1982 = vpop.f32.mrf.mxu0
      %v1983 = vadd.f32 0.0, %v1982
      %v1984 = vpop.f32.mrf.mxu0
      %1985 = vmatprep.mubr.bf16.mxu0 0
      %1986 = vmatmul.mubr.bf16.gmra.mxu0 %v1858
      %v1987 = vpop.f32.mrf.mxu0
      %v1988 = vadd.f32 0.0, %v1987
      %v1989 = vpop.f32.mrf.mxu0
      %v1990 = vpop.f32.mrf.mxu0
      %v1991 = vadd.f32 0.0, %v1990
      %v1992 = vpop.f32.mrf.mxu0
      %1993 = vmatprep.mubr.bf16.mxu0 0
      %1994 = vmatmul.mubr.bf16.gmra.mxu0 %v1859
      %v1995 = vpop.f32.mrf.mxu0
      %v1996 = vadd.f32 0.0, %v1995
      %v1997 = vpop.f32.mrf.mxu0
      %v1998 = vpop.f32.mrf.mxu0
      %v1999 = vadd.f32 0.0, %v1998
      %v2000 = vpop.f32.mrf.mxu0
      %2001 = vmatprep.mubr.bf16.mxu0 0
      %2002 = vmatmul.mubr.bf16.gmra.mxu0 %v1860
      %v2003 = vpop.f32.mrf.mxu0
      %v2004 = vadd.f32 0.0, %v2003
      %v2005 = vpop.f32.mrf.mxu0
      %v2006 = vpop.f32.mrf.mxu0
      %v2007 = vadd.f32 0.0, %v2006
      %v2008 = vpop.f32.mrf.mxu0
      %2009 = vmatprep.mubr.bf16.mxu0 0
      %2010 = vmatmul.mubr.bf16.gmra.mxu0 %v1861
      %v2011 = vpop.f32.mrf.mxu0
      %v2012 = vadd.f32 0.0, %v2011
      %v2013 = vpop.f32.mrf.mxu0
      %v2014 = vpop.f32.mrf.mxu0
      %v2015 = vadd.f32 0.0, %v2014
      %v2016 = vpop.f32.mrf.mxu0
      %2017 = vmatprep.mubr.bf16.mxu0 0
      %2018 = vmatmul.mubr.bf16.gmra.mxu0 %v1862
      %v2019 = vpop.f32.mrf.mxu0
      %v2020 = vadd.f32 0.0, %v2019
      %v2021 = vpop.f32.mrf.mxu0
      %v2022 = vpop.f32.mrf.mxu0
      %v2023 = vadd.f32 0.0, %v2022
      %v2024 = vpop.f32.mrf.mxu0
      %2025 = vmatprep.mubr.bf16.mxu0 0
      %2026 = vmatmul.mubr.bf16.gmra.mxu0 %v1863
      %v2027 = vpop.f32.mrf.mxu0
      %v2028 = vadd.f32 0.0, %v2027
      %v2029 = vpop.f32.mrf.mxu0
      %v2030 = vpop.f32.mrf.mxu0
      %v2031 = vadd.f32 0.0, %v2030
      %v2032 = vpop.f32.mrf.mxu0
      %2033 = vmatprep.mubr.bf16.mxu0 0
      %2034 = vmatmul.mubr.bf16.gmra.mxu0 %v1864
      %v2035 = vpop.f32.mrf.mxu0
      %v2036 = vadd.f32 0.0, %v2035
      %v2037 = vpop.f32.mrf.mxu0
      %v2038 = vpop.f32.mrf.mxu0
      %v2039 = vadd.f32 0.0, %v2038
      %v2040 = vpop.f32.mrf.mxu0
      %2041 = vmatprep.mubr.bf16.mxu0 0
      %2042 = vmatmul.mubr.bf16.gmra.mxu0 %v1865
      %v2043 = vpop.f32.mrf.mxu0
      %v2044 = vadd.f32 0.0, %v2043
      %v2045 = vpop.f32.mrf.mxu0
      %v2046 = vpop.f32.mrf.mxu0
      %v2047 = vadd.f32 0.0, %v2046
      %v2048 = vpop.f32.mrf.mxu0
      %2049 = vmatprep.mubr.bf16.mxu0 0
      %2050 = vmatmul.mubr.bf16.gmra.mxu0 %v1866
      %v2051 = vpop.f32.mrf.mxu0
      %v2052 = vadd.f32 0.0, %v2051
      %v2053 = vpop.f32.mrf.mxu0
      %v2054 = vpop.f32.mrf.mxu0
      %v2055 = vadd.f32 0.0, %v2054
      %v2056 = vpop.f32.mrf.mxu0
      %2057 = vmatprep.mubr.bf16.mxu0 0
      %2058 = vmatmul.mubr.bf16.gmra.mxu0 %v1867
      %v2059 = vpop.f32.mrf.mxu0
      %v2060 = vadd.f32 0.0, %v2059
      %v2061 = vpop.f32.mrf.mxu0
      %v2062 = vpop.f32.mrf.mxu0
      %v2063 = vadd.f32 0.0, %v2062
      %v2064 = vpop.f32.mrf.mxu0
      %2065 = vmatprep.mubr.bf16.mxu0 0
      %2066 = vmatmul.mubr.bf16.gmra.mxu0 %v1868
      %v2067 = vpop.f32.mrf.mxu0
      %v2068 = vadd.f32 0.0, %v2067
      %v2069 = vpop.f32.mrf.mxu0
      %v2070 = vpop.f32.mrf.mxu0
      %v2071 = vadd.f32 0.0, %v2070
      %v2072 = vpop.f32.mrf.mxu0
      %2073 = vmatprep.mubr.bf16.mxu0 0
      %2074 = vmatmul.mubr.bf16.gmra.mxu0 %v1869
      %v2075 = vpop.f32.mrf.mxu0
      %v2076 = vadd.f32 0.0, %v2075
      %v2077 = vpop.f32.mrf.mxu0
      %v2078 = vpop.f32.mrf.mxu0
      %v2079 = vadd.f32 0.0, %v2078
      %v2080 = vpop.f32.mrf.mxu0
      %2081 = vmatprep.mubr.bf16.mxu0 0
      %2082 = vmatmul.mubr.bf16.gmra.mxu0 %v1870
      %v2083 = vpop.f32.mrf.mxu0
      %v2084 = vadd.f32 0.0, %v2083
      %v2085 = vpop.f32.mrf.mxu0
      %v2086 = vpop.f32.mrf.mxu0
      %v2087 = vadd.f32 0.0, %v2086
      %v2088 = vpop.f32.mrf.mxu0
      %2089 = vmatprep.mubr.bf16.mxu0 0
      %2090 = vmatmul.mubr.bf16.gmra.mxu0 %v1871
      %v2091 = vpop.f32.mrf.mxu0
      %v2092 = vadd.f32 0.0, %v2091
      %v2093 = vpop.f32.mrf.mxu0
      %v2094 = vpop.f32.mrf.mxu0
      %v2095 = vadd.f32 0.0, %v2094
      %v2096 = vpop.f32.mrf.mxu0
      %2097 = vdwg.mxu0
      %v2098 = vld [vmem:[#allocation4] sm:$0xff]
      %v2099 = vld [vmem:[#allocation4 + $0x8] sm:$0xff]
      %v2100 = vld [vmem:[#allocation4 + $0x10] sm:$0xff]
      %v2101 = vld [vmem:[#allocation4 + $0x18] sm:$0xff]
      %v2102 = vld [vmem:[#allocation4 + $0x20] sm:$0xff]
      %v2103 = vld [vmem:[#allocation4 + $0x28] sm:$0xff]
      %v2104 = vld [vmem:[#allocation4 + $0x30] sm:$0xff]
      %v2105 = vld [vmem:[#allocation4 + $0x38] sm:$0xff]
      %v2106 = vld [vmem:[#allocation4 + $0x40] sm:$0xff]
      %v2107 = vld [vmem:[#allocation4 + $0x48] sm:$0xff]
      %v2108 = vld [vmem:[#allocation4 + $0x50] sm:$0xff]
      %v2109 = vld [vmem:[#allocation4 + $0x58] sm:$0xff]
      %v2110 = vld [vmem:[#allocation4 + $0x60] sm:$0xff]
      %v2111 = vld [vmem:[#allocation4 + $0x68] sm:$0xff]
      %v2112 = vld [vmem:[#allocation4 + $0x70] sm:$0xff]
      %v2113 = vld [vmem:[#allocation4 + $0x78] sm:$0xff]
      %v2114 = vld [vmem:[#allocation4 + $0x80] sm:$0xff]
      %v2115 = vld [vmem:[#allocation4 + $0x88] sm:$0xff]
      %v2116 = vld [vmem:[#allocation4 + $0x90] sm:$0xff]
      %v2117 = vld [vmem:[#allocation4 + $0x98] sm:$0xff]
      %v2118 = vld [vmem:[#allocation4 + $0xa0] sm:$0xff]
      %v2119 = vld [vmem:[#allocation4 + $0xa8] sm:$0xff]
      %v2120 = vld [vmem:[#allocation4 + $0xb0] sm:$0xff]
      %v2121 = vld [vmem:[#allocation4 + $0xb8] sm:$0xff]
      %v2122 = vld [vmem:[#allocation4 + $0xc0] sm:$0xff]
      %v2123 = vld [vmem:[#allocation4 + $0xc8] sm:$0xff]
      %v2124 = vld [vmem:[#allocation4 + $0xd0] sm:$0xff]
      %v2125 = vld [vmem:[#allocation4 + $0xd8] sm:$0xff]
      %v2126 = vld [vmem:[#allocation4 + $0xe0] sm:$0xff]
      %v2127 = vld [vmem:[#allocation4 + $0xe8] sm:$0xff]
      %v2128 = vld [vmem:[#allocation4 + $0xf0] sm:$0xff]
      %v2129 = vld [vmem:[#allocation4 + $0xf8] sm:$0xff]
      %v2130 = vadd.f32 %v2098, %v1972
      %v2131 = vadd.f32 %v2099, %v1975
      %v2132 = vadd.f32 %v2100, %v1980
      %v2133 = vadd.f32 %v2101, %v1983
      %v2134 = vadd.f32 %v2102, %v1988
      %v2135 = vadd.f32 %v2103, %v1991
      %v2136 = vadd.f32 %v2104, %v1996
      %v2137 = vadd.f32 %v2105, %v1999
      %v2138 = vadd.f32 %v2106, %v2004
      %v2139 = vadd.f32 %v2107, %v2007
      %v2140 = vadd.f32 %v2108, %v2012
      %v2141 = vadd.f32 %v2109, %v2015
      %v2142 = vadd.f32 %v2110, %v2020
      %v2143 = vadd.f32 %v2111, %v2023
      %v2144 = vadd.f32 %v2112, %v2028
      %v2145 = vadd.f32 %v2113, %v2031
      %v2146 = vadd.f32 %v2114, %v2036
      %v2147 = vadd.f32 %v2115, %v2039
      %v2148 = vadd.f32 %v2116, %v2044
      %v2149 = vadd.f32 %v2117, %v2047
      %v2150 = vadd.f32 %v2118, %v2052
      %v2151 = vadd.f32 %v2119, %v2055
      %v2152 = vadd.f32 %v2120, %v2060
      %v2153 = vadd.f32 %v2121, %v2063
      %v2154 = vadd.f32 %v2122, %v2068
      %v2155 = vadd.f32 %v2123, %v2071
      %v2156 = vadd.f32 %v2124, %v2076
      %v2157 = vadd.f32 %v2125, %v2079
      %v2158 = vadd.f32 %v2126, %v2084
      %v2159 = vadd.f32 %v2127, %v2087
      %v2160 = vadd.f32 %v2128, %v2092
      %v2161 = vadd.f32 %v2129, %v2095
      %2162 = vst [vmem:[#allocation4] sm:$0xff] %v2130
      %2163 = vst [vmem:[#allocation4 + $0x8] sm:$0xff] %v2131
      %2164 = vst [vmem:[#allocation4 + $0x10] sm:$0xff] %v2132
      %2165 = vst [vmem:[#allocation4 + $0x18] sm:$0xff] %v2133
      %2166 = vst [vmem:[#allocation4 + $0x20] sm:$0xff] %v2134
      %2167 = vst [vmem:[#allocation4 + $0x28] sm:$0xff] %v2135
      %2168 = vst [vmem:[#allocation4 + $0x30] sm:$0xff] %v2136
      %2169 = vst [vmem:[#allocation4 + $0x38] sm:$0xff] %v2137
      %2170 = vst [vmem:[#allocation4 + $0x40] sm:$0xff] %v2138
      %2171 = vst [vmem:[#allocation4 + $0x48] sm:$0xff] %v2139
      %2172 = vst [vmem:[#allocation4 + $0x50] sm:$0xff] %v2140
      %2173 = vst [vmem:[#allocation4 + $0x58] sm:$0xff] %v2141
      %2174 = vst [vmem:[#allocation4 + $0x60] sm:$0xff] %v2142
      %2175 = vst [vmem:[#allocation4 + $0x68] sm:$0xff] %v2143
      %2176 = vst [vmem:[#allocation4 + $0x70] sm:$0xff] %v2144
      %2177 = vst [vmem:[#allocation4 + $0x78] sm:$0xff] %v2145
      %2178 = vst [vmem:[#allocation4 + $0x80] sm:$0xff] %v2146
      %2179 = vst [vmem:[#allocation4 + $0x88] sm:$0xff] %v2147
      %2180 = vst [vmem:[#allocation4 + $0x90] sm:$0xff] %v2148
      %2181 = vst [vmem:[#allocation4 + $0x98] sm:$0xff] %v2149
      %2182 = vst [vmem:[#allocation4 + $0xa0] sm:$0xff] %v2150
      %2183 = vst [vmem:[#allocation4 + $0xa8] sm:$0xff] %v2151
      %2184 = vst [vmem:[#allocation4 + $0xb0] sm:$0xff] %v2152
      %2185 = vst [vmem:[#allocation4 + $0xb8] sm:$0xff] %v2153
      %2186 = vst [vmem:[#allocation4 + $0xc0] sm:$0xff] %v2154
      %2187 = vst [vmem:[#allocation4 + $0xc8] sm:$0xff] %v2155
      %2188 = vst [vmem:[#allocation4 + $0xd0] sm:$0xff] %v2156
      %2189 = vst [vmem:[#allocation4 + $0xd8] sm:$0xff] %v2157
      %2190 = vst [vmem:[#allocation4 + $0xe0] sm:$0xff] %v2158
      %2191 = vst [vmem:[#allocation4 + $0xe8] sm:$0xff] %v2159
      %2192 = vst [vmem:[#allocation4 + $0xf0] sm:$0xff] %v2160
      %2193 = vst [vmem:[#allocation4 + $0xf8] sm:$0xff] %v2161
      %v2194 = vld [vmem:[%s376 + $0x2] sm:$0xff]
      %v2195 = vld [vmem:[%s376 + $0xa] sm:$0xff]
      %v2196 = vld [vmem:[%s376 + $0x1a] sm:$0xff]
      %v2197 = vld [vmem:[%s376 + $0x22] sm:$0xff]
      %v2198 = vld [vmem:[%s376 + $0x32] sm:$0xff]
      %v2199 = vld [vmem:[%s376 + $0x3a] sm:$0xff]
      %v2200 = vld [vmem:[%s376 + $0x4a] sm:$0xff]
      %v2201 = vld [vmem:[%s376 + $0x52] sm:$0xff]
      %v2202 = vld [vmem:[%s376 + $0x62] sm:$0xff]
      %v2203 = vld [vmem:[%s376 + $0x6a] sm:$0xff]
      %v2204 = vld [vmem:[%s376 + $0x7a] sm:$0xff]
      %v2205 = vld [vmem:[%s376 + $0x82] sm:$0xff]
      %v2206 = vld [vmem:[%s376 + $0x92] sm:$0xff]
      %v2207 = vld [vmem:[%s376 + $0x9a] sm:$0xff]
      %v2208 = vld [vmem:[%s376 + $0xaa] sm:$0xff]
      %v2209 = vld [vmem:[%s376 + $0xb2] sm:$0xff]
      %v2210 = vld [vmem:[%s376 + $0xc2] sm:$0xff]
      %v2211 = vld [vmem:[%s376 + $0xca] sm:$0xff]
      %v2212 = vld [vmem:[%s376 + $0xda] sm:$0xff]
      %v2213 = vld [vmem:[%s376 + $0xe2] sm:$0xff]
      %v2214 = vld [vmem:[%s376 + $0xf2] sm:$0xff]
      %v2215 = vld [vmem:[%s376 + $0xfa] sm:$0xff]
      %v2216 = vld [vmem:[%s376 + $0x10a] sm:$0xff]
      %v2217 = vld [vmem:[%s376 + $0x112] sm:$0xff]
      %v2218 = vld [vmem:[%s376 + $0x122] sm:$0xff]
      %v2219 = vld [vmem:[%s376 + $0x12a] sm:$0xff]
      %v2220 = vld [vmem:[%s376 + $0x13a] sm:$0xff]
      %v2221 = vld [vmem:[%s376 + $0x142] sm:$0xff]
      %v2222 = vld [vmem:[%s376 + $0x152] sm:$0xff]
      %v2223 = vld [vmem:[%s376 + $0x15a] sm:$0xff]
      %v2224 = vld [vmem:[%s376 + $0x16a] sm:$0xff]
      %v2225 = vld [vmem:[%s376 + $0x172] sm:$0xff]
      %v2226 = vpack.c.bf16 %v2195, %v2194
      %v2227 = vpack.c.bf16 %v2197, %v2196
      %v2228 = vpack.c.bf16 %v2199, %v2198
      %v2229 = vpack.c.bf16 %v2201, %v2200
      %v2230 = vpack.c.bf16 %v2203, %v2202
      %v2231 = vpack.c.bf16 %v2205, %v2204
      %v2232 = vpack.c.bf16 %v2207, %v2206
      %v2233 = vpack.c.bf16 %v2209, %v2208
      %v2234 = vpack.c.bf16 %v2211, %v2210
      %v2235 = vpack.c.bf16 %v2213, %v2212
      %v2236 = vpack.c.bf16 %v2215, %v2214
      %v2237 = vpack.c.bf16 %v2217, %v2216
      %v2238 = vpack.c.bf16 %v2219, %v2218
      %v2239 = vpack.c.bf16 %v2221, %v2220
      %v2240 = vpack.c.bf16 %v2223, %v2222
      %v2241 = vpack.c.bf16 %v2225, %v2224
      %s2242 = scalar_lea.vmem %s1, 320
      %v2243 = vld [vmem:[%s2242] sm:$0xf]
      %v2244 = vld [vmem:[%s2242 + $0x4] sm:$0xf]
      %v2245 = vld [vmem:[%s2242 + $0x8] sm:$0xf]
      %v2246 = vld [vmem:[%s2242 + $0xc] sm:$0xf]
      %v2247 = vld [vmem:[%s2242 + $0x10] sm:$0xf]
      %v2248 = vld [vmem:[%s2242 + $0x14] sm:$0xf]
      %v2249 = vld [vmem:[%s2242 + $0x18] sm:$0xf]
      %v2250 = vld [vmem:[%s2242 + $0x1c] sm:$0xf]
      %v2251 = vld [vmem:[%s2242 + $0x20] sm:$0xf]
      %v2252 = vld [vmem:[%s2242 + $0x24] sm:$0xf]
      %v2253 = vld [vmem:[%s2242 + $0x28] sm:$0xf]
      %v2254 = vld [vmem:[%s2242 + $0x2c] sm:$0xf]
      %v2255 = vld [vmem:[%s2242 + $0x30] sm:$0xf]
      %v2256 = vld [vmem:[%s2242 + $0x34] sm:$0xf]
      %v2257 = vld [vmem:[%s2242 + $0x38] sm:$0xf]
      %v2258 = vld [vmem:[%s2242 + $0x3c] sm:$0xf]
      %v2275 = vunpack.c.l.b16 %v2243
      %v2276 = vunpack.c.l.b16 %v2244
      %v2277 = vunpack.c.l.b16 %v2245
      %v2278 = vunpack.c.l.b16 %v2246
      %v2279 = vunpack.c.l.b16 %v2247
      %v2280 = vunpack.c.l.b16 %v2248
      %v2281 = vunpack.c.l.b16 %v2249
      %v2282 = vunpack.c.l.b16 %v2250
      %v2283 = vunpack.c.l.b16 %v2251
      %v2284 = vunpack.c.l.b16 %v2252
      %v2285 = vunpack.c.l.b16 %v2253
      %v2286 = vunpack.c.l.b16 %v2254
      %v2287 = vunpack.c.l.b16 %v2255
      %v2288 = vunpack.c.l.b16 %v2256
      %v2289 = vunpack.c.l.b16 %v2257
      %v2290 = vunpack.c.l.b16 %v2258
      %v2291 = vpack.c.b16 %v2276, %v2275
      %v2292 = vpack.c.b16 %v2278, %v2277
      %v2293 = vpack.c.b16 %v2280, %v2279
      %v2294 = vpack.c.b16 %v2282, %v2281
      %v2295 = vpack.c.b16 %v2284, %v2283
      %v2296 = vpack.c.b16 %v2286, %v2285
      %v2297 = vpack.c.b16 %v2288, %v2287
      %v2298 = vpack.c.b16 %v2290, %v2289
      %2307 = vmatprep.subr.bf16.mxu0 0
      %2308 = vmatpush1.bf16.msra.mxu0 %v2298
      %2309 = vmatprep.subr.bf16.mxu0 0
      %2310 = vmatpush1.bf16.msra.mxu0 %v2297
      %2311 = vmatprep.subr.bf16.mxu0 0
      %2312 = vmatpush1.bf16.msra.mxu0 %v2296
      %2313 = vmatprep.subr.bf16.mxu0 0
      %2314 = vmatpush1.bf16.msra.mxu0 %v2295
      %2315 = vmatprep.subr.bf16.mxu0 0
      %2316 = vmatpush1.bf16.msra.mxu0 %v2294
      %2317 = vmatprep.subr.bf16.mxu0 0
      %2318 = vmatpush1.bf16.msra.mxu0 %v2293
      %2319 = vmatprep.subr.bf16.mxu0 0
      %2320 = vmatpush1.bf16.msra.mxu0 %v2292
      %2321 = vmatprep.subr.bf16.mxu0 0
      %2322 = vmatpush1.bf16.msra.mxu0 %v2291
      %2323 = vmatprep.subr.bf16.mxu0 0
      %2324 = vmatpush2.bf16.msra.mxu0 0
      %2325 = vmatprep.subr.bf16.mxu0 0
      %2326 = vmatpush2.bf16.msra.mxu0 0
      %2327 = vmatprep.subr.bf16.mxu0 0
      %2328 = vmatpush2.bf16.msra.mxu0 0
      %2329 = vmatprep.subr.bf16.mxu0 0
      %2330 = vmatpush2.bf16.msra.mxu0 0
      %2331 = vmatprep.subr.bf16.mxu0 0
      %2332 = vmatpush2.bf16.msra.mxu0 0
      %2333 = vmatprep.subr.bf16.mxu0 0
      %2334 = vmatpush2.bf16.msra.mxu0 0
      %2335 = vmatprep.subr.bf16.mxu0 0
      %2336 = vmatpush2.bf16.msra.mxu0 0
      %2337 = vmatprep.subr.bf16.mxu0 0
      %2338 = vmatpush2.bf16.msra.mxu0 0
      %2339 = vmatprep.mubr.bf16.mxu0 0
      %2340 = vmatmul.mubr.bf16.gmra.mxu0 %v2226
      %v2341 = vpop.f32.mrf.mxu0
      %v2342 = vadd.f32 0.0, %v2341
      %v2343 = vpop.f32.mrf.mxu0
      %v2344 = vpop.f32.mrf.mxu0
      %v2345 = vadd.f32 0.0, %v2344
      %v2346 = vpop.f32.mrf.mxu0
      %2347 = vmatprep.mubr.bf16.mxu0 0
      %2348 = vmatmul.mubr.bf16.gmra.mxu0 %v2227
      %v2349 = vpop.f32.mrf.mxu0
      %v2350 = vadd.f32 0.0, %v2349
      %v2351 = vpop.f32.mrf.mxu0
      %v2352 = vpop.f32.mrf.mxu0
      %v2353 = vadd.f32 0.0, %v2352
      %v2354 = vpop.f32.mrf.mxu0
      %2355 = vmatprep.mubr.bf16.mxu0 0
      %2356 = vmatmul.mubr.bf16.gmra.mxu0 %v2228
      %v2357 = vpop.f32.mrf.mxu0
      %v2358 = vadd.f32 0.0, %v2357
      %v2359 = vpop.f32.mrf.mxu0
      %v2360 = vpop.f32.mrf.mxu0
      %v2361 = vadd.f32 0.0, %v2360
      %v2362 = vpop.f32.mrf.mxu0
      %2363 = vmatprep.mubr.bf16.mxu0 0
      %2364 = vmatmul.mubr.bf16.gmra.mxu0 %v2229
      %v2365 = vpop.f32.mrf.mxu0
      %v2366 = vadd.f32 0.0, %v2365
      %v2367 = vpop.f32.mrf.mxu0
      %v2368 = vpop.f32.mrf.mxu0
      %v2369 = vadd.f32 0.0, %v2368
      %v2370 = vpop.f32.mrf.mxu0
      %2371 = vmatprep.mubr.bf16.mxu0 0
      %2372 = vmatmul.mubr.bf16.gmra.mxu0 %v2230
      %v2373 = vpop.f32.mrf.mxu0
      %v2374 = vadd.f32 0.0, %v2373
      %v2375 = vpop.f32.mrf.mxu0
      %v2376 = vpop.f32.mrf.mxu0
      %v2377 = vadd.f32 0.0, %v2376
      %v2378 = vpop.f32.mrf.mxu0
      %2379 = vmatprep.mubr.bf16.mxu0 0
      %2380 = vmatmul.mubr.bf16.gmra.mxu0 %v2231
      %v2381 = vpop.f32.mrf.mxu0
      %v2382 = vadd.f32 0.0, %v2381
      %v2383 = vpop.f32.mrf.mxu0
      %v2384 = vpop.f32.mrf.mxu0
      %v2385 = vadd.f32 0.0, %v2384
      %v2386 = vpop.f32.mrf.mxu0
      %2387 = vmatprep.mubr.bf16.mxu0 0
      %2388 = vmatmul.mubr.bf16.gmra.mxu0 %v2232
      %v2389 = vpop.f32.mrf.mxu0
      %v2390 = vadd.f32 0.0, %v2389
      %v2391 = vpop.f32.mrf.mxu0
      %v2392 = vpop.f32.mrf.mxu0
      %v2393 = vadd.f32 0.0, %v2392
      %v2394 = vpop.f32.mrf.mxu0
      %2395 = vmatprep.mubr.bf16.mxu0 0
      %2396 = vmatmul.mubr.bf16.gmra.mxu0 %v2233
      %v2397 = vpop.f32.mrf.mxu0
      %v2398 = vadd.f32 0.0, %v2397
      %v2399 = vpop.f32.mrf.mxu0
      %v2400 = vpop.f32.mrf.mxu0
      %v2401 = vadd.f32 0.0, %v2400
      %v2402 = vpop.f32.mrf.mxu0
      %2403 = vmatprep.mubr.bf16.mxu0 0
      %2404 = vmatmul.mubr.bf16.gmra.mxu0 %v2234
      %v2405 = vpop.f32.mrf.mxu0
      %v2406 = vadd.f32 0.0, %v2405
      %v2407 = vpop.f32.mrf.mxu0
      %v2408 = vpop.f32.mrf.mxu0
      %v2409 = vadd.f32 0.0, %v2408
      %v2410 = vpop.f32.mrf.mxu0
      %2411 = vmatprep.mubr.bf16.mxu0 0
      %2412 = vmatmul.mubr.bf16.gmra.mxu0 %v2235
      %v2413 = vpop.f32.mrf.mxu0
      %v2414 = vadd.f32 0.0, %v2413
      %v2415 = vpop.f32.mrf.mxu0
      %v2416 = vpop.f32.mrf.mxu0
      %v2417 = vadd.f32 0.0, %v2416
      %v2418 = vpop.f32.mrf.mxu0
      %2419 = vmatprep.mubr.bf16.mxu0 0
      %2420 = vmatmul.mubr.bf16.gmra.mxu0 %v2236
      %v2421 = vpop.f32.mrf.mxu0
      %v2422 = vadd.f32 0.0, %v2421
      %v2423 = vpop.f32.mrf.mxu0
      %v2424 = vpop.f32.mrf.mxu0
      %v2425 = vadd.f32 0.0, %v2424
      %v2426 = vpop.f32.mrf.mxu0
      %2427 = vmatprep.mubr.bf16.mxu0 0
      %2428 = vmatmul.mubr.bf16.gmra.mxu0 %v2237
      %v2429 = vpop.f32.mrf.mxu0
      %v2430 = vadd.f32 0.0, %v2429
      %v2431 = vpop.f32.mrf.mxu0
      %v2432 = vpop.f32.mrf.mxu0
      %v2433 = vadd.f32 0.0, %v2432
      %v2434 = vpop.f32.mrf.mxu0
      %2435 = vmatprep.mubr.bf16.mxu0 0
      %2436 = vmatmul.mubr.bf16.gmra.mxu0 %v2238
      %v2437 = vpop.f32.mrf.mxu0
      %v2438 = vadd.f32 0.0, %v2437
      %v2439 = vpop.f32.mrf.mxu0
      %v2440 = vpop.f32.mrf.mxu0
      %v2441 = vadd.f32 0.0, %v2440
      %v2442 = vpop.f32.mrf.mxu0
      %2443 = vmatprep.mubr.bf16.mxu0 0
      %2444 = vmatmul.mubr.bf16.gmra.mxu0 %v2239
      %v2445 = vpop.f32.mrf.mxu0
      %v2446 = vadd.f32 0.0, %v2445
      %v2447 = vpop.f32.mrf.mxu0
      %v2448 = vpop.f32.mrf.mxu0
      %v2449 = vadd.f32 0.0, %v2448
      %v2450 = vpop.f32.mrf.mxu0
      %2451 = vmatprep.mubr.bf16.mxu0 0
      %2452 = vmatmul.mubr.bf16.gmra.mxu0 %v2240
      %v2453 = vpop.f32.mrf.mxu0
      %v2454 = vadd.f32 0.0, %v2453
      %v2455 = vpop.f32.mrf.mxu0
      %v2456 = vpop.f32.mrf.mxu0
      %v2457 = vadd.f32 0.0, %v2456
      %v2458 = vpop.f32.mrf.mxu0
      %2459 = vmatprep.mubr.bf16.mxu0 0
      %2460 = vmatmul.mubr.bf16.gmra.mxu0 %v2241
      %v2461 = vpop.f32.mrf.mxu0
      %v2462 = vadd.f32 0.0, %v2461
      %v2463 = vpop.f32.mrf.mxu0
      %v2464 = vpop.f32.mrf.mxu0
      %v2465 = vadd.f32 0.0, %v2464
      %v2466 = vpop.f32.mrf.mxu0
      %2467 = vdwg.mxu0
      %v2468 = vld [vmem:[#allocation4] sm:$0xff]
      %v2469 = vld [vmem:[#allocation4 + $0x8] sm:$0xff]
      %v2470 = vld [vmem:[#allocation4 + $0x10] sm:$0xff]
      %v2471 = vld [vmem:[#allocation4 + $0x18] sm:$0xff]
      %v2472 = vld [vmem:[#allocation4 + $0x20] sm:$0xff]
      %v2473 = vld [vmem:[#allocation4 + $0x28] sm:$0xff]
      %v2474 = vld [vmem:[#allocation4 + $0x30] sm:$0xff]
      %v2475 = vld [vmem:[#allocation4 + $0x38] sm:$0xff]
      %v2476 = vld [vmem:[#allocation4 + $0x40] sm:$0xff]
      %v2477 = vld [vmem:[#allocation4 + $0x48] sm:$0xff]
      %v2478 = vld [vmem:[#allocation4 + $0x50] sm:$0xff]
      %v2479 = vld [vmem:[#allocation4 + $0x58] sm:$0xff]
      %v2480 = vld [vmem:[#allocation4 + $0x60] sm:$0xff]
      %v2481 = vld [vmem:[#allocation4 + $0x68] sm:$0xff]
      %v2482 = vld [vmem:[#allocation4 + $0x70] sm:$0xff]
      %v2483 = vld [vmem:[#allocation4 + $0x78] sm:$0xff]
      %v2484 = vld [vmem:[#allocation4 + $0x80] sm:$0xff]
      %v2485 = vld [vmem:[#allocation4 + $0x88] sm:$0xff]
      %v2486 = vld [vmem:[#allocation4 + $0x90] sm:$0xff]
      %v2487 = vld [vmem:[#allocation4 + $0x98] sm:$0xff]
      %v2488 = vld [vmem:[#allocation4 + $0xa0] sm:$0xff]
      %v2489 = vld [vmem:[#allocation4 + $0xa8] sm:$0xff]
      %v2490 = vld [vmem:[#allocation4 + $0xb0] sm:$0xff]
      %v2491 = vld [vmem:[#allocation4 + $0xb8] sm:$0xff]
      %v2492 = vld [vmem:[#allocation4 + $0xc0] sm:$0xff]
      %v2493 = vld [vmem:[#allocation4 + $0xc8] sm:$0xff]
      %v2494 = vld [vmem:[#allocation4 + $0xd0] sm:$0xff]
      %v2495 = vld [vmem:[#allocation4 + $0xd8] sm:$0xff]
      %v2496 = vld [vmem:[#allocation4 + $0xe0] sm:$0xff]
      %v2497 = vld [vmem:[#allocation4 + $0xe8] sm:$0xff]
      %v2498 = vld [vmem:[#allocation4 + $0xf0] sm:$0xff]
      %v2499 = vld [vmem:[#allocation4 + $0xf8] sm:$0xff]
      %v2500 = vadd.f32 %v2468, %v2342
      %v2501 = vadd.f32 %v2469, %v2345
      %v2502 = vadd.f32 %v2470, %v2350
      %v2503 = vadd.f32 %v2471, %v2353
      %v2504 = vadd.f32 %v2472, %v2358
      %v2505 = vadd.f32 %v2473, %v2361
      %v2506 = vadd.f32 %v2474, %v2366
      %v2507 = vadd.f32 %v2475, %v2369
      %v2508 = vadd.f32 %v2476, %v2374
      %v2509 = vadd.f32 %v2477, %v2377
      %v2510 = vadd.f32 %v2478, %v2382
      %v2511 = vadd.f32 %v2479, %v2385
      %v2512 = vadd.f32 %v2480, %v2390
      %v2513 = vadd.f32 %v2481, %v2393
      %v2514 = vadd.f32 %v2482, %v2398
      %v2515 = vadd.f32 %v2483, %v2401
      %v2516 = vadd.f32 %v2484, %v2406
      %v2517 = vadd.f32 %v2485, %v2409
      %v2518 = vadd.f32 %v2486, %v2414
      %v2519 = vadd.f32 %v2487, %v2417
      %v2520 = vadd.f32 %v2488, %v2422
      %v2521 = vadd.f32 %v2489, %v2425
      %v2522 = vadd.f32 %v2490, %v2430
      %v2523 = vadd.f32 %v2491, %v2433
      %v2524 = vadd.f32 %v2492, %v2438
      %v2525 = vadd.f32 %v2493, %v2441
      %v2526 = vadd.f32 %v2494, %v2446
      %v2527 = vadd.f32 %v2495, %v2449
      %v2528 = vadd.f32 %v2496, %v2454
      %v2529 = vadd.f32 %v2497, %v2457
      %v2530 = vadd.f32 %v2498, %v2462
      %v2531 = vadd.f32 %v2499, %v2465
      %2532 = vst [vmem:[#allocation4] sm:$0xff] %v2500
      %2533 = vst [vmem:[#allocation4 + $0x8] sm:$0xff] %v2501
      %2534 = vst [vmem:[#allocation4 + $0x10] sm:$0xff] %v2502
      %2535 = vst [vmem:[#allocation4 + $0x18] sm:$0xff] %v2503
      %2536 = vst [vmem:[#allocation4 + $0x20] sm:$0xff] %v2504
      %2537 = vst [vmem:[#allocation4 + $0x28] sm:$0xff] %v2505
      %2538 = vst [vmem:[#allocation4 + $0x30] sm:$0xff] %v2506
      %2539 = vst [vmem:[#allocation4 + $0x38] sm:$0xff] %v2507
      %2540 = vst [vmem:[#allocation4 + $0x40] sm:$0xff] %v2508
      %2541 = vst [vmem:[#allocation4 + $0x48] sm:$0xff] %v2509
      %2542 = vst [vmem:[#allocation4 + $0x50] sm:$0xff] %v2510
      %2543 = vst [vmem:[#allocation4 + $0x58] sm:$0xff] %v2511
      %2544 = vst [vmem:[#allocation4 + $0x60] sm:$0xff] %v2512
      %2545 = vst [vmem:[#allocation4 + $0x68] sm:$0xff] %v2513
      %2546 = vst [vmem:[#allocation4 + $0x70] sm:$0xff] %v2514
      %2547 = vst [vmem:[#allocation4 + $0x78] sm:$0xff] %v2515
      %2548 = vst [vmem:[#allocation4 + $0x80] sm:$0xff] %v2516
      %2549 = vst [vmem:[#allocation4 + $0x88] sm:$0xff] %v2517
      %2550 = vst [vmem:[#allocation4 + $0x90] sm:$0xff] %v2518
      %2551 = vst [vmem:[#allocation4 + $0x98] sm:$0xff] %v2519
      %2552 = vst [vmem:[#allocation4 + $0xa0] sm:$0xff] %v2520
      %2553 = vst [vmem:[#allocation4 + $0xa8] sm:$0xff] %v2521
      %2554 = vst [vmem:[#allocation4 + $0xb0] sm:$0xff] %v2522
      %2555 = vst [vmem:[#allocation4 + $0xb8] sm:$0xff] %v2523
      %2556 = vst [vmem:[#allocation4 + $0xc0] sm:$0xff] %v2524
      %2557 = vst [vmem:[#allocation4 + $0xc8] sm:$0xff] %v2525
      %2558 = vst [vmem:[#allocation4 + $0xd0] sm:$0xff] %v2526
      %2559 = vst [vmem:[#allocation4 + $0xd8] sm:$0xff] %v2527
      %2560 = vst [vmem:[#allocation4 + $0xe0] sm:$0xff] %v2528
      %2561 = vst [vmem:[#allocation4 + $0xe8] sm:$0xff] %v2529
      %2562 = vst [vmem:[#allocation4 + $0xf0] sm:$0xff] %v2530
      %2563 = vst [vmem:[#allocation4 + $0xf8] sm:$0xff] %v2531
      %s2564 = scalar_lea.vmem [#allocation2], 48
      %v2565 = vld [vmem:[%s2564] sm:$0xff]
      %v2566 = vld [vmem:[%s2564 + $0x8] sm:$0xff]
      %v2567 = vld [vmem:[%s2564 + $0x18] sm:$0xff]
      %v2568 = vld [vmem:[%s2564 + $0x20] sm:$0xff]
      %v2569 = vld [vmem:[%s2564 + $0x30] sm:$0xff]
      %v2570 = vld [vmem:[%s2564 + $0x38] sm:$0xff]
      %v2571 = vld [vmem:[%s2564 + $0x48] sm:$0xff]
      %v2572 = vld [vmem:[%s2564 + $0x50] sm:$0xff]
      %v2573 = vld [vmem:[%s2564 + $0x60] sm:$0xff]
      %v2574 = vld [vmem:[%s2564 + $0x68] sm:$0xff]
      %v2575 = vld [vmem:[%s2564 + $0x78] sm:$0xff]
      %v2576 = vld [vmem:[%s2564 + $0x80] sm:$0xff]
      %v2577 = vld [vmem:[%s2564 + $0x90] sm:$0xff]
      %v2578 = vld [vmem:[%s2564 + $0x98] sm:$0xff]
      %v2579 = vld [vmem:[%s2564 + $0xa8] sm:$0xff]
      %v2580 = vld [vmem:[%s2564 + $0xb0] sm:$0xff]
      %v2581 = vld [vmem:[%s2564 + $0xc0] sm:$0xff]
      %v2582 = vld [vmem:[%s2564 + $0xc8] sm:$0xff]
      %v2583 = vld [vmem:[%s2564 + $0xd8] sm:$0xff]
      %v2584 = vld [vmem:[%s2564 + $0xe0] sm:$0xff]
      %v2585 = vld [vmem:[%s2564 + $0xf0] sm:$0xff]
      %v2586 = vld [vmem:[%s2564 + $0xf8] sm:$0xff]
      %v2587 = vld [vmem:[%s2564 + $0x108] sm:$0xff]
      %v2588 = vld [vmem:[%s2564 + $0x110] sm:$0xff]
      %v2589 = vld [vmem:[%s2564 + $0x120] sm:$0xff]
      %v2590 = vld [vmem:[%s2564 + $0x128] sm:$0xff]
      %v2591 = vld [vmem:[%s2564 + $0x138] sm:$0xff]
      %v2592 = vld [vmem:[%s2564 + $0x140] sm:$0xff]
      %v2593 = vld [vmem:[%s2564 + $0x150] sm:$0xff]
      %v2594 = vld [vmem:[%s2564 + $0x158] sm:$0xff]
      %v2595 = vld [vmem:[%s2564 + $0x168] sm:$0xff]
      %v2596 = vld [vmem:[%s2564 + $0x170] sm:$0xff]
      %v2597 = vpack.c.bf16 %v2566, %v2565
      %v2598 = vpack.c.bf16 %v2568, %v2567
      %v2599 = vpack.c.bf16 %v2570, %v2569
      %v2600 = vpack.c.bf16 %v2572, %v2571
      %v2601 = vpack.c.bf16 %v2574, %v2573
      %v2602 = vpack.c.bf16 %v2576, %v2575
      %v2603 = vpack.c.bf16 %v2578, %v2577
      %v2604 = vpack.c.bf16 %v2580, %v2579
      %v2605 = vpack.c.bf16 %v2582, %v2581
      %v2606 = vpack.c.bf16 %v2584, %v2583
      %v2607 = vpack.c.bf16 %v2586, %v2585
      %v2608 = vpack.c.bf16 %v2588, %v2587
      %v2609 = vpack.c.bf16 %v2590, %v2589
      %v2610 = vpack.c.bf16 %v2592, %v2591
      %v2611 = vpack.c.bf16 %v2594, %v2593
      %v2612 = vpack.c.bf16 %v2596, %v2595
      %s2613 = scalar_lea.vmem %s1, 384
      %v2614 = vld [vmem:[%s2613] sm:$0xf]
      %v2615 = vld [vmem:[%s2613 + $0x4] sm:$0xf]
      %v2616 = vld [vmem:[%s2613 + $0x8] sm:$0xf]
      %v2617 = vld [vmem:[%s2613 + $0xc] sm:$0xf]
      %v2618 = vld [vmem:[%s2613 + $0x10] sm:$0xf]
      %v2619 = vld [vmem:[%s2613 + $0x14] sm:$0xf]
      %v2620 = vld [vmem:[%s2613 + $0x18] sm:$0xf]
      %v2621 = vld [vmem:[%s2613 + $0x1c] sm:$0xf]
      %v2622 = vld [vmem:[%s2613 + $0x20] sm:$0xf]
      %v2623 = vld [vmem:[%s2613 + $0x24] sm:$0xf]
      %v2624 = vld [vmem:[%s2613 + $0x28] sm:$0xf]
      %v2625 = vld [vmem:[%s2613 + $0x2c] sm:$0xf]
      %v2626 = vld [vmem:[%s2613 + $0x30] sm:$0xf]
      %v2627 = vld [vmem:[%s2613 + $0x34] sm:$0xf]
      %v2628 = vld [vmem:[%s2613 + $0x38] sm:$0xf]
      %v2629 = vld [vmem:[%s2613 + $0x3c] sm:$0xf]
      %v2646 = vunpack.c.l.b16 %v2614
      %v2647 = vunpack.c.l.b16 %v2615
      %v2648 = vunpack.c.l.b16 %v2616
      %v2649 = vunpack.c.l.b16 %v2617
      %v2650 = vunpack.c.l.b16 %v2618
      %v2651 = vunpack.c.l.b16 %v2619
      %v2652 = vunpack.c.l.b16 %v2620
      %v2653 = vunpack.c.l.b16 %v2621
      %v2654 = vunpack.c.l.b16 %v2622
      %v2655 = vunpack.c.l.b16 %v2623
      %v2656 = vunpack.c.l.b16 %v2624
      %v2657 = vunpack.c.l.b16 %v2625
      %v2658 = vunpack.c.l.b16 %v2626
      %v2659 = vunpack.c.l.b16 %v2627
      %v2660 = vunpack.c.l.b16 %v2628
      %v2661 = vunpack.c.l.b16 %v2629
      %v2662 = vpack.c.b16 %v2647, %v2646
      %v2663 = vpack.c.b16 %v2649, %v2648
      %v2664 = vpack.c.b16 %v2651, %v2650
      %v2665 = vpack.c.b16 %v2653, %v2652
      %v2666 = vpack.c.b16 %v2655, %v2654
      %v2667 = vpack.c.b16 %v2657, %v2656
      %v2668 = vpack.c.b16 %v2659, %v2658
      %v2669 = vpack.c.b16 %v2661, %v2660
      %2678 = vmatprep.subr.bf16.mxu0 0
      %2679 = vmatpush1.bf16.msra.mxu0 %v2669
      %2680 = vmatprep.subr.bf16.mxu0 0
      %2681 = vmatpush1.bf16.msra.mxu0 %v2668
      %2682 = vmatprep.subr.bf16.mxu0 0
      %2683 = vmatpush1.bf16.msra.mxu0 %v2667
      %2684 = vmatprep.subr.bf16.mxu0 0
      %2685 = vmatpush1.bf16.msra.mxu0 %v2666
      %2686 = vmatprep.subr.bf16.mxu0 0
      %2687 = vmatpush1.bf16.msra.mxu0 %v2665
      %2688 = vmatprep.subr.bf16.mxu0 0
      %2689 = vmatpush1.bf16.msra.mxu0 %v2664
      %2690 = vmatprep.subr.bf16.mxu0 0
      %2691 = vmatpush1.bf16.msra.mxu0 %v2663
      %2692 = vmatprep.subr.bf16.mxu0 0
      %2693 = vmatpush1.bf16.msra.mxu0 %v2662
      %2694 = vmatprep.subr.bf16.mxu0 0
      %2695 = vmatpush2.bf16.msra.mxu0 0
      %2696 = vmatprep.subr.bf16.mxu0 0
      %2697 = vmatpush2.bf16.msra.mxu0 0
      %2698 = vmatprep.subr.bf16.mxu0 0
      %2699 = vmatpush2.bf16.msra.mxu0 0
      %2700 = vmatprep.subr.bf16.mxu0 0
      %2701 = vmatpush2.bf16.msra.mxu0 0
      %2702 = vmatprep.subr.bf16.mxu0 0
      %2703 = vmatpush2.bf16.msra.mxu0 0
      %2704 = vmatprep.subr.bf16.mxu0 0
      %2705 = vmatpush2.bf16.msra.mxu0 0
      %2706 = vmatprep.subr.bf16.mxu0 0
      %2707 = vmatpush2.bf16.msra.mxu0 0
      %2708 = vmatprep.subr.bf16.mxu0 0
      %2709 = vmatpush2.bf16.msra.mxu0 0
      %2710 = vmatprep.mubr.bf16.mxu0 0
      %2711 = vmatmul.mubr.bf16.gmra.mxu0 %v2597
      %v2712 = vpop.f32.mrf.mxu0
      %v2713 = vadd.f32 0.0, %v2712
      %v2714 = vpop.f32.mrf.mxu0
      %v2715 = vpop.f32.mrf.mxu0
      %v2716 = vadd.f32 0.0, %v2715
      %v2717 = vpop.f32.mrf.mxu0
      %2718 = vmatprep.mubr.bf16.mxu0 0
      %2719 = vmatmul.mubr.bf16.gmra.mxu0 %v2598
      %v2720 = vpop.f32.mrf.mxu0
      %v2721 = vadd.f32 0.0, %v2720
      %v2722 = vpop.f32.mrf.mxu0
      %v2723 = vpop.f32.mrf.mxu0
      %v2724 = vadd.f32 0.0, %v2723
      %v2725 = vpop.f32.mrf.mxu0
      %2726 = vmatprep.mubr.bf16.mxu0 0
      %2727 = vmatmul.mubr.bf16.gmra.mxu0 %v2599
      %v2728 = vpop.f32.mrf.mxu0
      %v2729 = vadd.f32 0.0, %v2728
      %v2730 = vpop.f32.mrf.mxu0
      %v2731 = vpop.f32.mrf.mxu0
      %v2732 = vadd.f32 0.0, %v2731
      %v2733 = vpop.f32.mrf.mxu0
      %2734 = vmatprep.mubr.bf16.mxu0 0
      %2735 = vmatmul.mubr.bf16.gmra.mxu0 %v2600
      %v2736 = vpop.f32.mrf.mxu0
      %v2737 = vadd.f32 0.0, %v2736
      %v2738 = vpop.f32.mrf.mxu0
      %v2739 = vpop.f32.mrf.mxu0
      %v2740 = vadd.f32 0.0, %v2739
      %v2741 = vpop.f32.mrf.mxu0
      %2742 = vmatprep.mubr.bf16.mxu0 0
      %2743 = vmatmul.mubr.bf16.gmra.mxu0 %v2601
      %v2744 = vpop.f32.mrf.mxu0
      %v2745 = vadd.f32 0.0, %v2744
      %v2746 = vpop.f32.mrf.mxu0
      %v2747 = vpop.f32.mrf.mxu0
      %v2748 = vadd.f32 0.0, %v2747
      %v2749 = vpop.f32.mrf.mxu0
      %2750 = vmatprep.mubr.bf16.mxu0 0
      %2751 = vmatmul.mubr.bf16.gmra.mxu0 %v2602
      %v2752 = vpop.f32.mrf.mxu0
      %v2753 = vadd.f32 0.0, %v2752
      %v2754 = vpop.f32.mrf.mxu0
      %v2755 = vpop.f32.mrf.mxu0
      %v2756 = vadd.f32 0.0, %v2755
      %v2757 = vpop.f32.mrf.mxu0
      %2758 = vmatprep.mubr.bf16.mxu0 0
      %2759 = vmatmul.mubr.bf16.gmra.mxu0 %v2603
      %v2760 = vpop.f32.mrf.mxu0
      %v2761 = vadd.f32 0.0, %v2760
      %v2762 = vpop.f32.mrf.mxu0
      %v2763 = vpop.f32.mrf.mxu0
      %v2764 = vadd.f32 0.0, %v2763
      %v2765 = vpop.f32.mrf.mxu0
      %2766 = vmatprep.mubr.bf16.mxu0 0
      %2767 = vmatmul.mubr.bf16.gmra.mxu0 %v2604
      %v2768 = vpop.f32.mrf.mxu0
      %v2769 = vadd.f32 0.0, %v2768
      %v2770 = vpop.f32.mrf.mxu0
      %v2771 = vpop.f32.mrf.mxu0
      %v2772 = vadd.f32 0.0, %v2771
      %v2773 = vpop.f32.mrf.mxu0
      %2774 = vmatprep.mubr.bf16.mxu0 0
      %2775 = vmatmul.mubr.bf16.gmra.mxu0 %v2605
      %v2776 = vpop.f32.mrf.mxu0
      %v2777 = vadd.f32 0.0, %v2776
      %v2778 = vpop.f32.mrf.mxu0
      %v2779 = vpop.f32.mrf.mxu0
      %v2780 = vadd.f32 0.0, %v2779
      %v2781 = vpop.f32.mrf.mxu0
      %2782 = vmatprep.mubr.bf16.mxu0 0
      %2783 = vmatmul.mubr.bf16.gmra.mxu0 %v2606
      %v2784 = vpop.f32.mrf.mxu0
      %v2785 = vadd.f32 0.0, %v2784
      %v2786 = vpop.f32.mrf.mxu0
      %v2787 = vpop.f32.mrf.mxu0
      %v2788 = vadd.f32 0.0, %v2787
      %v2789 = vpop.f32.mrf.mxu0
      %2790 = vmatprep.mubr.bf16.mxu0 0
      %2791 = vmatmul.mubr.bf16.gmra.mxu0 %v2607
      %v2792 = vpop.f32.mrf.mxu0
      %v2793 = vadd.f32 0.0, %v2792
      %v2794 = vpop.f32.mrf.mxu0
      %v2795 = vpop.f32.mrf.mxu0
      %v2796 = vadd.f32 0.0, %v2795
      %v2797 = vpop.f32.mrf.mxu0
      %2798 = vmatprep.mubr.bf16.mxu0 0
      %2799 = vmatmul.mubr.bf16.gmra.mxu0 %v2608
      %v2800 = vpop.f32.mrf.mxu0
      %v2801 = vadd.f32 0.0, %v2800
      %v2802 = vpop.f32.mrf.mxu0
      %v2803 = vpop.f32.mrf.mxu0
      %v2804 = vadd.f32 0.0, %v2803
      %v2805 = vpop.f32.mrf.mxu0
      %2806 = vmatprep.mubr.bf16.mxu0 0
      %2807 = vmatmul.mubr.bf16.gmra.mxu0 %v2609
      %v2808 = vpop.f32.mrf.mxu0
      %v2809 = vadd.f32 0.0, %v2808
      %v2810 = vpop.f32.mrf.mxu0
      %v2811 = vpop.f32.mrf.mxu0
      %v2812 = vadd.f32 0.0, %v2811
      %v2813 = vpop.f32.mrf.mxu0
      %2814 = vmatprep.mubr.bf16.mxu0 0
      %2815 = vmatmul.mubr.bf16.gmra.mxu0 %v2610
      %v2816 = vpop.f32.mrf.mxu0
      %v2817 = vadd.f32 0.0, %v2816
      %v2818 = vpop.f32.mrf.mxu0
      %v2819 = vpop.f32.mrf.mxu0
      %v2820 = vadd.f32 0.0, %v2819
      %v2821 = vpop.f32.mrf.mxu0
      %2822 = vmatprep.mubr.bf16.mxu0 0
      %2823 = vmatmul.mubr.bf16.gmra.mxu0 %v2611
      %v2824 = vpop.f32.mrf.mxu0
      %v2825 = vadd.f32 0.0, %v2824
      %v2826 = vpop.f32.mrf.mxu0
      %v2827 = vpop.f32.mrf.mxu0
      %v2828 = vadd.f32 0.0, %v2827
      %v2829 = vpop.f32.mrf.mxu0
      %2830 = vmatprep.mubr.bf16.mxu0 0
      %2831 = vmatmul.mubr.bf16.gmra.mxu0 %v2612
      %v2832 = vpop.f32.mrf.mxu0
      %v2833 = vadd.f32 0.0, %v2832
      %v2834 = vpop.f32.mrf.mxu0
      %v2835 = vpop.f32.mrf.mxu0
      %v2836 = vadd.f32 0.0, %v2835
      %v2837 = vpop.f32.mrf.mxu0
      %2838 = vdwg.mxu0
      %v2839 = vld [vmem:[#allocation4] sm:$0xff]
      %v2840 = vld [vmem:[#allocation4 + $0x8] sm:$0xff]
      %v2841 = vld [vmem:[#allocation4 + $0x10] sm:$0xff]
      %v2842 = vld [vmem:[#allocation4 + $0x18] sm:$0xff]
      %v2843 = vld [vmem:[#allocation4 + $0x20] sm:$0xff]
      %v2844 = vld [vmem:[#allocation4 + $0x28] sm:$0xff]
      %v2845 = vld [vmem:[#allocation4 + $0x30] sm:$0xff]
      %v2846 = vld [vmem:[#allocation4 + $0x38] sm:$0xff]
      %v2847 = vld [vmem:[#allocation4 + $0x40] sm:$0xff]
      %v2848 = vld [vmem:[#allocation4 + $0x48] sm:$0xff]
      %v2849 = vld [vmem:[#allocation4 + $0x50] sm:$0xff]
      %v2850 = vld [vmem:[#allocation4 + $0x58] sm:$0xff]
      %v2851 = vld [vmem:[#allocation4 + $0x60] sm:$0xff]
      %v2852 = vld [vmem:[#allocation4 + $0x68] sm:$0xff]
      %v2853 = vld [vmem:[#allocation4 + $0x70] sm:$0xff]
      %v2854 = vld [vmem:[#allocation4 + $0x78] sm:$0xff]
      %v2855 = vld [vmem:[#allocation4 + $0x80] sm:$0xff]
      %v2856 = vld [vmem:[#allocation4 + $0x88] sm:$0xff]
      %v2857 = vld [vmem:[#allocation4 + $0x90] sm:$0xff]
      %v2858 = vld [vmem:[#allocation4 + $0x98] sm:$0xff]
      %v2859 = vld [vmem:[#allocation4 + $0xa0] sm:$0xff]
      %v2860 = vld [vmem:[#allocation4 + $0xa8] sm:$0xff]
      %v2861 = vld [vmem:[#allocation4 + $0xb0] sm:$0xff]
      %v2862 = vld [vmem:[#allocation4 + $0xb8] sm:$0xff]
      %v2863 = vld [vmem:[#allocation4 + $0xc0] sm:$0xff]
      %v2864 = vld [vmem:[#allocation4 + $0xc8] sm:$0xff]
      %v2865 = vld [vmem:[#allocation4 + $0xd0] sm:$0xff]
      %v2866 = vld [vmem:[#allocation4 + $0xd8] sm:$0xff]
      %v2867 = vld [vmem:[#allocation4 + $0xe0] sm:$0xff]
      %v2868 = vld [vmem:[#allocation4 + $0xe8] sm:$0xff]
      %v2869 = vld [vmem:[#allocation4 + $0xf0] sm:$0xff]
      %v2870 = vld [vmem:[#allocation4 + $0xf8] sm:$0xff]
      %v2871 = vadd.f32 %v2839, %v2713
      %v2872 = vadd.f32 %v2840, %v2716
      %v2873 = vadd.f32 %v2841, %v2721
      %v2874 = vadd.f32 %v2842, %v2724
      %v2875 = vadd.f32 %v2843, %v2729
      %v2876 = vadd.f32 %v2844, %v2732
      %v2877 = vadd.f32 %v2845, %v2737
      %v2878 = vadd.f32 %v2846, %v2740
      %v2879 = vadd.f32 %v2847, %v2745
      %v2880 = vadd.f32 %v2848, %v2748
      %v2881 = vadd.f32 %v2849, %v2753
      %v2882 = vadd.f32 %v2850, %v2756
      %v2883 = vadd.f32 %v2851, %v2761
      %v2884 = vadd.f32 %v2852, %v2764
      %v2885 = vadd.f32 %v2853, %v2769
      %v2886 = vadd.f32 %v2854, %v2772
      %v2887 = vadd.f32 %v2855, %v2777
      %v2888 = vadd.f32 %v2856, %v2780
      %v2889 = vadd.f32 %v2857, %v2785
      %v2890 = vadd.f32 %v2858, %v2788
      %v2891 = vadd.f32 %v2859, %v2793
      %v2892 = vadd.f32 %v2860, %v2796
      %v2893 = vadd.f32 %v2861, %v2801
      %v2894 = vadd.f32 %v2862, %v2804
      %v2895 = vadd.f32 %v2863, %v2809
      %v2896 = vadd.f32 %v2864, %v2812
      %v2897 = vadd.f32 %v2865, %v2817
      %v2898 = vadd.f32 %v2866, %v2820
      %v2899 = vadd.f32 %v2867, %v2825
      %v2900 = vadd.f32 %v2868, %v2828
      %v2901 = vadd.f32 %v2869, %v2833
      %v2902 = vadd.f32 %v2870, %v2836
      %2903 = vst [vmem:[#allocation4] sm:$0xff] %v2871
      %2904 = vst [vmem:[#allocation4 + $0x8] sm:$0xff] %v2872
      %2905 = vst [vmem:[#allocation4 + $0x10] sm:$0xff] %v2873
      %2906 = vst [vmem:[#allocation4 + $0x18] sm:$0xff] %v2874
      %2907 = vst [vmem:[#allocation4 + $0x20] sm:$0xff] %v2875
      %2908 = vst [vmem:[#allocation4 + $0x28] sm:$0xff] %v2876
      %2909 = vst [vmem:[#allocation4 + $0x30] sm:$0xff] %v2877
      %2910 = vst [vmem:[#allocation4 + $0x38] sm:$0xff] %v2878
      %2911 = vst [vmem:[#allocation4 + $0x40] sm:$0xff] %v2879
      %2912 = vst [vmem:[#allocation4 + $0x48] sm:$0xff] %v2880
      %2913 = vst [vmem:[#allocation4 + $0x50] sm:$0xff] %v2881
      %2914 = vst [vmem:[#allocation4 + $0x58] sm:$0xff] %v2882
      %2915 = vst [vmem:[#allocation4 + $0x60] sm:$0xff] %v2883
      %2916 = vst [vmem:[#allocation4 + $0x68] sm:$0xff] %v2884
      %2917 = vst [vmem:[#allocation4 + $0x70] sm:$0xff] %v2885
      %2918 = vst [vmem:[#allocation4 + $0x78] sm:$0xff] %v2886
      %2919 = vst [vmem:[#allocation4 + $0x80] sm:$0xff] %v2887
      %2920 = vst [vmem:[#allocation4 + $0x88] sm:$0xff] %v2888
      %2921 = vst [vmem:[#allocation4 + $0x90] sm:$0xff] %v2889
      %2922 = vst [vmem:[#allocation4 + $0x98] sm:$0xff] %v2890
      %2923 = vst [vmem:[#allocation4 + $0xa0] sm:$0xff] %v2891
      %2924 = vst [vmem:[#allocation4 + $0xa8] sm:$0xff] %v2892
      %2925 = vst [vmem:[#allocation4 + $0xb0] sm:$0xff] %v2893
      %2926 = vst [vmem:[#allocation4 + $0xb8] sm:$0xff] %v2894
      %2927 = vst [vmem:[#allocation4 + $0xc0] sm:$0xff] %v2895
      %2928 = vst [vmem:[#allocation4 + $0xc8] sm:$0xff] %v2896
      %2929 = vst [vmem:[#allocation4 + $0xd0] sm:$0xff] %v2897
      %2930 = vst [vmem:[#allocation4 + $0xd8] sm:$0xff] %v2898
      %2931 = vst [vmem:[#allocation4 + $0xe0] sm:$0xff] %v2899
      %2932 = vst [vmem:[#allocation4 + $0xe8] sm:$0xff] %v2900
      %2933 = vst [vmem:[#allocation4 + $0xf0] sm:$0xff] %v2901
      %2934 = vst [vmem:[#allocation4 + $0xf8] sm:$0xff] %v2902
      %v2935 = vld [vmem:[%s2564 + $0x1] sm:$0xff]
      %v2936 = vld [vmem:[%s2564 + $0x9] sm:$0xff]
      %v2937 = vld [vmem:[%s2564 + $0x19] sm:$0xff]
      %v2938 = vld [vmem:[%s2564 + $0x21] sm:$0xff]
      %v2939 = vld [vmem:[%s2564 + $0x31] sm:$0xff]
      %v2940 = vld [vmem:[%s2564 + $0x39] sm:$0xff]
      %v2941 = vld [vmem:[%s2564 + $0x49] sm:$0xff]
      %v2942 = vld [vmem:[%s2564 + $0x51] sm:$0xff]
      %v2943 = vld [vmem:[%s2564 + $0x61] sm:$0xff]
      %v2944 = vld [vmem:[%s2564 + $0x69] sm:$0xff]
      %v2945 = vld [vmem:[%s2564 + $0x79] sm:$0xff]
      %v2946 = vld [vmem:[%s2564 + $0x81] sm:$0xff]
      %v2947 = vld [vmem:[%s2564 + $0x91] sm:$0xff]
      %v2948 = vld [vmem:[%s2564 + $0x99] sm:$0xff]
      %v2949 = vld [vmem:[%s2564 + $0xa9] sm:$0xff]
      %v2950 = vld [vmem:[%s2564 + $0xb1] sm:$0xff]
      %v2951 = vld [vmem:[%s2564 + $0xc1] sm:$0xff]
      %v2952 = vld [vmem:[%s2564 + $0xc9] sm:$0xff]
      %v2953 = vld [vmem:[%s2564 + $0xd9] sm:$0xff]
      %v2954 = vld [vmem:[%s2564 + $0xe1] sm:$0xff]
      %v2955 = vld [vmem:[%s2564 + $0xf1] sm:$0xff]
      %v2956 = vld [vmem:[%s2564 + $0xf9] sm:$0xff]
      %v2957 = vld [vmem:[%s2564 + $0x109] sm:$0xff]
      %v2958 = vld [vmem:[%s2564 + $0x111] sm:$0xff]
      %v2959 = vld [vmem:[%s2564 + $0x121] sm:$0xff]
      %v2960 = vld [vmem:[%s2564 + $0x129] sm:$0xff]
      %v2961 = vld [vmem:[%s2564 + $0x139] sm:$0xff]
      %v2962 = vld [vmem:[%s2564 + $0x141] sm:$0xff]
      %v2963 = vld [vmem:[%s2564 + $0x151] sm:$0xff]
      %v2964 = vld [vmem:[%s2564 + $0x159] sm:$0xff]
      %v2965 = vld [vmem:[%s2564 + $0x169] sm:$0xff]
      %v2966 = vld [vmem:[%s2564 + $0x171] sm:$0xff]
      %v2967 = vpack.c.bf16 %v2936, %v2935
      %v2968 = vpack.c.bf16 %v2938, %v2937
      %v2969 = vpack.c.bf16 %v2940, %v2939
      %v2970 = vpack.c.bf16 %v2942, %v2941
      %v2971 = vpack.c.bf16 %v2944, %v2943
      %v2972 = vpack.c.bf16 %v2946, %v2945
      %v2973 = vpack.c.bf16 %v2948, %v2947
      %v2974 = vpack.c.bf16 %v2950, %v2949
      %v2975 = vpack.c.bf16 %v2952, %v2951
      %v2976 = vpack.c.bf16 %v2954, %v2953
      %v2977 = vpack.c.bf16 %v2956, %v2955
      %v2978 = vpack.c.bf16 %v2958, %v2957
      %v2979 = vpack.c.bf16 %v2960, %v2959
      %v2980 = vpack.c.bf16 %v2962, %v2961
      %v2981 = vpack.c.bf16 %v2964, %v2963
      %v2982 = vpack.c.bf16 %v2966, %v2965
      %s2983 = scalar_lea.vmem %s1, 448
      %v2984 = vld [vmem:[%s2983] sm:$0xf]
      %v2985 = vld [vmem:[%s2983 + $0x4] sm:$0xf]
      %v2986 = vld [vmem:[%s2983 + $0x8] sm:$0xf]
      %v2987 = vld [vmem:[%s2983 + $0xc] sm:$0xf]
      %v2988 = vld [vmem:[%s2983 + $0x10] sm:$0xf]
      %v2989 = vld [vmem:[%s2983 + $0x14] sm:$0xf]
      %v2990 = vld [vmem:[%s2983 + $0x18] sm:$0xf]
      %v2991 = vld [vmem:[%s2983 + $0x1c] sm:$0xf]
      %v2992 = vld [vmem:[%s2983 + $0x20] sm:$0xf]
      %v2993 = vld [vmem:[%s2983 + $0x24] sm:$0xf]
      %v2994 = vld [vmem:[%s2983 + $0x28] sm:$0xf]
      %v2995 = vld [vmem:[%s2983 + $0x2c] sm:$0xf]
      %v2996 = vld [vmem:[%s2983 + $0x30] sm:$0xf]
      %v2997 = vld [vmem:[%s2983 + $0x34] sm:$0xf]
      %v2998 = vld [vmem:[%s2983 + $0x38] sm:$0xf]
      %v2999 = vld [vmem:[%s2983 + $0x3c] sm:$0xf]
      %v3016 = vunpack.c.l.b16 %v2984
      %v3017 = vunpack.c.l.b16 %v2985
      %v3018 = vunpack.c.l.b16 %v2986
      %v3019 = vunpack.c.l.b16 %v2987
      %v3020 = vunpack.c.l.b16 %v2988
      %v3021 = vunpack.c.l.b16 %v2989
      %v3022 = vunpack.c.l.b16 %v2990
      %v3023 = vunpack.c.l.b16 %v2991
      %v3024 = vunpack.c.l.b16 %v2992
      %v3025 = vunpack.c.l.b16 %v2993
      %v3026 = vunpack.c.l.b16 %v2994
      %v3027 = vunpack.c.l.b16 %v2995
      %v3028 = vunpack.c.l.b16 %v2996
      %v3029 = vunpack.c.l.b16 %v2997
      %v3030 = vunpack.c.l.b16 %v2998
      %v3031 = vunpack.c.l.b16 %v2999
      %v3032 = vpack.c.b16 %v3017, %v3016
      %v3033 = vpack.c.b16 %v3019, %v3018
      %v3034 = vpack.c.b16 %v3021, %v3020
      %v3035 = vpack.c.b16 %v3023, %v3022
      %v3036 = vpack.c.b16 %v3025, %v3024
      %v3037 = vpack.c.b16 %v3027, %v3026
      %v3038 = vpack.c.b16 %v3029, %v3028
      %v3039 = vpack.c.b16 %v3031, %v3030
      %3048 = vmatprep.subr.bf16.mxu0 0
      %3049 = vmatpush1.bf16.msra.mxu0 %v3039
      %3050 = vmatprep.subr.bf16.mxu0 0
      %3051 = vmatpush1.bf16.msra.mxu0 %v3038
      %3052 = vmatprep.subr.bf16.mxu0 0
      %3053 = vmatpush1.bf16.msra.mxu0 %v3037
      %3054 = vmatprep.subr.bf16.mxu0 0
      %3055 = vmatpush1.bf16.msra.mxu0 %v3036
      %3056 = vmatprep.subr.bf16.mxu0 0
      %3057 = vmatpush1.bf16.msra.mxu0 %v3035
      %3058 = vmatprep.subr.bf16.mxu0 0
      %3059 = vmatpush1.bf16.msra.mxu0 %v3034
      %3060 = vmatprep.subr.bf16.mxu0 0
      %3061 = vmatpush1.bf16.msra.mxu0 %v3033
      %3062 = vmatprep.subr.bf16.mxu0 0
      %3063 = vmatpush1.bf16.msra.mxu0 %v3032
      %3064 = vmatprep.subr.bf16.mxu0 0
      %3065 = vmatpush2.bf16.msra.mxu0 0
      %3066 = vmatprep.subr.bf16.mxu0 0
      %3067 = vmatpush2.bf16.msra.mxu0 0
      %3068 = vmatprep.subr.bf16.mxu0 0
      %3069 = vmatpush2.bf16.msra.mxu0 0
      %3070 = vmatprep.subr.bf16.mxu0 0
      %3071 = vmatpush2.bf16.msra.mxu0 0
      %3072 = vmatprep.subr.bf16.mxu0 0
      %3073 = vmatpush2.bf16.msra.mxu0 0
      %3074 = vmatprep.subr.bf16.mxu0 0
      %3075 = vmatpush2.bf16.msra.mxu0 0
      %3076 = vmatprep.subr.bf16.mxu0 0
      %3077 = vmatpush2.bf16.msra.mxu0 0
      %3078 = vmatprep.subr.bf16.mxu0 0
      %3079 = vmatpush2.bf16.msra.mxu0 0
      %3080 = vmatprep.mubr.bf16.mxu0 0
      %3081 = vmatmul.mubr.bf16.gmra.mxu0 %v2967
      %v3082 = vpop.f32.mrf.mxu0
      %v3083 = vadd.f32 0.0, %v3082
      %v3084 = vpop.f32.mrf.mxu0
      %v3085 = vpop.f32.mrf.mxu0
      %v3086 = vadd.f32 0.0, %v3085
      %v3087 = vpop.f32.mrf.mxu0
      %3088 = vmatprep.mubr.bf16.mxu0 0
      %3089 = vmatmul.mubr.bf16.gmra.mxu0 %v2968
      %v3090 = vpop.f32.mrf.mxu0
      %v3091 = vadd.f32 0.0, %v3090
      %v3092 = vpop.f32.mrf.mxu0
      %v3093 = vpop.f32.mrf.mxu0
      %v3094 = vadd.f32 0.0, %v3093
      %v3095 = vpop.f32.mrf.mxu0
      %3096 = vmatprep.mubr.bf16.mxu0 0
      %3097 = vmatmul.mubr.bf16.gmra.mxu0 %v2969
      %v3098 = vpop.f32.mrf.mxu0
      %v3099 = vadd.f32 0.0, %v3098
      %v3100 = vpop.f32.mrf.mxu0
      %v3101 = vpop.f32.mrf.mxu0
      %v3102 = vadd.f32 0.0, %v3101
      %v3103 = vpop.f32.mrf.mxu0
      %3104 = vmatprep.mubr.bf16.mxu0 0
      %3105 = vmatmul.mubr.bf16.gmra.mxu0 %v2970
      %v3106 = vpop.f32.mrf.mxu0
      %v3107 = vadd.f32 0.0, %v3106
      %v3108 = vpop.f32.mrf.mxu0
      %v3109 = vpop.f32.mrf.mxu0
      %v3110 = vadd.f32 0.0, %v3109
      %v3111 = vpop.f32.mrf.mxu0
      %3112 = vmatprep.mubr.bf16.mxu0 0
      %3113 = vmatmul.mubr.bf16.gmra.mxu0 %v2971
      %v3114 = vpop.f32.mrf.mxu0
      %v3115 = vadd.f32 0.0, %v3114
      %v3116 = vpop.f32.mrf.mxu0
      %v3117 = vpop.f32.mrf.mxu0
      %v3118 = vadd.f32 0.0, %v3117
      %v3119 = vpop.f32.mrf.mxu0
      %3120 = vmatprep.mubr.bf16.mxu0 0
      %3121 = vmatmul.mubr.bf16.gmra.mxu0 %v2972
      %v3122 = vpop.f32.mrf.mxu0
      %v3123 = vadd.f32 0.0, %v3122
      %v3124 = vpop.f32.mrf.mxu0
      %v3125 = vpop.f32.mrf.mxu0
      %v3126 = vadd.f32 0.0, %v3125
      %v3127 = vpop.f32.mrf.mxu0
      %3128 = vmatprep.mubr.bf16.mxu0 0
      %3129 = vmatmul.mubr.bf16.gmra.mxu0 %v2973
      %v3130 = vpop.f32.mrf.mxu0
      %v3131 = vadd.f32 0.0, %v3130
      %v3132 = vpop.f32.mrf.mxu0
      %v3133 = vpop.f32.mrf.mxu0
      %v3134 = vadd.f32 0.0, %v3133
      %v3135 = vpop.f32.mrf.mxu0
      %3136 = vmatprep.mubr.bf16.mxu0 0
      %3137 = vmatmul.mubr.bf16.gmra.mxu0 %v2974
      %v3138 = vpop.f32.mrf.mxu0
      %v3139 = vadd.f32 0.0, %v3138
      %v3140 = vpop.f32.mrf.mxu0
      %v3141 = vpop.f32.mrf.mxu0
      %v3142 = vadd.f32 0.0, %v3141
      %v3143 = vpop.f32.mrf.mxu0
      %3144 = vmatprep.mubr.bf16.mxu0 0
      %3145 = vmatmul.mubr.bf16.gmra.mxu0 %v2975
      %v3146 = vpop.f32.mrf.mxu0
      %v3147 = vadd.f32 0.0, %v3146
      %v3148 = vpop.f32.mrf.mxu0
      %v3149 = vpop.f32.mrf.mxu0
      %v3150 = vadd.f32 0.0, %v3149
      %v3151 = vpop.f32.mrf.mxu0
      %3152 = vmatprep.mubr.bf16.mxu0 0
      %3153 = vmatmul.mubr.bf16.gmra.mxu0 %v2976
      %v3154 = vpop.f32.mrf.mxu0
      %v3155 = vadd.f32 0.0, %v3154
      %v3156 = vpop.f32.mrf.mxu0
      %v3157 = vpop.f32.mrf.mxu0
      %v3158 = vadd.f32 0.0, %v3157
      %v3159 = vpop.f32.mrf.mxu0
      %3160 = vmatprep.mubr.bf16.mxu0 0
      %3161 = vmatmul.mubr.bf16.gmra.mxu0 %v2977
      %v3162 = vpop.f32.mrf.mxu0
      %v3163 = vadd.f32 0.0, %v3162
      %v3164 = vpop.f32.mrf.mxu0
      %v3165 = vpop.f32.mrf.mxu0
      %v3166 = vadd.f32 0.0, %v3165
      %v3167 = vpop.f32.mrf.mxu0
      %3168 = vmatprep.mubr.bf16.mxu0 0
      %3169 = vmatmul.mubr.bf16.gmra.mxu0 %v2978
      %v3170 = vpop.f32.mrf.mxu0
      %v3171 = vadd.f32 0.0, %v3170
      %v3172 = vpop.f32.mrf.mxu0
      %v3173 = vpop.f32.mrf.mxu0
      %v3174 = vadd.f32 0.0, %v3173
      %v3175 = vpop.f32.mrf.mxu0
      %3176 = vmatprep.mubr.bf16.mxu0 0
      %3177 = vmatmul.mubr.bf16.gmra.mxu0 %v2979
      %v3178 = vpop.f32.mrf.mxu0
      %v3179 = vadd.f32 0.0, %v3178
      %v3180 = vpop.f32.mrf.mxu0
      %v3181 = vpop.f32.mrf.mxu0
      %v3182 = vadd.f32 0.0, %v3181
      %v3183 = vpop.f32.mrf.mxu0
      %3184 = vmatprep.mubr.bf16.mxu0 0
      %3185 = vmatmul.mubr.bf16.gmra.mxu0 %v2980
      %v3186 = vpop.f32.mrf.mxu0
      %v3187 = vadd.f32 0.0, %v3186
      %v3188 = vpop.f32.mrf.mxu0
      %v3189 = vpop.f32.mrf.mxu0
      %v3190 = vadd.f32 0.0, %v3189
      %v3191 = vpop.f32.mrf.mxu0
      %3192 = vmatprep.mubr.bf16.mxu0 0
      %3193 = vmatmul.mubr.bf16.gmra.mxu0 %v2981
      %v3194 = vpop.f32.mrf.mxu0
      %v3195 = vadd.f32 0.0, %v3194
      %v3196 = vpop.f32.mrf.mxu0
      %v3197 = vpop.f32.mrf.mxu0
      %v3198 = vadd.f32 0.0, %v3197
      %v3199 = vpop.f32.mrf.mxu0
      %3200 = vmatprep.mubr.bf16.mxu0 0
      %3201 = vmatmul.mubr.bf16.gmra.mxu0 %v2982
      %v3202 = vpop.f32.mrf.mxu0
      %v3203 = vadd.f32 0.0, %v3202
      %v3204 = vpop.f32.mrf.mxu0
      %v3205 = vpop.f32.mrf.mxu0
      %v3206 = vadd.f32 0.0, %v3205
      %v3207 = vpop.f32.mrf.mxu0
      %3208 = vdwg.mxu0
      %v3209 = vld [vmem:[#allocation4] sm:$0xff]
      %v3210 = vld [vmem:[#allocation4 + $0x8] sm:$0xff]
      %v3211 = vld [vmem:[#allocation4 + $0x10] sm:$0xff]
      %v3212 = vld [vmem:[#allocation4 + $0x18] sm:$0xff]
      %v3213 = vld [vmem:[#allocation4 + $0x20] sm:$0xff]
      %v3214 = vld [vmem:[#allocation4 + $0x28] sm:$0xff]
      %v3215 = vld [vmem:[#allocation4 + $0x30] sm:$0xff]
      %v3216 = vld [vmem:[#allocation4 + $0x38] sm:$0xff]
      %v3217 = vld [vmem:[#allocation4 + $0x40] sm:$0xff]
      %v3218 = vld [vmem:[#allocation4 + $0x48] sm:$0xff]
      %v3219 = vld [vmem:[#allocation4 + $0x50] sm:$0xff]
      %v3220 = vld [vmem:[#allocation4 + $0x58] sm:$0xff]
      %v3221 = vld [vmem:[#allocation4 + $0x60] sm:$0xff]
      %v3222 = vld [vmem:[#allocation4 + $0x68] sm:$0xff]
      %v3223 = vld [vmem:[#allocation4 + $0x70] sm:$0xff]
      %v3224 = vld [vmem:[#allocation4 + $0x78] sm:$0xff]
      %v3225 = vld [vmem:[#allocation4 + $0x80] sm:$0xff]
      %v3226 = vld [vmem:[#allocation4 + $0x88] sm:$0xff]
      %v3227 = vld [vmem:[#allocation4 + $0x90] sm:$0xff]
      %v3228 = vld [vmem:[#allocation4 + $0x98] sm:$0xff]
      %v3229 = vld [vmem:[#allocation4 + $0xa0] sm:$0xff]
      %v3230 = vld [vmem:[#allocation4 + $0xa8] sm:$0xff]
      %v3231 = vld [vmem:[#allocation4 + $0xb0] sm:$0xff]
      %v3232 = vld [vmem:[#allocation4 + $0xb8] sm:$0xff]
      %v3233 = vld [vmem:[#allocation4 + $0xc0] sm:$0xff]
      %v3234 = vld [vmem:[#allocation4 + $0xc8] sm:$0xff]
      %v3235 = vld [vmem:[#allocation4 + $0xd0] sm:$0xff]
      %v3236 = vld [vmem:[#allocation4 + $0xd8] sm:$0xff]
      %v3237 = vld [vmem:[#allocation4 + $0xe0] sm:$0xff]
      %v3238 = vld [vmem:[#allocation4 + $0xe8] sm:$0xff]
      %v3239 = vld [vmem:[#allocation4 + $0xf0] sm:$0xff]
      %v3240 = vld [vmem:[#allocation4 + $0xf8] sm:$0xff]
      %v3241 = vadd.f32 %v3209, %v3083
      %v3242 = vadd.f32 %v3210, %v3086
      %v3243 = vadd.f32 %v3211, %v3091
      %v3244 = vadd.f32 %v3212, %v3094
      %v3245 = vadd.f32 %v3213, %v3099
      %v3246 = vadd.f32 %v3214, %v3102
      %v3247 = vadd.f32 %v3215, %v3107
      %v3248 = vadd.f32 %v3216, %v3110
      %v3249 = vadd.f32 %v3217, %v3115
      %v3250 = vadd.f32 %v3218, %v3118
      %v3251 = vadd.f32 %v3219, %v3123
      %v3252 = vadd.f32 %v3220, %v3126
      %v3253 = vadd.f32 %v3221, %v3131
      %v3254 = vadd.f32 %v3222, %v3134
      %v3255 = vadd.f32 %v3223, %v3139
      %v3256 = vadd.f32 %v3224, %v3142
      %v3257 = vadd.f32 %v3225, %v3147
      %v3258 = vadd.f32 %v3226, %v3150
      %v3259 = vadd.f32 %v3227, %v3155
      %v3260 = vadd.f32 %v3228, %v3158
      %v3261 = vadd.f32 %v3229, %v3163
      %v3262 = vadd.f32 %v3230, %v3166
      %v3263 = vadd.f32 %v3231, %v3171
      %v3264 = vadd.f32 %v3232, %v3174
      %v3265 = vadd.f32 %v3233, %v3179
      %v3266 = vadd.f32 %v3234, %v3182
      %v3267 = vadd.f32 %v3235, %v3187
      %v3268 = vadd.f32 %v3236, %v3190
      %v3269 = vadd.f32 %v3237, %v3195
      %v3270 = vadd.f32 %v3238, %v3198
      %v3271 = vadd.f32 %v3239, %v3203
      %v3272 = vadd.f32 %v3240, %v3206
      %3273 = vst [vmem:[#allocation4] sm:$0xff] %v3241
      %3274 = vst [vmem:[#allocation4 + $0x8] sm:$0xff] %v3242
      %3275 = vst [vmem:[#allocation4 + $0x10] sm:$0xff] %v3243
      %3276 = vst [vmem:[#allocation4 + $0x18] sm:$0xff] %v3244
      %3277 = vst [vmem:[#allocation4 + $0x20] sm:$0xff] %v3245
      %3278 = vst [vmem:[#allocation4 + $0x28] sm:$0xff] %v3246
      %3279 = vst [vmem:[#allocation4 + $0x30] sm:$0xff] %v3247
      %3280 = vst [vmem:[#allocation4 + $0x38] sm:$0xff] %v3248
      %3281 = vst [vmem:[#allocation4 + $0x40] sm:$0xff] %v3249
      %3282 = vst [vmem:[#allocation4 + $0x48] sm:$0xff] %v3250
      %3283 = vst [vmem:[#allocation4 + $0x50] sm:$0xff] %v3251
      %3284 = vst [vmem:[#allocation4 + $0x58] sm:$0xff] %v3252
      %3285 = vst [vmem:[#allocation4 + $0x60] sm:$0xff] %v3253
      %3286 = vst [vmem:[#allocation4 + $0x68] sm:$0xff] %v3254
      %3287 = vst [vmem:[#allocation4 + $0x70] sm:$0xff] %v3255
      %3288 = vst [vmem:[#allocation4 + $0x78] sm:$0xff] %v3256
      %3289 = vst [vmem:[#allocation4 + $0x80] sm:$0xff] %v3257
      %3290 = vst [vmem:[#allocation4 + $0x88] sm:$0xff] %v3258
      %3291 = vst [vmem:[#allocation4 + $0x90] sm:$0xff] %v3259
      %3292 = vst [vmem:[#allocation4 + $0x98] sm:$0xff] %v3260
      %3293 = vst [vmem:[#allocation4 + $0xa0] sm:$0xff] %v3261
      %3294 = vst [vmem:[#allocation4 + $0xa8] sm:$0xff] %v3262
      %3295 = vst [vmem:[#allocation4 + $0xb0] sm:$0xff] %v3263
      %3296 = vst [vmem:[#allocation4 + $0xb8] sm:$0xff] %v3264
      %3297 = vst [vmem:[#allocation4 + $0xc0] sm:$0xff] %v3265
      %3298 = vst [vmem:[#allocation4 + $0xc8] sm:$0xff] %v3266
      %3299 = vst [vmem:[#allocation4 + $0xd0] sm:$0xff] %v3267
      %3300 = vst [vmem:[#allocation4 + $0xd8] sm:$0xff] %v3268
      %3301 = vst [vmem:[#allocation4 + $0xe0] sm:$0xff] %v3269
      %3302 = vst [vmem:[#allocation4 + $0xe8] sm:$0xff] %v3270
      %3303 = vst [vmem:[#allocation4 + $0xf0] sm:$0xff] %v3271
      %3304 = vst [vmem:[#allocation4 + $0xf8] sm:$0xff] %v3272
      %v3305 = vld [vmem:[%s2564 + $0x2] sm:$0xff]
      %v3306 = vld [vmem:[%s2564 + $0xa] sm:$0xff]
      %v3307 = vld [vmem:[%s2564 + $0x1a] sm:$0xff]
      %v3308 = vld [vmem:[%s2564 + $0x22] sm:$0xff]
      %v3309 = vld [vmem:[%s2564 + $0x32] sm:$0xff]
      %v3310 = vld [vmem:[%s2564 + $0x3a] sm:$0xff]
      %v3311 = vld [vmem:[%s2564 + $0x4a] sm:$0xff]
      %v3312 = vld [vmem:[%s2564 + $0x52] sm:$0xff]
      %v3313 = vld [vmem:[%s2564 + $0x62] sm:$0xff]
      %v3314 = vld [vmem:[%s2564 + $0x6a] sm:$0xff]
      %v3315 = vld [vmem:[%s2564 + $0x7a] sm:$0xff]
      %v3316 = vld [vmem:[%s2564 + $0x82] sm:$0xff]
      %v3317 = vld [vmem:[%s2564 + $0x92] sm:$0xff]
      %v3318 = vld [vmem:[%s2564 + $0x9a] sm:$0xff]
      %v3319 = vld [vmem:[%s2564 + $0xaa] sm:$0xff]
      %v3320 = vld [vmem:[%s2564 + $0xb2] sm:$0xff]
      %v3321 = vld [vmem:[%s2564 + $0xc2] sm:$0xff]
      %v3322 = vld [vmem:[%s2564 + $0xca] sm:$0xff]
      %v3323 = vld [vmem:[%s2564 + $0xda] sm:$0xff]
      %v3324 = vld [vmem:[%s2564 + $0xe2] sm:$0xff]
      %v3325 = vld [vmem:[%s2564 + $0xf2] sm:$0xff]
      %v3326 = vld [vmem:[%s2564 + $0xfa] sm:$0xff]
      %v3327 = vld [vmem:[%s2564 + $0x10a] sm:$0xff]
      %v3328 = vld [vmem:[%s2564 + $0x112] sm:$0xff]
      %v3329 = vld [vmem:[%s2564 + $0x122] sm:$0xff]
      %v3330 = vld [vmem:[%s2564 + $0x12a] sm:$0xff]
      %v3331 = vld [vmem:[%s2564 + $0x13a] sm:$0xff]
      %v3332 = vld [vmem:[%s2564 + $0x142] sm:$0xff]
      %v3333 = vld [vmem:[%s2564 + $0x152] sm:$0xff]
      %v3334 = vld [vmem:[%s2564 + $0x15a] sm:$0xff]
      %v3335 = vld [vmem:[%s2564 + $0x16a] sm:$0xff]
      %v3336 = vld [vmem:[%s2564 + $0x172] sm:$0xff]
      %v3337 = vpack.c.bf16 %v3306, %v3305
      %v3338 = vpack.c.bf16 %v3308, %v3307
      %v3339 = vpack.c.bf16 %v3310, %v3309
      %v3340 = vpack.c.bf16 %v3312, %v3311
      %v3341 = vpack.c.bf16 %v3314, %v3313
      %v3342 = vpack.c.bf16 %v3316, %v3315
      %v3343 = vpack.c.bf16 %v3318, %v3317
      %v3344 = vpack.c.bf16 %v3320, %v3319
      %v3345 = vpack.c.bf16 %v3322, %v3321
      %v3346 = vpack.c.bf16 %v3324, %v3323
      %v3347 = vpack.c.bf16 %v3326, %v3325
      %v3348 = vpack.c.bf16 %v3328, %v3327
      %v3349 = vpack.c.bf16 %v3330, %v3329
      %v3350 = vpack.c.bf16 %v3332, %v3331
      %v3351 = vpack.c.bf16 %v3334, %v3333
      %v3352 = vpack.c.bf16 %v3336, %v3335
      %s3353 = scalar_lea.vmem %s1, 512
      %v3354 = vld [vmem:[%s3353] sm:$0xf]
      %v3355 = vld [vmem:[%s3353 + $0x4] sm:$0xf]
      %v3356 = vld [vmem:[%s3353 + $0x8] sm:$0xf]
      %v3357 = vld [vmem:[%s3353 + $0xc] sm:$0xf]
      %v3358 = vld [vmem:[%s3353 + $0x10] sm:$0xf]
      %v3359 = vld [vmem:[%s3353 + $0x14] sm:$0xf]
      %v3360 = vld [vmem:[%s3353 + $0x18] sm:$0xf]
      %v3361 = vld [vmem:[%s3353 + $0x1c] sm:$0xf]
      %v3362 = vld [vmem:[%s3353 + $0x20] sm:$0xf]
      %v3363 = vld [vmem:[%s3353 + $0x24] sm:$0xf]
      %v3364 = vld [vmem:[%s3353 + $0x28] sm:$0xf]
      %v3365 = vld [vmem:[%s3353 + $0x2c] sm:$0xf]
      %v3366 = vld [vmem:[%s3353 + $0x30] sm:$0xf]
      %v3367 = vld [vmem:[%s3353 + $0x34] sm:$0xf]
      %v3368 = vld [vmem:[%s3353 + $0x38] sm:$0xf]
      %v3369 = vld [vmem:[%s3353 + $0x3c] sm:$0xf]
      %v3386 = vunpack.c.l.b16 %v3354
      %v3387 = vunpack.c.l.b16 %v3355
      %v3388 = vunpack.c.l.b16 %v3356
      %v3389 = vunpack.c.l.b16 %v3357
      %v3390 = vunpack.c.l.b16 %v3358
      %v3391 = vunpack.c.l.b16 %v3359
      %v3392 = vunpack.c.l.b16 %v3360
      %v3393 = vunpack.c.l.b16 %v3361
      %v3394 = vunpack.c.l.b16 %v3362
      %v3395 = vunpack.c.l.b16 %v3363
      %v3396 = vunpack.c.l.b16 %v3364
      %v3397 = vunpack.c.l.b16 %v3365
      %v3398 = vunpack.c.l.b16 %v3366
      %v3399 = vunpack.c.l.b16 %v3367
      %v3400 = vunpack.c.l.b16 %v3368
      %v3401 = vunpack.c.l.b16 %v3369
      %v3402 = vpack.c.b16 %v3387, %v3386
      %v3403 = vpack.c.b16 %v3389, %v3388
      %v3404 = vpack.c.b16 %v3391, %v3390
      %v3405 = vpack.c.b16 %v3393, %v3392
      %v3406 = vpack.c.b16 %v3395, %v3394
      %v3407 = vpack.c.b16 %v3397, %v3396
      %v3408 = vpack.c.b16 %v3399, %v3398
      %v3409 = vpack.c.b16 %v3401, %v3400
      %3418 = vmatprep.subr.bf16.mxu0 0
      %3419 = vmatpush1.bf16.msra.mxu0 %v3409
      %3420 = vmatprep.subr.bf16.mxu0 0
      %3421 = vmatpush1.bf16.msra.mxu0 %v3408
      %3422 = vmatprep.subr.bf16.mxu0 0
      %3423 = vmatpush1.bf16.msra.mxu0 %v3407
      %3424 = vmatprep.subr.bf16.mxu0 0
      %3425 = vmatpush1.bf16.msra.mxu0 %v3406
      %3426 = vmatprep.subr.bf16.mxu0 0
      %3427 = vmatpush1.bf16.msra.mxu0 %v3405
      %3428 = vmatprep.subr.bf16.mxu0 0
      %3429 = vmatpush1.bf16.msra.mxu0 %v3404
      %3430 = vmatprep.subr.bf16.mxu0 0
      %3431 = vmatpush1.bf16.msra.mxu0 %v3403
      %3432 = vmatprep.subr.bf16.mxu0 0
      %3433 = vmatpush1.bf16.msra.mxu0 %v3402
      %3434 = vmatprep.subr.bf16.mxu0 0
      %3435 = vmatpush2.bf16.msra.mxu0 0
      %3436 = vmatprep.subr.bf16.mxu0 0
      %3437 = vmatpush2.bf16.msra.mxu0 0
      %3438 = vmatprep.subr.bf16.mxu0 0
      %3439 = vmatpush2.bf16.msra.mxu0 0
      %3440 = vmatprep.subr.bf16.mxu0 0
      %3441 = vmatpush2.bf16.msra.mxu0 0
      %3442 = vmatprep.subr.bf16.mxu0 0
      %3443 = vmatpush2.bf16.msra.mxu0 0
      %3444 = vmatprep.subr.bf16.mxu0 0
      %3445 = vmatpush2.bf16.msra.mxu0 0
      %3446 = vmatprep.subr.bf16.mxu0 0
      %3447 = vmatpush2.bf16.msra.mxu0 0
      %3448 = vmatprep.subr.bf16.mxu0 0
      %3449 = vmatpush2.bf16.msra.mxu0 0
      %3450 = vmatprep.mubr.bf16.mxu0 0
      %3451 = vmatmul.mubr.bf16.gmra.mxu0 %v3337
      %v3452 = vpop.f32.mrf.mxu0
      %v3453 = vadd.f32 0.0, %v3452
      %v3454 = vpop.f32.mrf.mxu0
      %v3455 = vpop.f32.mrf.mxu0
      %v3456 = vadd.f32 0.0, %v3455
      %v3457 = vpop.f32.mrf.mxu0
      %3458 = vmatprep.mubr.bf16.mxu0 0
      %3459 = vmatmul.mubr.bf16.gmra.mxu0 %v3338
      %v3460 = vpop.f32.mrf.mxu0
      %v3461 = vadd.f32 0.0, %v3460
      %v3462 = vpop.f32.mrf.mxu0
      %v3463 = vpop.f32.mrf.mxu0
      %v3464 = vadd.f32 0.0, %v3463
      %v3465 = vpop.f32.mrf.mxu0
      %3466 = vmatprep.mubr.bf16.mxu0 0
      %3467 = vmatmul.mubr.bf16.gmra.mxu0 %v3339
      %v3468 = vpop.f32.mrf.mxu0
      %v3469 = vadd.f32 0.0, %v3468
      %v3470 = vpop.f32.mrf.mxu0
      %v3471 = vpop.f32.mrf.mxu0
      %v3472 = vadd.f32 0.0, %v3471
      %v3473 = vpop.f32.mrf.mxu0
      %3474 = vmatprep.mubr.bf16.mxu0 0
      %3475 = vmatmul.mubr.bf16.gmra.mxu0 %v3340
      %v3476 = vpop.f32.mrf.mxu0
      %v3477 = vadd.f32 0.0, %v3476
      %v3478 = vpop.f32.mrf.mxu0
      %v3479 = vpop.f32.mrf.mxu0
      %v3480 = vadd.f32 0.0, %v3479
      %v3481 = vpop.f32.mrf.mxu0
      %3482 = vmatprep.mubr.bf16.mxu0 0
      %3483 = vmatmul.mubr.bf16.gmra.mxu0 %v3341
      %v3484 = vpop.f32.mrf.mxu0
      %v3485 = vadd.f32 0.0, %v3484
      %v3486 = vpop.f32.mrf.mxu0
      %v3487 = vpop.f32.mrf.mxu0
      %v3488 = vadd.f32 0.0, %v3487
      %v3489 = vpop.f32.mrf.mxu0
      %3490 = vmatprep.mubr.bf16.mxu0 0
      %3491 = vmatmul.mubr.bf16.gmra.mxu0 %v3342
      %v3492 = vpop.f32.mrf.mxu0
      %v3493 = vadd.f32 0.0, %v3492
      %v3494 = vpop.f32.mrf.mxu0
      %v3495 = vpop.f32.mrf.mxu0
      %v3496 = vadd.f32 0.0, %v3495
      %v3497 = vpop.f32.mrf.mxu0
      %3498 = vmatprep.mubr.bf16.mxu0 0
      %3499 = vmatmul.mubr.bf16.gmra.mxu0 %v3343
      %v3500 = vpop.f32.mrf.mxu0
      %v3501 = vadd.f32 0.0, %v3500
      %v3502 = vpop.f32.mrf.mxu0
      %v3503 = vpop.f32.mrf.mxu0
      %v3504 = vadd.f32 0.0, %v3503
      %v3505 = vpop.f32.mrf.mxu0
      %3506 = vmatprep.mubr.bf16.mxu0 0
      %3507 = vmatmul.mubr.bf16.gmra.mxu0 %v3344
      %v3508 = vpop.f32.mrf.mxu0
      %v3509 = vadd.f32 0.0, %v3508
      %v3510 = vpop.f32.mrf.mxu0
      %v3511 = vpop.f32.mrf.mxu0
      %v3512 = vadd.f32 0.0, %v3511
      %v3513 = vpop.f32.mrf.mxu0
      %3514 = vmatprep.mubr.bf16.mxu0 0
      %3515 = vmatmul.mubr.bf16.gmra.mxu0 %v3345
      %v3516 = vpop.f32.mrf.mxu0
      %v3517 = vadd.f32 0.0, %v3516
      %v3518 = vpop.f32.mrf.mxu0
      %v3519 = vpop.f32.mrf.mxu0
      %v3520 = vadd.f32 0.0, %v3519
      %v3521 = vpop.f32.mrf.mxu0
      %3522 = vmatprep.mubr.bf16.mxu0 0
      %3523 = vmatmul.mubr.bf16.gmra.mxu0 %v3346
      %v3524 = vpop.f32.mrf.mxu0
      %v3525 = vadd.f32 0.0, %v3524
      %v3526 = vpop.f32.mrf.mxu0
      %v3527 = vpop.f32.mrf.mxu0
      %v3528 = vadd.f32 0.0, %v3527
      %v3529 = vpop.f32.mrf.mxu0
      %3530 = vmatprep.mubr.bf16.mxu0 0
      %3531 = vmatmul.mubr.bf16.gmra.mxu0 %v3347
      %v3532 = vpop.f32.mrf.mxu0
      %v3533 = vadd.f32 0.0, %v3532
      %v3534 = vpop.f32.mrf.mxu0
      %v3535 = vpop.f32.mrf.mxu0
      %v3536 = vadd.f32 0.0, %v3535
      %v3537 = vpop.f32.mrf.mxu0
      %3538 = vmatprep.mubr.bf16.mxu0 0
      %3539 = vmatmul.mubr.bf16.gmra.mxu0 %v3348
      %v3540 = vpop.f32.mrf.mxu0
      %v3541 = vadd.f32 0.0, %v3540
      %v3542 = vpop.f32.mrf.mxu0
      %v3543 = vpop.f32.mrf.mxu0
      %v3544 = vadd.f32 0.0, %v3543
      %v3545 = vpop.f32.mrf.mxu0
      %3546 = vmatprep.mubr.bf16.mxu0 0
      %3547 = vmatmul.mubr.bf16.gmra.mxu0 %v3349
      %v3548 = vpop.f32.mrf.mxu0
      %v3549 = vadd.f32 0.0, %v3548
      %v3550 = vpop.f32.mrf.mxu0
      %v3551 = vpop.f32.mrf.mxu0
      %v3552 = vadd.f32 0.0, %v3551
      %v3553 = vpop.f32.mrf.mxu0
      %3554 = vmatprep.mubr.bf16.mxu0 0
      %3555 = vmatmul.mubr.bf16.gmra.mxu0 %v3350
      %v3556 = vpop.f32.mrf.mxu0
      %v3557 = vadd.f32 0.0, %v3556
      %v3558 = vpop.f32.mrf.mxu0
      %v3559 = vpop.f32.mrf.mxu0
      %v3560 = vadd.f32 0.0, %v3559
      %v3561 = vpop.f32.mrf.mxu0
      %3562 = vmatprep.mubr.bf16.mxu0 0
      %3563 = vmatmul.mubr.bf16.gmra.mxu0 %v3351
      %v3564 = vpop.f32.mrf.mxu0
      %v3565 = vadd.f32 0.0, %v3564
      %v3566 = vpop.f32.mrf.mxu0
      %v3567 = vpop.f32.mrf.mxu0
      %v3568 = vadd.f32 0.0, %v3567
      %v3569 = vpop.f32.mrf.mxu0
      %3570 = vmatprep.mubr.bf16.mxu0 0
      %3571 = vmatmul.mubr.bf16.gmra.mxu0 %v3352
      %v3572 = vpop.f32.mrf.mxu0
      %v3573 = vadd.f32 0.0, %v3572
      %v3574 = vpop.f32.mrf.mxu0
      %v3575 = vpop.f32.mrf.mxu0
      %v3576 = vadd.f32 0.0, %v3575
      %v3577 = vpop.f32.mrf.mxu0
      %3578 = vdwg.mxu0
      %v3579 = vld [vmem:[#allocation4] sm:$0xff]
      %v3580 = vld [vmem:[#allocation4 + $0x8] sm:$0xff]
      %v3581 = vld [vmem:[#allocation4 + $0x10] sm:$0xff]
      %v3582 = vld [vmem:[#allocation4 + $0x18] sm:$0xff]
      %v3583 = vld [vmem:[#allocation4 + $0x20] sm:$0xff]
      %v3584 = vld [vmem:[#allocation4 + $0x28] sm:$0xff]
      %v3585 = vld [vmem:[#allocation4 + $0x30] sm:$0xff]
      %v3586 = vld [vmem:[#allocation4 + $0x38] sm:$0xff]
      %v3587 = vld [vmem:[#allocation4 + $0x40] sm:$0xff]
      %v3588 = vld [vmem:[#allocation4 + $0x48] sm:$0xff]
      %v3589 = vld [vmem:[#allocation4 + $0x50] sm:$0xff]
      %v3590 = vld [vmem:[#allocation4 + $0x58] sm:$0xff]
      %v3591 = vld [vmem:[#allocation4 + $0x60] sm:$0xff]
      %v3592 = vld [vmem:[#allocation4 + $0x68] sm:$0xff]
      %v3593 = vld [vmem:[#allocation4 + $0x70] sm:$0xff]
      %v3594 = vld [vmem:[#allocation4 + $0x78] sm:$0xff]
      %v3595 = vld [vmem:[#allocation4 + $0x80] sm:$0xff]
      %v3596 = vld [vmem:[#allocation4 + $0x88] sm:$0xff]
      %v3597 = vld [vmem:[#allocation4 + $0x90] sm:$0xff]
      %v3598 = vld [vmem:[#allocation4 + $0x98] sm:$0xff]
      %v3599 = vld [vmem:[#allocation4 + $0xa0] sm:$0xff]
      %v3600 = vld [vmem:[#allocation4 + $0xa8] sm:$0xff]
      %v3601 = vld [vmem:[#allocation4 + $0xb0] sm:$0xff]
      %v3602 = vld [vmem:[#allocation4 + $0xb8] sm:$0xff]
      %v3603 = vld [vmem:[#allocation4 + $0xc0] sm:$0xff]
      %v3604 = vld [vmem:[#allocation4 + $0xc8] sm:$0xff]
      %v3605 = vld [vmem:[#allocation4 + $0xd0] sm:$0xff]
      %v3606 = vld [vmem:[#allocation4 + $0xd8] sm:$0xff]
      %v3607 = vld [vmem:[#allocation4 + $0xe0] sm:$0xff]
      %v3608 = vld [vmem:[#allocation4 + $0xe8] sm:$0xff]
      %v3609 = vld [vmem:[#allocation4 + $0xf0] sm:$0xff]
      %v3610 = vld [vmem:[#allocation4 + $0xf8] sm:$0xff]
      %v3611 = vadd.f32 %v3579, %v3453
      %v3612 = vadd.f32 %v3580, %v3456
      %v3613 = vadd.f32 %v3581, %v3461
      %v3614 = vadd.f32 %v3582, %v3464
      %v3615 = vadd.f32 %v3583, %v3469
      %v3616 = vadd.f32 %v3584, %v3472
      %v3617 = vadd.f32 %v3585, %v3477
      %v3618 = vadd.f32 %v3586, %v3480
      %v3619 = vadd.f32 %v3587, %v3485
      %v3620 = vadd.f32 %v3588, %v3488
      %v3621 = vadd.f32 %v3589, %v3493
      %v3622 = vadd.f32 %v3590, %v3496
      %v3623 = vadd.f32 %v3591, %v3501
      %v3624 = vadd.f32 %v3592, %v3504
      %v3625 = vadd.f32 %v3593, %v3509
      %v3626 = vadd.f32 %v3594, %v3512
      %v3627 = vadd.f32 %v3595, %v3517
      %v3628 = vadd.f32 %v3596, %v3520
      %v3629 = vadd.f32 %v3597, %v3525
      %v3630 = vadd.f32 %v3598, %v3528
      %v3631 = vadd.f32 %v3599, %v3533
      %v3632 = vadd.f32 %v3600, %v3536
      %v3633 = vadd.f32 %v3601, %v3541
      %v3634 = vadd.f32 %v3602, %v3544
      %v3635 = vadd.f32 %v3603, %v3549
      %v3636 = vadd.f32 %v3604, %v3552
      %v3637 = vadd.f32 %v3605, %v3557
      %v3638 = vadd.f32 %v3606, %v3560
      %v3639 = vadd.f32 %v3607, %v3565
      %v3640 = vadd.f32 %v3608, %v3568
      %v3641 = vadd.f32 %v3609, %v3573
      %v3642 = vadd.f32 %v3610, %v3576
      %3643 = vst [vmem:[#allocation4] sm:$0xff] %v3611
      %3644 = vst [vmem:[#allocation4 + $0x8] sm:$0xff] %v3612
      %3645 = vst [vmem:[#allocation4 + $0x10] sm:$0xff] %v3613
      %3646 = vst [vmem:[#allocation4 + $0x18] sm:$0xff] %v3614
      %3647 = vst [vmem:[#allocation4 + $0x20] sm:$0xff] %v3615
      %3648 = vst [vmem:[#allocation4 + $0x28] sm:$0xff] %v3616
      %3649 = vst [vmem:[#allocation4 + $0x30] sm:$0xff] %v3617
      %3650 = vst [vmem:[#allocation4 + $0x38] sm:$0xff] %v3618
      %3651 = vst [vmem:[#allocation4 + $0x40] sm:$0xff] %v3619
      %3652 = vst [vmem:[#allocation4 + $0x48] sm:$0xff] %v3620
      %3653 = vst [vmem:[#allocation4 + $0x50] sm:$0xff] %v3621
      %3654 = vst [vmem:[#allocation4 + $0x58] sm:$0xff] %v3622
      %3655 = vst [vmem:[#allocation4 + $0x60] sm:$0xff] %v3623
      %3656 = vst [vmem:[#allocation4 + $0x68] sm:$0xff] %v3624
      %3657 = vst [vmem:[#allocation4 + $0x70] sm:$0xff] %v3625
      %3658 = vst [vmem:[#allocation4 + $0x78] sm:$0xff] %v3626
      %3659 = vst [vmem:[#allocation4 + $0x80] sm:$0xff] %v3627
      %3660 = vst [vmem:[#allocation4 + $0x88] sm:$0xff] %v3628
      %3661 = vst [vmem:[#allocation4 + $0x90] sm:$0xff] %v3629
      %3662 = vst [vmem:[#allocation4 + $0x98] sm:$0xff] %v3630
      %3663 = vst [vmem:[#allocation4 + $0xa0] sm:$0xff] %v3631
      %3664 = vst [vmem:[#allocation4 + $0xa8] sm:$0xff] %v3632
      %3665 = vst [vmem:[#allocation4 + $0xb0] sm:$0xff] %v3633
      %3666 = vst [vmem:[#allocation4 + $0xb8] sm:$0xff] %v3634
      %3667 = vst [vmem:[#allocation4 + $0xc0] sm:$0xff] %v3635
      %3668 = vst [vmem:[#allocation4 + $0xc8] sm:$0xff] %v3636
      %3669 = vst [vmem:[#allocation4 + $0xd0] sm:$0xff] %v3637
      %3670 = vst [vmem:[#allocation4 + $0xd8] sm:$0xff] %v3638
      %3671 = vst [vmem:[#allocation4 + $0xe0] sm:$0xff] %v3639
      %3672 = vst [vmem:[#allocation4 + $0xe8] sm:$0xff] %v3640
      %3673 = vst [vmem:[#allocation4 + $0xf0] sm:$0xff] %v3641
      %3674 = vst [vmem:[#allocation4 + $0xf8] sm:$0xff] %v3642
      %v3675 = vld [vmem:[#allocation4] sm:$0xff]
      %v3676 = vld [vmem:[#allocation4 + $0x8] sm:$0xff]
      %v3677 = vld [vmem:[#allocation4 + $0x10] sm:$0xff]
      %v3678 = vld [vmem:[#allocation4 + $0x18] sm:$0xff]
      %v3679 = vld [vmem:[#allocation4 + $0x20] sm:$0xff]
      %v3680 = vld [vmem:[#allocation4 + $0x28] sm:$0xff]
      %v3681 = vld [vmem:[#allocation4 + $0x30] sm:$0xff]
      %v3682 = vld [vmem:[#allocation4 + $0x38] sm:$0xff]
      %v3683 = vld [vmem:[#allocation4 + $0x40] sm:$0xff]
      %v3684 = vld [vmem:[#allocation4 + $0x48] sm:$0xff]
      %v3685 = vld [vmem:[#allocation4 + $0x50] sm:$0xff]
      %v3686 = vld [vmem:[#allocation4 + $0x58] sm:$0xff]
      %v3687 = vld [vmem:[#allocation4 + $0x60] sm:$0xff]
      %v3688 = vld [vmem:[#allocation4 + $0x68] sm:$0xff]
      %v3689 = vld [vmem:[#allocation4 + $0x70] sm:$0xff]
      %v3690 = vld [vmem:[#allocation4 + $0x78] sm:$0xff]
      %v3691 = vld [vmem:[#allocation4 + $0x80] sm:$0xff]
      %v3692 = vld [vmem:[#allocation4 + $0x88] sm:$0xff]
      %v3693 = vld [vmem:[#allocation4 + $0x90] sm:$0xff]
      %v3694 = vld [vmem:[#allocation4 + $0x98] sm:$0xff]
      %v3695 = vld [vmem:[#allocation4 + $0xa0] sm:$0xff]
      %v3696 = vld [vmem:[#allocation4 + $0xa8] sm:$0xff]
      %v3697 = vld [vmem:[#allocation4 + $0xb0] sm:$0xff]
      %v3698 = vld [vmem:[#allocation4 + $0xb8] sm:$0xff]
      %v3699 = vld [vmem:[#allocation4 + $0xc0] sm:$0xff]
      %v3700 = vld [vmem:[#allocation4 + $0xc8] sm:$0xff]
      %v3701 = vld [vmem:[#allocation4 + $0xd0] sm:$0xff]
      %v3702 = vld [vmem:[#allocation4 + $0xd8] sm:$0xff]
      %v3703 = vld [vmem:[#allocation4 + $0xe0] sm:$0xff]
      %v3704 = vld [vmem:[#allocation4 + $0xe8] sm:$0xff]
      %v3705 = vld [vmem:[#allocation4 + $0xf0] sm:$0xff]
      %v3706 = vld [vmem:[#allocation4 + $0xf8] sm:$0xff]
      %v3707 = vld [vmem:[%s2] sm:$0x1]
      %v3709 = vlaneseq
      %v3710 = vshrl.u32 %v3709, 7
      %v3711 = vsub.s32 0, %v3710
      %v3712 = vrot.slane %v3707, %v3711
      %v3714 = vadd.f32 %v3675, %v3712
      %v3715 = vadd.f32 %v3676, %v3712
      %v3716 = vadd.f32 %v3677, %v3712
      %v3717 = vadd.f32 %v3678, %v3712
      %v3718 = vadd.f32 %v3679, %v3712
      %v3719 = vadd.f32 %v3680, %v3712
      %v3720 = vadd.f32 %v3681, %v3712
      %v3721 = vadd.f32 %v3682, %v3712
      %v3722 = vadd.f32 %v3683, %v3712
      %v3723 = vadd.f32 %v3684, %v3712
      %v3724 = vadd.f32 %v3685, %v3712
      %v3725 = vadd.f32 %v3686, %v3712
      %v3726 = vadd.f32 %v3687, %v3712
      %v3727 = vadd.f32 %v3688, %v3712
      %v3728 = vadd.f32 %v3689, %v3712
      %v3729 = vadd.f32 %v3690, %v3712
      %v3730 = vadd.f32 %v3691, %v3712
      %v3731 = vadd.f32 %v3692, %v3712
      %v3732 = vadd.f32 %v3693, %v3712
      %v3733 = vadd.f32 %v3694, %v3712
      %v3734 = vadd.f32 %v3695, %v3712
      %v3735 = vadd.f32 %v3696, %v3712
      %v3736 = vadd.f32 %v3697, %v3712
      %v3737 = vadd.f32 %v3698, %v3712
      %v3738 = vadd.f32 %v3699, %v3712
      %v3739 = vadd.f32 %v3700, %v3712
      %v3740 = vadd.f32 %v3701, %v3712
      %v3741 = vadd.f32 %v3702, %v3712
      %v3742 = vadd.f32 %v3703, %v3712
      %v3743 = vadd.f32 %v3704, %v3712
      %v3744 = vadd.f32 %v3705, %v3712
      %v3745 = vadd.f32 %v3706, %v3712
      %v3746 = vmax.f32 %v3714, 0.0
      %v3747 = vmax.f32 %v3715, 0.0
      %v3748 = vmax.f32 %v3716, 0.0
      %v3749 = vmax.f32 %v3717, 0.0
      %v3750 = vmax.f32 %v3718, 0.0
      %v3751 = vmax.f32 %v3719, 0.0
      %v3752 = vmax.f32 %v3720, 0.0
      %v3753 = vmax.f32 %v3721, 0.0
      %v3754 = vmax.f32 %v3722, 0.0
      %v3755 = vmax.f32 %v3723, 0.0
      %v3756 = vmax.f32 %v3724, 0.0
      %v3757 = vmax.f32 %v3725, 0.0
      %v3758 = vmax.f32 %v3726, 0.0
      %v3759 = vmax.f32 %v3727, 0.0
      %v3760 = vmax.f32 %v3728, 0.0
      %v3761 = vmax.f32 %v3729, 0.0
      %v3762 = vmax.f32 %v3730, 0.0
      %v3763 = vmax.f32 %v3731, 0.0
      %v3764 = vmax.f32 %v3732, 0.0
      %v3765 = vmax.f32 %v3733, 0.0
      %v3766 = vmax.f32 %v3734, 0.0
      %v3767 = vmax.f32 %v3735, 0.0
      %v3768 = vmax.f32 %v3736, 0.0
      %v3769 = vmax.f32 %v3737, 0.0
      %v3770 = vmax.f32 %v3738, 0.0
      %v3771 = vmax.f32 %v3739, 0.0
      %v3772 = vmax.f32 %v3740, 0.0
      %v3773 = vmax.f32 %v3741, 0.0
      %v3774 = vmax.f32 %v3742, 0.0
      %v3775 = vmax.f32 %v3743, 0.0
      %v3776 = vmax.f32 %v3744, 0.0
      %v3777 = vmax.f32 %v3745, 0.0
      %s3778 = scalar_lea.vmem [#allocation3], 24
      %3779 = vst [vmem:[%s3778 + $0x1] sm:$0xff] %v3746
      %3780 = vst [vmem:[%s3778 + $0x9] sm:$0xff] %v3747
      %3781 = vst [vmem:[%s3778 + $0x19] sm:$0xff] %v3748
      %3782 = vst [vmem:[%s3778 + $0x21] sm:$0xff] %v3749
      %3783 = vst [vmem:[%s3778 + $0x31] sm:$0xff] %v3750
      %3784 = vst [vmem:[%s3778 + $0x39] sm:$0xff] %v3751
      %3785 = vst [vmem:[%s3778 + $0x49] sm:$0xff] %v3752
      %3786 = vst [vmem:[%s3778 + $0x51] sm:$0xff] %v3753
      %3787 = vst [vmem:[%s3778 + $0x61] sm:$0xff] %v3754
      %3788 = vst [vmem:[%s3778 + $0x69] sm:$0xff] %v3755
      %3789 = vst [vmem:[%s3778 + $0x79] sm:$0xff] %v3756
      %3790 = vst [vmem:[%s3778 + $0x81] sm:$0xff] %v3757
      %3791 = vst [vmem:[%s3778 + $0x91] sm:$0xff] %v3758
      %3792 = vst [vmem:[%s3778 + $0x99] sm:$0xff] %v3759
      %3793 = vst [vmem:[%s3778 + $0xa9] sm:$0xff] %v3760
      %3794 = vst [vmem:[%s3778 + $0xb1] sm:$0xff] %v3761
      %3795 = vst [vmem:[%s3778 + $0xc1] sm:$0xff] %v3762
      %3796 = vst [vmem:[%s3778 + $0xc9] sm:$0xff] %v3763
      %3797 = vst [vmem:[%s3778 + $0xd9] sm:$0xff] %v3764
      %3798 = vst [vmem:[%s3778 + $0xe1] sm:$0xff] %v3765
      %3799 = vst [vmem:[%s3778 + $0xf1] sm:$0xff] %v3766
      %3800 = vst [vmem:[%s3778 + $0xf9] sm:$0xff] %v3767
      %3801 = vst [vmem:[%s3778 + $0x109] sm:$0xff] %v3768
      %3802 = vst [vmem:[%s3778 + $0x111] sm:$0xff] %v3769
      %3803 = vst [vmem:[%s3778 + $0x121] sm:$0xff] %v3770
      %3804 = vst [vmem:[%s3778 + $0x129] sm:$0xff] %v3771
      %3805 = vst [vmem:[%s3778 + $0x139] sm:$0xff] %v3772
      %3806 = vst [vmem:[%s3778 + $0x141] sm:$0xff] %v3773
      %3807 = vst [vmem:[%s3778 + $0x151] sm:$0xff] %v3774
      %3808 = vst [vmem:[%s3778 + $0x159] sm:$0xff] %v3775
      %3809 = vst [vmem:[%s3778 + $0x169] sm:$0xff] %v3776
      %3810 = vst [vmem:[%s3778 + $0x171] sm:$0xff] %v3777
      %v3811 = vld [vmem:[#allocation3] sm:$0xff]
      %v3812 = vld [vmem:[#allocation3 + $0x8] sm:$0xff]
      %v3813 = vld [vmem:[#allocation3 + $0x18] sm:$0xff]
      %v3814 = vld [vmem:[#allocation3 + $0x20] sm:$0xff]
      %v3815 = vld [vmem:[#allocation3 + $0x30] sm:$0xff]
      %v3816 = vld [vmem:[#allocation3 + $0x38] sm:$0xff]
      %v3817 = vld [vmem:[#allocation3 + $0x48] sm:$0xff]
      %v3818 = vld [vmem:[#allocation3 + $0x50] sm:$0xff]
      %v3819 = vld [vmem:[#allocation3 + $0x60] sm:$0xff]
      %v3820 = vld [vmem:[#allocation3 + $0x68] sm:$0xff]
      %v3821 = vld [vmem:[#allocation3 + $0x78] sm:$0xff]
      %v3822 = vld [vmem:[#allocation3 + $0x80] sm:$0xff]
      %v3823 = vld [vmem:[#allocation3 + $0x90] sm:$0xff]
      %v3824 = vld [vmem:[#allocation3 + $0x98] sm:$0xff]
      %v3825 = vld [vmem:[#allocation3 + $0xa8] sm:$0xff]
      %v3826 = vld [vmem:[#allocation3 + $0xb0] sm:$0xff]
      %v3827 = vld [vmem:[#allocation3 + $0xc0] sm:$0xff]
      %v3828 = vld [vmem:[#allocation3 + $0xc8] sm:$0xff]
      %v3829 = vld [vmem:[#allocation3 + $0xd8] sm:$0xff]
      %v3830 = vld [vmem:[#allocation3 + $0xe0] sm:$0xff]
      %v3831 = vld [vmem:[#allocation3 + $0xf0] sm:$0xff]
      %v3832 = vld [vmem:[#allocation3 + $0xf8] sm:$0xff]
      %v3833 = vld [vmem:[#allocation3 + $0x108] sm:$0xff]
      %v3834 = vld [vmem:[#allocation3 + $0x110] sm:$0xff]
      %v3835 = vld [vmem:[#allocation3 + $0x120] sm:$0xff]
      %v3836 = vld [vmem:[#allocation3 + $0x128] sm:$0xff]
      %v3837 = vld [vmem:[#allocation3 + $0x138] sm:$0xff]
      %v3838 = vld [vmem:[#allocation3 + $0x140] sm:$0xff]
      %v3839 = vld [vmem:[#allocation3 + $0x150] sm:$0xff]
      %v3840 = vld [vmem:[#allocation3 + $0x158] sm:$0xff]
      %v3841 = vld [vmem:[#allocation3 + $0x168] sm:$0xff]
      %v3842 = vld [vmem:[#allocation3 + $0x170] sm:$0xff]
      %v3843 = vpack.c.bf16 %v3812, %v3811
      %v3844 = vpack.c.bf16 %v3814, %v3813
      %v3845 = vpack.c.bf16 %v3816, %v3815
      %v3846 = vpack.c.bf16 %v3818, %v3817
      %v3847 = vpack.c.bf16 %v3820, %v3819
      %v3848 = vpack.c.bf16 %v3822, %v3821
      %v3849 = vpack.c.bf16 %v3824, %v3823
      %v3850 = vpack.c.bf16 %v3826, %v3825
      %v3851 = vpack.c.bf16 %v3828, %v3827
      %v3852 = vpack.c.bf16 %v3830, %v3829
      %v3853 = vpack.c.bf16 %v3832, %v3831
      %v3854 = vpack.c.bf16 %v3834, %v3833
      %v3855 = vpack.c.bf16 %v3836, %v3835
      %v3856 = vpack.c.bf16 %v3838, %v3837
      %v3857 = vpack.c.bf16 %v3840, %v3839
      %v3858 = vpack.c.bf16 %v3842, %v3841
      %v3859 = vld [vmem:[%s3] sm:$0xf]
      %v3860 = vld [vmem:[%s3 + $0x4] sm:$0xf]
      %v3861 = vld [vmem:[%s3 + $0x8] sm:$0xf]
      %v3862 = vld [vmem:[%s3 + $0xc] sm:$0xf]
      %v3863 = vld [vmem:[%s3 + $0x10] sm:$0xf]
      %v3864 = vld [vmem:[%s3 + $0x14] sm:$0xf]
      %v3865 = vld [vmem:[%s3 + $0x18] sm:$0xf]
      %v3866 = vld [vmem:[%s3 + $0x1c] sm:$0xf]
      %v3867 = vld [vmem:[%s3 + $0x20] sm:$0xf]
      %v3868 = vld [vmem:[%s3 + $0x24] sm:$0xf]
      %v3869 = vld [vmem:[%s3 + $0x28] sm:$0xf]
      %v3870 = vld [vmem:[%s3 + $0x2c] sm:$0xf]
      %v3871 = vld [vmem:[%s3 + $0x30] sm:$0xf]
      %v3872 = vld [vmem:[%s3 + $0x34] sm:$0xf]
      %v3873 = vld [vmem:[%s3 + $0x38] sm:$0xf]
      %v3874 = vld [vmem:[%s3 + $0x3c] sm:$0xf]
      %v3891 = vunpack.c.l.b16 %v3859
      %v3892 = vunpack.c.l.b16 %v3860
      %v3893 = vunpack.c.l.b16 %v3861
      %v3894 = vunpack.c.l.b16 %v3862
      %v3895 = vunpack.c.l.b16 %v3863
      %v3896 = vunpack.c.l.b16 %v3864
      %v3897 = vunpack.c.l.b16 %v3865
      %v3898 = vunpack.c.l.b16 %v3866
      %v3899 = vunpack.c.l.b16 %v3867
      %v3900 = vunpack.c.l.b16 %v3868
      %v3901 = vunpack.c.l.b16 %v3869
      %v3902 = vunpack.c.l.b16 %v3870
      %v3903 = vunpack.c.l.b16 %v3871
      %v3904 = vunpack.c.l.b16 %v3872
      %v3905 = vunpack.c.l.b16 %v3873
      %v3906 = vunpack.c.l.b16 %v3874
      %v3907 = vpack.c.b16 %v3892, %v3891
      %v3908 = vpack.c.b16 %v3894, %v3893
      %v3909 = vpack.c.b16 %v3896, %v3895
      %v3910 = vpack.c.b16 %v3898, %v3897
      %v3911 = vpack.c.b16 %v3900, %v3899
      %v3912 = vpack.c.b16 %v3902, %v3901
      %v3913 = vpack.c.b16 %v3904, %v3903
      %v3914 = vpack.c.b16 %v3906, %v3905
      %3923 = vmatprep.subr.bf16.mxu0 0
      %3924 = vmatpush1.bf16.msra.mxu0 %v3914
      %3925 = vmatprep.subr.bf16.mxu0 0
      %3926 = vmatpush1.bf16.msra.mxu0 %v3913
      %3927 = vmatprep.subr.bf16.mxu0 0
      %3928 = vmatpush1.bf16.msra.mxu0 %v3912
      %3929 = vmatprep.subr.bf16.mxu0 0
      %3930 = vmatpush1.bf16.msra.mxu0 %v3911
      %3931 = vmatprep.subr.bf16.mxu0 0
      %3932 = vmatpush1.bf16.msra.mxu0 %v3910
      %3933 = vmatprep.subr.bf16.mxu0 0
      %3934 = vmatpush1.bf16.msra.mxu0 %v3909
      %3935 = vmatprep.subr.bf16.mxu0 0
      %3936 = vmatpush1.bf16.msra.mxu0 %v3908
      %3937 = vmatprep.subr.bf16.mxu0 0
      %3938 = vmatpush1.bf16.msra.mxu0 %v3907
      %3939 = vmatprep.subr.bf16.mxu0 0
      %3940 = vmatpush2.bf16.msra.mxu0 0
      %3941 = vmatprep.subr.bf16.mxu0 0
      %3942 = vmatpush2.bf16.msra.mxu0 0
      %3943 = vmatprep.subr.bf16.mxu0 0
      %3944 = vmatpush2.bf16.msra.mxu0 0
      %3945 = vmatprep.subr.bf16.mxu0 0
      %3946 = vmatpush2.bf16.msra.mxu0 0
      %3947 = vmatprep.subr.bf16.mxu0 0
      %3948 = vmatpush2.bf16.msra.mxu0 0
      %3949 = vmatprep.subr.bf16.mxu0 0
      %3950 = vmatpush2.bf16.msra.mxu0 0
      %3951 = vmatprep.subr.bf16.mxu0 0
      %3952 = vmatpush2.bf16.msra.mxu0 0
      %3953 = vmatprep.subr.bf16.mxu0 0
      %3954 = vmatpush2.bf16.msra.mxu0 0
      %3955 = vmatprep.mubr.bf16.mxu0 0
      %3956 = vmatmul.mubr.bf16.gmra.mxu0 %v3843
      %v3957 = vpop.f32.mrf.mxu0
      %v3958 = vadd.f32 0.0, %v3957
      %v3959 = vpop.f32.mrf.mxu0
      %v3960 = vpop.f32.mrf.mxu0
      %v3961 = vadd.f32 0.0, %v3960
      %v3962 = vpop.f32.mrf.mxu0
      %3963 = vmatprep.mubr.bf16.mxu0 0
      %3964 = vmatmul.mubr.bf16.gmra.mxu0 %v3844
      %v3965 = vpop.f32.mrf.mxu0
      %v3966 = vadd.f32 0.0, %v3965
      %v3967 = vpop.f32.mrf.mxu0
      %v3968 = vpop.f32.mrf.mxu0
      %v3969 = vadd.f32 0.0, %v3968
      %v3970 = vpop.f32.mrf.mxu0
      %3971 = vmatprep.mubr.bf16.mxu0 0
      %3972 = vmatmul.mubr.bf16.gmra.mxu0 %v3845
      %v3973 = vpop.f32.mrf.mxu0
      %v3974 = vadd.f32 0.0, %v3973
      %v3975 = vpop.f32.mrf.mxu0
      %v3976 = vpop.f32.mrf.mxu0
      %v3977 = vadd.f32 0.0, %v3976
      %v3978 = vpop.f32.mrf.mxu0
      %3979 = vmatprep.mubr.bf16.mxu0 0
      %3980 = vmatmul.mubr.bf16.gmra.mxu0 %v3846
      %v3981 = vpop.f32.mrf.mxu0
      %v3982 = vadd.f32 0.0, %v3981
      %v3983 = vpop.f32.mrf.mxu0
      %v3984 = vpop.f32.mrf.mxu0
      %v3985 = vadd.f32 0.0, %v3984
      %v3986 = vpop.f32.mrf.mxu0
      %3987 = vmatprep.mubr.bf16.mxu0 0
      %3988 = vmatmul.mubr.bf16.gmra.mxu0 %v3847
      %v3989 = vpop.f32.mrf.mxu0
      %v3990 = vadd.f32 0.0, %v3989
      %v3991 = vpop.f32.mrf.mxu0
      %v3992 = vpop.f32.mrf.mxu0
      %v3993 = vadd.f32 0.0, %v3992
      %v3994 = vpop.f32.mrf.mxu0
      %3995 = vmatprep.mubr.bf16.mxu0 0
      %3996 = vmatmul.mubr.bf16.gmra.mxu0 %v3848
      %v3997 = vpop.f32.mrf.mxu0
      %v3998 = vadd.f32 0.0, %v3997
      %v3999 = vpop.f32.mrf.mxu0
      %v4000 = vpop.f32.mrf.mxu0
      %v4001 = vadd.f32 0.0, %v4000
      %v4002 = vpop.f32.mrf.mxu0
      %4003 = vmatprep.mubr.bf16.mxu0 0
      %4004 = vmatmul.mubr.bf16.gmra.mxu0 %v3849
      %v4005 = vpop.f32.mrf.mxu0
      %v4006 = vadd.f32 0.0, %v4005
      %v4007 = vpop.f32.mrf.mxu0
      %v4008 = vpop.f32.mrf.mxu0
      %v4009 = vadd.f32 0.0, %v4008
      %v4010 = vpop.f32.mrf.mxu0
      %4011 = vmatprep.mubr.bf16.mxu0 0
      %4012 = vmatmul.mubr.bf16.gmra.mxu0 %v3850
      %v4013 = vpop.f32.mrf.mxu0
      %v4014 = vadd.f32 0.0, %v4013
      %v4015 = vpop.f32.mrf.mxu0
      %v4016 = vpop.f32.mrf.mxu0
      %v4017 = vadd.f32 0.0, %v4016
      %v4018 = vpop.f32.mrf.mxu0
      %4019 = vmatprep.mubr.bf16.mxu0 0
      %4020 = vmatmul.mubr.bf16.gmra.mxu0 %v3851
      %v4021 = vpop.f32.mrf.mxu0
      %v4022 = vadd.f32 0.0, %v4021
      %v4023 = vpop.f32.mrf.mxu0
      %v4024 = vpop.f32.mrf.mxu0
      %v4025 = vadd.f32 0.0, %v4024
      %v4026 = vpop.f32.mrf.mxu0
      %4027 = vmatprep.mubr.bf16.mxu0 0
      %4028 = vmatmul.mubr.bf16.gmra.mxu0 %v3852
      %v4029 = vpop.f32.mrf.mxu0
      %v4030 = vadd.f32 0.0, %v4029
      %v4031 = vpop.f32.mrf.mxu0
      %v4032 = vpop.f32.mrf.mxu0
      %v4033 = vadd.f32 0.0, %v4032
      %v4034 = vpop.f32.mrf.mxu0
      %4035 = vmatprep.mubr.bf16.mxu0 0
      %4036 = vmatmul.mubr.bf16.gmra.mxu0 %v3853
      %v4037 = vpop.f32.mrf.mxu0
      %v4038 = vadd.f32 0.0, %v4037
      %v4039 = vpop.f32.mrf.mxu0
      %v4040 = vpop.f32.mrf.mxu0
      %v4041 = vadd.f32 0.0, %v4040
      %v4042 = vpop.f32.mrf.mxu0
      %4043 = vmatprep.mubr.bf16.mxu0 0
      %4044 = vmatmul.mubr.bf16.gmra.mxu0 %v3854
      %v4045 = vpop.f32.mrf.mxu0
      %v4046 = vadd.f32 0.0, %v4045
      %v4047 = vpop.f32.mrf.mxu0
      %v4048 = vpop.f32.mrf.mxu0
      %v4049 = vadd.f32 0.0, %v4048
      %v4050 = vpop.f32.mrf.mxu0
      %4051 = vmatprep.mubr.bf16.mxu0 0
      %4052 = vmatmul.mubr.bf16.gmra.mxu0 %v3855
      %v4053 = vpop.f32.mrf.mxu0
      %v4054 = vadd.f32 0.0, %v4053
      %v4055 = vpop.f32.mrf.mxu0
      %v4056 = vpop.f32.mrf.mxu0
      %v4057 = vadd.f32 0.0, %v4056
      %v4058 = vpop.f32.mrf.mxu0
      %4059 = vmatprep.mubr.bf16.mxu0 0
      %4060 = vmatmul.mubr.bf16.gmra.mxu0 %v3856
      %v4061 = vpop.f32.mrf.mxu0
      %v4062 = vadd.f32 0.0, %v4061
      %v4063 = vpop.f32.mrf.mxu0
      %v4064 = vpop.f32.mrf.mxu0
      %v4065 = vadd.f32 0.0, %v4064
      %v4066 = vpop.f32.mrf.mxu0
      %4067 = vmatprep.mubr.bf16.mxu0 0
      %4068 = vmatmul.mubr.bf16.gmra.mxu0 %v3857
      %v4069 = vpop.f32.mrf.mxu0
      %v4070 = vadd.f32 0.0, %v4069
      %v4071 = vpop.f32.mrf.mxu0
      %v4072 = vpop.f32.mrf.mxu0
      %v4073 = vadd.f32 0.0, %v4072
      %v4074 = vpop.f32.mrf.mxu0
      %4075 = vmatprep.mubr.bf16.mxu0 0
      %4076 = vmatmul.mubr.bf16.gmra.mxu0 %v3858
      %v4077 = vpop.f32.mrf.mxu0
      %v4078 = vadd.f32 0.0, %v4077
      %v4079 = vpop.f32.mrf.mxu0
      %v4080 = vpop.f32.mrf.mxu0
      %v4081 = vadd.f32 0.0, %v4080
      %v4082 = vpop.f32.mrf.mxu0
      %4083 = vdwg.mxu0
      %4084 = vst [vmem:[#allocation4] sm:$0xff] %v3958
      %4085 = vst [vmem:[#allocation4 + $0x8] sm:$0xff] %v3961
      %4086 = vst [vmem:[#allocation4 + $0x10] sm:$0xff] %v3966
      %4087 = vst [vmem:[#allocation4 + $0x18] sm:$0xff] %v3969
      %4088 = vst [vmem:[#allocation4 + $0x20] sm:$0xff] %v3974
      %4089 = vst [vmem:[#allocation4 + $0x28] sm:$0xff] %v3977
      %4090 = vst [vmem:[#allocation4 + $0x30] sm:$0xff] %v3982
      %4091 = vst [vmem:[#allocation4 + $0x38] sm:$0xff] %v3985
      %4092 = vst [vmem:[#allocation4 + $0x40] sm:$0xff] %v3990
      %4093 = vst [vmem:[#allocation4 + $0x48] sm:$0xff] %v3993
      %4094 = vst [vmem:[#allocation4 + $0x50] sm:$0xff] %v3998
      %4095 = vst [vmem:[#allocation4 + $0x58] sm:$0xff] %v4001
      %4096 = vst [vmem:[#allocation4 + $0x60] sm:$0xff] %v4006
      %4097 = vst [vmem:[#allocation4 + $0x68] sm:$0xff] %v4009
      %4098 = vst [vmem:[#allocation4 + $0x70] sm:$0xff] %v4014
      %4099 = vst [vmem:[#allocation4 + $0x78] sm:$0xff] %v4017
      %4100 = vst [vmem:[#allocation4 + $0x80] sm:$0xff] %v4022
      %4101 = vst [vmem:[#allocation4 + $0x88] sm:$0xff] %v4025
      %4102 = vst [vmem:[#allocation4 + $0x90] sm:$0xff] %v4030
      %4103 = vst [vmem:[#allocation4 + $0x98] sm:$0xff] %v4033
      %4104 = vst [vmem:[#allocation4 + $0xa0] sm:$0xff] %v4038
      %4105 = vst [vmem:[#allocation4 + $0xa8] sm:$0xff] %v4041
      %4106 = vst [vmem:[#allocation4 + $0xb0] sm:$0xff] %v4046
      %4107 = vst [vmem:[#allocation4 + $0xb8] sm:$0xff] %v4049
      %4108 = vst [vmem:[#allocation4 + $0xc0] sm:$0xff] %v4054
      %4109 = vst [vmem:[#allocation4 + $0xc8] sm:$0xff] %v4057
      %4110 = vst [vmem:[#allocation4 + $0xd0] sm:$0xff] %v4062
      %4111 = vst [vmem:[#allocation4 + $0xd8] sm:$0xff] %v4065
      %4112 = vst [vmem:[#allocation4 + $0xe0] sm:$0xff] %v4070
      %4113 = vst [vmem:[#allocation4 + $0xe8] sm:$0xff] %v4073
      %4114 = vst [vmem:[#allocation4 + $0xf0] sm:$0xff] %v4078
      %4115 = vst [vmem:[#allocation4 + $0xf8] sm:$0xff] %v4081
      %v4116 = vld [vmem:[#allocation3 + $0x1] sm:$0xff]
      %v4117 = vld [vmem:[#allocation3 + $0x9] sm:$0xff]
      %v4118 = vld [vmem:[#allocation3 + $0x19] sm:$0xff]
      %v4119 = vld [vmem:[#allocation3 + $0x21] sm:$0xff]
      %v4120 = vld [vmem:[#allocation3 + $0x31] sm:$0xff]
      %v4121 = vld [vmem:[#allocation3 + $0x39] sm:$0xff]
      %v4122 = vld [vmem:[#allocation3 + $0x49] sm:$0xff]
      %v4123 = vld [vmem:[#allocation3 + $0x51] sm:$0xff]
      %v4124 = vld [vmem:[#allocation3 + $0x61] sm:$0xff]
      %v4125 = vld [vmem:[#allocation3 + $0x69] sm:$0xff]
      %v4126 = vld [vmem:[#allocation3 + $0x79] sm:$0xff]
      %v4127 = vld [vmem:[#allocation3 + $0x81] sm:$0xff]
      %v4128 = vld [vmem:[#allocation3 + $0x91] sm:$0xff]
      %v4129 = vld [vmem:[#allocation3 + $0x99] sm:$0xff]
      %v4130 = vld [vmem:[#allocation3 + $0xa9] sm:$0xff]
      %v4131 = vld [vmem:[#allocation3 + $0xb1] sm:$0xff]
      %v4132 = vld [vmem:[#allocation3 + $0xc1] sm:$0xff]
      %v4133 = vld [vmem:[#allocation3 + $0xc9] sm:$0xff]
      %v4134 = vld [vmem:[#allocation3 + $0xd9] sm:$0xff]
      %v4135 = vld [vmem:[#allocation3 + $0xe1] sm:$0xff]
      %v4136 = vld [vmem:[#allocation3 + $0xf1] sm:$0xff]
      %v4137 = vld [vmem:[#allocation3 + $0xf9] sm:$0xff]
      %v4138 = vld [vmem:[#allocation3 + $0x109] sm:$0xff]
      %v4139 = vld [vmem:[#allocation3 + $0x111] sm:$0xff]
      %v4140 = vld [vmem:[#allocation3 + $0x121] sm:$0xff]
      %v4141 = vld [vmem:[#allocation3 + $0x129] sm:$0xff]
      %v4142 = vld [vmem:[#allocation3 + $0x139] sm:$0xff]
      %v4143 = vld [vmem:[#allocation3 + $0x141] sm:$0xff]
      %v4144 = vld [vmem:[#allocation3 + $0x151] sm:$0xff]
      %v4145 = vld [vmem:[#allocation3 + $0x159] sm:$0xff]
      %v4146 = vld [vmem:[#allocation3 + $0x169] sm:$0xff]
      %v4147 = vld [vmem:[#allocation3 + $0x171] sm:$0xff]
      %v4148 = vpack.c.bf16 %v4117, %v4116
      %v4149 = vpack.c.bf16 %v4119, %v4118
      %v4150 = vpack.c.bf16 %v4121, %v4120
      %v4151 = vpack.c.bf16 %v4123, %v4122
      %v4152 = vpack.c.bf16 %v4125, %v4124
      %v4153 = vpack.c.bf16 %v4127, %v4126
      %v4154 = vpack.c.bf16 %v4129, %v4128
      %v4155 = vpack.c.bf16 %v4131, %v4130
      %v4156 = vpack.c.bf16 %v4133, %v4132
      %v4157 = vpack.c.bf16 %v4135, %v4134
      %v4158 = vpack.c.bf16 %v4137, %v4136
      %v4159 = vpack.c.bf16 %v4139, %v4138
      %v4160 = vpack.c.bf16 %v4141, %v4140
      %v4161 = vpack.c.bf16 %v4143, %v4142
      %v4162 = vpack.c.bf16 %v4145, %v4144
      %v4163 = vpack.c.bf16 %v4147, %v4146
      %s4164 = scalar_lea.vmem %s3, 64
      %v4165 = vld [vmem:[%s4164] sm:$0xf]
      %v4166 = vld [vmem:[%s4164 + $0x4] sm:$0xf]
      %v4167 = vld [vmem:[%s4164 + $0x8] sm:$0xf]
      %v4168 = vld [vmem:[%s4164 + $0xc] sm:$0xf]
      %v4169 = vld [vmem:[%s4164 + $0x10] sm:$0xf]
      %v4170 = vld [vmem:[%s4164 + $0x14] sm:$0xf]
      %v4171 = vld [vmem:[%s4164 + $0x18] sm:$0xf]
      %v4172 = vld [vmem:[%s4164 + $0x1c] sm:$0xf]
      %v4173 = vld [vmem:[%s4164 + $0x20] sm:$0xf]
      %v4174 = vld [vmem:[%s4164 + $0x24] sm:$0xf]
      %v4175 = vld [vmem:[%s4164 + $0x28] sm:$0xf]
      %v4176 = vld [vmem:[%s4164 + $0x2c] sm:$0xf]
      %v4177 = vld [vmem:[%s4164 + $0x30] sm:$0xf]
      %v4178 = vld [vmem:[%s4164 + $0x34] sm:$0xf]
      %v4179 = vld [vmem:[%s4164 + $0x38] sm:$0xf]
      %v4180 = vld [vmem:[%s4164 + $0x3c] sm:$0xf]
      %v4197 = vunpack.c.l.b16 %v4165
      %v4198 = vunpack.c.l.b16 %v4166
      %v4199 = vunpack.c.l.b16 %v4167
      %v4200 = vunpack.c.l.b16 %v4168
      %v4201 = vunpack.c.l.b16 %v4169
      %v4202 = vunpack.c.l.b16 %v4170
      %v4203 = vunpack.c.l.b16 %v4171
      %v4204 = vunpack.c.l.b16 %v4172
      %v4205 = vunpack.c.l.b16 %v4173
      %v4206 = vunpack.c.l.b16 %v4174
      %v4207 = vunpack.c.l.b16 %v4175
      %v4208 = vunpack.c.l.b16 %v4176
      %v4209 = vunpack.c.l.b16 %v4177
      %v4210 = vunpack.c.l.b16 %v4178
      %v4211 = vunpack.c.l.b16 %v4179
      %v4212 = vunpack.c.l.b16 %v4180
      %v4213 = vpack.c.b16 %v4198, %v4197
      %v4214 = vpack.c.b16 %v4200, %v4199
      %v4215 = vpack.c.b16 %v4202, %v4201
      %v4216 = vpack.c.b16 %v4204, %v4203
      %v4217 = vpack.c.b16 %v4206, %v4205
      %v4218 = vpack.c.b16 %v4208, %v4207
      %v4219 = vpack.c.b16 %v4210, %v4209
      %v4220 = vpack.c.b16 %v4212, %v4211
      %4229 = vmatprep.subr.bf16.mxu0 0
      %4230 = vmatpush1.bf16.msra.mxu0 %v4220
      %4231 = vmatprep.subr.bf16.mxu0 0
      %4232 = vmatpush1.bf16.msra.mxu0 %v4219
      %4233 = vmatprep.subr.bf16.mxu0 0
      %4234 = vmatpush1.bf16.msra.mxu0 %v4218
      %4235 = vmatprep.subr.bf16.mxu0 0
      %4236 = vmatpush1.bf16.msra.mxu0 %v4217
      %4237 = vmatprep.subr.bf16.mxu0 0
      %4238 = vmatpush1.bf16.msra.mxu0 %v4216
      %4239 = vmatprep.subr.bf16.mxu0 0
      %4240 = vmatpush1.bf16.msra.mxu0 %v4215
      %4241 = vmatprep.subr.bf16.mxu0 0
      %4242 = vmatpush1.bf16.msra.mxu0 %v4214
      %4243 = vmatprep.subr.bf16.mxu0 0
      %4244 = vmatpush1.bf16.msra.mxu0 %v4213
      %4245 = vmatprep.subr.bf16.mxu0 0
      %4246 = vmatpush2.bf16.msra.mxu0 0
      %4247 = vmatprep.subr.bf16.mxu0 0
      %4248 = vmatpush2.bf16.msra.mxu0 0
      %4249 = vmatprep.subr.bf16.mxu0 0
      %4250 = vmatpush2.bf16.msra.mxu0 0
      %4251 = vmatprep.subr.bf16.mxu0 0
      %4252 = vmatpush2.bf16.msra.mxu0 0
      %4253 = vmatprep.subr.bf16.mxu0 0
      %4254 = vmatpush2.bf16.msra.mxu0 0
      %4255 = vmatprep.subr.bf16.mxu0 0
      %4256 = vmatpush2.bf16.msra.mxu0 0
      %4257 = vmatprep.subr.bf16.mxu0 0
      %4258 = vmatpush2.bf16.msra.mxu0 0
      %4259 = vmatprep.subr.bf16.mxu0 0
      %4260 = vmatpush2.bf16.msra.mxu0 0
      %4261 = vmatprep.mubr.bf16.mxu0 0
      %4262 = vmatmul.mubr.bf16.gmra.mxu0 %v4148
      %v4263 = vpop.f32.mrf.mxu0
      %v4264 = vadd.f32 0.0, %v4263
      %v4265 = vpop.f32.mrf.mxu0
      %v4266 = vpop.f32.mrf.mxu0
      %v4267 = vadd.f32 0.0, %v4266
      %v4268 = vpop.f32.mrf.mxu0
      %4269 = vmatprep.mubr.bf16.mxu0 0
      %4270 = vmatmul.mubr.bf16.gmra.mxu0 %v4149
      %v4271 = vpop.f32.mrf.mxu0
      %v4272 = vadd.f32 0.0, %v4271
      %v4273 = vpop.f32.mrf.mxu0
      %v4274 = vpop.f32.mrf.mxu0
      %v4275 = vadd.f32 0.0, %v4274
      %v4276 = vpop.f32.mrf.mxu0
      %4277 = vmatprep.mubr.bf16.mxu0 0
      %4278 = vmatmul.mubr.bf16.gmra.mxu0 %v4150
      %v4279 = vpop.f32.mrf.mxu0
      %v4280 = vadd.f32 0.0, %v4279
      %v4281 = vpop.f32.mrf.mxu0
      %v4282 = vpop.f32.mrf.mxu0
      %v4283 = vadd.f32 0.0, %v4282
      %v4284 = vpop.f32.mrf.mxu0
      %4285 = vmatprep.mubr.bf16.mxu0 0
      %4286 = vmatmul.mubr.bf16.gmra.mxu0 %v4151
      %v4287 = vpop.f32.mrf.mxu0
      %v4288 = vadd.f32 0.0, %v4287
      %v4289 = vpop.f32.mrf.mxu0
      %v4290 = vpop.f32.mrf.mxu0
      %v4291 = vadd.f32 0.0, %v4290
      %v4292 = vpop.f32.mrf.mxu0
      %4293 = vmatprep.mubr.bf16.mxu0 0
      %4294 = vmatmul.mubr.bf16.gmra.mxu0 %v4152
      %v4295 = vpop.f32.mrf.mxu0
      %v4296 = vadd.f32 0.0, %v4295
      %v4297 = vpop.f32.mrf.mxu0
      %v4298 = vpop.f32.mrf.mxu0
      %v4299 = vadd.f32 0.0, %v4298
      %v4300 = vpop.f32.mrf.mxu0
      %4301 = vmatprep.mubr.bf16.mxu0 0
      %4302 = vmatmul.mubr.bf16.gmra.mxu0 %v4153
      %v4303 = vpop.f32.mrf.mxu0
      %v4304 = vadd.f32 0.0, %v4303
      %v4305 = vpop.f32.mrf.mxu0
      %v4306 = vpop.f32.mrf.mxu0
      %v4307 = vadd.f32 0.0, %v4306
      %v4308 = vpop.f32.mrf.mxu0
      %4309 = vmatprep.mubr.bf16.mxu0 0
      %4310 = vmatmul.mubr.bf16.gmra.mxu0 %v4154
      %v4311 = vpop.f32.mrf.mxu0
      %v4312 = vadd.f32 0.0, %v4311
      %v4313 = vpop.f32.mrf.mxu0
      %v4314 = vpop.f32.mrf.mxu0
      %v4315 = vadd.f32 0.0, %v4314
      %v4316 = vpop.f32.mrf.mxu0
      %4317 = vmatprep.mubr.bf16.mxu0 0
      %4318 = vmatmul.mubr.bf16.gmra.mxu0 %v4155
      %v4319 = vpop.f32.mrf.mxu0
      %v4320 = vadd.f32 0.0, %v4319
      %v4321 = vpop.f32.mrf.mxu0
      %v4322 = vpop.f32.mrf.mxu0
      %v4323 = vadd.f32 0.0, %v4322
      %v4324 = vpop.f32.mrf.mxu0
      %4325 = vmatprep.mubr.bf16.mxu0 0
      %4326 = vmatmul.mubr.bf16.gmra.mxu0 %v4156
      %v4327 = vpop.f32.mrf.mxu0
      %v4328 = vadd.f32 0.0, %v4327
      %v4329 = vpop.f32.mrf.mxu0
      %v4330 = vpop.f32.mrf.mxu0
      %v4331 = vadd.f32 0.0, %v4330
      %v4332 = vpop.f32.mrf.mxu0
      %4333 = vmatprep.mubr.bf16.mxu0 0
      %4334 = vmatmul.mubr.bf16.gmra.mxu0 %v4157
      %v4335 = vpop.f32.mrf.mxu0
      %v4336 = vadd.f32 0.0, %v4335
      %v4337 = vpop.f32.mrf.mxu0
      %v4338 = vpop.f32.mrf.mxu0
      %v4339 = vadd.f32 0.0, %v4338
      %v4340 = vpop.f32.mrf.mxu0
      %4341 = vmatprep.mubr.bf16.mxu0 0
      %4342 = vmatmul.mubr.bf16.gmra.mxu0 %v4158
      %v4343 = vpop.f32.mrf.mxu0
      %v4344 = vadd.f32 0.0, %v4343
      %v4345 = vpop.f32.mrf.mxu0
      %v4346 = vpop.f32.mrf.mxu0
      %v4347 = vadd.f32 0.0, %v4346
      %v4348 = vpop.f32.mrf.mxu0
      %4349 = vmatprep.mubr.bf16.mxu0 0
      %4350 = vmatmul.mubr.bf16.gmra.mxu0 %v4159
      %v4351 = vpop.f32.mrf.mxu0
      %v4352 = vadd.f32 0.0, %v4351
      %v4353 = vpop.f32.mrf.mxu0
      %v4354 = vpop.f32.mrf.mxu0
      %v4355 = vadd.f32 0.0, %v4354
      %v4356 = vpop.f32.mrf.mxu0
      %4357 = vmatprep.mubr.bf16.mxu0 0
      %4358 = vmatmul.mubr.bf16.gmra.mxu0 %v4160
      %v4359 = vpop.f32.mrf.mxu0
      %v4360 = vadd.f32 0.0, %v4359
      %v4361 = vpop.f32.mrf.mxu0
      %v4362 = vpop.f32.mrf.mxu0
      %v4363 = vadd.f32 0.0, %v4362
      %v4364 = vpop.f32.mrf.mxu0
      %4365 = vmatprep.mubr.bf16.mxu0 0
      %4366 = vmatmul.mubr.bf16.gmra.mxu0 %v4161
      %v4367 = vpop.f32.mrf.mxu0
      %v4368 = vadd.f32 0.0, %v4367
      %v4369 = vpop.f32.mrf.mxu0
      %v4370 = vpop.f32.mrf.mxu0
      %v4371 = vadd.f32 0.0, %v4370
      %v4372 = vpop.f32.mrf.mxu0
      %4373 = vmatprep.mubr.bf16.mxu0 0
      %4374 = vmatmul.mubr.bf16.gmra.mxu0 %v4162
      %v4375 = vpop.f32.mrf.mxu0
      %v4376 = vadd.f32 0.0, %v4375
      %v4377 = vpop.f32.mrf.mxu0
      %v4378 = vpop.f32.mrf.mxu0
      %v4379 = vadd.f32 0.0, %v4378
      %v4380 = vpop.f32.mrf.mxu0
      %4381 = vmatprep.mubr.bf16.mxu0 0
      %4382 = vmatmul.mubr.bf16.gmra.mxu0 %v4163
      %v4383 = vpop.f32.mrf.mxu0
      %v4384 = vadd.f32 0.0, %v4383
      %v4385 = vpop.f32.mrf.mxu0
      %v4386 = vpop.f32.mrf.mxu0
      %v4387 = vadd.f32 0.0, %v4386
      %v4388 = vpop.f32.mrf.mxu0
      %4389 = vdwg.mxu0
      %v4390 = vld [vmem:[#allocation4] sm:$0xff]
      %v4391 = vld [vmem:[#allocation4 + $0x8] sm:$0xff]
      %v4392 = vld [vmem:[#allocation4 + $0x10] sm:$0xff]
      %v4393 = vld [vmem:[#allocation4 + $0x18] sm:$0xff]
      %v4394 = vld [vmem:[#allocation4 + $0x20] sm:$0xff]
      %v4395 = vld [vmem:[#allocation4 + $0x28] sm:$0xff]
      %v4396 = vld [vmem:[#allocation4 + $0x30] sm:$0xff]
      %v4397 = vld [vmem:[#allocation4 + $0x38] sm:$0xff]
      %v4398 = vld [vmem:[#allocation4 + $0x40] sm:$0xff]
      %v4399 = vld [vmem:[#allocation4 + $0x48] sm:$0xff]
      %v4400 = vld [vmem:[#allocation4 + $0x50] sm:$0xff]
      %v4401 = vld [vmem:[#allocation4 + $0x58] sm:$0xff]
      %v4402 = vld [vmem:[#allocation4 + $0x60] sm:$0xff]
      %v4403 = vld [vmem:[#allocation4 + $0x68] sm:$0xff]
      %v4404 = vld [vmem:[#allocation4 + $0x70] sm:$0xff]
      %v4405 = vld [vmem:[#allocation4 + $0x78] sm:$0xff]
      %v4406 = vld [vmem:[#allocation4 + $0x80] sm:$0xff]
      %v4407 = vld [vmem:[#allocation4 + $0x88] sm:$0xff]
      %v4408 = vld [vmem:[#allocation4 + $0x90] sm:$0xff]
      %v4409 = vld [vmem:[#allocation4 + $0x98] sm:$0xff]
      %v4410 = vld [vmem:[#allocation4 + $0xa0] sm:$0xff]
      %v4411 = vld [vmem:[#allocation4 + $0xa8] sm:$0xff]
      %v4412 = vld [vmem:[#allocation4 + $0xb0] sm:$0xff]
      %v4413 = vld [vmem:[#allocation4 + $0xb8] sm:$0xff]
      %v4414 = vld [vmem:[#allocation4 + $0xc0] sm:$0xff]
      %v4415 = vld [vmem:[#allocation4 + $0xc8] sm:$0xff]
      %v4416 = vld [vmem:[#allocation4 + $0xd0] sm:$0xff]
      %v4417 = vld [vmem:[#allocation4 + $0xd8] sm:$0xff]
      %v4418 = vld [vmem:[#allocation4 + $0xe0] sm:$0xff]
      %v4419 = vld [vmem:[#allocation4 + $0xe8] sm:$0xff]
      %v4420 = vld [vmem:[#allocation4 + $0xf0] sm:$0xff]
      %v4421 = vld [vmem:[#allocation4 + $0xf8] sm:$0xff]
      %v4422 = vadd.f32 %v4390, %v4264
      %v4423 = vadd.f32 %v4391, %v4267
      %v4424 = vadd.f32 %v4392, %v4272
      %v4425 = vadd.f32 %v4393, %v4275
      %v4426 = vadd.f32 %v4394, %v4280
      %v4427 = vadd.f32 %v4395, %v4283
      %v4428 = vadd.f32 %v4396, %v4288
      %v4429 = vadd.f32 %v4397, %v4291
      %v4430 = vadd.f32 %v4398, %v4296
      %v4431 = vadd.f32 %v4399, %v4299
      %v4432 = vadd.f32 %v4400, %v4304
      %v4433 = vadd.f32 %v4401, %v4307
      %v4434 = vadd.f32 %v4402, %v4312
      %v4435 = vadd.f32 %v4403, %v4315
      %v4436 = vadd.f32 %v4404, %v4320
      %v4437 = vadd.f32 %v4405, %v4323
      %v4438 = vadd.f32 %v4406, %v4328
      %v4439 = vadd.f32 %v4407, %v4331
      %v4440 = vadd.f32 %v4408, %v4336
      %v4441 = vadd.f32 %v4409, %v4339
      %v4442 = vadd.f32 %v4410, %v4344
      %v4443 = vadd.f32 %v4411, %v4347
      %v4444 = vadd.f32 %v4412, %v4352
      %v4445 = vadd.f32 %v4413, %v4355
      %v4446 = vadd.f32 %v4414, %v4360
      %v4447 = vadd.f32 %v4415, %v4363
      %v4448 = vadd.f32 %v4416, %v4368
      %v4449 = vadd.f32 %v4417, %v4371
      %v4450 = vadd.f32 %v4418, %v4376
      %v4451 = vadd.f32 %v4419, %v4379
      %v4452 = vadd.f32 %v4420, %v4384
      %v4453 = vadd.f32 %v4421, %v4387
      %4454 = vst [vmem:[#allocation4] sm:$0xff] %v4422
      %4455 = vst [vmem:[#allocation4 + $0x8] sm:$0xff] %v4423
      %4456 = vst [vmem:[#allocation4 + $0x10] sm:$0xff] %v4424
      %4457 = vst [vmem:[#allocation4 + $0x18] sm:$0xff] %v4425
      %4458 = vst [vmem:[#allocation4 + $0x20] sm:$0xff] %v4426
      %4459 = vst [vmem:[#allocation4 + $0x28] sm:$0xff] %v4427
      %4460 = vst [vmem:[#allocation4 + $0x30] sm:$0xff] %v4428
      %4461 = vst [vmem:[#allocation4 + $0x38] sm:$0xff] %v4429
      %4462 = vst [vmem:[#allocation4 + $0x40] sm:$0xff] %v4430
      %4463 = vst [vmem:[#allocation4 + $0x48] sm:$0xff] %v4431
      %4464 = vst [vmem:[#allocation4 + $0x50] sm:$0xff] %v4432
      %4465 = vst [vmem:[#allocation4 + $0x58] sm:$0xff] %v4433
      %4466 = vst [vmem:[#allocation4 + $0x60] sm:$0xff] %v4434
      %4467 = vst [vmem:[#allocation4 + $0x68] sm:$0xff] %v4435
      %4468 = vst [vmem:[#allocation4 + $0x70] sm:$0xff] %v4436
      %4469 = vst [vmem:[#allocation4 + $0x78] sm:$0xff] %v4437
      %4470 = vst [vmem:[#allocation4 + $0x80] sm:$0xff] %v4438
      %4471 = vst [vmem:[#allocation4 + $0x88] sm:$0xff] %v4439
      %4472 = vst [vmem:[#allocation4 + $0x90] sm:$0xff] %v4440
      %4473 = vst [vmem:[#allocation4 + $0x98] sm:$0xff] %v4441
      %4474 = vst [vmem:[#allocation4 + $0xa0] sm:$0xff] %v4442
      %4475 = vst [vmem:[#allocation4 + $0xa8] sm:$0xff] %v4443
      %4476 = vst [vmem:[#allocation4 + $0xb0] sm:$0xff] %v4444
      %4477 = vst [vmem:[#allocation4 + $0xb8] sm:$0xff] %v4445
      %4478 = vst [vmem:[#allocation4 + $0xc0] sm:$0xff] %v4446
      %4479 = vst [vmem:[#allocation4 + $0xc8] sm:$0xff] %v4447
      %4480 = vst [vmem:[#allocation4 + $0xd0] sm:$0xff] %v4448
      %4481 = vst [vmem:[#allocation4 + $0xd8] sm:$0xff] %v4449
      %4482 = vst [vmem:[#allocation4 + $0xe0] sm:$0xff] %v4450
      %4483 = vst [vmem:[#allocation4 + $0xe8] sm:$0xff] %v4451
      %4484 = vst [vmem:[#allocation4 + $0xf0] sm:$0xff] %v4452
      %4485 = vst [vmem:[#allocation4 + $0xf8] sm:$0xff] %v4453
      %v4486 = vld [vmem:[#allocation3 + $0x2] sm:$0xff]
      %v4487 = vld [vmem:[#allocation3 + $0xa] sm:$0xff]
      %v4488 = vld [vmem:[#allocation3 + $0x1a] sm:$0xff]
      %v4489 = vld [vmem:[#allocation3 + $0x22] sm:$0xff]
      %v4490 = vld [vmem:[#allocation3 + $0x32] sm:$0xff]
      %v4491 = vld [vmem:[#allocation3 + $0x3a] sm:$0xff]
      %v4492 = vld [vmem:[#allocation3 + $0x4a] sm:$0xff]
      %v4493 = vld [vmem:[#allocation3 + $0x52] sm:$0xff]
      %v4494 = vld [vmem:[#allocation3 + $0x62] sm:$0xff]
      %v4495 = vld [vmem:[#allocation3 + $0x6a] sm:$0xff]
      %v4496 = vld [vmem:[#allocation3 + $0x7a] sm:$0xff]
      %v4497 = vld [vmem:[#allocation3 + $0x82] sm:$0xff]
      %v4498 = vld [vmem:[#allocation3 + $0x92] sm:$0xff]
      %v4499 = vld [vmem:[#allocation3 + $0x9a] sm:$0xff]
      %v4500 = vld [vmem:[#allocation3 + $0xaa] sm:$0xff]
      %v4501 = vld [vmem:[#allocation3 + $0xb2] sm:$0xff]
      %v4502 = vld [vmem:[#allocation3 + $0xc2] sm:$0xff]
      %v4503 = vld [vmem:[#allocation3 + $0xca] sm:$0xff]
      %v4504 = vld [vmem:[#allocation3 + $0xda] sm:$0xff]
      %v4505 = vld [vmem:[#allocation3 + $0xe2] sm:$0xff]
      %v4506 = vld [vmem:[#allocation3 + $0xf2] sm:$0xff]
      %v4507 = vld [vmem:[#allocation3 + $0xfa] sm:$0xff]
      %v4508 = vld [vmem:[#allocation3 + $0x10a] sm:$0xff]
      %v4509 = vld [vmem:[#allocation3 + $0x112] sm:$0xff]
      %v4510 = vld [vmem:[#allocation3 + $0x122] sm:$0xff]
      %v4511 = vld [vmem:[#allocation3 + $0x12a] sm:$0xff]
      %v4512 = vld [vmem:[#allocation3 + $0x13a] sm:$0xff]
      %v4513 = vld [vmem:[#allocation3 + $0x142] sm:$0xff]
      %v4514 = vld [vmem:[#allocation3 + $0x152] sm:$0xff]
      %v4515 = vld [vmem:[#allocation3 + $0x15a] sm:$0xff]
      %v4516 = vld [vmem:[#allocation3 + $0x16a] sm:$0xff]
      %v4517 = vld [vmem:[#allocation3 + $0x172] sm:$0xff]
      %v4518 = vpack.c.bf16 %v4487, %v4486
      %v4519 = vpack.c.bf16 %v4489, %v4488
      %v4520 = vpack.c.bf16 %v4491, %v4490
      %v4521 = vpack.c.bf16 %v4493, %v4492
      %v4522 = vpack.c.bf16 %v4495, %v4494
      %v4523 = vpack.c.bf16 %v4497, %v4496
      %v4524 = vpack.c.bf16 %v4499, %v4498
      %v4525 = vpack.c.bf16 %v4501, %v4500
      %v4526 = vpack.c.bf16 %v4503, %v4502
      %v4527 = vpack.c.bf16 %v4505, %v4504
      %v4528 = vpack.c.bf16 %v4507, %v4506
      %v4529 = vpack.c.bf16 %v4509, %v4508
      %v4530 = vpack.c.bf16 %v4511, %v4510
      %v4531 = vpack.c.bf16 %v4513, %v4512
      %v4532 = vpack.c.bf16 %v4515, %v4514
      %v4533 = vpack.c.bf16 %v4517, %v4516
      %s4534 = scalar_lea.vmem %s3, 128
      %v4535 = vld [vmem:[%s4534] sm:$0xf]
      %v4536 = vld [vmem:[%s4534 + $0x4] sm:$0xf]
      %v4537 = vld [vmem:[%s4534 + $0x8] sm:$0xf]
      %v4538 = vld [vmem:[%s4534 + $0xc] sm:$0xf]
      %v4539 = vld [vmem:[%s4534 + $0x10] sm:$0xf]
      %v4540 = vld [vmem:[%s4534 + $0x14] sm:$0xf]
      %v4541 = vld [vmem:[%s4534 + $0x18] sm:$0xf]
      %v4542 = vld [vmem:[%s4534 + $0x1c] sm:$0xf]
      %v4543 = vld [vmem:[%s4534 + $0x20] sm:$0xf]
      %v4544 = vld [vmem:[%s4534 + $0x24] sm:$0xf]
      %v4545 = vld [vmem:[%s4534 + $0x28] sm:$0xf]
      %v4546 = vld [vmem:[%s4534 + $0x2c] sm:$0xf]
      %v4547 = vld [vmem:[%s4534 + $0x30] sm:$0xf]
      %v4548 = vld [vmem:[%s4534 + $0x34] sm:$0xf]
      %v4549 = vld [vmem:[%s4534 + $0x38] sm:$0xf]
      %v4550 = vld [vmem:[%s4534 + $0x3c] sm:$0xf]
      %v4567 = vunpack.c.l.b16 %v4535
      %v4568 = vunpack.c.l.b16 %v4536
      %v4569 = vunpack.c.l.b16 %v4537
      %v4570 = vunpack.c.l.b16 %v4538
      %v4571 = vunpack.c.l.b16 %v4539
      %v4572 = vunpack.c.l.b16 %v4540
      %v4573 = vunpack.c.l.b16 %v4541
      %v4574 = vunpack.c.l.b16 %v4542
      %v4575 = vunpack.c.l.b16 %v4543
      %v4576 = vunpack.c.l.b16 %v4544
      %v4577 = vunpack.c.l.b16 %v4545
      %v4578 = vunpack.c.l.b16 %v4546
      %v4579 = vunpack.c.l.b16 %v4547
      %v4580 = vunpack.c.l.b16 %v4548
      %v4581 = vunpack.c.l.b16 %v4549
      %v4582 = vunpack.c.l.b16 %v4550
      %v4583 = vpack.c.b16 %v4568, %v4567
      %v4584 = vpack.c.b16 %v4570, %v4569
      %v4585 = vpack.c.b16 %v4572, %v4571
      %v4586 = vpack.c.b16 %v4574, %v4573
      %v4587 = vpack.c.b16 %v4576, %v4575
      %v4588 = vpack.c.b16 %v4578, %v4577
      %v4589 = vpack.c.b16 %v4580, %v4579
      %v4590 = vpack.c.b16 %v4582, %v4581
      %4599 = vmatprep.subr.bf16.mxu0 0
      %4600 = vmatpush1.bf16.msra.mxu0 %v4590
      %4601 = vmatprep.subr.bf16.mxu0 0
      %4602 = vmatpush1.bf16.msra.mxu0 %v4589
      %4603 = vmatprep.subr.bf16.mxu0 0
      %4604 = vmatpush1.bf16.msra.mxu0 %v4588
      %4605 = vmatprep.subr.bf16.mxu0 0
      %4606 = vmatpush1.bf16.msra.mxu0 %v4587
      %4607 = vmatprep.subr.bf16.mxu0 0
      %4608 = vmatpush1.bf16.msra.mxu0 %v4586
      %4609 = vmatprep.subr.bf16.mxu0 0
      %4610 = vmatpush1.bf16.msra.mxu0 %v4585
      %4611 = vmatprep.subr.bf16.mxu0 0
      %4612 = vmatpush1.bf16.msra.mxu0 %v4584
      %4613 = vmatprep.subr.bf16.mxu0 0
      %4614 = vmatpush1.bf16.msra.mxu0 %v4583
      %4615 = vmatprep.subr.bf16.mxu0 0
      %4616 = vmatpush2.bf16.msra.mxu0 0
      %4617 = vmatprep.subr.bf16.mxu0 0
      %4618 = vmatpush2.bf16.msra.mxu0 0
      %4619 = vmatprep.subr.bf16.mxu0 0
      %4620 = vmatpush2.bf16.msra.mxu0 0
      %4621 = vmatprep.subr.bf16.mxu0 0
      %4622 = vmatpush2.bf16.msra.mxu0 0
      %4623 = vmatprep.subr.bf16.mxu0 0
      %4624 = vmatpush2.bf16.msra.mxu0 0
      %4625 = vmatprep.subr.bf16.mxu0 0
      %4626 = vmatpush2.bf16.msra.mxu0 0
      %4627 = vmatprep.subr.bf16.mxu0 0
      %4628 = vmatpush2.bf16.msra.mxu0 0
      %4629 = vmatprep.subr.bf16.mxu0 0
      %4630 = vmatpush2.bf16.msra.mxu0 0
      %4631 = vmatprep.mubr.bf16.mxu0 0
      %4632 = vmatmul.mubr.bf16.gmra.mxu0 %v4518
      %v4633 = vpop.f32.mrf.mxu0
      %v4634 = vadd.f32 0.0, %v4633
      %v4635 = vpop.f32.mrf.mxu0
      %v4636 = vpop.f32.mrf.mxu0
      %v4637 = vadd.f32 0.0, %v4636
      %v4638 = vpop.f32.mrf.mxu0
      %4639 = vmatprep.mubr.bf16.mxu0 0
      %4640 = vmatmul.mubr.bf16.gmra.mxu0 %v4519
      %v4641 = vpop.f32.mrf.mxu0
      %v4642 = vadd.f32 0.0, %v4641
      %v4643 = vpop.f32.mrf.mxu0
      %v4644 = vpop.f32.mrf.mxu0
      %v4645 = vadd.f32 0.0, %v4644
      %v4646 = vpop.f32.mrf.mxu0
      %4647 = vmatprep.mubr.bf16.mxu0 0
      %4648 = vmatmul.mubr.bf16.gmra.mxu0 %v4520
      %v4649 = vpop.f32.mrf.mxu0
      %v4650 = vadd.f32 0.0, %v4649
      %v4651 = vpop.f32.mrf.mxu0
      %v4652 = vpop.f32.mrf.mxu0
      %v4653 = vadd.f32 0.0, %v4652
      %v4654 = vpop.f32.mrf.mxu0
      %4655 = vmatprep.mubr.bf16.mxu0 0
      %4656 = vmatmul.mubr.bf16.gmra.mxu0 %v4521
      %v4657 = vpop.f32.mrf.mxu0
      %v4658 = vadd.f32 0.0, %v4657
      %v4659 = vpop.f32.mrf.mxu0
      %v4660 = vpop.f32.mrf.mxu0
      %v4661 = vadd.f32 0.0, %v4660
      %v4662 = vpop.f32.mrf.mxu0
      %4663 = vmatprep.mubr.bf16.mxu0 0
      %4664 = vmatmul.mubr.bf16.gmra.mxu0 %v4522
      %v4665 = vpop.f32.mrf.mxu0
      %v4666 = vadd.f32 0.0, %v4665
      %v4667 = vpop.f32.mrf.mxu0
      %v4668 = vpop.f32.mrf.mxu0
      %v4669 = vadd.f32 0.0, %v4668
      %v4670 = vpop.f32.mrf.mxu0
      %4671 = vmatprep.mubr.bf16.mxu0 0
      %4672 = vmatmul.mubr.bf16.gmra.mxu0 %v4523
      %v4673 = vpop.f32.mrf.mxu0
      %v4674 = vadd.f32 0.0, %v4673
      %v4675 = vpop.f32.mrf.mxu0
      %v4676 = vpop.f32.mrf.mxu0
      %v4677 = vadd.f32 0.0, %v4676
      %v4678 = vpop.f32.mrf.mxu0
      %4679 = vmatprep.mubr.bf16.mxu0 0
      %4680 = vmatmul.mubr.bf16.gmra.mxu0 %v4524
      %v4681 = vpop.f32.mrf.mxu0
      %v4682 = vadd.f32 0.0, %v4681
      %v4683 = vpop.f32.mrf.mxu0
      %v4684 = vpop.f32.mrf.mxu0
      %v4685 = vadd.f32 0.0, %v4684
      %v4686 = vpop.f32.mrf.mxu0
      %4687 = vmatprep.mubr.bf16.mxu0 0
      %4688 = vmatmul.mubr.bf16.gmra.mxu0 %v4525
      %v4689 = vpop.f32.mrf.mxu0
      %v4690 = vadd.f32 0.0, %v4689
      %v4691 = vpop.f32.mrf.mxu0
      %v4692 = vpop.f32.mrf.mxu0
      %v4693 = vadd.f32 0.0, %v4692
      %v4694 = vpop.f32.mrf.mxu0
      %4695 = vmatprep.mubr.bf16.mxu0 0
      %4696 = vmatmul.mubr.bf16.gmra.mxu0 %v4526
      %v4697 = vpop.f32.mrf.mxu0
      %v4698 = vadd.f32 0.0, %v4697
      %v4699 = vpop.f32.mrf.mxu0
      %v4700 = vpop.f32.mrf.mxu0
      %v4701 = vadd.f32 0.0, %v4700
      %v4702 = vpop.f32.mrf.mxu0
      %4703 = vmatprep.mubr.bf16.mxu0 0
      %4704 = vmatmul.mubr.bf16.gmra.mxu0 %v4527
      %v4705 = vpop.f32.mrf.mxu0
      %v4706 = vadd.f32 0.0, %v4705
      %v4707 = vpop.f32.mrf.mxu0
      %v4708 = vpop.f32.mrf.mxu0
      %v4709 = vadd.f32 0.0, %v4708
      %v4710 = vpop.f32.mrf.mxu0
      %4711 = vmatprep.mubr.bf16.mxu0 0
      %4712 = vmatmul.mubr.bf16.gmra.mxu0 %v4528
      %v4713 = vpop.f32.mrf.mxu0
      %v4714 = vadd.f32 0.0, %v4713
      %v4715 = vpop.f32.mrf.mxu0
      %v4716 = vpop.f32.mrf.mxu0
      %v4717 = vadd.f32 0.0, %v4716
      %v4718 = vpop.f32.mrf.mxu0
      %4719 = vmatprep.mubr.bf16.mxu0 0
      %4720 = vmatmul.mubr.bf16.gmra.mxu0 %v4529
      %v4721 = vpop.f32.mrf.mxu0
      %v4722 = vadd.f32 0.0, %v4721
      %v4723 = vpop.f32.mrf.mxu0
      %v4724 = vpop.f32.mrf.mxu0
      %v4725 = vadd.f32 0.0, %v4724
      %v4726 = vpop.f32.mrf.mxu0
      %4727 = vmatprep.mubr.bf16.mxu0 0
      %4728 = vmatmul.mubr.bf16.gmra.mxu0 %v4530
      %v4729 = vpop.f32.mrf.mxu0
      %v4730 = vadd.f32 0.0, %v4729
      %v4731 = vpop.f32.mrf.mxu0
      %v4732 = vpop.f32.mrf.mxu0
      %v4733 = vadd.f32 0.0, %v4732
      %v4734 = vpop.f32.mrf.mxu0
      %4735 = vmatprep.mubr.bf16.mxu0 0
      %4736 = vmatmul.mubr.bf16.gmra.mxu0 %v4531
      %v4737 = vpop.f32.mrf.mxu0
      %v4738 = vadd.f32 0.0, %v4737
      %v4739 = vpop.f32.mrf.mxu0
      %v4740 = vpop.f32.mrf.mxu0
      %v4741 = vadd.f32 0.0, %v4740
      %v4742 = vpop.f32.mrf.mxu0
      %4743 = vmatprep.mubr.bf16.mxu0 0
      %4744 = vmatmul.mubr.bf16.gmra.mxu0 %v4532
      %v4745 = vpop.f32.mrf.mxu0
      %v4746 = vadd.f32 0.0, %v4745
      %v4747 = vpop.f32.mrf.mxu0
      %v4748 = vpop.f32.mrf.mxu0
      %v4749 = vadd.f32 0.0, %v4748
      %v4750 = vpop.f32.mrf.mxu0
      %4751 = vmatprep.mubr.bf16.mxu0 0
      %4752 = vmatmul.mubr.bf16.gmra.mxu0 %v4533
      %v4753 = vpop.f32.mrf.mxu0
      %v4754 = vadd.f32 0.0, %v4753
      %v4755 = vpop.f32.mrf.mxu0
      %v4756 = vpop.f32.mrf.mxu0
      %v4757 = vadd.f32 0.0, %v4756
      %v4758 = vpop.f32.mrf.mxu0
      %4759 = vdwg.mxu0
      %v4760 = vld [vmem:[#allocation4] sm:$0xff]
      %v4761 = vld [vmem:[#allocation4 + $0x8] sm:$0xff]
      %v4762 = vld [vmem:[#allocation4 + $0x10] sm:$0xff]
      %v4763 = vld [vmem:[#allocation4 + $0x18] sm:$0xff]
      %v4764 = vld [vmem:[#allocation4 + $0x20] sm:$0xff]
      %v4765 = vld [vmem:[#allocation4 + $0x28] sm:$0xff]
      %v4766 = vld [vmem:[#allocation4 + $0x30] sm:$0xff]
      %v4767 = vld [vmem:[#allocation4 + $0x38] sm:$0xff]
      %v4768 = vld [vmem:[#allocation4 + $0x40] sm:$0xff]
      %v4769 = vld [vmem:[#allocation4 + $0x48] sm:$0xff]
      %v4770 = vld [vmem:[#allocation4 + $0x50] sm:$0xff]
      %v4771 = vld [vmem:[#allocation4 + $0x58] sm:$0xff]
      %v4772 = vld [vmem:[#allocation4 + $0x60] sm:$0xff]
      %v4773 = vld [vmem:[#allocation4 + $0x68] sm:$0xff]
      %v4774 = vld [vmem:[#allocation4 + $0x70] sm:$0xff]
      %v4775 = vld [vmem:[#allocation4 + $0x78] sm:$0xff]
      %v4776 = vld [vmem:[#allocation4 + $0x80] sm:$0xff]
      %v4777 = vld [vmem:[#allocation4 + $0x88] sm:$0xff]
      %v4778 = vld [vmem:[#allocation4 + $0x90] sm:$0xff]
      %v4779 = vld [vmem:[#allocation4 + $0x98] sm:$0xff]
      %v4780 = vld [vmem:[#allocation4 + $0xa0] sm:$0xff]
      %v4781 = vld [vmem:[#allocation4 + $0xa8] sm:$0xff]
      %v4782 = vld [vmem:[#allocation4 + $0xb0] sm:$0xff]
      %v4783 = vld [vmem:[#allocation4 + $0xb8] sm:$0xff]
      %v4784 = vld [vmem:[#allocation4 + $0xc0] sm:$0xff]
      %v4785 = vld [vmem:[#allocation4 + $0xc8] sm:$0xff]
      %v4786 = vld [vmem:[#allocation4 + $0xd0] sm:$0xff]
      %v4787 = vld [vmem:[#allocation4 + $0xd8] sm:$0xff]
      %v4788 = vld [vmem:[#allocation4 + $0xe0] sm:$0xff]
      %v4789 = vld [vmem:[#allocation4 + $0xe8] sm:$0xff]
      %v4790 = vld [vmem:[#allocation4 + $0xf0] sm:$0xff]
      %v4791 = vld [vmem:[#allocation4 + $0xf8] sm:$0xff]
      %v4792 = vadd.f32 %v4760, %v4634
      %v4793 = vadd.f32 %v4761, %v4637
      %v4794 = vadd.f32 %v4762, %v4642
      %v4795 = vadd.f32 %v4763, %v4645
      %v4796 = vadd.f32 %v4764, %v4650
      %v4797 = vadd.f32 %v4765, %v4653
      %v4798 = vadd.f32 %v4766, %v4658
      %v4799 = vadd.f32 %v4767, %v4661
      %v4800 = vadd.f32 %v4768, %v4666
      %v4801 = vadd.f32 %v4769, %v4669
      %v4802 = vadd.f32 %v4770, %v4674
      %v4803 = vadd.f32 %v4771, %v4677
      %v4804 = vadd.f32 %v4772, %v4682
      %v4805 = vadd.f32 %v4773, %v4685
      %v4806 = vadd.f32 %v4774, %v4690
      %v4807 = vadd.f32 %v4775, %v4693
      %v4808 = vadd.f32 %v4776, %v4698
      %v4809 = vadd.f32 %v4777, %v4701
      %v4810 = vadd.f32 %v4778, %v4706
      %v4811 = vadd.f32 %v4779, %v4709
      %v4812 = vadd.f32 %v4780, %v4714
      %v4813 = vadd.f32 %v4781, %v4717
      %v4814 = vadd.f32 %v4782, %v4722
      %v4815 = vadd.f32 %v4783, %v4725
      %v4816 = vadd.f32 %v4784, %v4730
      %v4817 = vadd.f32 %v4785, %v4733
      %v4818 = vadd.f32 %v4786, %v4738
      %v4819 = vadd.f32 %v4787, %v4741
      %v4820 = vadd.f32 %v4788, %v4746
      %v4821 = vadd.f32 %v4789, %v4749
      %v4822 = vadd.f32 %v4790, %v4754
      %v4823 = vadd.f32 %v4791, %v4757
      %4824 = vst [vmem:[#allocation4] sm:$0xff] %v4792
      %4825 = vst [vmem:[#allocation4 + $0x8] sm:$0xff] %v4793
      %4826 = vst [vmem:[#allocation4 + $0x10] sm:$0xff] %v4794
      %4827 = vst [vmem:[#allocation4 + $0x18] sm:$0xff] %v4795
      %4828 = vst [vmem:[#allocation4 + $0x20] sm:$0xff] %v4796
      %4829 = vst [vmem:[#allocation4 + $0x28] sm:$0xff] %v4797
      %4830 = vst [vmem:[#allocation4 + $0x30] sm:$0xff] %v4798
      %4831 = vst [vmem:[#allocation4 + $0x38] sm:$0xff] %v4799
      %4832 = vst [vmem:[#allocation4 + $0x40] sm:$0xff] %v4800
      %4833 = vst [vmem:[#allocation4 + $0x48] sm:$0xff] %v4801
      %4834 = vst [vmem:[#allocation4 + $0x50] sm:$0xff] %v4802
      %4835 = vst [vmem:[#allocation4 + $0x58] sm:$0xff] %v4803
      %4836 = vst [vmem:[#allocation4 + $0x60] sm:$0xff] %v4804
      %4837 = vst [vmem:[#allocation4 + $0x68] sm:$0xff] %v4805
      %4838 = vst [vmem:[#allocation4 + $0x70] sm:$0xff] %v4806
      %4839 = vst [vmem:[#allocation4 + $0x78] sm:$0xff] %v4807
      %4840 = vst [vmem:[#allocation4 + $0x80] sm:$0xff] %v4808
      %4841 = vst [vmem:[#allocation4 + $0x88] sm:$0xff] %v4809
      %4842 = vst [vmem:[#allocation4 + $0x90] sm:$0xff] %v4810
      %4843 = vst [vmem:[#allocation4 + $0x98] sm:$0xff] %v4811
      %4844 = vst [vmem:[#allocation4 + $0xa0] sm:$0xff] %v4812
      %4845 = vst [vmem:[#allocation4 + $0xa8] sm:$0xff] %v4813
      %4846 = vst [vmem:[#allocation4 + $0xb0] sm:$0xff] %v4814
      %4847 = vst [vmem:[#allocation4 + $0xb8] sm:$0xff] %v4815
      %4848 = vst [vmem:[#allocation4 + $0xc0] sm:$0xff] %v4816
      %4849 = vst [vmem:[#allocation4 + $0xc8] sm:$0xff] %v4817
      %4850 = vst [vmem:[#allocation4 + $0xd0] sm:$0xff] %v4818
      %4851 = vst [vmem:[#allocation4 + $0xd8] sm:$0xff] %v4819
      %4852 = vst [vmem:[#allocation4 + $0xe0] sm:$0xff] %v4820
      %4853 = vst [vmem:[#allocation4 + $0xe8] sm:$0xff] %v4821
      %4854 = vst [vmem:[#allocation4 + $0xf0] sm:$0xff] %v4822
      %4855 = vst [vmem:[#allocation4 + $0xf8] sm:$0xff] %v4823
      %v4856 = vld [vmem:[%s3778] sm:$0xff]
      %v4857 = vld [vmem:[%s3778 + $0x8] sm:$0xff]
      %v4858 = vld [vmem:[%s3778 + $0x18] sm:$0xff]
      %v4859 = vld [vmem:[%s3778 + $0x20] sm:$0xff]
      %v4860 = vld [vmem:[%s3778 + $0x30] sm:$0xff]
      %v4861 = vld [vmem:[%s3778 + $0x38] sm:$0xff]
      %v4862 = vld [vmem:[%s3778 + $0x48] sm:$0xff]
      %v4863 = vld [vmem:[%s3778 + $0x50] sm:$0xff]
      %v4864 = vld [vmem:[%s3778 + $0x60] sm:$0xff]
      %v4865 = vld [vmem:[%s3778 + $0x68] sm:$0xff]
      %v4866 = vld [vmem:[%s3778 + $0x78] sm:$0xff]
      %v4867 = vld [vmem:[%s3778 + $0x80] sm:$0xff]
      %v4868 = vld [vmem:[%s3778 + $0x90] sm:$0xff]
      %v4869 = vld [vmem:[%s3778 + $0x98] sm:$0xff]
      %v4870 = vld [vmem:[%s3778 + $0xa8] sm:$0xff]
      %v4871 = vld [vmem:[%s3778 + $0xb0] sm:$0xff]
      %v4872 = vld [vmem:[%s3778 + $0xc0] sm:$0xff]
      %v4873 = vld [vmem:[%s3778 + $0xc8] sm:$0xff]
      %v4874 = vld [vmem:[%s3778 + $0xd8] sm:$0xff]
      %v4875 = vld [vmem:[%s3778 + $0xe0] sm:$0xff]
      %v4876 = vld [vmem:[%s3778 + $0xf0] sm:$0xff]
      %v4877 = vld [vmem:[%s3778 + $0xf8] sm:$0xff]
      %v4878 = vld [vmem:[%s3778 + $0x108] sm:$0xff]
      %v4879 = vld [vmem:[%s3778 + $0x110] sm:$0xff]
      %v4880 = vld [vmem:[%s3778 + $0x120] sm:$0xff]
      %v4881 = vld [vmem:[%s3778 + $0x128] sm:$0xff]
      %v4882 = vld [vmem:[%s3778 + $0x138] sm:$0xff]
      %v4883 = vld [vmem:[%s3778 + $0x140] sm:$0xff]
      %v4884 = vld [vmem:[%s3778 + $0x150] sm:$0xff]
      %v4885 = vld [vmem:[%s3778 + $0x158] sm:$0xff]
      %v4886 = vld [vmem:[%s3778 + $0x168] sm:$0xff]
      %v4887 = vld [vmem:[%s3778 + $0x170] sm:$0xff]
      %v4888 = vpack.c.bf16 %v4857, %v4856
      %v4889 = vpack.c.bf16 %v4859, %v4858
      %v4890 = vpack.c.bf16 %v4861, %v4860
      %v4891 = vpack.c.bf16 %v4863, %v4862
      %v4892 = vpack.c.bf16 %v4865, %v4864
      %v4893 = vpack.c.bf16 %v4867, %v4866
      %v4894 = vpack.c.bf16 %v4869, %v4868
      %v4895 = vpack.c.bf16 %v4871, %v4870
      %v4896 = vpack.c.bf16 %v4873, %v4872
      %v4897 = vpack.c.bf16 %v4875, %v4874
      %v4898 = vpack.c.bf16 %v4877, %v4876
      %v4899 = vpack.c.bf16 %v4879, %v4878
      %v4900 = vpack.c.bf16 %v4881, %v4880
      %v4901 = vpack.c.bf16 %v4883, %v4882
      %v4902 = vpack.c.bf16 %v4885, %v4884
      %v4903 = vpack.c.bf16 %v4887, %v4886
      %s4904 = scalar_lea.vmem %s3, 192
      %v4905 = vld [vmem:[%s4904] sm:$0xf]
      %v4906 = vld [vmem:[%s4904 + $0x4] sm:$0xf]
      %v4907 = vld [vmem:[%s4904 + $0x8] sm:$0xf]
      %v4908 = vld [vmem:[%s4904 + $0xc] sm:$0xf]
      %v4909 = vld [vmem:[%s4904 + $0x10] sm:$0xf]
      %v4910 = vld [vmem:[%s4904 + $0x14] sm:$0xf]
      %v4911 = vld [vmem:[%s4904 + $0x18] sm:$0xf]
      %v4912 = vld [vmem:[%s4904 + $0x1c] sm:$0xf]
      %v4913 = vld [vmem:[%s4904 + $0x20] sm:$0xf]
      %v4914 = vld [vmem:[%s4904 + $0x24] sm:$0xf]
      %v4915 = vld [vmem:[%s4904 + $0x28] sm:$0xf]
      %v4916 = vld [vmem:[%s4904 + $0x2c] sm:$0xf]
      %v4917 = vld [vmem:[%s4904 + $0x30] sm:$0xf]
      %v4918 = vld [vmem:[%s4904 + $0x34] sm:$0xf]
      %v4919 = vld [vmem:[%s4904 + $0x38] sm:$0xf]
      %v4920 = vld [vmem:[%s4904 + $0x3c] sm:$0xf]
      %v4937 = vunpack.c.l.b16 %v4905
      %v4938 = vunpack.c.l.b16 %v4906
      %v4939 = vunpack.c.l.b16 %v4907
      %v4940 = vunpack.c.l.b16 %v4908
      %v4941 = vunpack.c.l.b16 %v4909
      %v4942 = vunpack.c.l.b16 %v4910
      %v4943 = vunpack.c.l.b16 %v4911
      %v4944 = vunpack.c.l.b16 %v4912
      %v4945 = vunpack.c.l.b16 %v4913
      %v4946 = vunpack.c.l.b16 %v4914
      %v4947 = vunpack.c.l.b16 %v4915
      %v4948 = vunpack.c.l.b16 %v4916
      %v4949 = vunpack.c.l.b16 %v4917
      %v4950 = vunpack.c.l.b16 %v4918
      %v4951 = vunpack.c.l.b16 %v4919
      %v4952 = vunpack.c.l.b16 %v4920
      %v4953 = vpack.c.b16 %v4938, %v4937
      %v4954 = vpack.c.b16 %v4940, %v4939
      %v4955 = vpack.c.b16 %v4942, %v4941
      %v4956 = vpack.c.b16 %v4944, %v4943
      %v4957 = vpack.c.b16 %v4946, %v4945
      %v4958 = vpack.c.b16 %v4948, %v4947
      %v4959 = vpack.c.b16 %v4950, %v4949
      %v4960 = vpack.c.b16 %v4952, %v4951
      %4969 = vmatprep.subr.bf16.mxu0 0
      %4970 = vmatpush1.bf16.msra.mxu0 %v4960
      %4971 = vmatprep.subr.bf16.mxu0 0
      %4972 = vmatpush1.bf16.msra.mxu0 %v4959
      %4973 = vmatprep.subr.bf16.mxu0 0
      %4974 = vmatpush1.bf16.msra.mxu0 %v4958
      %4975 = vmatprep.subr.bf16.mxu0 0
      %4976 = vmatpush1.bf16.msra.mxu0 %v4957
      %4977 = vmatprep.subr.bf16.mxu0 0
      %4978 = vmatpush1.bf16.msra.mxu0 %v4956
      %4979 = vmatprep.subr.bf16.mxu0 0
      %4980 = vmatpush1.bf16.msra.mxu0 %v4955
      %4981 = vmatprep.subr.bf16.mxu0 0
      %4982 = vmatpush1.bf16.msra.mxu0 %v4954
      %4983 = vmatprep.subr.bf16.mxu0 0
      %4984 = vmatpush1.bf16.msra.mxu0 %v4953
      %4985 = vmatprep.subr.bf16.mxu0 0
      %4986 = vmatpush2.bf16.msra.mxu0 0
      %4987 = vmatprep.subr.bf16.mxu0 0
      %4988 = vmatpush2.bf16.msra.mxu0 0
      %4989 = vmatprep.subr.bf16.mxu0 0
      %4990 = vmatpush2.bf16.msra.mxu0 0
      %4991 = vmatprep.subr.bf16.mxu0 0
      %4992 = vmatpush2.bf16.msra.mxu0 0
      %4993 = vmatprep.subr.bf16.mxu0 0
      %4994 = vmatpush2.bf16.msra.mxu0 0
      %4995 = vmatprep.subr.bf16.mxu0 0
      %4996 = vmatpush2.bf16.msra.mxu0 0
      %4997 = vmatprep.subr.bf16.mxu0 0
      %4998 = vmatpush2.bf16.msra.mxu0 0
      %4999 = vmatprep.subr.bf16.mxu0 0
      %5000 = vmatpush2.bf16.msra.mxu0 0
      %5001 = vmatprep.mubr.bf16.mxu0 0
      %5002 = vmatmul.mubr.bf16.gmra.mxu0 %v4888
      %v5003 = vpop.f32.mrf.mxu0
      %v5004 = vadd.f32 0.0, %v5003
      %v5005 = vpop.f32.mrf.mxu0
      %v5006 = vpop.f32.mrf.mxu0
      %v5007 = vadd.f32 0.0, %v5006
      %v5008 = vpop.f32.mrf.mxu0
      %5009 = vmatprep.mubr.bf16.mxu0 0
      %5010 = vmatmul.mubr.bf16.gmra.mxu0 %v4889
      %v5011 = vpop.f32.mrf.mxu0
      %v5012 = vadd.f32 0.0, %v5011
      %v5013 = vpop.f32.mrf.mxu0
      %v5014 = vpop.f32.mrf.mxu0
      %v5015 = vadd.f32 0.0, %v5014
      %v5016 = vpop.f32.mrf.mxu0
      %5017 = vmatprep.mubr.bf16.mxu0 0
      %5018 = vmatmul.mubr.bf16.gmra.mxu0 %v4890
      %v5019 = vpop.f32.mrf.mxu0
      %v5020 = vadd.f32 0.0, %v5019
      %v5021 = vpop.f32.mrf.mxu0
      %v5022 = vpop.f32.mrf.mxu0
      %v5023 = vadd.f32 0.0, %v5022
      %v5024 = vpop.f32.mrf.mxu0
      %5025 = vmatprep.mubr.bf16.mxu0 0
      %5026 = vmatmul.mubr.bf16.gmra.mxu0 %v4891
      %v5027 = vpop.f32.mrf.mxu0
      %v5028 = vadd.f32 0.0, %v5027
      %v5029 = vpop.f32.mrf.mxu0
      %v5030 = vpop.f32.mrf.mxu0
      %v5031 = vadd.f32 0.0, %v5030
      %v5032 = vpop.f32.mrf.mxu0
      %5033 = vmatprep.mubr.bf16.mxu0 0
      %5034 = vmatmul.mubr.bf16.gmra.mxu0 %v4892
      %v5035 = vpop.f32.mrf.mxu0
      %v5036 = vadd.f32 0.0, %v5035
      %v5037 = vpop.f32.mrf.mxu0
      %v5038 = vpop.f32.mrf.mxu0
      %v5039 = vadd.f32 0.0, %v5038
      %v5040 = vpop.f32.mrf.mxu0
      %5041 = vmatprep.mubr.bf16.mxu0 0
      %5042 = vmatmul.mubr.bf16.gmra.mxu0 %v4893
      %v5043 = vpop.f32.mrf.mxu0
      %v5044 = vadd.f32 0.0, %v5043
      %v5045 = vpop.f32.mrf.mxu0
      %v5046 = vpop.f32.mrf.mxu0
      %v5047 = vadd.f32 0.0, %v5046
      %v5048 = vpop.f32.mrf.mxu0
      %5049 = vmatprep.mubr.bf16.mxu0 0
      %5050 = vmatmul.mubr.bf16.gmra.mxu0 %v4894
      %v5051 = vpop.f32.mrf.mxu0
      %v5052 = vadd.f32 0.0, %v5051
      %v5053 = vpop.f32.mrf.mxu0
      %v5054 = vpop.f32.mrf.mxu0
      %v5055 = vadd.f32 0.0, %v5054
      %v5056 = vpop.f32.mrf.mxu0
      %5057 = vmatprep.mubr.bf16.mxu0 0
      %5058 = vmatmul.mubr.bf16.gmra.mxu0 %v4895
      %v5059 = vpop.f32.mrf.mxu0
      %v5060 = vadd.f32 0.0, %v5059
      %v5061 = vpop.f32.mrf.mxu0
      %v5062 = vpop.f32.mrf.mxu0
      %v5063 = vadd.f32 0.0, %v5062
      %v5064 = vpop.f32.mrf.mxu0
      %5065 = vmatprep.mubr.bf16.mxu0 0
      %5066 = vmatmul.mubr.bf16.gmra.mxu0 %v4896
      %v5067 = vpop.f32.mrf.mxu0
      %v5068 = vadd.f32 0.0, %v5067
      %v5069 = vpop.f32.mrf.mxu0
      %v5070 = vpop.f32.mrf.mxu0
      %v5071 = vadd.f32 0.0, %v5070
      %v5072 = vpop.f32.mrf.mxu0
      %5073 = vmatprep.mubr.bf16.mxu0 0
      %5074 = vmatmul.mubr.bf16.gmra.mxu0 %v4897
      %v5075 = vpop.f32.mrf.mxu0
      %v5076 = vadd.f32 0.0, %v5075
      %v5077 = vpop.f32.mrf.mxu0
      %v5078 = vpop.f32.mrf.mxu0
      %v5079 = vadd.f32 0.0, %v5078
      %v5080 = vpop.f32.mrf.mxu0
      %5081 = vmatprep.mubr.bf16.mxu0 0
      %5082 = vmatmul.mubr.bf16.gmra.mxu0 %v4898
      %v5083 = vpop.f32.mrf.mxu0
      %v5084 = vadd.f32 0.0, %v5083
      %v5085 = vpop.f32.mrf.mxu0
      %v5086 = vpop.f32.mrf.mxu0
      %v5087 = vadd.f32 0.0, %v5086
      %v5088 = vpop.f32.mrf.mxu0
      %5089 = vmatprep.mubr.bf16.mxu0 0
      %5090 = vmatmul.mubr.bf16.gmra.mxu0 %v4899
      %v5091 = vpop.f32.mrf.mxu0
      %v5092 = vadd.f32 0.0, %v5091
      %v5093 = vpop.f32.mrf.mxu0
      %v5094 = vpop.f32.mrf.mxu0
      %v5095 = vadd.f32 0.0, %v5094
      %v5096 = vpop.f32.mrf.mxu0
      %5097 = vmatprep.mubr.bf16.mxu0 0
      %5098 = vmatmul.mubr.bf16.gmra.mxu0 %v4900
      %v5099 = vpop.f32.mrf.mxu0
      %v5100 = vadd.f32 0.0, %v5099
      %v5101 = vpop.f32.mrf.mxu0
      %v5102 = vpop.f32.mrf.mxu0
      %v5103 = vadd.f32 0.0, %v5102
      %v5104 = vpop.f32.mrf.mxu0
      %5105 = vmatprep.mubr.bf16.mxu0 0
      %5106 = vmatmul.mubr.bf16.gmra.mxu0 %v4901
      %v5107 = vpop.f32.mrf.mxu0
      %v5108 = vadd.f32 0.0, %v5107
      %v5109 = vpop.f32.mrf.mxu0
      %v5110 = vpop.f32.mrf.mxu0
      %v5111 = vadd.f32 0.0, %v5110
      %v5112 = vpop.f32.mrf.mxu0
      %5113 = vmatprep.mubr.bf16.mxu0 0
      %5114 = vmatmul.mubr.bf16.gmra.mxu0 %v4902
      %v5115 = vpop.f32.mrf.mxu0
      %v5116 = vadd.f32 0.0, %v5115
      %v5117 = vpop.f32.mrf.mxu0
      %v5118 = vpop.f32.mrf.mxu0
      %v5119 = vadd.f32 0.0, %v5118
      %v5120 = vpop.f32.mrf.mxu0
      %5121 = vmatprep.mubr.bf16.mxu0 0
      %5122 = vmatmul.mubr.bf16.gmra.mxu0 %v4903
      %v5123 = vpop.f32.mrf.mxu0
      %v5124 = vadd.f32 0.0, %v5123
      %v5125 = vpop.f32.mrf.mxu0
      %v5126 = vpop.f32.mrf.mxu0
      %v5127 = vadd.f32 0.0, %v5126
      %v5128 = vpop.f32.mrf.mxu0
      %5129 = vdwg.mxu0
      %v5130 = vld [vmem:[#allocation4] sm:$0xff]
      %v5131 = vld [vmem:[#allocation4 + $0x8] sm:$0xff]
      %v5132 = vld [vmem:[#allocation4 + $0x10] sm:$0xff]
      %v5133 = vld [vmem:[#allocation4 + $0x18] sm:$0xff]
      %v5134 = vld [vmem:[#allocation4 + $0x20] sm:$0xff]
      %v5135 = vld [vmem:[#allocation4 + $0x28] sm:$0xff]
      %v5136 = vld [vmem:[#allocation4 + $0x30] sm:$0xff]
      %v5137 = vld [vmem:[#allocation4 + $0x38] sm:$0xff]
      %v5138 = vld [vmem:[#allocation4 + $0x40] sm:$0xff]
      %v5139 = vld [vmem:[#allocation4 + $0x48] sm:$0xff]
      %v5140 = vld [vmem:[#allocation4 + $0x50] sm:$0xff]
      %v5141 = vld [vmem:[#allocation4 + $0x58] sm:$0xff]
      %v5142 = vld [vmem:[#allocation4 + $0x60] sm:$0xff]
      %v5143 = vld [vmem:[#allocation4 + $0x68] sm:$0xff]
      %v5144 = vld [vmem:[#allocation4 + $0x70] sm:$0xff]
      %v5145 = vld [vmem:[#allocation4 + $0x78] sm:$0xff]
      %v5146 = vld [vmem:[#allocation4 + $0x80] sm:$0xff]
      %v5147 = vld [vmem:[#allocation4 + $0x88] sm:$0xff]
      %v5148 = vld [vmem:[#allocation4 + $0x90] sm:$0xff]
      %v5149 = vld [vmem:[#allocation4 + $0x98] sm:$0xff]
      %v5150 = vld [vmem:[#allocation4 + $0xa0] sm:$0xff]
      %v5151 = vld [vmem:[#allocation4 + $0xa8] sm:$0xff]
      %v5152 = vld [vmem:[#allocation4 + $0xb0] sm:$0xff]
      %v5153 = vld [vmem:[#allocation4 + $0xb8] sm:$0xff]
      %v5154 = vld [vmem:[#allocation4 + $0xc0] sm:$0xff]
      %v5155 = vld [vmem:[#allocation4 + $0xc8] sm:$0xff]
      %v5156 = vld [vmem:[#allocation4 + $0xd0] sm:$0xff]
      %v5157 = vld [vmem:[#allocation4 + $0xd8] sm:$0xff]
      %v5158 = vld [vmem:[#allocation4 + $0xe0] sm:$0xff]
      %v5159 = vld [vmem:[#allocation4 + $0xe8] sm:$0xff]
      %v5160 = vld [vmem:[#allocation4 + $0xf0] sm:$0xff]
      %v5161 = vld [vmem:[#allocation4 + $0xf8] sm:$0xff]
      %v5162 = vadd.f32 %v5130, %v5004
      %v5163 = vadd.f32 %v5131, %v5007
      %v5164 = vadd.f32 %v5132, %v5012
      %v5165 = vadd.f32 %v5133, %v5015
      %v5166 = vadd.f32 %v5134, %v5020
      %v5167 = vadd.f32 %v5135, %v5023
      %v5168 = vadd.f32 %v5136, %v5028
      %v5169 = vadd.f32 %v5137, %v5031
      %v5170 = vadd.f32 %v5138, %v5036
      %v5171 = vadd.f32 %v5139, %v5039
      %v5172 = vadd.f32 %v5140, %v5044
      %v5173 = vadd.f32 %v5141, %v5047
      %v5174 = vadd.f32 %v5142, %v5052
      %v5175 = vadd.f32 %v5143, %v5055
      %v5176 = vadd.f32 %v5144, %v5060
      %v5177 = vadd.f32 %v5145, %v5063
      %v5178 = vadd.f32 %v5146, %v5068
      %v5179 = vadd.f32 %v5147, %v5071
      %v5180 = vadd.f32 %v5148, %v5076
      %v5181 = vadd.f32 %v5149, %v5079
      %v5182 = vadd.f32 %v5150, %v5084
      %v5183 = vadd.f32 %v5151, %v5087
      %v5184 = vadd.f32 %v5152, %v5092
      %v5185 = vadd.f32 %v5153, %v5095
      %v5186 = vadd.f32 %v5154, %v5100
      %v5187 = vadd.f32 %v5155, %v5103
      %v5188 = vadd.f32 %v5156, %v5108
      %v5189 = vadd.f32 %v5157, %v5111
      %v5190 = vadd.f32 %v5158, %v5116
      %v5191 = vadd.f32 %v5159, %v5119
      %v5192 = vadd.f32 %v5160, %v5124
      %v5193 = vadd.f32 %v5161, %v5127
      %5194 = vst [vmem:[#allocation4] sm:$0xff] %v5162
      %5195 = vst [vmem:[#allocation4 + $0x8] sm:$0xff] %v5163
      %5196 = vst [vmem:[#allocation4 + $0x10] sm:$0xff] %v5164
      %5197 = vst [vmem:[#allocation4 + $0x18] sm:$0xff] %v5165
      %5198 = vst [vmem:[#allocation4 + $0x20] sm:$0xff] %v5166
      %5199 = vst [vmem:[#allocation4 + $0x28] sm:$0xff] %v5167
      %5200 = vst [vmem:[#allocation4 + $0x30] sm:$0xff] %v5168
      %5201 = vst [vmem:[#allocation4 + $0x38] sm:$0xff] %v5169
      %5202 = vst [vmem:[#allocation4 + $0x40] sm:$0xff] %v5170
      %5203 = vst [vmem:[#allocation4 + $0x48] sm:$0xff] %v5171
      %5204 = vst [vmem:[#allocation4 + $0x50] sm:$0xff] %v5172
      %5205 = vst [vmem:[#allocation4 + $0x58] sm:$0xff] %v5173
      %5206 = vst [vmem:[#allocation4 + $0x60] sm:$0xff] %v5174
      %5207 = vst [vmem:[#allocation4 + $0x68] sm:$0xff] %v5175
      %5208 = vst [vmem:[#allocation4 + $0x70] sm:$0xff] %v5176
      %5209 = vst [vmem:[#allocation4 + $0x78] sm:$0xff] %v5177
      %5210 = vst [vmem:[#allocation4 + $0x80] sm:$0xff] %v5178
      %5211 = vst [vmem:[#allocation4 + $0x88] sm:$0xff] %v5179
      %5212 = vst [vmem:[#allocation4 + $0x90] sm:$0xff] %v5180
      %5213 = vst [vmem:[#allocation4 + $0x98] sm:$0xff] %v5181
      %5214 = vst [vmem:[#allocation4 + $0xa0] sm:$0xff] %v5182
      %5215 = vst [vmem:[#allocation4 + $0xa8] sm:$0xff] %v5183
      %5216 = vst [vmem:[#allocation4 + $0xb0] sm:$0xff] %v5184
      %5217 = vst [vmem:[#allocation4 + $0xb8] sm:$0xff] %v5185
      %5218 = vst [vmem:[#allocation4 + $0xc0] sm:$0xff] %v5186
      %5219 = vst [vmem:[#allocation4 + $0xc8] sm:$0xff] %v5187
      %5220 = vst [vmem:[#allocation4 + $0xd0] sm:$0xff] %v5188
      %5221 = vst [vmem:[#allocation4 + $0xd8] sm:$0xff] %v5189
      %5222 = vst [vmem:[#allocation4 + $0xe0] sm:$0xff] %v5190
      %5223 = vst [vmem:[#allocation4 + $0xe8] sm:$0xff] %v5191
      %5224 = vst [vmem:[#allocation4 + $0xf0] sm:$0xff] %v5192
      %5225 = vst [vmem:[#allocation4 + $0xf8] sm:$0xff] %v5193
      %v5226 = vld [vmem:[%s3778 + $0x1] sm:$0xff]
      %v5227 = vld [vmem:[%s3778 + $0x9] sm:$0xff]
      %v5228 = vld [vmem:[%s3778 + $0x19] sm:$0xff]
      %v5229 = vld [vmem:[%s3778 + $0x21] sm:$0xff]
      %v5230 = vld [vmem:[%s3778 + $0x31] sm:$0xff]
      %v5231 = vld [vmem:[%s3778 + $0x39] sm:$0xff]
      %v5232 = vld [vmem:[%s3778 + $0x49] sm:$0xff]
      %v5233 = vld [vmem:[%s3778 + $0x51] sm:$0xff]
      %v5234 = vld [vmem:[%s3778 + $0x61] sm:$0xff]
      %v5235 = vld [vmem:[%s3778 + $0x69] sm:$0xff]
      %v5236 = vld [vmem:[%s3778 + $0x79] sm:$0xff]
      %v5237 = vld [vmem:[%s3778 + $0x81] sm:$0xff]
      %v5238 = vld [vmem:[%s3778 + $0x91] sm:$0xff]
      %v5239 = vld [vmem:[%s3778 + $0x99] sm:$0xff]
      %v5240 = vld [vmem:[%s3778 + $0xa9] sm:$0xff]
      %v5241 = vld [vmem:[%s3778 + $0xb1] sm:$0xff]
      %v5242 = vld [vmem:[%s3778 + $0xc1] sm:$0xff]
      %v5243 = vld [vmem:[%s3778 + $0xc9] sm:$0xff]
      %v5244 = vld [vmem:[%s3778 + $0xd9] sm:$0xff]
      %v5245 = vld [vmem:[%s3778 + $0xe1] sm:$0xff]
      %v5246 = vld [vmem:[%s3778 + $0xf1] sm:$0xff]
      %v5247 = vld [vmem:[%s3778 + $0xf9] sm:$0xff]
      %v5248 = vld [vmem:[%s3778 + $0x109] sm:$0xff]
      %v5249 = vld [vmem:[%s3778 + $0x111] sm:$0xff]
      %v5250 = vld [vmem:[%s3778 + $0x121] sm:$0xff]
      %v5251 = vld [vmem:[%s3778 + $0x129] sm:$0xff]
      %v5252 = vld [vmem:[%s3778 + $0x139] sm:$0xff]
      %v5253 = vld [vmem:[%s3778 + $0x141] sm:$0xff]
      %v5254 = vld [vmem:[%s3778 + $0x151] sm:$0xff]
      %v5255 = vld [vmem:[%s3778 + $0x159] sm:$0xff]
      %v5256 = vld [vmem:[%s3778 + $0x169] sm:$0xff]
      %v5257 = vld [vmem:[%s3778 + $0x171] sm:$0xff]
      %v5258 = vpack.c.bf16 %v5227, %v5226
      %v5259 = vpack.c.bf16 %v5229, %v5228
      %v5260 = vpack.c.bf16 %v5231, %v5230
      %v5261 = vpack.c.bf16 %v5233, %v5232
      %v5262 = vpack.c.bf16 %v5235, %v5234
      %v5263 = vpack.c.bf16 %v5237, %v5236
      %v5264 = vpack.c.bf16 %v5239, %v5238
      %v5265 = vpack.c.bf16 %v5241, %v5240
      %v5266 = vpack.c.bf16 %v5243, %v5242
      %v5267 = vpack.c.bf16 %v5245, %v5244
      %v5268 = vpack.c.bf16 %v5247, %v5246
      %v5269 = vpack.c.bf16 %v5249, %v5248
      %v5270 = vpack.c.bf16 %v5251, %v5250
      %v5271 = vpack.c.bf16 %v5253, %v5252
      %v5272 = vpack.c.bf16 %v5255, %v5254
      %v5273 = vpack.c.bf16 %v5257, %v5256
      %s5274 = scalar_lea.vmem %s3, 256
      %v5275 = vld [vmem:[%s5274] sm:$0xf]
      %v5276 = vld [vmem:[%s5274 + $0x4] sm:$0xf]
      %v5277 = vld [vmem:[%s5274 + $0x8] sm:$0xf]
      %v5278 = vld [vmem:[%s5274 + $0xc] sm:$0xf]
      %v5279 = vld [vmem:[%s5274 + $0x10] sm:$0xf]
      %v5280 = vld [vmem:[%s5274 + $0x14] sm:$0xf]
      %v5281 = vld [vmem:[%s5274 + $0x18] sm:$0xf]
      %v5282 = vld [vmem:[%s5274 + $0x1c] sm:$0xf]
      %v5283 = vld [vmem:[%s5274 + $0x20] sm:$0xf]
      %v5284 = vld [vmem:[%s5274 + $0x24] sm:$0xf]
      %v5285 = vld [vmem:[%s5274 + $0x28] sm:$0xf]
      %v5286 = vld [vmem:[%s5274 + $0x2c] sm:$0xf]
      %v5287 = vld [vmem:[%s5274 + $0x30] sm:$0xf]
      %v5288 = vld [vmem:[%s5274 + $0x34] sm:$0xf]
      %v5289 = vld [vmem:[%s5274 + $0x38] sm:$0xf]
      %v5290 = vld [vmem:[%s5274 + $0x3c] sm:$0xf]
      %v5307 = vunpack.c.l.b16 %v5275
      %v5308 = vunpack.c.l.b16 %v5276
      %v5309 = vunpack.c.l.b16 %v5277
      %v5310 = vunpack.c.l.b16 %v5278
      %v5311 = vunpack.c.l.b16 %v5279
      %v5312 = vunpack.c.l.b16 %v5280
      %v5313 = vunpack.c.l.b16 %v5281
      %v5314 = vunpack.c.l.b16 %v5282
      %v5315 = vunpack.c.l.b16 %v5283
      %v5316 = vunpack.c.l.b16 %v5284
      %v5317 = vunpack.c.l.b16 %v5285
      %v5318 = vunpack.c.l.b16 %v5286
      %v5319 = vunpack.c.l.b16 %v5287
      %v5320 = vunpack.c.l.b16 %v5288
      %v5321 = vunpack.c.l.b16 %v5289
      %v5322 = vunpack.c.l.b16 %v5290
      %v5323 = vpack.c.b16 %v5308, %v5307
      %v5324 = vpack.c.b16 %v5310, %v5309
      %v5325 = vpack.c.b16 %v5312, %v5311
      %v5326 = vpack.c.b16 %v5314, %v5313
      %v5327 = vpack.c.b16 %v5316, %v5315
      %v5328 = vpack.c.b16 %v5318, %v5317
      %v5329 = vpack.c.b16 %v5320, %v5319
      %v5330 = vpack.c.b16 %v5322, %v5321
      %5339 = vmatprep.subr.bf16.mxu0 0
      %5340 = vmatpush1.bf16.msra.mxu0 %v5330
      %5341 = vmatprep.subr.bf16.mxu0 0
      %5342 = vmatpush1.bf16.msra.mxu0 %v5329
      %5343 = vmatprep.subr.bf16.mxu0 0
      %5344 = vmatpush1.bf16.msra.mxu0 %v5328
      %5345 = vmatprep.subr.bf16.mxu0 0
      %5346 = vmatpush1.bf16.msra.mxu0 %v5327
      %5347 = vmatprep.subr.bf16.mxu0 0
      %5348 = vmatpush1.bf16.msra.mxu0 %v5326
      %5349 = vmatprep.subr.bf16.mxu0 0
      %5350 = vmatpush1.bf16.msra.mxu0 %v5325
      %5351 = vmatprep.subr.bf16.mxu0 0
      %5352 = vmatpush1.bf16.msra.mxu0 %v5324
      %5353 = vmatprep.subr.bf16.mxu0 0
      %5354 = vmatpush1.bf16.msra.mxu0 %v5323
      %5355 = vmatprep.subr.bf16.mxu0 0
      %5356 = vmatpush2.bf16.msra.mxu0 0
      %5357 = vmatprep.subr.bf16.mxu0 0
      %5358 = vmatpush2.bf16.msra.mxu0 0
      %5359 = vmatprep.subr.bf16.mxu0 0
      %5360 = vmatpush2.bf16.msra.mxu0 0
      %5361 = vmatprep.subr.bf16.mxu0 0
      %5362 = vmatpush2.bf16.msra.mxu0 0
      %5363 = vmatprep.subr.bf16.mxu0 0
      %5364 = vmatpush2.bf16.msra.mxu0 0
      %5365 = vmatprep.subr.bf16.mxu0 0
      %5366 = vmatpush2.bf16.msra.mxu0 0
      %5367 = vmatprep.subr.bf16.mxu0 0
      %5368 = vmatpush2.bf16.msra.mxu0 0
      %5369 = vmatprep.subr.bf16.mxu0 0
      %5370 = vmatpush2.bf16.msra.mxu0 0
      %5371 = vmatprep.mubr.bf16.mxu0 0
      %5372 = vmatmul.mubr.bf16.gmra.mxu0 %v5258
      %v5373 = vpop.f32.mrf.mxu0
      %v5374 = vadd.f32 0.0, %v5373
      %v5375 = vpop.f32.mrf.mxu0
      %v5376 = vpop.f32.mrf.mxu0
      %v5377 = vadd.f32 0.0, %v5376
      %v5378 = vpop.f32.mrf.mxu0
      %5379 = vmatprep.mubr.bf16.mxu0 0
      %5380 = vmatmul.mubr.bf16.gmra.mxu0 %v5259
      %v5381 = vpop.f32.mrf.mxu0
      %v5382 = vadd.f32 0.0, %v5381
      %v5383 = vpop.f32.mrf.mxu0
      %v5384 = vpop.f32.mrf.mxu0
      %v5385 = vadd.f32 0.0, %v5384
      %v5386 = vpop.f32.mrf.mxu0
      %5387 = vmatprep.mubr.bf16.mxu0 0
      %5388 = vmatmul.mubr.bf16.gmra.mxu0 %v5260
      %v5389 = vpop.f32.mrf.mxu0
      %v5390 = vadd.f32 0.0, %v5389
      %v5391 = vpop.f32.mrf.mxu0
      %v5392 = vpop.f32.mrf.mxu0
      %v5393 = vadd.f32 0.0, %v5392
      %v5394 = vpop.f32.mrf.mxu0
      %5395 = vmatprep.mubr.bf16.mxu0 0
      %5396 = vmatmul.mubr.bf16.gmra.mxu0 %v5261
      %v5397 = vpop.f32.mrf.mxu0
      %v5398 = vadd.f32 0.0, %v5397
      %v5399 = vpop.f32.mrf.mxu0
      %v5400 = vpop.f32.mrf.mxu0
      %v5401 = vadd.f32 0.0, %v5400
      %v5402 = vpop.f32.mrf.mxu0
      %5403 = vmatprep.mubr.bf16.mxu0 0
      %5404 = vmatmul.mubr.bf16.gmra.mxu0 %v5262
      %v5405 = vpop.f32.mrf.mxu0
      %v5406 = vadd.f32 0.0, %v5405
      %v5407 = vpop.f32.mrf.mxu0
      %v5408 = vpop.f32.mrf.mxu0
      %v5409 = vadd.f32 0.0, %v5408
      %v5410 = vpop.f32.mrf.mxu0
      %5411 = vmatprep.mubr.bf16.mxu0 0
      %5412 = vmatmul.mubr.bf16.gmra.mxu0 %v5263
      %v5413 = vpop.f32.mrf.mxu0
      %v5414 = vadd.f32 0.0, %v5413
      %v5415 = vpop.f32.mrf.mxu0
      %v5416 = vpop.f32.mrf.mxu0
      %v5417 = vadd.f32 0.0, %v5416
      %v5418 = vpop.f32.mrf.mxu0
      %5419 = vmatprep.mubr.bf16.mxu0 0
      %5420 = vmatmul.mubr.bf16.gmra.mxu0 %v5264
      %v5421 = vpop.f32.mrf.mxu0
      %v5422 = vadd.f32 0.0, %v5421
      %v5423 = vpop.f32.mrf.mxu0
      %v5424 = vpop.f32.mrf.mxu0
      %v5425 = vadd.f32 0.0, %v5424
      %v5426 = vpop.f32.mrf.mxu0
      %5427 = vmatprep.mubr.bf16.mxu0 0
      %5428 = vmatmul.mubr.bf16.gmra.mxu0 %v5265
      %v5429 = vpop.f32.mrf.mxu0
      %v5430 = vadd.f32 0.0, %v5429
      %v5431 = vpop.f32.mrf.mxu0
      %v5432 = vpop.f32.mrf.mxu0
      %v5433 = vadd.f32 0.0, %v5432
      %v5434 = vpop.f32.mrf.mxu0
      %5435 = vmatprep.mubr.bf16.mxu0 0
      %5436 = vmatmul.mubr.bf16.gmra.mxu0 %v5266
      %v5437 = vpop.f32.mrf.mxu0
      %v5438 = vadd.f32 0.0, %v5437
      %v5439 = vpop.f32.mrf.mxu0
      %v5440 = vpop.f32.mrf.mxu0
      %v5441 = vadd.f32 0.0, %v5440
      %v5442 = vpop.f32.mrf.mxu0
      %5443 = vmatprep.mubr.bf16.mxu0 0
      %5444 = vmatmul.mubr.bf16.gmra.mxu0 %v5267
      %v5445 = vpop.f32.mrf.mxu0
      %v5446 = vadd.f32 0.0, %v5445
      %v5447 = vpop.f32.mrf.mxu0
      %v5448 = vpop.f32.mrf.mxu0
      %v5449 = vadd.f32 0.0, %v5448
      %v5450 = vpop.f32.mrf.mxu0
      %5451 = vmatprep.mubr.bf16.mxu0 0
      %5452 = vmatmul.mubr.bf16.gmra.mxu0 %v5268
      %v5453 = vpop.f32.mrf.mxu0
      %v5454 = vadd.f32 0.0, %v5453
      %v5455 = vpop.f32.mrf.mxu0
      %v5456 = vpop.f32.mrf.mxu0
      %v5457 = vadd.f32 0.0, %v5456
      %v5458 = vpop.f32.mrf.mxu0
      %5459 = vmatprep.mubr.bf16.mxu0 0
      %5460 = vmatmul.mubr.bf16.gmra.mxu0 %v5269
      %v5461 = vpop.f32.mrf.mxu0
      %v5462 = vadd.f32 0.0, %v5461
      %v5463 = vpop.f32.mrf.mxu0
      %v5464 = vpop.f32.mrf.mxu0
      %v5465 = vadd.f32 0.0, %v5464
      %v5466 = vpop.f32.mrf.mxu0
      %5467 = vmatprep.mubr.bf16.mxu0 0
      %5468 = vmatmul.mubr.bf16.gmra.mxu0 %v5270
      %v5469 = vpop.f32.mrf.mxu0
      %v5470 = vadd.f32 0.0, %v5469
      %v5471 = vpop.f32.mrf.mxu0
      %v5472 = vpop.f32.mrf.mxu0
      %v5473 = vadd.f32 0.0, %v5472
      %v5474 = vpop.f32.mrf.mxu0
      %5475 = vmatprep.mubr.bf16.mxu0 0
      %5476 = vmatmul.mubr.bf16.gmra.mxu0 %v5271
      %v5477 = vpop.f32.mrf.mxu0
      %v5478 = vadd.f32 0.0, %v5477
      %v5479 = vpop.f32.mrf.mxu0
      %v5480 = vpop.f32.mrf.mxu0
      %v5481 = vadd.f32 0.0, %v5480
      %v5482 = vpop.f32.mrf.mxu0
      %5483 = vmatprep.mubr.bf16.mxu0 0
      %5484 = vmatmul.mubr.bf16.gmra.mxu0 %v5272
      %v5485 = vpop.f32.mrf.mxu0
      %v5486 = vadd.f32 0.0, %v5485
      %v5487 = vpop.f32.mrf.mxu0
      %v5488 = vpop.f32.mrf.mxu0
      %v5489 = vadd.f32 0.0, %v5488
      %v5490 = vpop.f32.mrf.mxu0
      %5491 = vmatprep.mubr.bf16.mxu0 0
      %5492 = vmatmul.mubr.bf16.gmra.mxu0 %v5273
      %v5493 = vpop.f32.mrf.mxu0
      %v5494 = vadd.f32 0.0, %v5493
      %v5495 = vpop.f32.mrf.mxu0
      %v5496 = vpop.f32.mrf.mxu0
      %v5497 = vadd.f32 0.0, %v5496
      %v5498 = vpop.f32.mrf.mxu0
      %5499 = vdwg.mxu0
      %v5500 = vld [vmem:[#allocation4] sm:$0xff]
      %v5501 = vld [vmem:[#allocation4 + $0x8] sm:$0xff]
      %v5502 = vld [vmem:[#allocation4 + $0x10] sm:$0xff]
      %v5503 = vld [vmem:[#allocation4 + $0x18] sm:$0xff]
      %v5504 = vld [vmem:[#allocation4 + $0x20] sm:$0xff]
      %v5505 = vld [vmem:[#allocation4 + $0x28] sm:$0xff]
      %v5506 = vld [vmem:[#allocation4 + $0x30] sm:$0xff]
      %v5507 = vld [vmem:[#allocation4 + $0x38] sm:$0xff]
      %v5508 = vld [vmem:[#allocation4 + $0x40] sm:$0xff]
      %v5509 = vld [vmem:[#allocation4 + $0x48] sm:$0xff]
      %v5510 = vld [vmem:[#allocation4 + $0x50] sm:$0xff]
      %v5511 = vld [vmem:[#allocation4 + $0x58] sm:$0xff]
      %v5512 = vld [vmem:[#allocation4 + $0x60] sm:$0xff]
      %v5513 = vld [vmem:[#allocation4 + $0x68] sm:$0xff]
      %v5514 = vld [vmem:[#allocation4 + $0x70] sm:$0xff]
      %v5515 = vld [vmem:[#allocation4 + $0x78] sm:$0xff]
      %v5516 = vld [vmem:[#allocation4 + $0x80] sm:$0xff]
      %v5517 = vld [vmem:[#allocation4 + $0x88] sm:$0xff]
      %v5518 = vld [vmem:[#allocation4 + $0x90] sm:$0xff]
      %v5519 = vld [vmem:[#allocation4 + $0x98] sm:$0xff]
      %v5520 = vld [vmem:[#allocation4 + $0xa0] sm:$0xff]
      %v5521 = vld [vmem:[#allocation4 + $0xa8] sm:$0xff]
      %v5522 = vld [vmem:[#allocation4 + $0xb0] sm:$0xff]
      %v5523 = vld [vmem:[#allocation4 + $0xb8] sm:$0xff]
      %v5524 = vld [vmem:[#allocation4 + $0xc0] sm:$0xff]
      %v5525 = vld [vmem:[#allocation4 + $0xc8] sm:$0xff]
      %v5526 = vld [vmem:[#allocation4 + $0xd0] sm:$0xff]
      %v5527 = vld [vmem:[#allocation4 + $0xd8] sm:$0xff]
      %v5528 = vld [vmem:[#allocation4 + $0xe0] sm:$0xff]
      %v5529 = vld [vmem:[#allocation4 + $0xe8] sm:$0xff]
      %v5530 = vld [vmem:[#allocation4 + $0xf0] sm:$0xff]
      %v5531 = vld [vmem:[#allocation4 + $0xf8] sm:$0xff]
      %v5532 = vadd.f32 %v5500, %v5374
      %v5533 = vadd.f32 %v5501, %v5377
      %v5534 = vadd.f32 %v5502, %v5382
      %v5535 = vadd.f32 %v5503, %v5385
      %v5536 = vadd.f32 %v5504, %v5390
      %v5537 = vadd.f32 %v5505, %v5393
      %v5538 = vadd.f32 %v5506, %v5398
      %v5539 = vadd.f32 %v5507, %v5401
      %v5540 = vadd.f32 %v5508, %v5406
      %v5541 = vadd.f32 %v5509, %v5409
      %v5542 = vadd.f32 %v5510, %v5414
      %v5543 = vadd.f32 %v5511, %v5417
      %v5544 = vadd.f32 %v5512, %v5422
      %v5545 = vadd.f32 %v5513, %v5425
      %v5546 = vadd.f32 %v5514, %v5430
      %v5547 = vadd.f32 %v5515, %v5433
      %v5548 = vadd.f32 %v5516, %v5438
      %v5549 = vadd.f32 %v5517, %v5441
      %v5550 = vadd.f32 %v5518, %v5446
      %v5551 = vadd.f32 %v5519, %v5449
      %v5552 = vadd.f32 %v5520, %v5454
      %v5553 = vadd.f32 %v5521, %v5457
      %v5554 = vadd.f32 %v5522, %v5462
      %v5555 = vadd.f32 %v5523, %v5465
      %v5556 = vadd.f32 %v5524, %v5470
      %v5557 = vadd.f32 %v5525, %v5473
      %v5558 = vadd.f32 %v5526, %v5478
      %v5559 = vadd.f32 %v5527, %v5481
      %v5560 = vadd.f32 %v5528, %v5486
      %v5561 = vadd.f32 %v5529, %v5489
      %v5562 = vadd.f32 %v5530, %v5494
      %v5563 = vadd.f32 %v5531, %v5497
      %5564 = vst [vmem:[#allocation4] sm:$0xff] %v5532
      %5565 = vst [vmem:[#allocation4 + $0x8] sm:$0xff] %v5533
      %5566 = vst [vmem:[#allocation4 + $0x10] sm:$0xff] %v5534
      %5567 = vst [vmem:[#allocation4 + $0x18] sm:$0xff] %v5535
      %5568 = vst [vmem:[#allocation4 + $0x20] sm:$0xff] %v5536
      %5569 = vst [vmem:[#allocation4 + $0x28] sm:$0xff] %v5537
      %5570 = vst [vmem:[#allocation4 + $0x30] sm:$0xff] %v5538
      %5571 = vst [vmem:[#allocation4 + $0x38] sm:$0xff] %v5539
      %5572 = vst [vmem:[#allocation4 + $0x40] sm:$0xff] %v5540
      %5573 = vst [vmem:[#allocation4 + $0x48] sm:$0xff] %v5541
      %5574 = vst [vmem:[#allocation4 + $0x50] sm:$0xff] %v5542
      %5575 = vst [vmem:[#allocation4 + $0x58] sm:$0xff] %v5543
      %5576 = vst [vmem:[#allocation4 + $0x60] sm:$0xff] %v5544
      %5577 = vst [vmem:[#allocation4 + $0x68] sm:$0xff] %v5545
      %5578 = vst [vmem:[#allocation4 + $0x70] sm:$0xff] %v5546
      %5579 = vst [vmem:[#allocation4 + $0x78] sm:$0xff] %v5547
      %5580 = vst [vmem:[#allocation4 + $0x80] sm:$0xff] %v5548
      %5581 = vst [vmem:[#allocation4 + $0x88] sm:$0xff] %v5549
      %5582 = vst [vmem:[#allocation4 + $0x90] sm:$0xff] %v5550
      %5583 = vst [vmem:[#allocation4 + $0x98] sm:$0xff] %v5551
      %5584 = vst [vmem:[#allocation4 + $0xa0] sm:$0xff] %v5552
      %5585 = vst [vmem:[#allocation4 + $0xa8] sm:$0xff] %v5553
      %5586 = vst [vmem:[#allocation4 + $0xb0] sm:$0xff] %v5554
      %5587 = vst [vmem:[#allocation4 + $0xb8] sm:$0xff] %v5555
      %5588 = vst [vmem:[#allocation4 + $0xc0] sm:$0xff] %v5556
      %5589 = vst [vmem:[#allocation4 + $0xc8] sm:$0xff] %v5557
      %5590 = vst [vmem:[#allocation4 + $0xd0] sm:$0xff] %v5558
      %5591 = vst [vmem:[#allocation4 + $0xd8] sm:$0xff] %v5559
      %5592 = vst [vmem:[#allocation4 + $0xe0] sm:$0xff] %v5560
      %5593 = vst [vmem:[#allocation4 + $0xe8] sm:$0xff] %v5561
      %5594 = vst [vmem:[#allocation4 + $0xf0] sm:$0xff] %v5562
      %5595 = vst [vmem:[#allocation4 + $0xf8] sm:$0xff] %v5563
      %v5596 = vld [vmem:[%s3778 + $0x2] sm:$0xff]
      %v5597 = vld [vmem:[%s3778 + $0xa] sm:$0xff]
      %v5598 = vld [vmem:[%s3778 + $0x1a] sm:$0xff]
      %v5599 = vld [vmem:[%s3778 + $0x22] sm:$0xff]
      %v5600 = vld [vmem:[%s3778 + $0x32] sm:$0xff]
      %v5601 = vld [vmem:[%s3778 + $0x3a] sm:$0xff]
      %v5602 = vld [vmem:[%s3778 + $0x4a] sm:$0xff]
      %v5603 = vld [vmem:[%s3778 + $0x52] sm:$0xff]
      %v5604 = vld [vmem:[%s3778 + $0x62] sm:$0xff]
      %v5605 = vld [vmem:[%s3778 + $0x6a] sm:$0xff]
      %v5606 = vld [vmem:[%s3778 + $0x7a] sm:$0xff]
      %v5607 = vld [vmem:[%s3778 + $0x82] sm:$0xff]
      %v5608 = vld [vmem:[%s3778 + $0x92] sm:$0xff]
      %v5609 = vld [vmem:[%s3778 + $0x9a] sm:$0xff]
      %v5610 = vld [vmem:[%s3778 + $0xaa] sm:$0xff]
      %v5611 = vld [vmem:[%s3778 + $0xb2] sm:$0xff]
      %v5612 = vld [vmem:[%s3778 + $0xc2] sm:$0xff]
      %v5613 = vld [vmem:[%s3778 + $0xca] sm:$0xff]
      %v5614 = vld [vmem:[%s3778 + $0xda] sm:$0xff]
      %v5615 = vld [vmem:[%s3778 + $0xe2] sm:$0xff]
      %v5616 = vld [vmem:[%s3778 + $0xf2] sm:$0xff]
      %v5617 = vld [vmem:[%s3778 + $0xfa] sm:$0xff]
      %v5618 = vld [vmem:[%s3778 + $0x10a] sm:$0xff]
      %v5619 = vld [vmem:[%s3778 + $0x112] sm:$0xff]
      %v5620 = vld [vmem:[%s3778 + $0x122] sm:$0xff]
      %v5621 = vld [vmem:[%s3778 + $0x12a] sm:$0xff]
      %v5622 = vld [vmem:[%s3778 + $0x13a] sm:$0xff]
      %v5623 = vld [vmem:[%s3778 + $0x142] sm:$0xff]
      %v5624 = vld [vmem:[%s3778 + $0x152] sm:$0xff]
      %v5625 = vld [vmem:[%s3778 + $0x15a] sm:$0xff]
      %v5626 = vld [vmem:[%s3778 + $0x16a] sm:$0xff]
      %v5627 = vld [vmem:[%s3778 + $0x172] sm:$0xff]
      %v5628 = vpack.c.bf16 %v5597, %v5596
      %v5629 = vpack.c.bf16 %v5599, %v5598
      %v5630 = vpack.c.bf16 %v5601, %v5600
      %v5631 = vpack.c.bf16 %v5603, %v5602
      %v5632 = vpack.c.bf16 %v5605, %v5604
      %v5633 = vpack.c.bf16 %v5607, %v5606
      %v5634 = vpack.c.bf16 %v5609, %v5608
      %v5635 = vpack.c.bf16 %v5611, %v5610
      %v5636 = vpack.c.bf16 %v5613, %v5612
      %v5637 = vpack.c.bf16 %v5615, %v5614
      %v5638 = vpack.c.bf16 %v5617, %v5616
      %v5639 = vpack.c.bf16 %v5619, %v5618
      %v5640 = vpack.c.bf16 %v5621, %v5620
      %v5641 = vpack.c.bf16 %v5623, %v5622
      %v5642 = vpack.c.bf16 %v5625, %v5624
      %v5643 = vpack.c.bf16 %v5627, %v5626
      %s5644 = scalar_lea.vmem %s3, 320
      %v5645 = vld [vmem:[%s5644] sm:$0xf]
      %v5646 = vld [vmem:[%s5644 + $0x4] sm:$0xf]
      %v5647 = vld [vmem:[%s5644 + $0x8] sm:$0xf]
      %v5648 = vld [vmem:[%s5644 + $0xc] sm:$0xf]
      %v5649 = vld [vmem:[%s5644 + $0x10] sm:$0xf]
      %v5650 = vld [vmem:[%s5644 + $0x14] sm:$0xf]
      %v5651 = vld [vmem:[%s5644 + $0x18] sm:$0xf]
      %v5652 = vld [vmem:[%s5644 + $0x1c] sm:$0xf]
      %v5653 = vld [vmem:[%s5644 + $0x20] sm:$0xf]
      %v5654 = vld [vmem:[%s5644 + $0x24] sm:$0xf]
      %v5655 = vld [vmem:[%s5644 + $0x28] sm:$0xf]
      %v5656 = vld [vmem:[%s5644 + $0x2c] sm:$0xf]
      %v5657 = vld [vmem:[%s5644 + $0x30] sm:$0xf]
      %v5658 = vld [vmem:[%s5644 + $0x34] sm:$0xf]
      %v5659 = vld [vmem:[%s5644 + $0x38] sm:$0xf]
      %v5660 = vld [vmem:[%s5644 + $0x3c] sm:$0xf]
      %v5677 = vunpack.c.l.b16 %v5645
      %v5678 = vunpack.c.l.b16 %v5646
      %v5679 = vunpack.c.l.b16 %v5647
      %v5680 = vunpack.c.l.b16 %v5648
      %v5681 = vunpack.c.l.b16 %v5649
      %v5682 = vunpack.c.l.b16 %v5650
      %v5683 = vunpack.c.l.b16 %v5651
      %v5684 = vunpack.c.l.b16 %v5652
      %v5685 = vunpack.c.l.b16 %v5653
      %v5686 = vunpack.c.l.b16 %v5654
      %v5687 = vunpack.c.l.b16 %v5655
      %v5688 = vunpack.c.l.b16 %v5656
      %v5689 = vunpack.c.l.b16 %v5657
      %v5690 = vunpack.c.l.b16 %v5658
      %v5691 = vunpack.c.l.b16 %v5659
      %v5692 = vunpack.c.l.b16 %v5660
      %v5693 = vpack.c.b16 %v5678, %v5677
      %v5694 = vpack.c.b16 %v5680, %v5679
      %v5695 = vpack.c.b16 %v5682, %v5681
      %v5696 = vpack.c.b16 %v5684, %v5683
      %v5697 = vpack.c.b16 %v5686, %v5685
      %v5698 = vpack.c.b16 %v5688, %v5687
      %v5699 = vpack.c.b16 %v5690, %v5689
      %v5700 = vpack.c.b16 %v5692, %v5691
      %5709 = vmatprep.subr.bf16.mxu0 0
      %5710 = vmatpush1.bf16.msra.mxu0 %v5700
      %5711 = vmatprep.subr.bf16.mxu0 0
      %5712 = vmatpush1.bf16.msra.mxu0 %v5699
      %5713 = vmatprep.subr.bf16.mxu0 0
      %5714 = vmatpush1.bf16.msra.mxu0 %v5698
      %5715 = vmatprep.subr.bf16.mxu0 0
      %5716 = vmatpush1.bf16.msra.mxu0 %v5697
      %5717 = vmatprep.subr.bf16.mxu0 0
      %5718 = vmatpush1.bf16.msra.mxu0 %v5696
      %5719 = vmatprep.subr.bf16.mxu0 0
      %5720 = vmatpush1.bf16.msra.mxu0 %v5695
      %5721 = vmatprep.subr.bf16.mxu0 0
      %5722 = vmatpush1.bf16.msra.mxu0 %v5694
      %5723 = vmatprep.subr.bf16.mxu0 0
      %5724 = vmatpush1.bf16.msra.mxu0 %v5693
      %5725 = vmatprep.subr.bf16.mxu0 0
      %5726 = vmatpush2.bf16.msra.mxu0 0
      %5727 = vmatprep.subr.bf16.mxu0 0
      %5728 = vmatpush2.bf16.msra.mxu0 0
      %5729 = vmatprep.subr.bf16.mxu0 0
      %5730 = vmatpush2.bf16.msra.mxu0 0
      %5731 = vmatprep.subr.bf16.mxu0 0
      %5732 = vmatpush2.bf16.msra.mxu0 0
      %5733 = vmatprep.subr.bf16.mxu0 0
      %5734 = vmatpush2.bf16.msra.mxu0 0
      %5735 = vmatprep.subr.bf16.mxu0 0
      %5736 = vmatpush2.bf16.msra.mxu0 0
      %5737 = vmatprep.subr.bf16.mxu0 0
      %5738 = vmatpush2.bf16.msra.mxu0 0
      %5739 = vmatprep.subr.bf16.mxu0 0
      %5740 = vmatpush2.bf16.msra.mxu0 0
      %5741 = vmatprep.mubr.bf16.mxu0 0
      %5742 = vmatmul.mubr.bf16.gmra.mxu0 %v5628
      %v5743 = vpop.f32.mrf.mxu0
      %v5744 = vadd.f32 0.0, %v5743
      %v5745 = vpop.f32.mrf.mxu0
      %v5746 = vpop.f32.mrf.mxu0
      %v5747 = vadd.f32 0.0, %v5746
      %v5748 = vpop.f32.mrf.mxu0
      %5749 = vmatprep.mubr.bf16.mxu0 0
      %5750 = vmatmul.mubr.bf16.gmra.mxu0 %v5629
      %v5751 = vpop.f32.mrf.mxu0
      %v5752 = vadd.f32 0.0, %v5751
      %v5753 = vpop.f32.mrf.mxu0
      %v5754 = vpop.f32.mrf.mxu0
      %v5755 = vadd.f32 0.0, %v5754
      %v5756 = vpop.f32.mrf.mxu0
      %5757 = vmatprep.mubr.bf16.mxu0 0
      %5758 = vmatmul.mubr.bf16.gmra.mxu0 %v5630
      %v5759 = vpop.f32.mrf.mxu0
      %v5760 = vadd.f32 0.0, %v5759
      %v5761 = vpop.f32.mrf.mxu0
      %v5762 = vpop.f32.mrf.mxu0
      %v5763 = vadd.f32 0.0, %v5762
      %v5764 = vpop.f32.mrf.mxu0
      %5765 = vmatprep.mubr.bf16.mxu0 0
      %5766 = vmatmul.mubr.bf16.gmra.mxu0 %v5631
      %v5767 = vpop.f32.mrf.mxu0
      %v5768 = vadd.f32 0.0, %v5767
      %v5769 = vpop.f32.mrf.mxu0
      %v5770 = vpop.f32.mrf.mxu0
      %v5771 = vadd.f32 0.0, %v5770
      %v5772 = vpop.f32.mrf.mxu0
      %5773 = vmatprep.mubr.bf16.mxu0 0
      %5774 = vmatmul.mubr.bf16.gmra.mxu0 %v5632
      %v5775 = vpop.f32.mrf.mxu0
      %v5776 = vadd.f32 0.0, %v5775
      %v5777 = vpop.f32.mrf.mxu0
      %v5778 = vpop.f32.mrf.mxu0
      %v5779 = vadd.f32 0.0, %v5778
      %v5780 = vpop.f32.mrf.mxu0
      %5781 = vmatprep.mubr.bf16.mxu0 0
      %5782 = vmatmul.mubr.bf16.gmra.mxu0 %v5633
      %v5783 = vpop.f32.mrf.mxu0
      %v5784 = vadd.f32 0.0, %v5783
      %v5785 = vpop.f32.mrf.mxu0
      %v5786 = vpop.f32.mrf.mxu0
      %v5787 = vadd.f32 0.0, %v5786
      %v5788 = vpop.f32.mrf.mxu0
      %5789 = vmatprep.mubr.bf16.mxu0 0
      %5790 = vmatmul.mubr.bf16.gmra.mxu0 %v5634
      %v5791 = vpop.f32.mrf.mxu0
      %v5792 = vadd.f32 0.0, %v5791
      %v5793 = vpop.f32.mrf.mxu0
      %v5794 = vpop.f32.mrf.mxu0
      %v5795 = vadd.f32 0.0, %v5794
      %v5796 = vpop.f32.mrf.mxu0
      %5797 = vmatprep.mubr.bf16.mxu0 0
      %5798 = vmatmul.mubr.bf16.gmra.mxu0 %v5635
      %v5799 = vpop.f32.mrf.mxu0
      %v5800 = vadd.f32 0.0, %v5799
      %v5801 = vpop.f32.mrf.mxu0
      %v5802 = vpop.f32.mrf.mxu0
      %v5803 = vadd.f32 0.0, %v5802
      %v5804 = vpop.f32.mrf.mxu0
      %5805 = vmatprep.mubr.bf16.mxu0 0
      %5806 = vmatmul.mubr.bf16.gmra.mxu0 %v5636
      %v5807 = vpop.f32.mrf.mxu0
      %v5808 = vadd.f32 0.0, %v5807
      %v5809 = vpop.f32.mrf.mxu0
      %v5810 = vpop.f32.mrf.mxu0
      %v5811 = vadd.f32 0.0, %v5810
      %v5812 = vpop.f32.mrf.mxu0
      %5813 = vmatprep.mubr.bf16.mxu0 0
      %5814 = vmatmul.mubr.bf16.gmra.mxu0 %v5637
      %v5815 = vpop.f32.mrf.mxu0
      %v5816 = vadd.f32 0.0, %v5815
      %v5817 = vpop.f32.mrf.mxu0
      %v5818 = vpop.f32.mrf.mxu0
      %v5819 = vadd.f32 0.0, %v5818
      %v5820 = vpop.f32.mrf.mxu0
      %5821 = vmatprep.mubr.bf16.mxu0 0
      %5822 = vmatmul.mubr.bf16.gmra.mxu0 %v5638
      %v5823 = vpop.f32.mrf.mxu0
      %v5824 = vadd.f32 0.0, %v5823
      %v5825 = vpop.f32.mrf.mxu0
      %v5826 = vpop.f32.mrf.mxu0
      %v5827 = vadd.f32 0.0, %v5826
      %v5828 = vpop.f32.mrf.mxu0
      %5829 = vmatprep.mubr.bf16.mxu0 0
      %5830 = vmatmul.mubr.bf16.gmra.mxu0 %v5639
      %v5831 = vpop.f32.mrf.mxu0
      %v5832 = vadd.f32 0.0, %v5831
      %v5833 = vpop.f32.mrf.mxu0
      %v5834 = vpop.f32.mrf.mxu0
      %v5835 = vadd.f32 0.0, %v5834
      %v5836 = vpop.f32.mrf.mxu0
      %5837 = vmatprep.mubr.bf16.mxu0 0
      %5838 = vmatmul.mubr.bf16.gmra.mxu0 %v5640
      %v5839 = vpop.f32.mrf.mxu0
      %v5840 = vadd.f32 0.0, %v5839
      %v5841 = vpop.f32.mrf.mxu0
      %v5842 = vpop.f32.mrf.mxu0
      %v5843 = vadd.f32 0.0, %v5842
      %v5844 = vpop.f32.mrf.mxu0
      %5845 = vmatprep.mubr.bf16.mxu0 0
      %5846 = vmatmul.mubr.bf16.gmra.mxu0 %v5641
      %v5847 = vpop.f32.mrf.mxu0
      %v5848 = vadd.f32 0.0, %v5847
      %v5849 = vpop.f32.mrf.mxu0
      %v5850 = vpop.f32.mrf.mxu0
      %v5851 = vadd.f32 0.0, %v5850
      %v5852 = vpop.f32.mrf.mxu0
      %5853 = vmatprep.mubr.bf16.mxu0 0
      %5854 = vmatmul.mubr.bf16.gmra.mxu0 %v5642
      %v5855 = vpop.f32.mrf.mxu0
      %v5856 = vadd.f32 0.0, %v5855
      %v5857 = vpop.f32.mrf.mxu0
      %v5858 = vpop.f32.mrf.mxu0
      %v5859 = vadd.f32 0.0, %v5858
      %v5860 = vpop.f32.mrf.mxu0
      %5861 = vmatprep.mubr.bf16.mxu0 0
      %5862 = vmatmul.mubr.bf16.gmra.mxu0 %v5643
      %v5863 = vpop.f32.mrf.mxu0
      %v5864 = vadd.f32 0.0, %v5863
      %v5865 = vpop.f32.mrf.mxu0
      %v5866 = vpop.f32.mrf.mxu0
      %v5867 = vadd.f32 0.0, %v5866
      %v5868 = vpop.f32.mrf.mxu0
      %5869 = vdwg.mxu0
      %v5870 = vld [vmem:[#allocation4] sm:$0xff]
      %v5871 = vld [vmem:[#allocation4 + $0x8] sm:$0xff]
      %v5872 = vld [vmem:[#allocation4 + $0x10] sm:$0xff]
      %v5873 = vld [vmem:[#allocation4 + $0x18] sm:$0xff]
      %v5874 = vld [vmem:[#allocation4 + $0x20] sm:$0xff]
      %v5875 = vld [vmem:[#allocation4 + $0x28] sm:$0xff]
      %v5876 = vld [vmem:[#allocation4 + $0x30] sm:$0xff]
      %v5877 = vld [vmem:[#allocation4 + $0x38] sm:$0xff]
      %v5878 = vld [vmem:[#allocation4 + $0x40] sm:$0xff]
      %v5879 = vld [vmem:[#allocation4 + $0x48] sm:$0xff]
      %v5880 = vld [vmem:[#allocation4 + $0x50] sm:$0xff]
      %v5881 = vld [vmem:[#allocation4 + $0x58] sm:$0xff]
      %v5882 = vld [vmem:[#allocation4 + $0x60] sm:$0xff]
      %v5883 = vld [vmem:[#allocation4 + $0x68] sm:$0xff]
      %v5884 = vld [vmem:[#allocation4 + $0x70] sm:$0xff]
      %v5885 = vld [vmem:[#allocation4 + $0x78] sm:$0xff]
      %v5886 = vld [vmem:[#allocation4 + $0x80] sm:$0xff]
      %v5887 = vld [vmem:[#allocation4 + $0x88] sm:$0xff]
      %v5888 = vld [vmem:[#allocation4 + $0x90] sm:$0xff]
      %v5889 = vld [vmem:[#allocation4 + $0x98] sm:$0xff]
      %v5890 = vld [vmem:[#allocation4 + $0xa0] sm:$0xff]
      %v5891 = vld [vmem:[#allocation4 + $0xa8] sm:$0xff]
      %v5892 = vld [vmem:[#allocation4 + $0xb0] sm:$0xff]
      %v5893 = vld [vmem:[#allocation4 + $0xb8] sm:$0xff]
      %v5894 = vld [vmem:[#allocation4 + $0xc0] sm:$0xff]
      %v5895 = vld [vmem:[#allocation4 + $0xc8] sm:$0xff]
      %v5896 = vld [vmem:[#allocation4 + $0xd0] sm:$0xff]
      %v5897 = vld [vmem:[#allocation4 + $0xd8] sm:$0xff]
      %v5898 = vld [vmem:[#allocation4 + $0xe0] sm:$0xff]
      %v5899 = vld [vmem:[#allocation4 + $0xe8] sm:$0xff]
      %v5900 = vld [vmem:[#allocation4 + $0xf0] sm:$0xff]
      %v5901 = vld [vmem:[#allocation4 + $0xf8] sm:$0xff]
      %v5902 = vadd.f32 %v5870, %v5744
      %v5903 = vadd.f32 %v5871, %v5747
      %v5904 = vadd.f32 %v5872, %v5752
      %v5905 = vadd.f32 %v5873, %v5755
      %v5906 = vadd.f32 %v5874, %v5760
      %v5907 = vadd.f32 %v5875, %v5763
      %v5908 = vadd.f32 %v5876, %v5768
      %v5909 = vadd.f32 %v5877, %v5771
      %v5910 = vadd.f32 %v5878, %v5776
      %v5911 = vadd.f32 %v5879, %v5779
      %v5912 = vadd.f32 %v5880, %v5784
      %v5913 = vadd.f32 %v5881, %v5787
      %v5914 = vadd.f32 %v5882, %v5792
      %v5915 = vadd.f32 %v5883, %v5795
      %v5916 = vadd.f32 %v5884, %v5800
      %v5917 = vadd.f32 %v5885, %v5803
      %v5918 = vadd.f32 %v5886, %v5808
      %v5919 = vadd.f32 %v5887, %v5811
      %v5920 = vadd.f32 %v5888, %v5816
      %v5921 = vadd.f32 %v5889, %v5819
      %v5922 = vadd.f32 %v5890, %v5824
      %v5923 = vadd.f32 %v5891, %v5827
      %v5924 = vadd.f32 %v5892, %v5832
      %v5925 = vadd.f32 %v5893, %v5835
      %v5926 = vadd.f32 %v5894, %v5840
      %v5927 = vadd.f32 %v5895, %v5843
      %v5928 = vadd.f32 %v5896, %v5848
      %v5929 = vadd.f32 %v5897, %v5851
      %v5930 = vadd.f32 %v5898, %v5856
      %v5931 = vadd.f32 %v5899, %v5859
      %v5932 = vadd.f32 %v5900, %v5864
      %v5933 = vadd.f32 %v5901, %v5867
      %5934 = vst [vmem:[#allocation4] sm:$0xff] %v5902
      %5935 = vst [vmem:[#allocation4 + $0x8] sm:$0xff] %v5903
      %5936 = vst [vmem:[#allocation4 + $0x10] sm:$0xff] %v5904
      %5937 = vst [vmem:[#allocation4 + $0x18] sm:$0xff] %v5905
      %5938 = vst [vmem:[#allocation4 + $0x20] sm:$0xff] %v5906
      %5939 = vst [vmem:[#allocation4 + $0x28] sm:$0xff] %v5907
      %5940 = vst [vmem:[#allocation4 + $0x30] sm:$0xff] %v5908
      %5941 = vst [vmem:[#allocation4 + $0x38] sm:$0xff] %v5909
      %5942 = vst [vmem:[#allocation4 + $0x40] sm:$0xff] %v5910
      %5943 = vst [vmem:[#allocation4 + $0x48] sm:$0xff] %v5911
      %5944 = vst [vmem:[#allocation4 + $0x50] sm:$0xff] %v5912
      %5945 = vst [vmem:[#allocation4 + $0x58] sm:$0xff] %v5913
      %5946 = vst [vmem:[#allocation4 + $0x60] sm:$0xff] %v5914
      %5947 = vst [vmem:[#allocation4 + $0x68] sm:$0xff] %v5915
      %5948 = vst [vmem:[#allocation4 + $0x70] sm:$0xff] %v5916
      %5949 = vst [vmem:[#allocation4 + $0x78] sm:$0xff] %v5917
      %5950 = vst [vmem:[#allocation4 + $0x80] sm:$0xff] %v5918
      %5951 = vst [vmem:[#allocation4 + $0x88] sm:$0xff] %v5919
      %5952 = vst [vmem:[#allocation4 + $0x90] sm:$0xff] %v5920
      %5953 = vst [vmem:[#allocation4 + $0x98] sm:$0xff] %v5921
      %5954 = vst [vmem:[#allocation4 + $0xa0] sm:$0xff] %v5922
      %5955 = vst [vmem:[#allocation4 + $0xa8] sm:$0xff] %v5923
      %5956 = vst [vmem:[#allocation4 + $0xb0] sm:$0xff] %v5924
      %5957 = vst [vmem:[#allocation4 + $0xb8] sm:$0xff] %v5925
      %5958 = vst [vmem:[#allocation4 + $0xc0] sm:$0xff] %v5926
      %5959 = vst [vmem:[#allocation4 + $0xc8] sm:$0xff] %v5927
      %5960 = vst [vmem:[#allocation4 + $0xd0] sm:$0xff] %v5928
      %5961 = vst [vmem:[#allocation4 + $0xd8] sm:$0xff] %v5929
      %5962 = vst [vmem:[#allocation4 + $0xe0] sm:$0xff] %v5930
      %5963 = vst [vmem:[#allocation4 + $0xe8] sm:$0xff] %v5931
      %5964 = vst [vmem:[#allocation4 + $0xf0] sm:$0xff] %v5932
      %5965 = vst [vmem:[#allocation4 + $0xf8] sm:$0xff] %v5933
      %s5966 = scalar_lea.vmem [#allocation3], 48
      %v5967 = vld [vmem:[%s5966] sm:$0xff]
      %v5968 = vld [vmem:[%s5966 + $0x8] sm:$0xff]
      %v5969 = vld [vmem:[%s5966 + $0x18] sm:$0xff]
      %v5970 = vld [vmem:[%s5966 + $0x20] sm:$0xff]
      %v5971 = vld [vmem:[%s5966 + $0x30] sm:$0xff]
      %v5972 = vld [vmem:[%s5966 + $0x38] sm:$0xff]
      %v5973 = vld [vmem:[%s5966 + $0x48] sm:$0xff]
      %v5974 = vld [vmem:[%s5966 + $0x50] sm:$0xff]
      %v5975 = vld [vmem:[%s5966 + $0x60] sm:$0xff]
      %v5976 = vld [vmem:[%s5966 + $0x68] sm:$0xff]
      %v5977 = vld [vmem:[%s5966 + $0x78] sm:$0xff]
      %v5978 = vld [vmem:[%s5966 + $0x80] sm:$0xff]
      %v5979 = vld [vmem:[%s5966 + $0x90] sm:$0xff]
      %v5980 = vld [vmem:[%s5966 + $0x98] sm:$0xff]
      %v5981 = vld [vmem:[%s5966 + $0xa8] sm:$0xff]
      %v5982 = vld [vmem:[%s5966 + $0xb0] sm:$0xff]
      %v5983 = vld [vmem:[%s5966 + $0xc0] sm:$0xff]
      %v5984 = vld [vmem:[%s5966 + $0xc8] sm:$0xff]
      %v5985 = vld [vmem:[%s5966 + $0xd8] sm:$0xff]
      %v5986 = vld [vmem:[%s5966 + $0xe0] sm:$0xff]
      %v5987 = vld [vmem:[%s5966 + $0xf0] sm:$0xff]
      %v5988 = vld [vmem:[%s5966 + $0xf8] sm:$0xff]
      %v5989 = vld [vmem:[%s5966 + $0x108] sm:$0xff]
      %v5990 = vld [vmem:[%s5966 + $0x110] sm:$0xff]
      %v5991 = vld [vmem:[%s5966 + $0x120] sm:$0xff]
      %v5992 = vld [vmem:[%s5966 + $0x128] sm:$0xff]
      %v5993 = vld [vmem:[%s5966 + $0x138] sm:$0xff]
      %v5994 = vld [vmem:[%s5966 + $0x140] sm:$0xff]
      %v5995 = vld [vmem:[%s5966 + $0x150] sm:$0xff]
      %v5996 = vld [vmem:[%s5966 + $0x158] sm:$0xff]
      %v5997 = vld [vmem:[%s5966 + $0x168] sm:$0xff]
      %v5998 = vld [vmem:[%s5966 + $0x170] sm:$0xff]
      %v5999 = vpack.c.bf16 %v5968, %v5967
      %v6000 = vpack.c.bf16 %v5970, %v5969
      %v6001 = vpack.c.bf16 %v5972, %v5971
      %v6002 = vpack.c.bf16 %v5974, %v5973
      %v6003 = vpack.c.bf16 %v5976, %v5975
      %v6004 = vpack.c.bf16 %v5978, %v5977
      %v6005 = vpack.c.bf16 %v5980, %v5979
      %v6006 = vpack.c.bf16 %v5982, %v5981
      %v6007 = vpack.c.bf16 %v5984, %v5983
      %v6008 = vpack.c.bf16 %v5986, %v5985
      %v6009 = vpack.c.bf16 %v5988, %v5987
      %v6010 = vpack.c.bf16 %v5990, %v5989
      %v6011 = vpack.c.bf16 %v5992, %v5991
      %v6012 = vpack.c.bf16 %v5994, %v5993
      %v6013 = vpack.c.bf16 %v5996, %v5995
      %v6014 = vpack.c.bf16 %v5998, %v5997
      %s6015 = scalar_lea.vmem %s3, 384
      %v6016 = vld [vmem:[%s6015] sm:$0xf]
      %v6017 = vld [vmem:[%s6015 + $0x4] sm:$0xf]
      %v6018 = vld [vmem:[%s6015 + $0x8] sm:$0xf]
      %v6019 = vld [vmem:[%s6015 + $0xc] sm:$0xf]
      %v6020 = vld [vmem:[%s6015 + $0x10] sm:$0xf]
      %v6021 = vld [vmem:[%s6015 + $0x14] sm:$0xf]
      %v6022 = vld [vmem:[%s6015 + $0x18] sm:$0xf]
      %v6023 = vld [vmem:[%s6015 + $0x1c] sm:$0xf]
      %v6024 = vld [vmem:[%s6015 + $0x20] sm:$0xf]
      %v6025 = vld [vmem:[%s6015 + $0x24] sm:$0xf]
      %v6026 = vld [vmem:[%s6015 + $0x28] sm:$0xf]
      %v6027 = vld [vmem:[%s6015 + $0x2c] sm:$0xf]
      %v6028 = vld [vmem:[%s6015 + $0x30] sm:$0xf]
      %v6029 = vld [vmem:[%s6015 + $0x34] sm:$0xf]
      %v6030 = vld [vmem:[%s6015 + $0x38] sm:$0xf]
      %v6031 = vld [vmem:[%s6015 + $0x3c] sm:$0xf]
      %v6048 = vunpack.c.l.b16 %v6016
      %v6049 = vunpack.c.l.b16 %v6017
      %v6050 = vunpack.c.l.b16 %v6018
      %v6051 = vunpack.c.l.b16 %v6019
      %v6052 = vunpack.c.l.b16 %v6020
      %v6053 = vunpack.c.l.b16 %v6021
      %v6054 = vunpack.c.l.b16 %v6022
      %v6055 = vunpack.c.l.b16 %v6023
      %v6056 = vunpack.c.l.b16 %v6024
      %v6057 = vunpack.c.l.b16 %v6025
      %v6058 = vunpack.c.l.b16 %v6026
      %v6059 = vunpack.c.l.b16 %v6027
      %v6060 = vunpack.c.l.b16 %v6028
      %v6061 = vunpack.c.l.b16 %v6029
      %v6062 = vunpack.c.l.b16 %v6030
      %v6063 = vunpack.c.l.b16 %v6031
      %v6064 = vpack.c.b16 %v6049, %v6048
      %v6065 = vpack.c.b16 %v6051, %v6050
      %v6066 = vpack.c.b16 %v6053, %v6052
      %v6067 = vpack.c.b16 %v6055, %v6054
      %v6068 = vpack.c.b16 %v6057, %v6056
      %v6069 = vpack.c.b16 %v6059, %v6058
      %v6070 = vpack.c.b16 %v6061, %v6060
      %v6071 = vpack.c.b16 %v6063, %v6062
      %6080 = vmatprep.subr.bf16.mxu0 0
      %6081 = vmatpush1.bf16.msra.mxu0 %v6071
      %6082 = vmatprep.subr.bf16.mxu0 0
      %6083 = vmatpush1.bf16.msra.mxu0 %v6070
      %6084 = vmatprep.subr.bf16.mxu0 0
      %6085 = vmatpush1.bf16.msra.mxu0 %v6069
      %6086 = vmatprep.subr.bf16.mxu0 0
      %6087 = vmatpush1.bf16.msra.mxu0 %v6068
      %6088 = vmatprep.subr.bf16.mxu0 0
      %6089 = vmatpush1.bf16.msra.mxu0 %v6067
      %6090 = vmatprep.subr.bf16.mxu0 0
      %6091 = vmatpush1.bf16.msra.mxu0 %v6066
      %6092 = vmatprep.subr.bf16.mxu0 0
      %6093 = vmatpush1.bf16.msra.mxu0 %v6065
      %6094 = vmatprep.subr.bf16.mxu0 0
      %6095 = vmatpush1.bf16.msra.mxu0 %v6064
      %6096 = vmatprep.subr.bf16.mxu0 0
      %6097 = vmatpush2.bf16.msra.mxu0 0
      %6098 = vmatprep.subr.bf16.mxu0 0
      %6099 = vmatpush2.bf16.msra.mxu0 0
      %6100 = vmatprep.subr.bf16.mxu0 0
      %6101 = vmatpush2.bf16.msra.mxu0 0
      %6102 = vmatprep.subr.bf16.mxu0 0
      %6103 = vmatpush2.bf16.msra.mxu0 0
      %6104 = vmatprep.subr.bf16.mxu0 0
      %6105 = vmatpush2.bf16.msra.mxu0 0
      %6106 = vmatprep.subr.bf16.mxu0 0
      %6107 = vmatpush2.bf16.msra.mxu0 0
      %6108 = vmatprep.subr.bf16.mxu0 0
      %6109 = vmatpush2.bf16.msra.mxu0 0
      %6110 = vmatprep.subr.bf16.mxu0 0
      %6111 = vmatpush2.bf16.msra.mxu0 0
      %6112 = vmatprep.mubr.bf16.mxu0 0
      %6113 = vmatmul.mubr.bf16.gmra.mxu0 %v5999
      %v6114 = vpop.f32.mrf.mxu0
      %v6115 = vadd.f32 0.0, %v6114
      %v6116 = vpop.f32.mrf.mxu0
      %v6117 = vpop.f32.mrf.mxu0
      %v6118 = vadd.f32 0.0, %v6117
      %v6119 = vpop.f32.mrf.mxu0
      %6120 = vmatprep.mubr.bf16.mxu0 0
      %6121 = vmatmul.mubr.bf16.gmra.mxu0 %v6000
      %v6122 = vpop.f32.mrf.mxu0
      %v6123 = vadd.f32 0.0, %v6122
      %v6124 = vpop.f32.mrf.mxu0
      %v6125 = vpop.f32.mrf.mxu0
      %v6126 = vadd.f32 0.0, %v6125
      %v6127 = vpop.f32.mrf.mxu0
      %6128 = vmatprep.mubr.bf16.mxu0 0
      %6129 = vmatmul.mubr.bf16.gmra.mxu0 %v6001
      %v6130 = vpop.f32.mrf.mxu0
      %v6131 = vadd.f32 0.0, %v6130
      %v6132 = vpop.f32.mrf.mxu0
      %v6133 = vpop.f32.mrf.mxu0
      %v6134 = vadd.f32 0.0, %v6133
      %v6135 = vpop.f32.mrf.mxu0
      %6136 = vmatprep.mubr.bf16.mxu0 0
      %6137 = vmatmul.mubr.bf16.gmra.mxu0 %v6002
      %v6138 = vpop.f32.mrf.mxu0
      %v6139 = vadd.f32 0.0, %v6138
      %v6140 = vpop.f32.mrf.mxu0
      %v6141 = vpop.f32.mrf.mxu0
      %v6142 = vadd.f32 0.0, %v6141
      %v6143 = vpop.f32.mrf.mxu0
      %6144 = vmatprep.mubr.bf16.mxu0 0
      %6145 = vmatmul.mubr.bf16.gmra.mxu0 %v6003
      %v6146 = vpop.f32.mrf.mxu0
      %v6147 = vadd.f32 0.0, %v6146
      %v6148 = vpop.f32.mrf.mxu0
      %v6149 = vpop.f32.mrf.mxu0
      %v6150 = vadd.f32 0.0, %v6149
      %v6151 = vpop.f32.mrf.mxu0
      %6152 = vmatprep.mubr.bf16.mxu0 0
      %6153 = vmatmul.mubr.bf16.gmra.mxu0 %v6004
      %v6154 = vpop.f32.mrf.mxu0
      %v6155 = vadd.f32 0.0, %v6154
      %v6156 = vpop.f32.mrf.mxu0
      %v6157 = vpop.f32.mrf.mxu0
      %v6158 = vadd.f32 0.0, %v6157
      %v6159 = vpop.f32.mrf.mxu0
      %6160 = vmatprep.mubr.bf16.mxu0 0
      %6161 = vmatmul.mubr.bf16.gmra.mxu0 %v6005
      %v6162 = vpop.f32.mrf.mxu0
      %v6163 = vadd.f32 0.0, %v6162
      %v6164 = vpop.f32.mrf.mxu0
      %v6165 = vpop.f32.mrf.mxu0
      %v6166 = vadd.f32 0.0, %v6165
      %v6167 = vpop.f32.mrf.mxu0
      %6168 = vmatprep.mubr.bf16.mxu0 0
      %6169 = vmatmul.mubr.bf16.gmra.mxu0 %v6006
      %v6170 = vpop.f32.mrf.mxu0
      %v6171 = vadd.f32 0.0, %v6170
      %v6172 = vpop.f32.mrf.mxu0
      %v6173 = vpop.f32.mrf.mxu0
      %v6174 = vadd.f32 0.0, %v6173
      %v6175 = vpop.f32.mrf.mxu0
      %6176 = vmatprep.mubr.bf16.mxu0 0
      %6177 = vmatmul.mubr.bf16.gmra.mxu0 %v6007
      %v6178 = vpop.f32.mrf.mxu0
      %v6179 = vadd.f32 0.0, %v6178
      %v6180 = vpop.f32.mrf.mxu0
      %v6181 = vpop.f32.mrf.mxu0
      %v6182 = vadd.f32 0.0, %v6181
      %v6183 = vpop.f32.mrf.mxu0
      %6184 = vmatprep.mubr.bf16.mxu0 0
      %6185 = vmatmul.mubr.bf16.gmra.mxu0 %v6008
      %v6186 = vpop.f32.mrf.mxu0
      %v6187 = vadd.f32 0.0, %v6186
      %v6188 = vpop.f32.mrf.mxu0
      %v6189 = vpop.f32.mrf.mxu0
      %v6190 = vadd.f32 0.0, %v6189
      %v6191 = vpop.f32.mrf.mxu0
      %6192 = vmatprep.mubr.bf16.mxu0 0
      %6193 = vmatmul.mubr.bf16.gmra.mxu0 %v6009
      %v6194 = vpop.f32.mrf.mxu0
      %v6195 = vadd.f32 0.0, %v6194
      %v6196 = vpop.f32.mrf.mxu0
      %v6197 = vpop.f32.mrf.mxu0
      %v6198 = vadd.f32 0.0, %v6197
      %v6199 = vpop.f32.mrf.mxu0
      %6200 = vmatprep.mubr.bf16.mxu0 0
      %6201 = vmatmul.mubr.bf16.gmra.mxu0 %v6010
      %v6202 = vpop.f32.mrf.mxu0
      %v6203 = vadd.f32 0.0, %v6202
      %v6204 = vpop.f32.mrf.mxu0
      %v6205 = vpop.f32.mrf.mxu0
      %v6206 = vadd.f32 0.0, %v6205
      %v6207 = vpop.f32.mrf.mxu0
      %6208 = vmatprep.mubr.bf16.mxu0 0
      %6209 = vmatmul.mubr.bf16.gmra.mxu0 %v6011
      %v6210 = vpop.f32.mrf.mxu0
      %v6211 = vadd.f32 0.0, %v6210
      %v6212 = vpop.f32.mrf.mxu0
      %v6213 = vpop.f32.mrf.mxu0
      %v6214 = vadd.f32 0.0, %v6213
      %v6215 = vpop.f32.mrf.mxu0
      %6216 = vmatprep.mubr.bf16.mxu0 0
      %6217 = vmatmul.mubr.bf16.gmra.mxu0 %v6012
      %v6218 = vpop.f32.mrf.mxu0
      %v6219 = vadd.f32 0.0, %v6218
      %v6220 = vpop.f32.mrf.mxu0
      %v6221 = vpop.f32.mrf.mxu0
      %v6222 = vadd.f32 0.0, %v6221
      %v6223 = vpop.f32.mrf.mxu0
      %6224 = vmatprep.mubr.bf16.mxu0 0
      %6225 = vmatmul.mubr.bf16.gmra.mxu0 %v6013
      %v6226 = vpop.f32.mrf.mxu0
      %v6227 = vadd.f32 0.0, %v6226
      %v6228 = vpop.f32.mrf.mxu0
      %v6229 = vpop.f32.mrf.mxu0
      %v6230 = vadd.f32 0.0, %v6229
      %v6231 = vpop.f32.mrf.mxu0
      %6232 = vmatprep.mubr.bf16.mxu0 0
      %6233 = vmatmul.mubr.bf16.gmra.mxu0 %v6014
      %v6234 = vpop.f32.mrf.mxu0
      %v6235 = vadd.f32 0.0, %v6234
      %v6236 = vpop.f32.mrf.mxu0
      %v6237 = vpop.f32.mrf.mxu0
      %v6238 = vadd.f32 0.0, %v6237
      %v6239 = vpop.f32.mrf.mxu0
      %6240 = vdwg.mxu0
      %v6241 = vld [vmem:[#allocation4] sm:$0xff]
      %v6242 = vld [vmem:[#allocation4 + $0x8] sm:$0xff]
      %v6243 = vld [vmem:[#allocation4 + $0x10] sm:$0xff]
      %v6244 = vld [vmem:[#allocation4 + $0x18] sm:$0xff]
      %v6245 = vld [vmem:[#allocation4 + $0x20] sm:$0xff]
      %v6246 = vld [vmem:[#allocation4 + $0x28] sm:$0xff]
      %v6247 = vld [vmem:[#allocation4 + $0x30] sm:$0xff]
      %v6248 = vld [vmem:[#allocation4 + $0x38] sm:$0xff]
      %v6249 = vld [vmem:[#allocation4 + $0x40] sm:$0xff]
      %v6250 = vld [vmem:[#allocation4 + $0x48] sm:$0xff]
      %v6251 = vld [vmem:[#allocation4 + $0x50] sm:$0xff]
      %v6252 = vld [vmem:[#allocation4 + $0x58] sm:$0xff]
      %v6253 = vld [vmem:[#allocation4 + $0x60] sm:$0xff]
      %v6254 = vld [vmem:[#allocation4 + $0x68] sm:$0xff]
      %v6255 = vld [vmem:[#allocation4 + $0x70] sm:$0xff]
      %v6256 = vld [vmem:[#allocation4 + $0x78] sm:$0xff]
      %v6257 = vld [vmem:[#allocation4 + $0x80] sm:$0xff]
      %v6258 = vld [vmem:[#allocation4 + $0x88] sm:$0xff]
      %v6259 = vld [vmem:[#allocation4 + $0x90] sm:$0xff]
      %v6260 = vld [vmem:[#allocation4 + $0x98] sm:$0xff]
      %v6261 = vld [vmem:[#allocation4 + $0xa0] sm:$0xff]
      %v6262 = vld [vmem:[#allocation4 + $0xa8] sm:$0xff]
      %v6263 = vld [vmem:[#allocation4 + $0xb0] sm:$0xff]
      %v6264 = vld [vmem:[#allocation4 + $0xb8] sm:$0xff]
      %v6265 = vld [vmem:[#allocation4 + $0xc0] sm:$0xff]
      %v6266 = vld [vmem:[#allocation4 + $0xc8] sm:$0xff]
      %v6267 = vld [vmem:[#allocation4 + $0xd0] sm:$0xff]
      %v6268 = vld [vmem:[#allocation4 + $0xd8] sm:$0xff]
      %v6269 = vld [vmem:[#allocation4 + $0xe0] sm:$0xff]
      %v6270 = vld [vmem:[#allocation4 + $0xe8] sm:$0xff]
      %v6271 = vld [vmem:[#allocation4 + $0xf0] sm:$0xff]
      %v6272 = vld [vmem:[#allocation4 + $0xf8] sm:$0xff]
      %v6273 = vadd.f32 %v6241, %v6115
      %v6274 = vadd.f32 %v6242, %v6118
      %v6275 = vadd.f32 %v6243, %v6123
      %v6276 = vadd.f32 %v6244, %v6126
      %v6277 = vadd.f32 %v6245, %v6131
      %v6278 = vadd.f32 %v6246, %v6134
      %v6279 = vadd.f32 %v6247, %v6139
      %v6280 = vadd.f32 %v6248, %v6142
      %v6281 = vadd.f32 %v6249, %v6147
      %v6282 = vadd.f32 %v6250, %v6150
      %v6283 = vadd.f32 %v6251, %v6155
      %v6284 = vadd.f32 %v6252, %v6158
      %v6285 = vadd.f32 %v6253, %v6163
      %v6286 = vadd.f32 %v6254, %v6166
      %v6287 = vadd.f32 %v6255, %v6171
      %v6288 = vadd.f32 %v6256, %v6174
      %v6289 = vadd.f32 %v6257, %v6179
      %v6290 = vadd.f32 %v6258, %v6182
      %v6291 = vadd.f32 %v6259, %v6187
      %v6292 = vadd.f32 %v6260, %v6190
      %v6293 = vadd.f32 %v6261, %v6195
      %v6294 = vadd.f32 %v6262, %v6198
      %v6295 = vadd.f32 %v6263, %v6203
      %v6296 = vadd.f32 %v6264, %v6206
      %v6297 = vadd.f32 %v6265, %v6211
      %v6298 = vadd.f32 %v6266, %v6214
      %v6299 = vadd.f32 %v6267, %v6219
      %v6300 = vadd.f32 %v6268, %v6222
      %v6301 = vadd.f32 %v6269, %v6227
      %v6302 = vadd.f32 %v6270, %v6230
      %v6303 = vadd.f32 %v6271, %v6235
      %v6304 = vadd.f32 %v6272, %v6238
      %6305 = vst [vmem:[#allocation4] sm:$0xff] %v6273
      %6306 = vst [vmem:[#allocation4 + $0x8] sm:$0xff] %v6274
      %6307 = vst [vmem:[#allocation4 + $0x10] sm:$0xff] %v6275
      %6308 = vst [vmem:[#allocation4 + $0x18] sm:$0xff] %v6276
      %6309 = vst [vmem:[#allocation4 + $0x20] sm:$0xff] %v6277
      %6310 = vst [vmem:[#allocation4 + $0x28] sm:$0xff] %v6278
      %6311 = vst [vmem:[#allocation4 + $0x30] sm:$0xff] %v6279
      %6312 = vst [vmem:[#allocation4 + $0x38] sm:$0xff] %v6280
      %6313 = vst [vmem:[#allocation4 + $0x40] sm:$0xff] %v6281
      %6314 = vst [vmem:[#allocation4 + $0x48] sm:$0xff] %v6282
      %6315 = vst [vmem:[#allocation4 + $0x50] sm:$0xff] %v6283
      %6316 = vst [vmem:[#allocation4 + $0x58] sm:$0xff] %v6284
      %6317 = vst [vmem:[#allocation4 + $0x60] sm:$0xff] %v6285
      %6318 = vst [vmem:[#allocation4 + $0x68] sm:$0xff] %v6286
      %6319 = vst [vmem:[#allocation4 + $0x70] sm:$0xff] %v6287
      %6320 = vst [vmem:[#allocation4 + $0x78] sm:$0xff] %v6288
      %6321 = vst [vmem:[#allocation4 + $0x80] sm:$0xff] %v6289
      %6322 = vst [vmem:[#allocation4 + $0x88] sm:$0xff] %v6290
      %6323 = vst [vmem:[#allocation4 + $0x90] sm:$0xff] %v6291
      %6324 = vst [vmem:[#allocation4 + $0x98] sm:$0xff] %v6292
      %6325 = vst [vmem:[#allocation4 + $0xa0] sm:$0xff] %v6293
      %6326 = vst [vmem:[#allocation4 + $0xa8] sm:$0xff] %v6294
      %6327 = vst [vmem:[#allocation4 + $0xb0] sm:$0xff] %v6295
      %6328 = vst [vmem:[#allocation4 + $0xb8] sm:$0xff] %v6296
      %6329 = vst [vmem:[#allocation4 + $0xc0] sm:$0xff] %v6297
      %6330 = vst [vmem:[#allocation4 + $0xc8] sm:$0xff] %v6298
      %6331 = vst [vmem:[#allocation4 + $0xd0] sm:$0xff] %v6299
      %6332 = vst [vmem:[#allocation4 + $0xd8] sm:$0xff] %v6300
      %6333 = vst [vmem:[#allocation4 + $0xe0] sm:$0xff] %v6301
      %6334 = vst [vmem:[#allocation4 + $0xe8] sm:$0xff] %v6302
      %6335 = vst [vmem:[#allocation4 + $0xf0] sm:$0xff] %v6303
      %6336 = vst [vmem:[#allocation4 + $0xf8] sm:$0xff] %v6304
      %v6337 = vld [vmem:[%s5966 + $0x1] sm:$0xff]
      %v6338 = vld [vmem:[%s5966 + $0x9] sm:$0xff]
      %v6339 = vld [vmem:[%s5966 + $0x19] sm:$0xff]
      %v6340 = vld [vmem:[%s5966 + $0x21] sm:$0xff]
      %v6341 = vld [vmem:[%s5966 + $0x31] sm:$0xff]
      %v6342 = vld [vmem:[%s5966 + $0x39] sm:$0xff]
      %v6343 = vld [vmem:[%s5966 + $0x49] sm:$0xff]
      %v6344 = vld [vmem:[%s5966 + $0x51] sm:$0xff]
      %v6345 = vld [vmem:[%s5966 + $0x61] sm:$0xff]
      %v6346 = vld [vmem:[%s5966 + $0x69] sm:$0xff]
      %v6347 = vld [vmem:[%s5966 + $0x79] sm:$0xff]
      %v6348 = vld [vmem:[%s5966 + $0x81] sm:$0xff]
      %v6349 = vld [vmem:[%s5966 + $0x91] sm:$0xff]
      %v6350 = vld [vmem:[%s5966 + $0x99] sm:$0xff]
      %v6351 = vld [vmem:[%s5966 + $0xa9] sm:$0xff]
      %v6352 = vld [vmem:[%s5966 + $0xb1] sm:$0xff]
      %v6353 = vld [vmem:[%s5966 + $0xc1] sm:$0xff]
      %v6354 = vld [vmem:[%s5966 + $0xc9] sm:$0xff]
      %v6355 = vld [vmem:[%s5966 + $0xd9] sm:$0xff]
      %v6356 = vld [vmem:[%s5966 + $0xe1] sm:$0xff]
      %v6357 = vld [vmem:[%s5966 + $0xf1] sm:$0xff]
      %v6358 = vld [vmem:[%s5966 + $0xf9] sm:$0xff]
      %v6359 = vld [vmem:[%s5966 + $0x109] sm:$0xff]
      %v6360 = vld [vmem:[%s5966 + $0x111] sm:$0xff]
      %v6361 = vld [vmem:[%s5966 + $0x121] sm:$0xff]
      %v6362 = vld [vmem:[%s5966 + $0x129] sm:$0xff]
      %v6363 = vld [vmem:[%s5966 + $0x139] sm:$0xff]
      %v6364 = vld [vmem:[%s5966 + $0x141] sm:$0xff]
      %v6365 = vld [vmem:[%s5966 + $0x151] sm:$0xff]
      %v6366 = vld [vmem:[%s5966 + $0x159] sm:$0xff]
      %v6367 = vld [vmem:[%s5966 + $0x169] sm:$0xff]
      %v6368 = vld [vmem:[%s5966 + $0x171] sm:$0xff]
      %v6369 = vpack.c.bf16 %v6338, %v6337
      %v6370 = vpack.c.bf16 %v6340, %v6339
      %v6371 = vpack.c.bf16 %v6342, %v6341
      %v6372 = vpack.c.bf16 %v6344, %v6343
      %v6373 = vpack.c.bf16 %v6346, %v6345
      %v6374 = vpack.c.bf16 %v6348, %v6347
      %v6375 = vpack.c.bf16 %v6350, %v6349
      %v6376 = vpack.c.bf16 %v6352, %v6351
      %v6377 = vpack.c.bf16 %v6354, %v6353
      %v6378 = vpack.c.bf16 %v6356, %v6355
      %v6379 = vpack.c.bf16 %v6358, %v6357
      %v6380 = vpack.c.bf16 %v6360, %v6359
      %v6381 = vpack.c.bf16 %v6362, %v6361
      %v6382 = vpack.c.bf16 %v6364, %v6363
      %v6383 = vpack.c.bf16 %v6366, %v6365
      %v6384 = vpack.c.bf16 %v6368, %v6367
      %s6385 = scalar_lea.vmem %s3, 448
      %v6386 = vld [vmem:[%s6385] sm:$0xf]
      %v6387 = vld [vmem:[%s6385 + $0x4] sm:$0xf]
      %v6388 = vld [vmem:[%s6385 + $0x8] sm:$0xf]
      %v6389 = vld [vmem:[%s6385 + $0xc] sm:$0xf]
      %v6390 = vld [vmem:[%s6385 + $0x10] sm:$0xf]
      %v6391 = vld [vmem:[%s6385 + $0x14] sm:$0xf]
      %v6392 = vld [vmem:[%s6385 + $0x18] sm:$0xf]
      %v6393 = vld [vmem:[%s6385 + $0x1c] sm:$0xf]
      %v6394 = vld [vmem:[%s6385 + $0x20] sm:$0xf]
      %v6395 = vld [vmem:[%s6385 + $0x24] sm:$0xf]
      %v6396 = vld [vmem:[%s6385 + $0x28] sm:$0xf]
      %v6397 = vld [vmem:[%s6385 + $0x2c] sm:$0xf]
      %v6398 = vld [vmem:[%s6385 + $0x30] sm:$0xf]
      %v6399 = vld [vmem:[%s6385 + $0x34] sm:$0xf]
      %v6400 = vld [vmem:[%s6385 + $0x38] sm:$0xf]
      %v6401 = vld [vmem:[%s6385 + $0x3c] sm:$0xf]
      %v6418 = vunpack.c.l.b16 %v6386
      %v6419 = vunpack.c.l.b16 %v6387
      %v6420 = vunpack.c.l.b16 %v6388
      %v6421 = vunpack.c.l.b16 %v6389
      %v6422 = vunpack.c.l.b16 %v6390
      %v6423 = vunpack.c.l.b16 %v6391
      %v6424 = vunpack.c.l.b16 %v6392
      %v6425 = vunpack.c.l.b16 %v6393
      %v6426 = vunpack.c.l.b16 %v6394
      %v6427 = vunpack.c.l.b16 %v6395
      %v6428 = vunpack.c.l.b16 %v6396
      %v6429 = vunpack.c.l.b16 %v6397
      %v6430 = vunpack.c.l.b16 %v6398
      %v6431 = vunpack.c.l.b16 %v6399
      %v6432 = vunpack.c.l.b16 %v6400
      %v6433 = vunpack.c.l.b16 %v6401
      %v6434 = vpack.c.b16 %v6419, %v6418
      %v6435 = vpack.c.b16 %v6421, %v6420
      %v6436 = vpack.c.b16 %v6423, %v6422
      %v6437 = vpack.c.b16 %v6425, %v6424
      %v6438 = vpack.c.b16 %v6427, %v6426
      %v6439 = vpack.c.b16 %v6429, %v6428
      %v6440 = vpack.c.b16 %v6431, %v6430
      %v6441 = vpack.c.b16 %v6433, %v6432
      %6450 = vmatprep.subr.bf16.mxu0 0
      %6451 = vmatpush1.bf16.msra.mxu0 %v6441
      %6452 = vmatprep.subr.bf16.mxu0 0
      %6453 = vmatpush1.bf16.msra.mxu0 %v6440
      %6454 = vmatprep.subr.bf16.mxu0 0
      %6455 = vmatpush1.bf16.msra.mxu0 %v6439
      %6456 = vmatprep.subr.bf16.mxu0 0
      %6457 = vmatpush1.bf16.msra.mxu0 %v6438
      %6458 = vmatprep.subr.bf16.mxu0 0
      %6459 = vmatpush1.bf16.msra.mxu0 %v6437
      %6460 = vmatprep.subr.bf16.mxu0 0
      %6461 = vmatpush1.bf16.msra.mxu0 %v6436
      %6462 = vmatprep.subr.bf16.mxu0 0
      %6463 = vmatpush1.bf16.msra.mxu0 %v6435
      %6464 = vmatprep.subr.bf16.mxu0 0
      %6465 = vmatpush1.bf16.msra.mxu0 %v6434
      %6466 = vmatprep.subr.bf16.mxu0 0
      %6467 = vmatpush2.bf16.msra.mxu0 0
      %6468 = vmatprep.subr.bf16.mxu0 0
      %6469 = vmatpush2.bf16.msra.mxu0 0
      %6470 = vmatprep.subr.bf16.mxu0 0
      %6471 = vmatpush2.bf16.msra.mxu0 0
      %6472 = vmatprep.subr.bf16.mxu0 0
      %6473 = vmatpush2.bf16.msra.mxu0 0
      %6474 = vmatprep.subr.bf16.mxu0 0
      %6475 = vmatpush2.bf16.msra.mxu0 0
      %6476 = vmatprep.subr.bf16.mxu0 0
      %6477 = vmatpush2.bf16.msra.mxu0 0
      %6478 = vmatprep.subr.bf16.mxu0 0
      %6479 = vmatpush2.bf16.msra.mxu0 0
      %6480 = vmatprep.subr.bf16.mxu0 0
      %6481 = vmatpush2.bf16.msra.mxu0 0
      %6482 = vmatprep.mubr.bf16.mxu0 0
      %6483 = vmatmul.mubr.bf16.gmra.mxu0 %v6369
      %v6484 = vpop.f32.mrf.mxu0
      %v6485 = vadd.f32 0.0, %v6484
      %v6486 = vpop.f32.mrf.mxu0
      %v6487 = vpop.f32.mrf.mxu0
      %v6488 = vadd.f32 0.0, %v6487
      %v6489 = vpop.f32.mrf.mxu0
      %6490 = vmatprep.mubr.bf16.mxu0 0
      %6491 = vmatmul.mubr.bf16.gmra.mxu0 %v6370
      %v6492 = vpop.f32.mrf.mxu0
      %v6493 = vadd.f32 0.0, %v6492
      %v6494 = vpop.f32.mrf.mxu0
      %v6495 = vpop.f32.mrf.mxu0
      %v6496 = vadd.f32 0.0, %v6495
      %v6497 = vpop.f32.mrf.mxu0
      %6498 = vmatprep.mubr.bf16.mxu0 0
      %6499 = vmatmul.mubr.bf16.gmra.mxu0 %v6371
      %v6500 = vpop.f32.mrf.mxu0
      %v6501 = vadd.f32 0.0, %v6500
      %v6502 = vpop.f32.mrf.mxu0
      %v6503 = vpop.f32.mrf.mxu0
      %v6504 = vadd.f32 0.0, %v6503
      %v6505 = vpop.f32.mrf.mxu0
      %6506 = vmatprep.mubr.bf16.mxu0 0
      %6507 = vmatmul.mubr.bf16.gmra.mxu0 %v6372
      %v6508 = vpop.f32.mrf.mxu0
      %v6509 = vadd.f32 0.0, %v6508
      %v6510 = vpop.f32.mrf.mxu0
      %v6511 = vpop.f32.mrf.mxu0
      %v6512 = vadd.f32 0.0, %v6511
      %v6513 = vpop.f32.mrf.mxu0
      %6514 = vmatprep.mubr.bf16.mxu0 0
      %6515 = vmatmul.mubr.bf16.gmra.mxu0 %v6373
      %v6516 = vpop.f32.mrf.mxu0
      %v6517 = vadd.f32 0.0, %v6516
      %v6518 = vpop.f32.mrf.mxu0
      %v6519 = vpop.f32.mrf.mxu0
      %v6520 = vadd.f32 0.0, %v6519
      %v6521 = vpop.f32.mrf.mxu0
      %6522 = vmatprep.mubr.bf16.mxu0 0
      %6523 = vmatmul.mubr.bf16.gmra.mxu0 %v6374
      %v6524 = vpop.f32.mrf.mxu0
      %v6525 = vadd.f32 0.0, %v6524
      %v6526 = vpop.f32.mrf.mxu0
      %v6527 = vpop.f32.mrf.mxu0
      %v6528 = vadd.f32 0.0, %v6527
      %v6529 = vpop.f32.mrf.mxu0
      %6530 = vmatprep.mubr.bf16.mxu0 0
      %6531 = vmatmul.mubr.bf16.gmra.mxu0 %v6375
      %v6532 = vpop.f32.mrf.mxu0
      %v6533 = vadd.f32 0.0, %v6532
      %v6534 = vpop.f32.mrf.mxu0
      %v6535 = vpop.f32.mrf.mxu0
      %v6536 = vadd.f32 0.0, %v6535
      %v6537 = vpop.f32.mrf.mxu0
      %6538 = vmatprep.mubr.bf16.mxu0 0
      %6539 = vmatmul.mubr.bf16.gmra.mxu0 %v6376
      %v6540 = vpop.f32.mrf.mxu0
      %v6541 = vadd.f32 0.0, %v6540
      %v6542 = vpop.f32.mrf.mxu0
      %v6543 = vpop.f32.mrf.mxu0
      %v6544 = vadd.f32 0.0, %v6543
      %v6545 = vpop.f32.mrf.mxu0
      %6546 = vmatprep.mubr.bf16.mxu0 0
      %6547 = vmatmul.mubr.bf16.gmra.mxu0 %v6377
      %v6548 = vpop.f32.mrf.mxu0
      %v6549 = vadd.f32 0.0, %v6548
      %v6550 = vpop.f32.mrf.mxu0
      %v6551 = vpop.f32.mrf.mxu0
      %v6552 = vadd.f32 0.0, %v6551
      %v6553 = vpop.f32.mrf.mxu0
      %6554 = vmatprep.mubr.bf16.mxu0 0
      %6555 = vmatmul.mubr.bf16.gmra.mxu0 %v6378
      %v6556 = vpop.f32.mrf.mxu0
      %v6557 = vadd.f32 0.0, %v6556
      %v6558 = vpop.f32.mrf.mxu0
      %v6559 = vpop.f32.mrf.mxu0
      %v6560 = vadd.f32 0.0, %v6559
      %v6561 = vpop.f32.mrf.mxu0
      %6562 = vmatprep.mubr.bf16.mxu0 0
      %6563 = vmatmul.mubr.bf16.gmra.mxu0 %v6379
      %v6564 = vpop.f32.mrf.mxu0
      %v6565 = vadd.f32 0.0, %v6564
      %v6566 = vpop.f32.mrf.mxu0
      %v6567 = vpop.f32.mrf.mxu0
      %v6568 = vadd.f32 0.0, %v6567
      %v6569 = vpop.f32.mrf.mxu0
      %6570 = vmatprep.mubr.bf16.mxu0 0
      %6571 = vmatmul.mubr.bf16.gmra.mxu0 %v6380
      %v6572 = vpop.f32.mrf.mxu0
      %v6573 = vadd.f32 0.0, %v6572
      %v6574 = vpop.f32.mrf.mxu0
      %v6575 = vpop.f32.mrf.mxu0
      %v6576 = vadd.f32 0.0, %v6575
      %v6577 = vpop.f32.mrf.mxu0
      %6578 = vmatprep.mubr.bf16.mxu0 0
      %6579 = vmatmul.mubr.bf16.gmra.mxu0 %v6381
      %v6580 = vpop.f32.mrf.mxu0
      %v6581 = vadd.f32 0.0, %v6580
      %v6582 = vpop.f32.mrf.mxu0
      %v6583 = vpop.f32.mrf.mxu0
      %v6584 = vadd.f32 0.0, %v6583
      %v6585 = vpop.f32.mrf.mxu0
      %6586 = vmatprep.mubr.bf16.mxu0 0
      %6587 = vmatmul.mubr.bf16.gmra.mxu0 %v6382
      %v6588 = vpop.f32.mrf.mxu0
      %v6589 = vadd.f32 0.0, %v6588
      %v6590 = vpop.f32.mrf.mxu0
      %v6591 = vpop.f32.mrf.mxu0
      %v6592 = vadd.f32 0.0, %v6591
      %v6593 = vpop.f32.mrf.mxu0
      %6594 = vmatprep.mubr.bf16.mxu0 0
      %6595 = vmatmul.mubr.bf16.gmra.mxu0 %v6383
      %v6596 = vpop.f32.mrf.mxu0
      %v6597 = vadd.f32 0.0, %v6596
      %v6598 = vpop.f32.mrf.mxu0
      %v6599 = vpop.f32.mrf.mxu0
      %v6600 = vadd.f32 0.0, %v6599
      %v6601 = vpop.f32.mrf.mxu0
      %6602 = vmatprep.mubr.bf16.mxu0 0
      %6603 = vmatmul.mubr.bf16.gmra.mxu0 %v6384
      %v6604 = vpop.f32.mrf.mxu0
      %v6605 = vadd.f32 0.0, %v6604
      %v6606 = vpop.f32.mrf.mxu0
      %v6607 = vpop.f32.mrf.mxu0
      %v6608 = vadd.f32 0.0, %v6607
      %v6609 = vpop.f32.mrf.mxu0
      %6610 = vdwg.mxu0
      %v6611 = vld [vmem:[#allocation4] sm:$0xff]
      %v6612 = vld [vmem:[#allocation4 + $0x8] sm:$0xff]
      %v6613 = vld [vmem:[#allocation4 + $0x10] sm:$0xff]
      %v6614 = vld [vmem:[#allocation4 + $0x18] sm:$0xff]
      %v6615 = vld [vmem:[#allocation4 + $0x20] sm:$0xff]
      %v6616 = vld [vmem:[#allocation4 + $0x28] sm:$0xff]
      %v6617 = vld [vmem:[#allocation4 + $0x30] sm:$0xff]
      %v6618 = vld [vmem:[#allocation4 + $0x38] sm:$0xff]
      %v6619 = vld [vmem:[#allocation4 + $0x40] sm:$0xff]
      %v6620 = vld [vmem:[#allocation4 + $0x48] sm:$0xff]
      %v6621 = vld [vmem:[#allocation4 + $0x50] sm:$0xff]
      %v6622 = vld [vmem:[#allocation4 + $0x58] sm:$0xff]
      %v6623 = vld [vmem:[#allocation4 + $0x60] sm:$0xff]
      %v6624 = vld [vmem:[#allocation4 + $0x68] sm:$0xff]
      %v6625 = vld [vmem:[#allocation4 + $0x70] sm:$0xff]
      %v6626 = vld [vmem:[#allocation4 + $0x78] sm:$0xff]
      %v6627 = vld [vmem:[#allocation4 + $0x80] sm:$0xff]
      %v6628 = vld [vmem:[#allocation4 + $0x88] sm:$0xff]
      %v6629 = vld [vmem:[#allocation4 + $0x90] sm:$0xff]
      %v6630 = vld [vmem:[#allocation4 + $0x98] sm:$0xff]
      %v6631 = vld [vmem:[#allocation4 + $0xa0] sm:$0xff]
      %v6632 = vld [vmem:[#allocation4 + $0xa8] sm:$0xff]
      %v6633 = vld [vmem:[#allocation4 + $0xb0] sm:$0xff]
      %v6634 = vld [vmem:[#allocation4 + $0xb8] sm:$0xff]
      %v6635 = vld [vmem:[#allocation4 + $0xc0] sm:$0xff]
      %v6636 = vld [vmem:[#allocation4 + $0xc8] sm:$0xff]
      %v6637 = vld [vmem:[#allocation4 + $0xd0] sm:$0xff]
      %v6638 = vld [vmem:[#allocation4 + $0xd8] sm:$0xff]
      %v6639 = vld [vmem:[#allocation4 + $0xe0] sm:$0xff]
      %v6640 = vld [vmem:[#allocation4 + $0xe8] sm:$0xff]
      %v6641 = vld [vmem:[#allocation4 + $0xf0] sm:$0xff]
      %v6642 = vld [vmem:[#allocation4 + $0xf8] sm:$0xff]
      %v6643 = vadd.f32 %v6611, %v6485
      %v6644 = vadd.f32 %v6612, %v6488
      %v6645 = vadd.f32 %v6613, %v6493
      %v6646 = vadd.f32 %v6614, %v6496
      %v6647 = vadd.f32 %v6615, %v6501
      %v6648 = vadd.f32 %v6616, %v6504
      %v6649 = vadd.f32 %v6617, %v6509
      %v6650 = vadd.f32 %v6618, %v6512
      %v6651 = vadd.f32 %v6619, %v6517
      %v6652 = vadd.f32 %v6620, %v6520
      %v6653 = vadd.f32 %v6621, %v6525
      %v6654 = vadd.f32 %v6622, %v6528
      %v6655 = vadd.f32 %v6623, %v6533
      %v6656 = vadd.f32 %v6624, %v6536
      %v6657 = vadd.f32 %v6625, %v6541
      %v6658 = vadd.f32 %v6626, %v6544
      %v6659 = vadd.f32 %v6627, %v6549
      %v6660 = vadd.f32 %v6628, %v6552
      %v6661 = vadd.f32 %v6629, %v6557
      %v6662 = vadd.f32 %v6630, %v6560
      %v6663 = vadd.f32 %v6631, %v6565
      %v6664 = vadd.f32 %v6632, %v6568
      %v6665 = vadd.f32 %v6633, %v6573
      %v6666 = vadd.f32 %v6634, %v6576
      %v6667 = vadd.f32 %v6635, %v6581
      %v6668 = vadd.f32 %v6636, %v6584
      %v6669 = vadd.f32 %v6637, %v6589
      %v6670 = vadd.f32 %v6638, %v6592
      %v6671 = vadd.f32 %v6639, %v6597
      %v6672 = vadd.f32 %v6640, %v6600
      %v6673 = vadd.f32 %v6641, %v6605
      %v6674 = vadd.f32 %v6642, %v6608
      %6675 = vst [vmem:[#allocation4] sm:$0xff] %v6643
      %6676 = vst [vmem:[#allocation4 + $0x8] sm:$0xff] %v6644
      %6677 = vst [vmem:[#allocation4 + $0x10] sm:$0xff] %v6645
      %6678 = vst [vmem:[#allocation4 + $0x18] sm:$0xff] %v6646
      %6679 = vst [vmem:[#allocation4 + $0x20] sm:$0xff] %v6647
      %6680 = vst [vmem:[#allocation4 + $0x28] sm:$0xff] %v6648
      %6681 = vst [vmem:[#allocation4 + $0x30] sm:$0xff] %v6649
      %6682 = vst [vmem:[#allocation4 + $0x38] sm:$0xff] %v6650
      %6683 = vst [vmem:[#allocation4 + $0x40] sm:$0xff] %v6651
      %6684 = vst [vmem:[#allocation4 + $0x48] sm:$0xff] %v6652
      %6685 = vst [vmem:[#allocation4 + $0x50] sm:$0xff] %v6653
      %6686 = vst [vmem:[#allocation4 + $0x58] sm:$0xff] %v6654
      %6687 = vst [vmem:[#allocation4 + $0x60] sm:$0xff] %v6655
      %6688 = vst [vmem:[#allocation4 + $0x68] sm:$0xff] %v6656
      %6689 = vst [vmem:[#allocation4 + $0x70] sm:$0xff] %v6657
      %6690 = vst [vmem:[#allocation4 + $0x78] sm:$0xff] %v6658
      %6691 = vst [vmem:[#allocation4 + $0x80] sm:$0xff] %v6659
      %6692 = vst [vmem:[#allocation4 + $0x88] sm:$0xff] %v6660
      %6693 = vst [vmem:[#allocation4 + $0x90] sm:$0xff] %v6661
      %6694 = vst [vmem:[#allocation4 + $0x98] sm:$0xff] %v6662
      %6695 = vst [vmem:[#allocation4 + $0xa0] sm:$0xff] %v6663
      %6696 = vst [vmem:[#allocation4 + $0xa8] sm:$0xff] %v6664
      %6697 = vst [vmem:[#allocation4 + $0xb0] sm:$0xff] %v6665
      %6698 = vst [vmem:[#allocation4 + $0xb8] sm:$0xff] %v6666
      %6699 = vst [vmem:[#allocation4 + $0xc0] sm:$0xff] %v6667
      %6700 = vst [vmem:[#allocation4 + $0xc8] sm:$0xff] %v6668
      %6701 = vst [vmem:[#allocation4 + $0xd0] sm:$0xff] %v6669
      %6702 = vst [vmem:[#allocation4 + $0xd8] sm:$0xff] %v6670
      %6703 = vst [vmem:[#allocation4 + $0xe0] sm:$0xff] %v6671
      %6704 = vst [vmem:[#allocation4 + $0xe8] sm:$0xff] %v6672
      %6705 = vst [vmem:[#allocation4 + $0xf0] sm:$0xff] %v6673
      %6706 = vst [vmem:[#allocation4 + $0xf8] sm:$0xff] %v6674
      %v6707 = vld [vmem:[%s5966 + $0x2] sm:$0xff]
      %v6708 = vld [vmem:[%s5966 + $0xa] sm:$0xff]
      %v6709 = vld [vmem:[%s5966 + $0x1a] sm:$0xff]
      %v6710 = vld [vmem:[%s5966 + $0x22] sm:$0xff]
      %v6711 = vld [vmem:[%s5966 + $0x32] sm:$0xff]
      %v6712 = vld [vmem:[%s5966 + $0x3a] sm:$0xff]
      %v6713 = vld [vmem:[%s5966 + $0x4a] sm:$0xff]
      %v6714 = vld [vmem:[%s5966 + $0x52] sm:$0xff]
      %v6715 = vld [vmem:[%s5966 + $0x62] sm:$0xff]
      %v6716 = vld [vmem:[%s5966 + $0x6a] sm:$0xff]
      %v6717 = vld [vmem:[%s5966 + $0x7a] sm:$0xff]
      %v6718 = vld [vmem:[%s5966 + $0x82] sm:$0xff]
      %v6719 = vld [vmem:[%s5966 + $0x92] sm:$0xff]
      %v6720 = vld [vmem:[%s5966 + $0x9a] sm:$0xff]
      %v6721 = vld [vmem:[%s5966 + $0xaa] sm:$0xff]
      %v6722 = vld [vmem:[%s5966 + $0xb2] sm:$0xff]
      %v6723 = vld [vmem:[%s5966 + $0xc2] sm:$0xff]
      %v6724 = vld [vmem:[%s5966 + $0xca] sm:$0xff]
      %v6725 = vld [vmem:[%s5966 + $0xda] sm:$0xff]
      %v6726 = vld [vmem:[%s5966 + $0xe2] sm:$0xff]
      %v6727 = vld [vmem:[%s5966 + $0xf2] sm:$0xff]
      %v6728 = vld [vmem:[%s5966 + $0xfa] sm:$0xff]
      %v6729 = vld [vmem:[%s5966 + $0x10a] sm:$0xff]
      %v6730 = vld [vmem:[%s5966 + $0x112] sm:$0xff]
      %v6731 = vld [vmem:[%s5966 + $0x122] sm:$0xff]
      %v6732 = vld [vmem:[%s5966 + $0x12a] sm:$0xff]
      %v6733 = vld [vmem:[%s5966 + $0x13a] sm:$0xff]
      %v6734 = vld [vmem:[%s5966 + $0x142] sm:$0xff]
      %v6735 = vld [vmem:[%s5966 + $0x152] sm:$0xff]
      %v6736 = vld [vmem:[%s5966 + $0x15a] sm:$0xff]
      %v6737 = vld [vmem:[%s5966 + $0x16a] sm:$0xff]
      %v6738 = vld [vmem:[%s5966 + $0x172] sm:$0xff]
      %v6739 = vpack.c.bf16 %v6708, %v6707
      %v6740 = vpack.c.bf16 %v6710, %v6709
      %v6741 = vpack.c.bf16 %v6712, %v6711
      %v6742 = vpack.c.bf16 %v6714, %v6713
      %v6743 = vpack.c.bf16 %v6716, %v6715
      %v6744 = vpack.c.bf16 %v6718, %v6717
      %v6745 = vpack.c.bf16 %v6720, %v6719
      %v6746 = vpack.c.bf16 %v6722, %v6721
      %v6747 = vpack.c.bf16 %v6724, %v6723
      %v6748 = vpack.c.bf16 %v6726, %v6725
      %v6749 = vpack.c.bf16 %v6728, %v6727
      %v6750 = vpack.c.bf16 %v6730, %v6729
      %v6751 = vpack.c.bf16 %v6732, %v6731
      %v6752 = vpack.c.bf16 %v6734, %v6733
      %v6753 = vpack.c.bf16 %v6736, %v6735
      %v6754 = vpack.c.bf16 %v6738, %v6737
      %s6755 = scalar_lea.vmem %s3, 512
      %v6756 = vld [vmem:[%s6755] sm:$0xf]
      %v6757 = vld [vmem:[%s6755 + $0x4] sm:$0xf]
      %v6758 = vld [vmem:[%s6755 + $0x8] sm:$0xf]
      %v6759 = vld [vmem:[%s6755 + $0xc] sm:$0xf]
      %v6760 = vld [vmem:[%s6755 + $0x10] sm:$0xf]
      %v6761 = vld [vmem:[%s6755 + $0x14] sm:$0xf]
      %v6762 = vld [vmem:[%s6755 + $0x18] sm:$0xf]
      %v6763 = vld [vmem:[%s6755 + $0x1c] sm:$0xf]
      %v6764 = vld [vmem:[%s6755 + $0x20] sm:$0xf]
      %v6765 = vld [vmem:[%s6755 + $0x24] sm:$0xf]
      %v6766 = vld [vmem:[%s6755 + $0x28] sm:$0xf]
      %v6767 = vld [vmem:[%s6755 + $0x2c] sm:$0xf]
      %v6768 = vld [vmem:[%s6755 + $0x30] sm:$0xf]
      %v6769 = vld [vmem:[%s6755 + $0x34] sm:$0xf]
      %v6770 = vld [vmem:[%s6755 + $0x38] sm:$0xf]
      %v6771 = vld [vmem:[%s6755 + $0x3c] sm:$0xf]
      %v6788 = vunpack.c.l.b16 %v6756
      %v6789 = vunpack.c.l.b16 %v6757
      %v6790 = vunpack.c.l.b16 %v6758
      %v6791 = vunpack.c.l.b16 %v6759
      %v6792 = vunpack.c.l.b16 %v6760
      %v6793 = vunpack.c.l.b16 %v6761
      %v6794 = vunpack.c.l.b16 %v6762
      %v6795 = vunpack.c.l.b16 %v6763
      %v6796 = vunpack.c.l.b16 %v6764
      %v6797 = vunpack.c.l.b16 %v6765
      %v6798 = vunpack.c.l.b16 %v6766
      %v6799 = vunpack.c.l.b16 %v6767
      %v6800 = vunpack.c.l.b16 %v6768
      %v6801 = vunpack.c.l.b16 %v6769
      %v6802 = vunpack.c.l.b16 %v6770
      %v6803 = vunpack.c.l.b16 %v6771
      %v6804 = vpack.c.b16 %v6789, %v6788
      %v6805 = vpack.c.b16 %v6791, %v6790
      %v6806 = vpack.c.b16 %v6793, %v6792
      %v6807 = vpack.c.b16 %v6795, %v6794
      %v6808 = vpack.c.b16 %v6797, %v6796
      %v6809 = vpack.c.b16 %v6799, %v6798
      %v6810 = vpack.c.b16 %v6801, %v6800
      %v6811 = vpack.c.b16 %v6803, %v6802
      %6820 = vmatprep.subr.bf16.mxu0 0
      %6821 = vmatpush1.bf16.msra.mxu0 %v6811
      %6822 = vmatprep.subr.bf16.mxu0 0
      %6823 = vmatpush1.bf16.msra.mxu0 %v6810
      %6824 = vmatprep.subr.bf16.mxu0 0
      %6825 = vmatpush1.bf16.msra.mxu0 %v6809
      %6826 = vmatprep.subr.bf16.mxu0 0
      %6827 = vmatpush1.bf16.msra.mxu0 %v6808
      %6828 = vmatprep.subr.bf16.mxu0 0
      %6829 = vmatpush1.bf16.msra.mxu0 %v6807
      %6830 = vmatprep.subr.bf16.mxu0 0
      %6831 = vmatpush1.bf16.msra.mxu0 %v6806
      %6832 = vmatprep.subr.bf16.mxu0 0
      %6833 = vmatpush1.bf16.msra.mxu0 %v6805
      %6834 = vmatprep.subr.bf16.mxu0 0
      %6835 = vmatpush1.bf16.msra.mxu0 %v6804
      %6836 = vmatprep.subr.bf16.mxu0 0
      %6837 = vmatpush2.bf16.msra.mxu0 0
      %6838 = vmatprep.subr.bf16.mxu0 0
      %6839 = vmatpush2.bf16.msra.mxu0 0
      %6840 = vmatprep.subr.bf16.mxu0 0
      %6841 = vmatpush2.bf16.msra.mxu0 0
      %6842 = vmatprep.subr.bf16.mxu0 0
      %6843 = vmatpush2.bf16.msra.mxu0 0
      %6844 = vmatprep.subr.bf16.mxu0 0
      %6845 = vmatpush2.bf16.msra.mxu0 0
      %6846 = vmatprep.subr.bf16.mxu0 0
      %6847 = vmatpush2.bf16.msra.mxu0 0
      %6848 = vmatprep.subr.bf16.mxu0 0
      %6849 = vmatpush2.bf16.msra.mxu0 0
      %6850 = vmatprep.subr.bf16.mxu0 0
      %6851 = vmatpush2.bf16.msra.mxu0 0
      %6852 = vmatprep.mubr.bf16.mxu0 0
      %6853 = vmatmul.mubr.bf16.gmra.mxu0 %v6739
      %v6854 = vpop.f32.mrf.mxu0
      %v6855 = vadd.f32 0.0, %v6854
      %v6856 = vpop.f32.mrf.mxu0
      %v6857 = vpop.f32.mrf.mxu0
      %v6858 = vadd.f32 0.0, %v6857
      %v6859 = vpop.f32.mrf.mxu0
      %6860 = vmatprep.mubr.bf16.mxu0 0
      %6861 = vmatmul.mubr.bf16.gmra.mxu0 %v6740
      %v6862 = vpop.f32.mrf.mxu0
      %v6863 = vadd.f32 0.0, %v6862
      %v6864 = vpop.f32.mrf.mxu0
      %v6865 = vpop.f32.mrf.mxu0
      %v6866 = vadd.f32 0.0, %v6865
      %v6867 = vpop.f32.mrf.mxu0
      %6868 = vmatprep.mubr.bf16.mxu0 0
      %6869 = vmatmul.mubr.bf16.gmra.mxu0 %v6741
      %v6870 = vpop.f32.mrf.mxu0
      %v6871 = vadd.f32 0.0, %v6870
      %v6872 = vpop.f32.mrf.mxu0
      %v6873 = vpop.f32.mrf.mxu0
      %v6874 = vadd.f32 0.0, %v6873
      %v6875 = vpop.f32.mrf.mxu0
      %6876 = vmatprep.mubr.bf16.mxu0 0
      %6877 = vmatmul.mubr.bf16.gmra.mxu0 %v6742
      %v6878 = vpop.f32.mrf.mxu0
      %v6879 = vadd.f32 0.0, %v6878
      %v6880 = vpop.f32.mrf.mxu0
      %v6881 = vpop.f32.mrf.mxu0
      %v6882 = vadd.f32 0.0, %v6881
      %v6883 = vpop.f32.mrf.mxu0
      %6884 = vmatprep.mubr.bf16.mxu0 0
      %6885 = vmatmul.mubr.bf16.gmra.mxu0 %v6743
      %v6886 = vpop.f32.mrf.mxu0
      %v6887 = vadd.f32 0.0, %v6886
      %v6888 = vpop.f32.mrf.mxu0
      %v6889 = vpop.f32.mrf.mxu0
      %v6890 = vadd.f32 0.0, %v6889
      %v6891 = vpop.f32.mrf.mxu0
      %6892 = vmatprep.mubr.bf16.mxu0 0
      %6893 = vmatmul.mubr.bf16.gmra.mxu0 %v6744
      %v6894 = vpop.f32.mrf.mxu0
      %v6895 = vadd.f32 0.0, %v6894
      %v6896 = vpop.f32.mrf.mxu0
      %v6897 = vpop.f32.mrf.mxu0
      %v6898 = vadd.f32 0.0, %v6897
      %v6899 = vpop.f32.mrf.mxu0
      %6900 = vmatprep.mubr.bf16.mxu0 0
      %6901 = vmatmul.mubr.bf16.gmra.mxu0 %v6745
      %v6902 = vpop.f32.mrf.mxu0
      %v6903 = vadd.f32 0.0, %v6902
      %v6904 = vpop.f32.mrf.mxu0
      %v6905 = vpop.f32.mrf.mxu0
      %v6906 = vadd.f32 0.0, %v6905
      %v6907 = vpop.f32.mrf.mxu0
      %6908 = vmatprep.mubr.bf16.mxu0 0
      %6909 = vmatmul.mubr.bf16.gmra.mxu0 %v6746
      %v6910 = vpop.f32.mrf.mxu0
      %v6911 = vadd.f32 0.0, %v6910
      %v6912 = vpop.f32.mrf.mxu0
      %v6913 = vpop.f32.mrf.mxu0
      %v6914 = vadd.f32 0.0, %v6913
      %v6915 = vpop.f32.mrf.mxu0
      %6916 = vmatprep.mubr.bf16.mxu0 0
      %6917 = vmatmul.mubr.bf16.gmra.mxu0 %v6747
      %v6918 = vpop.f32.mrf.mxu0
      %v6919 = vadd.f32 0.0, %v6918
      %v6920 = vpop.f32.mrf.mxu0
      %v6921 = vpop.f32.mrf.mxu0
      %v6922 = vadd.f32 0.0, %v6921
      %v6923 = vpop.f32.mrf.mxu0
      %6924 = vmatprep.mubr.bf16.mxu0 0
      %6925 = vmatmul.mubr.bf16.gmra.mxu0 %v6748
      %v6926 = vpop.f32.mrf.mxu0
      %v6927 = vadd.f32 0.0, %v6926
      %v6928 = vpop.f32.mrf.mxu0
      %v6929 = vpop.f32.mrf.mxu0
      %v6930 = vadd.f32 0.0, %v6929
      %v6931 = vpop.f32.mrf.mxu0
      %6932 = vmatprep.mubr.bf16.mxu0 0
      %6933 = vmatmul.mubr.bf16.gmra.mxu0 %v6749
      %v6934 = vpop.f32.mrf.mxu0
      %v6935 = vadd.f32 0.0, %v6934
      %v6936 = vpop.f32.mrf.mxu0
      %v6937 = vpop.f32.mrf.mxu0
      %v6938 = vadd.f32 0.0, %v6937
      %v6939 = vpop.f32.mrf.mxu0
      %6940 = vmatprep.mubr.bf16.mxu0 0
      %6941 = vmatmul.mubr.bf16.gmra.mxu0 %v6750
      %v6942 = vpop.f32.mrf.mxu0
      %v6943 = vadd.f32 0.0, %v6942
      %v6944 = vpop.f32.mrf.mxu0
      %v6945 = vpop.f32.mrf.mxu0
      %v6946 = vadd.f32 0.0, %v6945
      %v6947 = vpop.f32.mrf.mxu0
      %6948 = vmatprep.mubr.bf16.mxu0 0
      %6949 = vmatmul.mubr.bf16.gmra.mxu0 %v6751
      %v6950 = vpop.f32.mrf.mxu0
      %v6951 = vadd.f32 0.0, %v6950
      %v6952 = vpop.f32.mrf.mxu0
      %v6953 = vpop.f32.mrf.mxu0
      %v6954 = vadd.f32 0.0, %v6953
      %v6955 = vpop.f32.mrf.mxu0
      %6956 = vmatprep.mubr.bf16.mxu0 0
      %6957 = vmatmul.mubr.bf16.gmra.mxu0 %v6752
      %v6958 = vpop.f32.mrf.mxu0
      %v6959 = vadd.f32 0.0, %v6958
      %v6960 = vpop.f32.mrf.mxu0
      %v6961 = vpop.f32.mrf.mxu0
      %v6962 = vadd.f32 0.0, %v6961
      %v6963 = vpop.f32.mrf.mxu0
      %6964 = vmatprep.mubr.bf16.mxu0 0
      %6965 = vmatmul.mubr.bf16.gmra.mxu0 %v6753
      %v6966 = vpop.f32.mrf.mxu0
      %v6967 = vadd.f32 0.0, %v6966
      %v6968 = vpop.f32.mrf.mxu0
      %v6969 = vpop.f32.mrf.mxu0
      %v6970 = vadd.f32 0.0, %v6969
      %v6971 = vpop.f32.mrf.mxu0
      %6972 = vmatprep.mubr.bf16.mxu0 0
      %6973 = vmatmul.mubr.bf16.gmra.mxu0 %v6754
      %v6974 = vpop.f32.mrf.mxu0
      %v6975 = vadd.f32 0.0, %v6974
      %v6976 = vpop.f32.mrf.mxu0
      %v6977 = vpop.f32.mrf.mxu0
      %v6978 = vadd.f32 0.0, %v6977
      %v6979 = vpop.f32.mrf.mxu0
      %6980 = vdwg.mxu0
      %v6981 = vld [vmem:[#allocation4] sm:$0xff]
      %v6982 = vld [vmem:[#allocation4 + $0x8] sm:$0xff]
      %v6983 = vld [vmem:[#allocation4 + $0x10] sm:$0xff]
      %v6984 = vld [vmem:[#allocation4 + $0x18] sm:$0xff]
      %v6985 = vld [vmem:[#allocation4 + $0x20] sm:$0xff]
      %v6986 = vld [vmem:[#allocation4 + $0x28] sm:$0xff]
      %v6987 = vld [vmem:[#allocation4 + $0x30] sm:$0xff]
      %v6988 = vld [vmem:[#allocation4 + $0x38] sm:$0xff]
      %v6989 = vld [vmem:[#allocation4 + $0x40] sm:$0xff]
      %v6990 = vld [vmem:[#allocation4 + $0x48] sm:$0xff]
      %v6991 = vld [vmem:[#allocation4 + $0x50] sm:$0xff]
      %v6992 = vld [vmem:[#allocation4 + $0x58] sm:$0xff]
      %v6993 = vld [vmem:[#allocation4 + $0x60] sm:$0xff]
      %v6994 = vld [vmem:[#allocation4 + $0x68] sm:$0xff]
      %v6995 = vld [vmem:[#allocation4 + $0x70] sm:$0xff]
      %v6996 = vld [vmem:[#allocation4 + $0x78] sm:$0xff]
      %v6997 = vld [vmem:[#allocation4 + $0x80] sm:$0xff]
      %v6998 = vld [vmem:[#allocation4 + $0x88] sm:$0xff]
      %v6999 = vld [vmem:[#allocation4 + $0x90] sm:$0xff]
      %v7000 = vld [vmem:[#allocation4 + $0x98] sm:$0xff]
      %v7001 = vld [vmem:[#allocation4 + $0xa0] sm:$0xff]
      %v7002 = vld [vmem:[#allocation4 + $0xa8] sm:$0xff]
      %v7003 = vld [vmem:[#allocation4 + $0xb0] sm:$0xff]
      %v7004 = vld [vmem:[#allocation4 + $0xb8] sm:$0xff]
      %v7005 = vld [vmem:[#allocation4 + $0xc0] sm:$0xff]
      %v7006 = vld [vmem:[#allocation4 + $0xc8] sm:$0xff]
      %v7007 = vld [vmem:[#allocation4 + $0xd0] sm:$0xff]
      %v7008 = vld [vmem:[#allocation4 + $0xd8] sm:$0xff]
      %v7009 = vld [vmem:[#allocation4 + $0xe0] sm:$0xff]
      %v7010 = vld [vmem:[#allocation4 + $0xe8] sm:$0xff]
      %v7011 = vld [vmem:[#allocation4 + $0xf0] sm:$0xff]
      %v7012 = vld [vmem:[#allocation4 + $0xf8] sm:$0xff]
      %v7013 = vadd.f32 %v6981, %v6855
      %v7014 = vadd.f32 %v6982, %v6858
      %v7015 = vadd.f32 %v6983, %v6863
      %v7016 = vadd.f32 %v6984, %v6866
      %v7017 = vadd.f32 %v6985, %v6871
      %v7018 = vadd.f32 %v6986, %v6874
      %v7019 = vadd.f32 %v6987, %v6879
      %v7020 = vadd.f32 %v6988, %v6882
      %v7021 = vadd.f32 %v6989, %v6887
      %v7022 = vadd.f32 %v6990, %v6890
      %v7023 = vadd.f32 %v6991, %v6895
      %v7024 = vadd.f32 %v6992, %v6898
      %v7025 = vadd.f32 %v6993, %v6903
      %v7026 = vadd.f32 %v6994, %v6906
      %v7027 = vadd.f32 %v6995, %v6911
      %v7028 = vadd.f32 %v6996, %v6914
      %v7029 = vadd.f32 %v6997, %v6919
      %v7030 = vadd.f32 %v6998, %v6922
      %v7031 = vadd.f32 %v6999, %v6927
      %v7032 = vadd.f32 %v7000, %v6930
      %v7033 = vadd.f32 %v7001, %v6935
      %v7034 = vadd.f32 %v7002, %v6938
      %v7035 = vadd.f32 %v7003, %v6943
      %v7036 = vadd.f32 %v7004, %v6946
      %v7037 = vadd.f32 %v7005, %v6951
      %v7038 = vadd.f32 %v7006, %v6954
      %v7039 = vadd.f32 %v7007, %v6959
      %v7040 = vadd.f32 %v7008, %v6962
      %v7041 = vadd.f32 %v7009, %v6967
      %v7042 = vadd.f32 %v7010, %v6970
      %v7043 = vadd.f32 %v7011, %v6975
      %v7044 = vadd.f32 %v7012, %v6978
      %7045 = vst [vmem:[#allocation4] sm:$0xff] %v7013
      %7046 = vst [vmem:[#allocation4 + $0x8] sm:$0xff] %v7014
      %7047 = vst [vmem:[#allocation4 + $0x10] sm:$0xff] %v7015
      %7048 = vst [vmem:[#allocation4 + $0x18] sm:$0xff] %v7016
      %7049 = vst [vmem:[#allocation4 + $0x20] sm:$0xff] %v7017
      %7050 = vst [vmem:[#allocation4 + $0x28] sm:$0xff] %v7018
      %7051 = vst [vmem:[#allocation4 + $0x30] sm:$0xff] %v7019
      %7052 = vst [vmem:[#allocation4 + $0x38] sm:$0xff] %v7020
      %7053 = vst [vmem:[#allocation4 + $0x40] sm:$0xff] %v7021
      %7054 = vst [vmem:[#allocation4 + $0x48] sm:$0xff] %v7022
      %7055 = vst [vmem:[#allocation4 + $0x50] sm:$0xff] %v7023
      %7056 = vst [vmem:[#allocation4 + $0x58] sm:$0xff] %v7024
      %7057 = vst [vmem:[#allocation4 + $0x60] sm:$0xff] %v7025
      %7058 = vst [vmem:[#allocation4 + $0x68] sm:$0xff] %v7026
      %7059 = vst [vmem:[#allocation4 + $0x70] sm:$0xff] %v7027
      %7060 = vst [vmem:[#allocation4 + $0x78] sm:$0xff] %v7028
      %7061 = vst [vmem:[#allocation4 + $0x80] sm:$0xff] %v7029
      %7062 = vst [vmem:[#allocation4 + $0x88] sm:$0xff] %v7030
      %7063 = vst [vmem:[#allocation4 + $0x90] sm:$0xff] %v7031
      %7064 = vst [vmem:[#allocation4 + $0x98] sm:$0xff] %v7032
      %7065 = vst [vmem:[#allocation4 + $0xa0] sm:$0xff] %v7033
      %7066 = vst [vmem:[#allocation4 + $0xa8] sm:$0xff] %v7034
      %7067 = vst [vmem:[#allocation4 + $0xb0] sm:$0xff] %v7035
      %7068 = vst [vmem:[#allocation4 + $0xb8] sm:$0xff] %v7036
      %7069 = vst [vmem:[#allocation4 + $0xc0] sm:$0xff] %v7037
      %7070 = vst [vmem:[#allocation4 + $0xc8] sm:$0xff] %v7038
      %7071 = vst [vmem:[#allocation4 + $0xd0] sm:$0xff] %v7039
      %7072 = vst [vmem:[#allocation4 + $0xd8] sm:$0xff] %v7040
      %7073 = vst [vmem:[#allocation4 + $0xe0] sm:$0xff] %v7041
      %7074 = vst [vmem:[#allocation4 + $0xe8] sm:$0xff] %v7042
      %7075 = vst [vmem:[#allocation4 + $0xf0] sm:$0xff] %v7043
      %7076 = vst [vmem:[#allocation4 + $0xf8] sm:$0xff] %v7044
      %v7077 = vld [vmem:[#allocation4] sm:$0xff]
      %v7078 = vld [vmem:[#allocation4 + $0x8] sm:$0xff]
      %v7079 = vld [vmem:[#allocation4 + $0x10] sm:$0xff]
      %v7080 = vld [vmem:[#allocation4 + $0x18] sm:$0xff]
      %v7081 = vld [vmem:[#allocation4 + $0x20] sm:$0xff]
      %v7082 = vld [vmem:[#allocation4 + $0x28] sm:$0xff]
      %v7083 = vld [vmem:[#allocation4 + $0x30] sm:$0xff]
      %v7084 = vld [vmem:[#allocation4 + $0x38] sm:$0xff]
      %v7085 = vld [vmem:[#allocation4 + $0x40] sm:$0xff]
      %v7086 = vld [vmem:[#allocation4 + $0x48] sm:$0xff]
      %v7087 = vld [vmem:[#allocation4 + $0x50] sm:$0xff]
      %v7088 = vld [vmem:[#allocation4 + $0x58] sm:$0xff]
      %v7089 = vld [vmem:[#allocation4 + $0x60] sm:$0xff]
      %v7090 = vld [vmem:[#allocation4 + $0x68] sm:$0xff]
      %v7091 = vld [vmem:[#allocation4 + $0x70] sm:$0xff]
      %v7092 = vld [vmem:[#allocation4 + $0x78] sm:$0xff]
      %v7093 = vld [vmem:[#allocation4 + $0x80] sm:$0xff]
      %v7094 = vld [vmem:[#allocation4 + $0x88] sm:$0xff]
      %v7095 = vld [vmem:[#allocation4 + $0x90] sm:$0xff]
      %v7096 = vld [vmem:[#allocation4 + $0x98] sm:$0xff]
      %v7097 = vld [vmem:[#allocation4 + $0xa0] sm:$0xff]
      %v7098 = vld [vmem:[#allocation4 + $0xa8] sm:$0xff]
      %v7099 = vld [vmem:[#allocation4 + $0xb0] sm:$0xff]
      %v7100 = vld [vmem:[#allocation4 + $0xb8] sm:$0xff]
      %v7101 = vld [vmem:[#allocation4 + $0xc0] sm:$0xff]
      %v7102 = vld [vmem:[#allocation4 + $0xc8] sm:$0xff]
      %v7103 = vld [vmem:[#allocation4 + $0xd0] sm:$0xff]
      %v7104 = vld [vmem:[#allocation4 + $0xd8] sm:$0xff]
      %v7105 = vld [vmem:[#allocation4 + $0xe0] sm:$0xff]
      %v7106 = vld [vmem:[#allocation4 + $0xe8] sm:$0xff]
      %v7107 = vld [vmem:[#allocation4 + $0xf0] sm:$0xff]
      %v7108 = vld [vmem:[#allocation4 + $0xf8] sm:$0xff]
      %v7109 = vld [vmem:[%s4] sm:$0x1]
      %v7111 = vlaneseq
      %v7112 = vshrl.u32 %v7111, 7
      %v7113 = vsub.s32 0, %v7112
      %v7114 = vrot.slane %v7109, %v7113
      %v7116 = vadd.f32 %v7077, %v7114
      %v7117 = vadd.f32 %v7078, %v7114
      %v7118 = vadd.f32 %v7079, %v7114
      %v7119 = vadd.f32 %v7080, %v7114
      %v7120 = vadd.f32 %v7081, %v7114
      %v7121 = vadd.f32 %v7082, %v7114
      %v7122 = vadd.f32 %v7083, %v7114
      %v7123 = vadd.f32 %v7084, %v7114
      %v7124 = vadd.f32 %v7085, %v7114
      %v7125 = vadd.f32 %v7086, %v7114
      %v7126 = vadd.f32 %v7087, %v7114
      %v7127 = vadd.f32 %v7088, %v7114
      %v7128 = vadd.f32 %v7089, %v7114
      %v7129 = vadd.f32 %v7090, %v7114
      %v7130 = vadd.f32 %v7091, %v7114
      %v7131 = vadd.f32 %v7092, %v7114
      %v7132 = vadd.f32 %v7093, %v7114
      %v7133 = vadd.f32 %v7094, %v7114
      %v7134 = vadd.f32 %v7095, %v7114
      %v7135 = vadd.f32 %v7096, %v7114
      %v7136 = vadd.f32 %v7097, %v7114
      %v7137 = vadd.f32 %v7098, %v7114
      %v7138 = vadd.f32 %v7099, %v7114
      %v7139 = vadd.f32 %v7100, %v7114
      %v7140 = vadd.f32 %v7101, %v7114
      %v7141 = vadd.f32 %v7102, %v7114
      %v7142 = vadd.f32 %v7103, %v7114
      %v7143 = vadd.f32 %v7104, %v7114
      %v7144 = vadd.f32 %v7105, %v7114
      %v7145 = vadd.f32 %v7106, %v7114
      %v7146 = vadd.f32 %v7107, %v7114
      %v7147 = vadd.f32 %v7108, %v7114
      %v7148 = vld [vmem:[%s219] sm:$0xf]
      %v7149 = vld [vmem:[%s219 + $0x4] sm:$0xf]
      %v7150 = vld [vmem:[%s219 + $0x8] sm:$0xf]
      %v7151 = vld [vmem:[%s219 + $0xc] sm:$0xf]
      %v7152 = vld [vmem:[%s219 + $0x10] sm:$0xf]
      %v7153 = vld [vmem:[%s219 + $0x14] sm:$0xf]
      %v7154 = vld [vmem:[%s219 + $0x18] sm:$0xf]
      %v7155 = vld [vmem:[%s219 + $0x1c] sm:$0xf]
      %v7156 = vld [vmem:[%s219 + $0x20] sm:$0xf]
      %v7157 = vld [vmem:[%s219 + $0x24] sm:$0xf]
      %v7158 = vld [vmem:[%s219 + $0x28] sm:$0xf]
      %v7159 = vld [vmem:[%s219 + $0x2c] sm:$0xf]
      %v7160 = vld [vmem:[%s219 + $0x30] sm:$0xf]
      %v7161 = vld [vmem:[%s219 + $0x34] sm:$0xf]
      %v7162 = vld [vmem:[%s219 + $0x38] sm:$0xf]
      %v7163 = vld [vmem:[%s219 + $0x3c] sm:$0xf]
      %v7164 = vld [vmem:[%s219 + $0x40] sm:$0xf]
      %v7165 = vld [vmem:[%s219 + $0x44] sm:$0xf]
      %v7166 = vld [vmem:[%s219 + $0x48] sm:$0xf]
      %v7167 = vld [vmem:[%s219 + $0x4c] sm:$0xf]
      %v7168 = vld [vmem:[%s219 + $0x50] sm:$0xf]
      %v7169 = vld [vmem:[%s219 + $0x54] sm:$0xf]
      %v7170 = vld [vmem:[%s219 + $0x58] sm:$0xf]
      %v7171 = vld [vmem:[%s219 + $0x5c] sm:$0xf]
      %v7172 = vld [vmem:[%s219 + $0x60] sm:$0xf]
      %v7173 = vld [vmem:[%s219 + $0x64] sm:$0xf]
      %v7174 = vld [vmem:[%s219 + $0x68] sm:$0xf]
      %v7175 = vld [vmem:[%s219 + $0x6c] sm:$0xf]
      %v7176 = vld [vmem:[%s219 + $0x70] sm:$0xf]
      %v7177 = vld [vmem:[%s219 + $0x74] sm:$0xf]
      %v7178 = vld [vmem:[%s219 + $0x78] sm:$0xf]
      %v7179 = vld [vmem:[%s219 + $0x7c] sm:$0xf]
      %v7180 = vunpack.c.l.bf16 %v7148
      %v7181 = vunpack.c.l.bf16 %v7149
      %v7182 = vunpack.c.l.bf16 %v7150
      %v7183 = vunpack.c.l.bf16 %v7151
      %v7184 = vunpack.c.l.bf16 %v7152
      %v7185 = vunpack.c.l.bf16 %v7153
      %v7186 = vunpack.c.l.bf16 %v7154
      %v7187 = vunpack.c.l.bf16 %v7155
      %v7188 = vunpack.c.l.bf16 %v7156
      %v7189 = vunpack.c.l.bf16 %v7157
      %v7190 = vunpack.c.l.bf16 %v7158
      %v7191 = vunpack.c.l.bf16 %v7159
      %v7192 = vunpack.c.l.bf16 %v7160
      %v7193 = vunpack.c.l.bf16 %v7161
      %v7194 = vunpack.c.l.bf16 %v7162
      %v7195 = vunpack.c.l.bf16 %v7163
      %v7196 = vunpack.c.l.bf16 %v7164
      %v7197 = vunpack.c.l.bf16 %v7165
      %v7198 = vunpack.c.l.bf16 %v7166
      %v7199 = vunpack.c.l.bf16 %v7167
      %v7200 = vunpack.c.l.bf16 %v7168
      %v7201 = vunpack.c.l.bf16 %v7169
      %v7202 = vunpack.c.l.bf16 %v7170
      %v7203 = vunpack.c.l.bf16 %v7171
      %v7204 = vunpack.c.l.bf16 %v7172
      %v7205 = vunpack.c.l.bf16 %v7173
      %v7206 = vunpack.c.l.bf16 %v7174
      %v7207 = vunpack.c.l.bf16 %v7175
      %v7208 = vunpack.c.l.bf16 %v7176
      %v7209 = vunpack.c.l.bf16 %v7177
      %v7210 = vunpack.c.l.bf16 %v7178
      %v7211 = vunpack.c.l.bf16 %v7179
      %v7212 = vadd.f32 %v7116, %v7180
      %v7213 = vadd.f32 %v7117, %v7181
      %v7214 = vadd.f32 %v7118, %v7182
      %v7215 = vadd.f32 %v7119, %v7183
      %v7216 = vadd.f32 %v7120, %v7184
      %v7217 = vadd.f32 %v7121, %v7185
      %v7218 = vadd.f32 %v7122, %v7186
      %v7219 = vadd.f32 %v7123, %v7187
      %v7220 = vadd.f32 %v7124, %v7188
      %v7221 = vadd.f32 %v7125, %v7189
      %v7222 = vadd.f32 %v7126, %v7190
      %v7223 = vadd.f32 %v7127, %v7191
      %v7224 = vadd.f32 %v7128, %v7192
      %v7225 = vadd.f32 %v7129, %v7193
      %v7226 = vadd.f32 %v7130, %v7194
      %v7227 = vadd.f32 %v7131, %v7195
      %v7228 = vadd.f32 %v7132, %v7196
      %v7229 = vadd.f32 %v7133, %v7197
      %v7230 = vadd.f32 %v7134, %v7198
      %v7231 = vadd.f32 %v7135, %v7199
      %v7232 = vadd.f32 %v7136, %v7200
      %v7233 = vadd.f32 %v7137, %v7201
      %v7234 = vadd.f32 %v7138, %v7202
      %v7235 = vadd.f32 %v7139, %v7203
      %v7236 = vadd.f32 %v7140, %v7204
      %v7237 = vadd.f32 %v7141, %v7205
      %v7238 = vadd.f32 %v7142, %v7206
      %v7239 = vadd.f32 %v7143, %v7207
      %v7240 = vadd.f32 %v7144, %v7208
      %v7241 = vadd.f32 %v7145, %v7209
      %v7242 = vadd.f32 %v7146, %v7210
      %v7243 = vadd.f32 %v7147, %v7211
      %v7244 = vmax.f32 %v7212, 0.0
      %v7245 = vmax.f32 %v7213, 0.0
      %v7246 = vmax.f32 %v7214, 0.0
      %v7247 = vmax.f32 %v7215, 0.0
      %v7248 = vmax.f32 %v7216, 0.0
      %v7249 = vmax.f32 %v7217, 0.0
      %v7250 = vmax.f32 %v7218, 0.0
      %v7251 = vmax.f32 %v7219, 0.0
      %v7252 = vmax.f32 %v7220, 0.0
      %v7253 = vmax.f32 %v7221, 0.0
      %v7254 = vmax.f32 %v7222, 0.0
      %v7255 = vmax.f32 %v7223, 0.0
      %v7256 = vmax.f32 %v7224, 0.0
      %v7257 = vmax.f32 %v7225, 0.0
      %v7258 = vmax.f32 %v7226, 0.0
      %v7259 = vmax.f32 %v7227, 0.0
      %v7260 = vmax.f32 %v7228, 0.0
      %v7261 = vmax.f32 %v7229, 0.0
      %v7262 = vmax.f32 %v7230, 0.0
      %v7263 = vmax.f32 %v7231, 0.0
      %v7264 = vmax.f32 %v7232, 0.0
      %v7265 = vmax.f32 %v7233, 0.0
      %v7266 = vmax.f32 %v7234, 0.0
      %v7267 = vmax.f32 %v7235, 0.0
      %v7268 = vmax.f32 %v7236, 0.0
      %v7269 = vmax.f32 %v7237, 0.0
      %v7270 = vmax.f32 %v7238, 0.0
      %v7271 = vmax.f32 %v7239, 0.0
      %v7272 = vmax.f32 %v7240, 0.0
      %v7273 = vmax.f32 %v7241, 0.0
      %v7274 = vmax.f32 %v7242, 0.0
      %v7275 = vmax.f32 %v7243, 0.0
      %7276 = vst [vmem:[%s224] sm:$0xff] %v7244
      %7277 = vst [vmem:[%s224 + $0x8] sm:$0xff] %v7245
      %7278 = vst [vmem:[%s224 + $0x10] sm:$0xff] %v7246
      %7279 = vst [vmem:[%s224 + $0x18] sm:$0xff] %v7247
      %7280 = vst [vmem:[%s224 + $0x20] sm:$0xff] %v7248
      %7281 = vst [vmem:[%s224 + $0x28] sm:$0xff] %v7249
      %7282 = vst [vmem:[%s224 + $0x30] sm:$0xff] %v7250
      %7283 = vst [vmem:[%s224 + $0x38] sm:$0xff] %v7251
      %7284 = vst [vmem:[%s224 + $0x40] sm:$0xff] %v7252
      %7285 = vst [vmem:[%s224 + $0x48] sm:$0xff] %v7253
      %7286 = vst [vmem:[%s224 + $0x50] sm:$0xff] %v7254
      %7287 = vst [vmem:[%s224 + $0x58] sm:$0xff] %v7255
      %7288 = vst [vmem:[%s224 + $0x60] sm:$0xff] %v7256
      %7289 = vst [vmem:[%s224 + $0x68] sm:$0xff] %v7257
      %7290 = vst [vmem:[%s224 + $0x70] sm:$0xff] %v7258
      %7291 = vst [vmem:[%s224 + $0x78] sm:$0xff] %v7259
      %7292 = vst [vmem:[%s224 + $0x80] sm:$0xff] %v7260
      %7293 = vst [vmem:[%s224 + $0x88] sm:$0xff] %v7261
      %7294 = vst [vmem:[%s224 + $0x90] sm:$0xff] %v7262
      %7295 = vst [vmem:[%s224 + $0x98] sm:$0xff] %v7263
      %7296 = vst [vmem:[%s224 + $0xa0] sm:$0xff] %v7264
      %7297 = vst [vmem:[%s224 + $0xa8] sm:$0xff] %v7265
      %7298 = vst [vmem:[%s224 + $0xb0] sm:$0xff] %v7266
      %7299 = vst [vmem:[%s224 + $0xb8] sm:$0xff] %v7267
      %7300 = vst [vmem:[%s224 + $0xc0] sm:$0xff] %v7268
      %7301 = vst [vmem:[%s224 + $0xc8] sm:$0xff] %v7269
      %7302 = vst [vmem:[%s224 + $0xd0] sm:$0xff] %v7270
      %7303 = vst [vmem:[%s224 + $0xd8] sm:$0xff] %v7271
      %7304 = vst [vmem:[%s224 + $0xe0] sm:$0xff] %v7272
      %7305 = vst [vmem:[%s224 + $0xe8] sm:$0xff] %v7273
      %7306 = vst [vmem:[%s224 + $0xf0] sm:$0xff] %v7274
      %7307 = vst [vmem:[%s224 + $0xf8] sm:$0xff] %v7275
      %p7308 = scmp.lt.s32.totalorder %s16, 1
      %s7309 = scalar_select %p7308, %s16, 1
      %s7310 = smul.addr %s7309, 32
      %s7311 = smul.addr %s7310, 8
      %s7312 = scalar_lea.vmem %s5, %s7311
      // Predicated region
      $region41: #{basic_block_forward.1} parent=39 // pred_check
        %p7313 = pneg %p144
      $region42: #{basic_block_forward.1} parent=39 // pred_check_branch
        %7315 = sbr.rel (%p7313) target = $region44
      $region43: #{basic_block_forward.1} parent=39 // pred_region
        _
      $region44: #{basic_block_forward.1} parent=39 // pred_fallthru
        _
    $region40: #{basic_block_forward.1} parent=5 // pred_fallthru
      _
    %p7316 = scmp.le.s32.totalorder 2, %s11
    // Predicated region
    $region45: #{basic_block_forward.1} parent=5 // pred_check
      %p7317 = pneg %p7316
    $region46: #{basic_block_forward.1} parent=5 // pred_check_branch
      %7319 = sbr.rel (%p7317) target = $region48
    $region47: #{basic_block_forward.1} parent=5 // pred_region
      %s7320 = ssub.s32 %s11, 2
      // Predicated region
      $region49: #{basic_block_forward.1} parent=47 // pred_check
        %p7321 = pneg %p150
      $region50: #{basic_block_forward.1} parent=47 // pred_check_branch
        %7323 = sbr.rel (%p7321) target = $region52
      $region51: #{basic_block_forward.1} parent=47 // pred_region
        %p7324 = scmp.lt.s32.totalorder %s17, 1
        %s7325 = scalar_select %p7324, %s17, 1
        %s7326 = smul.addr %s7325, 32
        %s7327 = smul.addr %s7326, 8
        %s7328 = scalar_lea.vmem %s5, %s7327
      $region52: #{basic_block_forward.1} parent=47 // pred_fallthru
        _
    $region48: #{basic_block_forward.1} parent=5 // pred_fallthru
      _
  $region6: #{basic_block_forward.1} parent=0 // loop_footer
    %s15 = sadd.s32 1, %s11
  $region7: #{basic_block_forward.1} parent=0 // loop_footer_branch
    %10 = sbr.rel target = $region3
  $region8: #{basic_block_forward.1} parent=0 // loop_exit
    _

</llo_original>
